<compile_context>
chip_gen: v6e
topology: v6e:2x2x1
jax: 0.10.0
libtpu: 0.0.40
codegen_flags: <defaults>
</compile_context>

<pallas_src>
import functools
import math

import jax
import jax.numpy as jnp
from jax import lax
from jax.experimental import pallas as pl
from jax.experimental.pallas import tpu as pltpu


# ---------------- config (small, consistent with the module) ----------------
class Config:
    num_words = 64            # vocab size V
    word_embedding_dim = 128  # D
    num_heads = 4             # H
    query_vector_dim = 32     # Q (additive attention)
    drop_prob = 0.2
    num_words_title = 16      # T


# ------------------------------ Pallas kernel -------------------------------
def news_encoder_kernel(
    ids_ref,               # (M, 1)  int32  flattened (Bt*T) title word ids
    mask_ref,              # (M, D)  bf16   dropout scale mask {0, 1/(1-p)}
    emb_ref,               # (V, D)  f32    word embedding table (grid-invariant)
    wqkv_ref, bqkv_ref,    # (D, 3D) bf16, (1, 3D) f32   fused Q/K/V projection
    wo_ref, bo_ref,        # (D, D)  bf16, (1, D)  f32   output projection
    wa_ref, ba_ref,        # (D, Q)  bf16, (1, Q)  f32   additive attention proj
    qv_ref,                # (1, Q)  f32                 additive attention query
    o_ref,                 # (Bt, D) f32                 news vectors
    *, num_heads, num_words_title,
):
    M, _ = ids_ref.shape
    V, D = emb_ref.shape
    T = num_words_title
    Bt = M // T
    H = num_heads
    dh = D // H
    scale = 1.0 / math.sqrt(dh)
    f32, bf16 = jnp.float32, jnp.bfloat16

    # ---- embedding gather (exact one-hot MXU matmul) + dropout --------------
    # NOTE: one-hot gather is only sensible for small vocabularies where the
    # table is VMEM-resident (V=64 here); large vocabs should gather outside.
    onehot = (lax.broadcasted_iota(jnp.int32, (M, V), 1) == ids_ref[...]).astype(f32)
    x = jnp.dot(onehot, emb_ref[...], preferred_element_type=f32)          # (M, D) f32
    x = (x * mask_ref[...].astype(f32)).astype(bf16)                       # dropout

    # ---- fused QKV projection: one (M,D)@(D,3D) MXU matmul, f32 accumulate --
    qkv = jnp.dot(x, wqkv_ref[...], preferred_element_type=f32) + bqkv_ref[...]
    q3 = qkv[:, 0 * D:1 * D].astype(bf16).reshape(Bt, T, D)
    k3 = qkv[:, 1 * D:2 * D].astype(bf16).reshape(Bt, T, D)
    v3 = qkv[:, 2 * D:3 * D].astype(bf16).reshape(Bt, T, D)

    # ---- multi-head self-attention (batched over titles, no .T) -------------
    ctx_heads = []
    for h in range(H):                         # static, unrolled (H = 4)
        lo = h * dh
        qh = q3[:, :, lo:lo + dh]              # (Bt, T, dh) bf16
        kh = k3[:, :, lo:lo + dh]
        vh = v3[:, :, lo:lo + dh]
        s = jnp.einsum("bqd,bkd->bqk", qh, kh,
                       preferred_element_type=f32) * scale                 # (Bt,T,T)
        s = s - jnp.max(s, axis=-1, keepdims=True)
        p = jnp.exp(s)
        p = p / jnp.sum(p, axis=-1, keepdims=True)                         # f32 softmax
        ctx_h = jnp.einsum("bqk,bkd->bqd", p.astype(bf16), vh,
                           preferred_element_type=f32)                     # (Bt,T,dh)
        ctx_heads.append(ctx_h.reshape(M, dh).astype(bf16))
    # lane-concat the heads -> ONE K=128 output-projection matmul (v6e/v7x MXU
    # depth fully used instead of four K=32 issues).
    ctx = jnp.concatenate(ctx_heads, axis=-1)                              # (M, D) bf16
    attn_out = jnp.dot(ctx, wo_ref[...], preferred_element_type=f32) + bo_ref[...]

    # ---- additive attention over the title words ----------------------------
    t = jnp.tanh(jnp.dot(attn_out.astype(bf16), wa_ref[...],
                         preferred_element_type=f32) + ba_ref[...])        # (M, Q)
    sc = jnp.sum(t * qv_ref[...], axis=-1, keepdims=True)                  # (M, 1) VPU
    sc = sc.reshape(Bt, T, 1)
    sc = sc - jnp.max(sc, axis=1, keepdims=True)
    w = jnp.exp(sc)
    w = w / jnp.sum(w, axis=1, keepdims=True)                              # (Bt, T, 1)
    o_ref[...] = jnp.sum(w * attn_out.reshape(Bt, T, D), axis=1).astype(o_ref.dtype)


# --------------------------------- glue --------------------------------------
def _dropout_scale_mask(key, shape, p):
    """F.dropout(training=True) semantics: 0 w.p. p, else 1/(1-p)."""
    # TODO(synk): mask uses jax.random (same Bernoulli/scale semantics as
    # F.dropout); bitwise-identical torch RNG reproduction has no equivalent.
    keep = jax.random.bernoulli(key, 1.0 - p, shape)
    return keep.astype(jnp.float32) / (1.0 - p)


def _pick_batch_tile(B, T):
    """Rows (= Bt*T) per grid step: >=256 when possible (fills the 256-deep MXU
    on v6e/v7x), at most 2 steps for moderate batches (one per v7x TC), rows
    capped at ~1024/step to bound in-kernel f32 temporaries."""
    rows = B * T
    if rows <= 512:
        n_tiles = 1
    else:
        n_tiles = max(2, pl.cdiv(rows, 1024))
    return ((pl.cdiv(B, n_tiles) + 7) // 8) * 8      # multiple of 8 sublanes


@functools.partial(jax.jit, static_argnames=("num_heads", "drop_prob", "training"))
def _news_encoder_jit(title_ids, kp, dropout_key, *, num_heads, drop_prob, training):
    B, T = title_ids.shape
    V, D = kp["emb"].shape
    Q = kp["wa"].shape[1]

    Bt = _pick_batch_tile(B, T)
    n_tiles = pl.cdiv(B, Bt)
    B_pad = n_tiles * Bt
    M = Bt * T

    if training and drop_prob > 0.0:
        mask = _dropout_scale_mask(dropout_key, (B, T, D), drop_prob).astype(jnp.bfloat16)
    else:
        mask = jnp.ones((B, T, D), jnp.bfloat16)

    ids = title_ids.astype(jnp.int32)
    if B_pad != B:
        ids = jnp.pad(ids, ((0, B_pad - B), (0, 0)))          # pad rows -> word 0 (padding_idx)
        mask = jnp.pad(mask, ((0, B_pad - B), (0, 0), (0, 0)))
    ids_flat = ids.reshape(B_pad * T, 1)
    mask_flat = mask.reshape(B_pad * T, D)

    kernel = functools.partial(news_encoder_kernel,
                               num_heads=num_heads, num_words_title=T)
    inv = lambda shape: pl.BlockSpec(shape, lambda b: tuple(0 for _ in shape))

    out = pl.pallas_call(
        kernel,
        out_shape=jax.ShapeDtypeStruct((B_pad, D), jnp.float32),
        grid=(n_tiles,),
        in_specs=[
            pl.BlockSpec((M, 1), lambda b: (b, 0)),           # title ids (per tile)
            pl.BlockSpec((M, D), lambda b: (b, 0)),           # dropout scale mask
            inv((V, D)),                                      # embedding table
            inv((D, 3 * D)), inv((1, 3 * D)),                 # fused W_qkv, b_qkv
            inv((D, D)), inv((1, D)),                         # Wo, bo
            inv((D, Q)), inv((1, Q)),                         # Wa, ba
            inv((1, Q)),                                      # additive query
        ],
        out_specs=pl.BlockSpec((Bt, D), lambda b: (b, 0)),
        compiler_params=pltpu.CompilerParams(
            dimension_semantics=("parallel",),                # 2 tiles -> both v7x TCs
        ),
    )(ids_flat, mask_flat, kp["emb"], kp["w_qkv"], kp["b_qkv"],
      kp["wo"], kp["bo"], kp["wa"], kp["ba"], kp["qv"])
    return out[:B]


def news_encoder_forward(title_ids, kparams, config: Config, *,
                         dropout_key=None, training=True):
    """title_ids: (B, T) int32 -> (B, D) float32 (fully jitted path)."""
    if dropout_key is None:
        dropout_key = jax.random.PRNGKey(0)
    return _news_encoder_jit(title_ids, kparams, dropout_key,
                             num_heads=config.num_heads,
                             drop_prob=float(config.drop_prob),
                             training=bool(training))


def prepare_params(params):
    """One-time weight prep (hoisted out of the per-call path)."""
    return dict(
        emb=params["emb"].astype(jnp.float32),
        w_qkv=jnp.concatenate([params["wq"], params["wk"], params["wv"]],
                              axis=1).astype(jnp.bfloat16),        # (D, 3D)
        b_qkv=jnp.concatenate([params["bq"], params["bk"], params["bv"]],
                              axis=1).astype(jnp.float32),         # (1, 3D)
        wo=params["wo"].astype(jnp.bfloat16), bo=params["bo"].astype(jnp.float32),
        wa=params["wa"].astype(jnp.bfloat16), ba=params["ba"].astype(jnp.float32),
        qv=params["qv"].astype(jnp.float32),
    )


# ------------------------- pure-JAX reference ---------------------------------
def news_encoder_reference(x, params, config: Config):
    """x: (B, T, D) post-dropout f32 activations."""
    B, T, D = x.shape
    H = config.num_heads
    dh = D // H
    q = x @ params["wq"] + params["bq"]
    k = x @ params["wk"] + params["bk"]
    v = x @ params["wv"] + params["bv"]
    qh = q.reshape(B, T, H, dh)
    kh = k.reshape(B, T, H, dh)
    vh = v.reshape(B, T, H, dh)
    s = jnp.einsum("bqhd,bkhd->bhqk", qh, kh) / math.sqrt(dh)
    p = jax.nn.softmax(s, axis=-1)
    ctx = jnp.einsum("bhqk,bkhd->bqhd", p, vh).reshape(B, T, D)
    attn_out = ctx @ params["wo"] + params["bo"]
    t = jnp.tanh(attn_out @ params["wa"] + params["ba"])
    sc = jnp.sum(t * params["qv"], axis=-1)                   # (B, T)
    w = jax.nn.softmax(sc, axis=-1)
    return jnp.einsum("bt,btd->bd", w, attn_out)


# ------------------------- deterministic params ------------------------------
def init_params(config: Config, key):
    D, Q, V = config.word_embedding_dim, config.query_vector_dim, config.num_words
    ks = jax.random.split(key, 9)
    n = lambda k, shape, s=0.02: (s * jax.random.normal(k, shape)).astype(jnp.float32)

    emb = n(ks[0], (V, D), 1.0)
    emb = emb.at[0].set(0.0)          # padding_idx = 0

    return dict(
        emb=emb,
        # projections stored as (D_in, D_out), i.e. torch W.T
        wq=n(ks[1], (D, D)), bq=jnp.zeros((1, D), jnp.float32),
        wk=n(ks[2], (D, D)), bk=jnp.zeros((1, D), jnp.float32),
        wv=n(ks[3], (D, D)), bv=jnp.zeros((1, D), jnp.float32),
        wo=n(ks[4], (D, D)), bo=n(ks[5], (1, D)),
        wa=n(ks[6], (D, Q)), ba=n(ks[7], (1, Q)),
        qv=(0.1 * (2.0 * jax.random.uniform(ks[8], (1, Q)) - 1.0)).astype(jnp.float32),
    )


# ----------------------------------- main ------------------------------------
if __name__ == "__main__":
    cfg = Config()
    key = jax.random.PRNGKey(0)
    k_param, k_title, k_drop = jax.random.split(key, 3)

    params = init_params(cfg, k_param)
    kparams = prepare_params(params)          # one-time fused bf16 weights

    B, T = 16, cfg.num_words_title
    title = jax.random.randint(k_title, (B, T), 0, cfg.num_words, dtype=jnp.int32)

    out = news_encoder_forward(title, kparams, cfg, dropout_key=k_drop, training=True)
    out = jax.block_until_ready(out)

    assert out.shape == (B, cfg.word_embedding_dim)
    assert bool(jnp.all(jnp.isfinite(out)))

    # Correctness check against a pure-JAX f32 reference using the SAME
    # dropout mask (loose tol: kernel uses bf16 MXU operands).
    D = cfg.word_embedding_dim
    mask = _dropout_scale_mask(k_drop, (B, T, D), cfg.drop_prob)
    x_act = jnp.take(params["emb"], title, axis=0) * mask
    ref = news_encoder_reference(x_act, params, cfg)
    err = float(jnp.max(jnp.abs(out - ref)))
    assert err < 3e-2, f"kernel/reference mismatch: max abs err {err}"

    print("KERNEL_OK")
</pallas_src>

<mosaic_0001>
module attributes {stable_mosaic.version = 11 : i64} {
  func.func @news_encoder_kernel(%arg0: i32, %arg1: memref<256x1xi32, #tpu.memory_space<vmem>>, %arg2: memref<256x128xbf16, #tpu.memory_space<vmem>>, %arg3: memref<64x128xf32, #tpu.memory_space<vmem>>, %arg4: memref<128x384xbf16, #tpu.memory_space<vmem>>, %arg5: memref<1x384xf32, #tpu.memory_space<vmem>>, %arg6: memref<128x128xbf16, #tpu.memory_space<vmem>>, %arg7: memref<1x128xf32, #tpu.memory_space<vmem>>, %arg8: memref<128x32xbf16, #tpu.memory_space<vmem>>, %arg9: memref<1x32xf32, #tpu.memory_space<vmem>>, %arg10: memref<1x32xf32, #tpu.memory_space<vmem>>, %arg11: memref<16x128xf32, #tpu.memory_space<vmem>>) attributes {dimension_semantics = [#tpu.dimension_semantics<parallel>], iteration_bounds = array<i64: 1>, scalar_prefetch = 0 : i64, scratch_operands = 0 : i64, tpu.core_type = #tpu.core_type<tc>, window_params = [{transform_indices = @transform_0, window_bounds = array<i64: 256, 1>}, {transform_indices = @transform_1, window_bounds = array<i64: 256, 128>}, {pipeline_mode = #tpu.pipeline_mode<synchronous>, transform_indices = @transform_2, window_bounds = array<i64: 64, 128>}, {pipeline_mode = #tpu.pipeline_mode<synchronous>, transform_indices = @transform_3, window_bounds = array<i64: 128, 384>}, {pipeline_mode = #tpu.pipeline_mode<synchronous>, transform_indices = @transform_4, window_bounds = array<i64: 1, 384>}, {pipeline_mode = #tpu.pipeline_mode<synchronous>, transform_indices = @transform_5, window_bounds = array<i64: 128, 128>}, {pipeline_mode = #tpu.pipeline_mode<synchronous>, transform_indices = @transform_6, window_bounds = array<i64: 1, 128>}, {pipeline_mode = #tpu.pipeline_mode<synchronous>, transform_indices = @transform_7, window_bounds = array<i64: 128, 32>}, {pipeline_mode = #tpu.pipeline_mode<synchronous>, transform_indices = @transform_8, window_bounds = array<i64: 1, 32>}, {pipeline_mode = #tpu.pipeline_mode<synchronous>, transform_indices = @transform_9, window_bounds = array<i64: 1, 32>}, {transform_indices = @transform_10, window_bounds = array<i64: 16, 128>}]} {
    %0 = tpu.iota {dimensions = array<i32: 1>} : vector<256x64xi32>
    %c0 = arith.constant 0 : index
    %c0_0 = arith.constant 0 : index
    %1 = vector.load %arg1[%c0, %c0_0] : memref<256x1xi32, #tpu.memory_space<vmem>>, vector<256x1xi32>
    %2 = vector.broadcast %1 : vector<256x1xi32> to vector<256x64xi32>
    %3 = arith.cmpi eq, %0, %2 : vector<256x64xi32>
    %4 = arith.extui %3 : vector<256x64xi1> to vector<256x64xi32>
    %5 = arith.sitofp %4 : vector<256x64xi32> to vector<256x64xf32>
    %c0_1 = arith.constant 0 : index
    %c0_2 = arith.constant 0 : index
    %6 = vector.load %arg3[%c0_1, %c0_2] : memref<64x128xf32, #tpu.memory_space<vmem>>, vector<64x128xf32>
    %cst = arith.constant dense<0.000000e+00> : vector<256x128xf32>
    %7 = tpu.matmul %5, %6, %cst {dimension_numbers = #tpu.dot_dimension_numbers<[1], [0], [0], [1], [0, 0, 1, 1], [], []>} : vector<256x64xf32>, vector<64x128xf32>, vector<256x128xf32> -> vector<256x128xf32>
    %c0_3 = arith.constant 0 : index
    %c0_4 = arith.constant 0 : index
    %8 = vector.load %arg2[%c0_3, %c0_4] : memref<256x128xbf16, #tpu.memory_space<vmem>>, vector<256x128xbf16>
    %9 = arith.extf %8 : vector<256x128xbf16> to vector<256x128xf32>
    %10 = arith.mulf %7, %9 : vector<256x128xf32>
    %11 = arith.truncf %10 : vector<256x128xf32> to vector<256x128xbf16>
    %c0_5 = arith.constant 0 : index
    %c0_6 = arith.constant 0 : index
    %12 = vector.load %arg4[%c0_5, %c0_6] : memref<128x384xbf16, #tpu.memory_space<vmem>>, vector<128x384xbf16>
    %cst_7 = arith.constant dense<0.000000e+00> : vector<256x384xf32>
    %13 = tpu.matmul %11, %12, %cst_7 {dimension_numbers = #tpu.dot_dimension_numbers<[1], [0], [0], [1], [0, 0, 1, 1], [], []>} : vector<256x128xbf16>, vector<128x384xbf16>, vector<256x384xf32> -> vector<256x384xf32>
    %c0_8 = arith.constant 0 : index
    %c0_9 = arith.constant 0 : index
    %14 = vector.load %arg5[%c0_8, %c0_9] : memref<1x384xf32, #tpu.memory_space<vmem>>, vector<1x384xf32>
    %15 = vector.broadcast %14 : vector<1x384xf32> to vector<256x384xf32>
    %16 = arith.addf %13, %15 : vector<256x384xf32>
    %17 = vector.extract_strided_slice %16 {offsets = [0, 0], sizes = [256, 128], strides = [1, 1]} : vector<256x384xf32> to vector<256x128xf32>
    %18 = arith.truncf %17 : vector<256x128xf32> to vector<256x128xbf16>
    %19 = vector.shape_cast %18 : vector<256x128xbf16> to vector<16x16x128xbf16>
    %20 = vector.extract_strided_slice %16 {offsets = [0, 128], sizes = [256, 128], strides = [1, 1]} : vector<256x384xf32> to vector<256x128xf32>
    %21 = arith.truncf %20 : vector<256x128xf32> to vector<256x128xbf16>
    %22 = vector.shape_cast %21 : vector<256x128xbf16> to vector<16x16x128xbf16>
    %23 = vector.extract_strided_slice %16 {offsets = [0, 256], sizes = [256, 128], strides = [1, 1]} : vector<256x384xf32> to vector<256x128xf32>
    %24 = arith.truncf %23 : vector<256x128xf32> to vector<256x128xbf16>
    %25 = vector.shape_cast %24 : vector<256x128xbf16> to vector<16x16x128xbf16>
    %26 = vector.extract_strided_slice %19 {offsets = [0, 0, 0], sizes = [16, 16, 32], strides = [1, 1, 1]} : vector<16x16x128xbf16> to vector<16x16x32xbf16>
    %27 = vector.extract_strided_slice %22 {offsets = [0, 0, 0], sizes = [16, 16, 32], strides = [1, 1, 1]} : vector<16x16x128xbf16> to vector<16x16x32xbf16>
    %28 = vector.extract_strided_slice %25 {offsets = [0, 0, 0], sizes = [16, 16, 32], strides = [1, 1, 1]} : vector<16x16x128xbf16> to vector<16x16x32xbf16>
    "tpu.trace_start"() <{level = 10 : i32, message = "bqd,bkd->bqk"}> : () -> ()
    %cst_10 = arith.constant dense<0.000000e+00> : vector<16x16x16xf32>
    %29 = tpu.matmul %26, %27, %cst_10 {dimension_numbers = #tpu.dot_dimension_numbers<[2], [2], [1], [1], [0, 0, 0, 1, 1, 1], [0], [0]>} : vector<16x16x32xbf16>, vector<16x16x32xbf16>, vector<16x16x16xf32> -> vector<16x16x16xf32>
    "tpu.trace_stop"() : () -> ()
    %cst_11 = arith.constant 0.176776692 : f32
    %30 = vector.broadcast %cst_11 : f32 to vector<16x16x16xf32>
    %31 = arith.mulf %29, %30 : vector<16x16x16xf32>
    %cst_12 = arith.constant dense<0xFF800000> : vector<16x16xf32>
    %32 = vector.multi_reduction <maximumf>, %31, %cst_12 [2] : vector<16x16x16xf32> to vector<16x16xf32>
    %33 = vector.shape_cast %32 : vector<16x16xf32> to vector<16x16x1xf32>
    %34 = vector.broadcast %33 : vector<16x16x1xf32> to vector<16x16x16xf32>
    %35 = arith.subf %31, %34 : vector<16x16x16xf32>
    %36 = math.exp %35 : vector<16x16x16xf32>
    %cst_13 = arith.constant dense<0.000000e+00> : vector<16x16xf32>
    %37 = vector.multi_reduction <add>, %36, %cst_13 [2] : vector<16x16x16xf32> to vector<16x16xf32>
    %38 = vector.shape_cast %37 : vector<16x16xf32> to vector<16x16x1xf32>
    %39 = vector.broadcast %38 : vector<16x16x1xf32> to vector<16x16x16xf32>
    %40 = arith.divf %36, %39 : vector<16x16x16xf32>
    %41 = arith.truncf %40 : vector<16x16x16xf32> to vector<16x16x16xbf16>
    "tpu.trace_start"() <{level = 10 : i32, message = "bqk,bkd->bqd"}> : () -> ()
    %cst_14 = arith.constant dense<0.000000e+00> : vector<16x16x32xf32>
    %42 = tpu.matmul %41, %28, %cst_14 {dimension_numbers = #tpu.dot_dimension_numbers<[2], [1], [1], [2], [0, 0, 0, 1, 1, 2], [0], [0]>} : vector<16x16x16xbf16>, vector<16x16x32xbf16>, vector<16x16x32xf32> -> vector<16x16x32xf32>
    "tpu.trace_stop"() : () -> ()
    %43 = vector.shape_cast %42 : vector<16x16x32xf32> to vector<256x32xf32>
    %44 = arith.truncf %43 : vector<256x32xf32> to vector<256x32xbf16>
    %45 = vector.extract_strided_slice %19 {offsets = [0, 0, 32], sizes = [16, 16, 32], strides = [1, 1, 1]} : vector<16x16x128xbf16> to vector<16x16x32xbf16>
    %46 = vector.extract_strided_slice %22 {offsets = [0, 0, 32], sizes = [16, 16, 32], strides = [1, 1, 1]} : vector<16x16x128xbf16> to vector<16x16x32xbf16>
    %47 = vector.extract_strided_slice %25 {offsets = [0, 0, 32], sizes = [16, 16, 32], strides = [1, 1, 1]} : vector<16x16x128xbf16> to vector<16x16x32xbf16>
    "tpu.trace_start"() <{level = 10 : i32, message = "bqd,bkd->bqk"}> : () -> ()
    %cst_15 = arith.constant dense<0.000000e+00> : vector<16x16x16xf32>
    %48 = tpu.matmul %45, %46, %cst_15 {dimension_numbers = #tpu.dot_dimension_numbers<[2], [2], [1], [1], [0, 0, 0, 1, 1, 1], [0], [0]>} : vector<16x16x32xbf16>, vector<16x16x32xbf16>, vector<16x16x16xf32> -> vector<16x16x16xf32>
    "tpu.trace_stop"() : () -> ()
    %cst_16 = arith.constant 0.176776692 : f32
    %49 = vector.broadcast %cst_16 : f32 to vector<16x16x16xf32>
    %50 = arith.mulf %48, %49 : vector<16x16x16xf32>
    %cst_17 = arith.constant dense<0xFF800000> : vector<16x16xf32>
    %51 = vector.multi_reduction <maximumf>, %50, %cst_17 [2] : vector<16x16x16xf32> to vector<16x16xf32>
    %52 = vector.shape_cast %51 : vector<16x16xf32> to vector<16x16x1xf32>
    %53 = vector.broadcast %52 : vector<16x16x1xf32> to vector<16x16x16xf32>
    %54 = arith.subf %50, %53 : vector<16x16x16xf32>
    %55 = math.exp %54 : vector<16x16x16xf32>
    %cst_18 = arith.constant dense<0.000000e+00> : vector<16x16xf32>
    %56 = vector.multi_reduction <add>, %55, %cst_18 [2] : vector<16x16x16xf32> to vector<16x16xf32>
    %57 = vector.shape_cast %56 : vector<16x16xf32> to vector<16x16x1xf32>
    %58 = vector.broadcast %57 : vector<16x16x1xf32> to vector<16x16x16xf32>
    %59 = arith.divf %55, %58 : vector<16x16x16xf32>
    %60 = arith.truncf %59 : vector<16x16x16xf32> to vector<16x16x16xbf16>
    "tpu.trace_start"() <{level = 10 : i32, message = "bqk,bkd->bqd"}> : () -> ()
    %cst_19 = arith.constant dense<0.000000e+00> : vector<16x16x32xf32>
    %61 = tpu.matmul %60, %47, %cst_19 {dimension_numbers = #tpu.dot_dimension_numbers<[2], [1], [1], [2], [0, 0, 0, 1, 1, 2], [0], [0]>} : vector<16x16x16xbf16>, vector<16x16x32xbf16>, vector<16x16x32xf32> -> vector<16x16x32xf32>
    "tpu.trace_stop"() : () -> ()
    %62 = vector.shape_cast %61 : vector<16x16x32xf32> to vector<256x32xf32>
    %63 = arith.truncf %62 : vector<256x32xf32> to vector<256x32xbf16>
    %64 = vector.extract_strided_slice %19 {offsets = [0, 0, 64], sizes = [16, 16, 32], strides = [1, 1, 1]} : vector<16x16x128xbf16> to vector<16x16x32xbf16>
    %65 = vector.extract_strided_slice %22 {offsets = [0, 0, 64], sizes = [16, 16, 32], strides = [1, 1, 1]} : vector<16x16x128xbf16> to vector<16x16x32xbf16>
    %66 = vector.extract_strided_slice %25 {offsets = [0, 0, 64], sizes = [16, 16, 32], strides = [1, 1, 1]} : vector<16x16x128xbf16> to vector<16x16x32xbf16>
    "tpu.trace_start"() <{level = 10 : i32, message = "bqd,bkd->bqk"}> : () -> ()
    %cst_20 = arith.constant dense<0.000000e+00> : vector<16x16x16xf32>
    %67 = tpu.matmul %64, %65, %cst_20 {dimension_numbers = #tpu.dot_dimension_numbers<[2], [2], [1], [1], [0, 0, 0, 1, 1, 1], [0], [0]>} : vector<16x16x32xbf16>, vector<16x16x32xbf16>, vector<16x16x16xf32> -> vector<16x16x16xf32>
    "tpu.trace_stop"() : () -> ()
    %cst_21 = arith.constant 0.176776692 : f32
    %68 = vector.broadcast %cst_21 : f32 to vector<16x16x16xf32>
    %69 = arith.mulf %67, %68 : vector<16x16x16xf32>
    %cst_22 = arith.constant dense<0xFF800000> : vector<16x16xf32>
    %70 = vector.multi_reduction <maximumf>, %69, %cst_22 [2] : vector<16x16x16xf32> to vector<16x16xf32>
    %71 = vector.shape_cast %70 : vector<16x16xf32> to vector<16x16x1xf32>
    %72 = vector.broadcast %71 : vector<16x16x1xf32> to vector<16x16x16xf32>
    %73 = arith.subf %69, %72 : vector<16x16x16xf32>
    %74 = math.exp %73 : vector<16x16x16xf32>
    %cst_23 = arith.constant dense<0.000000e+00> : vector<16x16xf32>
    %75 = vector.multi_reduction <add>, %74, %cst_23 [2] : vector<16x16x16xf32> to vector<16x16xf32>
    %76 = vector.shape_cast %75 : vector<16x16xf32> to vector<16x16x1xf32>
    %77 = vector.broadcast %76 : vector<16x16x1xf32> to vector<16x16x16xf32>
    %78 = arith.divf %74, %77 : vector<16x16x16xf32>
    %79 = arith.truncf %78 : vector<16x16x16xf32> to vector<16x16x16xbf16>
    "tpu.trace_start"() <{level = 10 : i32, message = "bqk,bkd->bqd"}> : () -> ()
    %cst_24 = arith.constant dense<0.000000e+00> : vector<16x16x32xf32>
    %80 = tpu.matmul %79, %66, %cst_24 {dimension_numbers = #tpu.dot_dimension_numbers<[2], [1], [1], [2], [0, 0, 0, 1, 1, 2], [0], [0]>} : vector<16x16x16xbf16>, vector<16x16x32xbf16>, vector<16x16x32xf32> -> vector<16x16x32xf32>
    "tpu.trace_stop"() : () -> ()
    %81 = vector.shape_cast %80 : vector<16x16x32xf32> to vector<256x32xf32>
    %82 = arith.truncf %81 : vector<256x32xf32> to vector<256x32xbf16>
    %83 = vector.extract_strided_slice %19 {offsets = [0, 0, 96], sizes = [16, 16, 32], strides = [1, 1, 1]} : vector<16x16x128xbf16> to vector<16x16x32xbf16>
    %84 = vector.extract_strided_slice %22 {offsets = [0, 0, 96], sizes = [16, 16, 32], strides = [1, 1, 1]} : vector<16x16x128xbf16> to vector<16x16x32xbf16>
    %85 = vector.extract_strided_slice %25 {offsets = [0, 0, 96], sizes = [16, 16, 32], strides = [1, 1, 1]} : vector<16x16x128xbf16> to vector<16x16x32xbf16>
    "tpu.trace_start"() <{level = 10 : i32, message = "bqd,bkd->bqk"}> : () -> ()
    %cst_25 = arith.constant dense<0.000000e+00> : vector<16x16x16xf32>
    %86 = tpu.matmul %83, %84, %cst_25 {dimension_numbers = #tpu.dot_dimension_numbers<[2], [2], [1], [1], [0, 0, 0, 1, 1, 1], [0], [0]>} : vector<16x16x32xbf16>, vector<16x16x32xbf16>, vector<16x16x16xf32> -> vector<16x16x16xf32>
    "tpu.trace_stop"() : () -> ()
    %cst_26 = arith.constant 0.176776692 : f32
    %87 = vector.broadcast %cst_26 : f32 to vector<16x16x16xf32>
    %88 = arith.mulf %86, %87 : vector<16x16x16xf32>
    %cst_27 = arith.constant dense<0xFF800000> : vector<16x16xf32>
    %89 = vector.multi_reduction <maximumf>, %88, %cst_27 [2] : vector<16x16x16xf32> to vector<16x16xf32>
    %90 = vector.shape_cast %89 : vector<16x16xf32> to vector<16x16x1xf32>
    %91 = vector.broadcast %90 : vector<16x16x1xf32> to vector<16x16x16xf32>
    %92 = arith.subf %88, %91 : vector<16x16x16xf32>
    %93 = math.exp %92 : vector<16x16x16xf32>
    %cst_28 = arith.constant dense<0.000000e+00> : vector<16x16xf32>
    %94 = vector.multi_reduction <add>, %93, %cst_28 [2] : vector<16x16x16xf32> to vector<16x16xf32>
    %95 = vector.shape_cast %94 : vector<16x16xf32> to vector<16x16x1xf32>
    %96 = vector.broadcast %95 : vector<16x16x1xf32> to vector<16x16x16xf32>
    %97 = arith.divf %93, %96 : vector<16x16x16xf32>
    %98 = arith.truncf %97 : vector<16x16x16xf32> to vector<16x16x16xbf16>
    "tpu.trace_start"() <{level = 10 : i32, message = "bqk,bkd->bqd"}> : () -> ()
    %cst_29 = arith.constant dense<0.000000e+00> : vector<16x16x32xf32>
    %99 = tpu.matmul %98, %85, %cst_29 {dimension_numbers = #tpu.dot_dimension_numbers<[2], [1], [1], [2], [0, 0, 0, 1, 1, 2], [0], [0]>} : vector<16x16x16xbf16>, vector<16x16x32xbf16>, vector<16x16x32xf32> -> vector<16x16x32xf32>
    "tpu.trace_stop"() : () -> ()
    %100 = vector.shape_cast %99 : vector<16x16x32xf32> to vector<256x32xf32>
    %101 = arith.truncf %100 : vector<256x32xf32> to vector<256x32xbf16>
    %102 = tpu.concatenate %44, %63, %82, %101 in 1 : vector<256x32xbf16>, vector<256x32xbf16>, vector<256x32xbf16>, vector<256x32xbf16> -> vector<256x128xbf16>
    %c0_30 = arith.constant 0 : index
    %c0_31 = arith.constant 0 : index
    %103 = vector.load %arg6[%c0_30, %c0_31] : memref<128x128xbf16, #tpu.memory_space<vmem>>, vector<128x128xbf16>
    %cst_32 = arith.constant dense<0.000000e+00> : vector<256x128xf32>
    %104 = tpu.matmul %102, %103, %cst_32 {dimension_numbers = #tpu.dot_dimension_numbers<[1], [0], [0], [1], [0, 0, 1, 1], [], []>} : vector<256x128xbf16>, vector<128x128xbf16>, vector<256x128xf32> -> vector<256x128xf32>
    %c0_33 = arith.constant 0 : index
    %c0_34 = arith.constant 0 : index
    %105 = vector.load %arg7[%c0_33, %c0_34] : memref<1x128xf32, #tpu.memory_space<vmem>>, vector<1x128xf32>
    %106 = vector.broadcast %105 : vector<1x128xf32> to vector<256x128xf32>
    %107 = arith.addf %104, %106 : vector<256x128xf32>
    %108 = arith.truncf %107 : vector<256x128xf32> to vector<256x128xbf16>
    %c0_35 = arith.constant 0 : index
    %c0_36 = arith.constant 0 : index
    %109 = vector.load %arg8[%c0_35, %c0_36] : memref<128x32xbf16, #tpu.memory_space<vmem>>, vector<128x32xbf16>
    %cst_37 = arith.constant dense<0.000000e+00> : vector<256x32xf32>
    %110 = tpu.matmul %108, %109, %cst_37 {dimension_numbers = #tpu.dot_dimension_numbers<[1], [0], [0], [1], [0, 0, 1, 1], [], []>} : vector<256x128xbf16>, vector<128x32xbf16>, vector<256x32xf32> -> vector<256x32xf32>
    %c0_38 = arith.constant 0 : index
    %c0_39 = arith.constant 0 : index
    %111 = vector.load %arg9[%c0_38, %c0_39] : memref<1x32xf32, #tpu.memory_space<vmem>>, vector<1x32xf32>
    %112 = vector.broadcast %111 : vector<1x32xf32> to vector<256x32xf32>
    %113 = arith.addf %110, %112 : vector<256x32xf32>
    %114 = math.tanh %113 : vector<256x32xf32>
    %c0_40 = arith.constant 0 : index
    %c0_41 = arith.constant 0 : index
    %115 = vector.load %arg10[%c0_40, %c0_41] : memref<1x32xf32, #tpu.memory_space<vmem>>, vector<1x32xf32>
    %116 = vector.broadcast %115 : vector<1x32xf32> to vector<256x32xf32>
    %117 = arith.mulf %114, %116 : vector<256x32xf32>
    %cst_42 = arith.constant dense<0.000000e+00> : vector<256xf32>
    %118 = vector.multi_reduction <add>, %117, %cst_42 [1] : vector<256x32xf32> to vector<256xf32>
    %119 = vector.shape_cast %118 : vector<256xf32> to vector<256x1xf32>
    %120 = vector.shape_cast %119 : vector<256x1xf32> to vector<16x16x1xf32>
    %cst_43 = arith.constant dense<0xFF800000> : vector<16x1xf32>
    %121 = vector.multi_reduction <maximumf>, %120, %cst_43 [1] : vector<16x16x1xf32> to vector<16x1xf32>
    %122 = vector.shape_cast %121 : vector<16x1xf32> to vector<16x1x1xf32>
    %123 = vector.broadcast %122 : vector<16x1x1xf32> to vector<16x16x1xf32>
    %124 = arith.subf %120, %123 : vector<16x16x1xf32>
    %125 = math.exp %124 : vector<16x16x1xf32>
    %cst_44 = arith.constant dense<0.000000e+00> : vector<16x1xf32>
    %126 = vector.multi_reduction <add>, %125, %cst_44 [1] : vector<16x16x1xf32> to vector<16x1xf32>
    %127 = vector.shape_cast %126 : vector<16x1xf32> to vector<16x1x1xf32>
    %128 = vector.broadcast %127 : vector<16x1x1xf32> to vector<16x16x1xf32>
    %129 = arith.divf %125, %128 : vector<16x16x1xf32>
    %130 = vector.shape_cast %107 : vector<256x128xf32> to vector<16x16x128xf32>
    %131 = vector.broadcast %129 : vector<16x16x1xf32> to vector<16x16x128xf32>
    %132 = arith.mulf %131, %130 : vector<16x16x128xf32>
    %cst_45 = arith.constant dense<0.000000e+00> : vector<16x128xf32>
    %133 = vector.multi_reduction <add>, %132, %cst_45 [1] : vector<16x16x128xf32> to vector<16x128xf32>
    %c0_46 = arith.constant 0 : index
    %c0_47 = arith.constant 0 : index
    %134 = vector.load %arg11[%c0_46, %c0_47] : memref<16x128xf32, #tpu.memory_space<vmem>>, vector<16x128xf32>
    tpu.vector_store %arg11[%c0_46, %c0_47], %133 {strides = array<i32>} : memref<16x128xf32, #tpu.memory_space<vmem>>, vector<16x128xf32>,
    return
  }
  func.func @transform_0(%arg0: i32) -> (i32, i32) {
    %c0_i32 = arith.constant 0 : i32
    %c0_i32_0 = arith.constant 0 : i32
    return %arg0, %c0_i32 : i32, i32
  }
  func.func @transform_1(%arg0: i32) -> (i32, i32) {
    %c0_i32 = arith.constant 0 : i32
    %c0_i32_0 = arith.constant 0 : i32
    return %arg0, %c0_i32 : i32, i32
  }
  func.func @transform_2(%arg0: i32) -> (i32, i32) {
    %c0_i32 = arith.constant 0 : i32
    %c0_i32_0 = arith.constant 0 : i32
    %c0_i32_1 = arith.constant 0 : i32
    return %c0_i32, %c0_i32_0 : i32, i32
  }
  func.func @transform_3(%arg0: i32) -> (i32, i32) {
    %c0_i32 = arith.constant 0 : i32
    %c0_i32_0 = arith.constant 0 : i32
    %c0_i32_1 = arith.constant 0 : i32
    return %c0_i32, %c0_i32_0 : i32, i32
  }
  func.func @transform_4(%arg0: i32) -> (i32, i32) {
    %c0_i32 = arith.constant 0 : i32
    %c0_i32_0 = arith.constant 0 : i32
    %c0_i32_1 = arith.constant 0 : i32
    return %c0_i32, %c0_i32_0 : i32, i32
  }
  func.func @transform_5(%arg0: i32) -> (i32, i32) {
    %c0_i32 = arith.constant 0 : i32
    %c0_i32_0 = arith.constant 0 : i32
    %c0_i32_1 = arith.constant 0 : i32
    return %c0_i32, %c0_i32_0 : i32, i32
  }
  func.func @transform_6(%arg0: i32) -> (i32, i32) {
    %c0_i32 = arith.constant 0 : i32
    %c0_i32_0 = arith.constant 0 : i32
    %c0_i32_1 = arith.constant 0 : i32
    return %c0_i32, %c0_i32_0 : i32, i32
  }
  func.func @transform_7(%arg0: i32) -> (i32, i32) {
    %c0_i32 = arith.constant 0 : i32
    %c0_i32_0 = arith.constant 0 : i32
    %c0_i32_1 = arith.constant 0 : i32
    return %c0_i32, %c0_i32_0 : i32, i32
  }
  func.func @transform_8(%arg0: i32) -> (i32, i32) {
    %c0_i32 = arith.constant 0 : i32
    %c0_i32_0 = arith.constant 0 : i32
    %c0_i32_1 = arith.constant 0 : i32
    return %c0_i32, %c0_i32_0 : i32, i32
  }
  func.func @transform_9(%arg0: i32) -> (i32, i32) {
    %c0_i32 = arith.constant 0 : i32
    %c0_i32_0 = arith.constant 0 : i32
    %c0_i32_1 = arith.constant 0 : i32
    return %c0_i32, %c0_i32_0 : i32, i32
  }
  func.func @transform_10(%arg0: i32) -> (i32, i32) {
    %c0_i32 = arith.constant 0 : i32
    %c0_i32_0 = arith.constant 0 : i32
    return %arg0, %c0_i32 : i32, i32
  }
}

</mosaic_0001>

<llo_original>
// kernel: _news_encoder_jit.1
$region0: #{_news_encoder_jit.1}
  #allocation0 [shape = 'u32[]', space=smem, size = 0x4, offset = 0x4, fixed_abs, tag = 'smem constant byte address 0x4 - core index']
  #allocation1 [shape = 'u32[144,128]{1,0:T(1,128)}', space=vmem, size = 0x12000, scoped, tag = 'internal scratch']
  %s0 = inlined_call_operand.vmem [shape: s32[256,1], index: 0, kind: input, shape index: {}]
  %s1 = inlined_call_operand.vmem [shape: bf16[256,128], index: 1, kind: input, shape index: {}]
  %s2 = inlined_call_operand.vmem [shape: f32[64,128], index: 2, kind: input, shape index: {}]
  %s3 = inlined_call_operand.vmem [shape: bf16[128,384], index: 3, kind: input, shape index: {}]
  %s4 = inlined_call_operand.vmem [shape: f32[1,384], index: 4, kind: input, shape index: {}]
  %s5 = inlined_call_operand.vmem [shape: bf16[128,128], index: 5, kind: input, shape index: {}]
  %s6 = inlined_call_operand.vmem [shape: f32[1,128], index: 6, kind: input, shape index: {}]
  %s7 = inlined_call_operand.vmem [shape: bf16[128,32], index: 7, kind: input, shape index: {}]
  %s8 = inlined_call_operand.vmem [shape: f32[1,32], index: 8, kind: input, shape index: {}]
  %s9 = inlined_call_operand.vmem [shape: f32[1,32], index: 9, kind: input, shape index: {}]
  %s10 = inlined_call_operand.hbm [shape: f32[16,128], index: 10, kind: output, shape index: {}]
  %s11 = sld [smem:[#allocation0]]
  $region50: #{_news_encoder_jit.1} parent=0
    _
  %s13 = ssub.s32 1, %s11
  %s14 = scalar_select 0, %s13, %s11
  $region1: #{_news_encoder_jit.1} parent=0
    #allocation2 [shape = 'u8[8192]{0}', space=vmem, size = 0x2000, scoped, tag = 'output window, operand 0, single buffered']
    #allocation3 [shape = 's32[1]{0}', space=sflag, size = 0x4, scoped, tag = 'scoped memory for _news_encoder_jit.1']
    %15 = vsyncpa [#allocation3], 0
    // Predicated region
    $region2: #{_news_encoder_jit.1} parent=1 // pred_check
      _
    $region3: #{_news_encoder_jit.1} parent=1 // pred_check_branch
      %17 = sbr.rel (0) target = $region5
    $region4: #{_news_encoder_jit.1} parent=1 // pred_region
      _
    $region5: #{_news_encoder_jit.1} parent=1 // pred_fallthru
      _
    // Predicated region
    $region6: #{_news_encoder_jit.1} parent=1 // pred_check
      _
    $region7: #{_news_encoder_jit.1} parent=1 // pred_check_branch
      %19 = sbr.rel (0) target = $region9
    $region8: #{_news_encoder_jit.1} parent=1 // pred_region
      _
    $region9: #{_news_encoder_jit.1} parent=1 // pred_fallthru
      _
    // Predicated region
    $region10: #{_news_encoder_jit.1} parent=1 // pred_check
      _
    $region11: #{_news_encoder_jit.1} parent=1 // pred_check_branch
      %21 = sbr.rel (0) target = $region13
    $region12: #{_news_encoder_jit.1} parent=1 // pred_region
      _
    $region13: #{_news_encoder_jit.1} parent=1 // pred_fallthru
      _
    // Predicated region
    $region14: #{_news_encoder_jit.1} parent=1 // pred_check
      _
    $region15: #{_news_encoder_jit.1} parent=1 // pred_check_branch
      %23 = sbr.rel (0) target = $region17
    $region16: #{_news_encoder_jit.1} parent=1 // pred_region
      _
    $region17: #{_news_encoder_jit.1} parent=1 // pred_fallthru
      _
    // Predicated region
    $region18: #{_news_encoder_jit.1} parent=1 // pred_check
      _
    $region19: #{_news_encoder_jit.1} parent=1 // pred_check_branch
      %25 = sbr.rel (0) target = $region21
    $region20: #{_news_encoder_jit.1} parent=1 // pred_region
      _
    $region21: #{_news_encoder_jit.1} parent=1 // pred_fallthru
      _
    // Predicated region
    $region22: #{_news_encoder_jit.1} parent=1 // pred_check
      _
    $region23: #{_news_encoder_jit.1} parent=1 // pred_check_branch
      %27 = sbr.rel (0) target = $region25
    $region24: #{_news_encoder_jit.1} parent=1 // pred_region
      _
    $region25: #{_news_encoder_jit.1} parent=1 // pred_fallthru
      _
    // Predicated region
    $region26: #{_news_encoder_jit.1} parent=1 // pred_check
      _
    $region27: #{_news_encoder_jit.1} parent=1 // pred_check_branch
      %29 = sbr.rel (0) target = $region29
    $region28: #{_news_encoder_jit.1} parent=1 // pred_region
      _
    $region29: #{_news_encoder_jit.1} parent=1 // pred_fallthru
      _
    // Predicated region
    $region30: #{_news_encoder_jit.1} parent=1 // pred_check
      _
    $region31: #{_news_encoder_jit.1} parent=1 // pred_check_branch
      %31 = sbr.rel (0) target = $region33
    $region32: #{_news_encoder_jit.1} parent=1 // pred_region
      _
    $region33: #{_news_encoder_jit.1} parent=1 // pred_fallthru
      _
    // Predicated region
    $region34: #{_news_encoder_jit.1} parent=1 // pred_check
      _
    $region35: #{_news_encoder_jit.1} parent=1 // pred_check_branch
      %33 = sbr.rel (0) target = $region37
    $region36: #{_news_encoder_jit.1} parent=1 // pred_region
      _
    $region37: #{_news_encoder_jit.1} parent=1 // pred_fallthru
      _
    // Predicated region
    $region38: #{_news_encoder_jit.1} parent=1 // pred_check
      _
    $region39: #{_news_encoder_jit.1} parent=1 // pred_check_branch
      %35 = sbr.rel (0) target = $region41
    $region40: #{_news_encoder_jit.1} parent=1 // pred_region
      _
    $region41: #{_news_encoder_jit.1} parent=1 // pred_fallthru
      _
    %v37 = vlaneseq
    %v38 = vand.u32 %v37, 127
    %v39 = vld [vmem:[%s0] sm:$0xff]
    %v40 = vld [vmem:[%s0 + $0x8] sm:$0xff]
    %v41 = vld [vmem:[%s0 + $0x10] sm:$0xff]
    %v42 = vld [vmem:[%s0 + $0x18] sm:$0xff]
    %v43 = vld [vmem:[%s0 + $0x20] sm:$0xff]
    %v44 = vld [vmem:[%s0 + $0x28] sm:$0xff]
    %v45 = vld [vmem:[%s0 + $0x30] sm:$0xff]
    %v46 = vld [vmem:[%s0 + $0x38] sm:$0xff]
    %v47 = vld [vmem:[%s0 + $0x40] sm:$0xff]
    %v48 = vld [vmem:[%s0 + $0x48] sm:$0xff]
    %v49 = vld [vmem:[%s0 + $0x50] sm:$0xff]
    %v50 = vld [vmem:[%s0 + $0x58] sm:$0xff]
    %v51 = vld [vmem:[%s0 + $0x60] sm:$0xff]
    %v52 = vld [vmem:[%s0 + $0x68] sm:$0xff]
    %v53 = vld [vmem:[%s0 + $0x70] sm:$0xff]
    %v54 = vld [vmem:[%s0 + $0x78] sm:$0xff]
    %v55 = vld [vmem:[%s0 + $0x80] sm:$0xff]
    %v56 = vld [vmem:[%s0 + $0x88] sm:$0xff]
    %v57 = vld [vmem:[%s0 + $0x90] sm:$0xff]
    %v58 = vld [vmem:[%s0 + $0x98] sm:$0xff]
    %v59 = vld [vmem:[%s0 + $0xa0] sm:$0xff]
    %v60 = vld [vmem:[%s0 + $0xa8] sm:$0xff]
    %v61 = vld [vmem:[%s0 + $0xb0] sm:$0xff]
    %v62 = vld [vmem:[%s0 + $0xb8] sm:$0xff]
    %v63 = vld [vmem:[%s0 + $0xc0] sm:$0xff]
    %v64 = vld [vmem:[%s0 + $0xc8] sm:$0xff]
    %v65 = vld [vmem:[%s0 + $0xd0] sm:$0xff]
    %v66 = vld [vmem:[%s0 + $0xd8] sm:$0xff]
    %v67 = vld [vmem:[%s0 + $0xe0] sm:$0xff]
    %v68 = vld [vmem:[%s0 + $0xe8] sm:$0xff]
    %v69 = vld [vmem:[%s0 + $0xf0] sm:$0xff]
    %v70 = vld [vmem:[%s0 + $0xf8] sm:$0xff]
    %71 = vset.pattern.permute.xlu0 0
    %72 = vperm.xlu0 %71, %v39
    %v73 = vpop.permute.xlu0 %72
    %74 = vset.pattern.permute.xlu0 0
    %75 = vperm.xlu0 %74, %v40
    %v76 = vpop.permute.xlu0 %75
    %77 = vset.pattern.permute.xlu0 0
    %78 = vperm.xlu0 %77, %v41
    %v79 = vpop.permute.xlu0 %78
    %80 = vset.pattern.permute.xlu0 0
    %81 = vperm.xlu0 %80, %v42
    %v82 = vpop.permute.xlu0 %81
    %83 = vset.pattern.permute.xlu0 0
    %84 = vperm.xlu0 %83, %v43
    %v85 = vpop.permute.xlu0 %84
    %86 = vset.pattern.permute.xlu0 0
    %87 = vperm.xlu0 %86, %v44
    %v88 = vpop.permute.xlu0 %87
    %89 = vset.pattern.permute.xlu0 0
    %90 = vperm.xlu0 %89, %v45
    %v91 = vpop.permute.xlu0 %90
    %92 = vset.pattern.permute.xlu0 0
    %93 = vperm.xlu0 %92, %v46
    %v94 = vpop.permute.xlu0 %93
    %95 = vset.pattern.permute.xlu0 0
    %96 = vperm.xlu0 %95, %v47
    %v97 = vpop.permute.xlu0 %96
    %98 = vset.pattern.permute.xlu0 0
    %99 = vperm.xlu0 %98, %v48
    %v100 = vpop.permute.xlu0 %99
    %101 = vset.pattern.permute.xlu0 0
    %102 = vperm.xlu0 %101, %v49
    %v103 = vpop.permute.xlu0 %102
    %104 = vset.pattern.permute.xlu0 0
    %105 = vperm.xlu0 %104, %v50
    %v106 = vpop.permute.xlu0 %105
    %107 = vset.pattern.permute.xlu0 0
    %108 = vperm.xlu0 %107, %v51
    %v109 = vpop.permute.xlu0 %108
    %110 = vset.pattern.permute.xlu0 0
    %111 = vperm.xlu0 %110, %v52
    %v112 = vpop.permute.xlu0 %111
    %113 = vset.pattern.permute.xlu0 0
    %114 = vperm.xlu0 %113, %v53
    %v115 = vpop.permute.xlu0 %114
    %116 = vset.pattern.permute.xlu0 0
    %117 = vperm.xlu0 %116, %v54
    %v118 = vpop.permute.xlu0 %117
    %119 = vset.pattern.permute.xlu0 0
    %120 = vperm.xlu0 %119, %v55
    %v121 = vpop.permute.xlu0 %120
    %122 = vset.pattern.permute.xlu0 0
    %123 = vperm.xlu0 %122, %v56
    %v124 = vpop.permute.xlu0 %123
    %125 = vset.pattern.permute.xlu0 0
    %126 = vperm.xlu0 %125, %v57
    %v127 = vpop.permute.xlu0 %126
    %128 = vset.pattern.permute.xlu0 0
    %129 = vperm.xlu0 %128, %v58
    %v130 = vpop.permute.xlu0 %129
    %131 = vset.pattern.permute.xlu0 0
    %132 = vperm.xlu0 %131, %v59
    %v133 = vpop.permute.xlu0 %132
    %134 = vset.pattern.permute.xlu0 0
    %135 = vperm.xlu0 %134, %v60
    %v136 = vpop.permute.xlu0 %135
    %137 = vset.pattern.permute.xlu0 0
    %138 = vperm.xlu0 %137, %v61
    %v139 = vpop.permute.xlu0 %138
    %140 = vset.pattern.permute.xlu0 0
    %141 = vperm.xlu0 %140, %v62
    %v142 = vpop.permute.xlu0 %141
    %143 = vset.pattern.permute.xlu0 0
    %144 = vperm.xlu0 %143, %v63
    %v145 = vpop.permute.xlu0 %144
    %146 = vset.pattern.permute.xlu0 0
    %147 = vperm.xlu0 %146, %v64
    %v148 = vpop.permute.xlu0 %147
    %149 = vset.pattern.permute.xlu0 0
    %150 = vperm.xlu0 %149, %v65
    %v151 = vpop.permute.xlu0 %150
    %152 = vset.pattern.permute.xlu0 0
    %153 = vperm.xlu0 %152, %v66
    %v154 = vpop.permute.xlu0 %153
    %155 = vset.pattern.permute.xlu0 0
    %156 = vperm.xlu0 %155, %v67
    %v157 = vpop.permute.xlu0 %156
    %158 = vset.pattern.permute.xlu0 0
    %159 = vperm.xlu0 %158, %v68
    %v160 = vpop.permute.xlu0 %159
    %161 = vset.pattern.permute.xlu0 0
    %162 = vperm.xlu0 %161, %v69
    %v163 = vpop.permute.xlu0 %162
    %164 = vset.pattern.permute.xlu0 0
    %165 = vperm.xlu0 %164, %v70
    %v166 = vpop.permute.xlu0 %165
    %vm167 = vcmp.eq.s32.totalorder %v38, %v73
    %vm168 = vcmp.eq.s32.totalorder %v38, %v76
    %vm169 = vcmp.eq.s32.totalorder %v38, %v79
    %vm170 = vcmp.eq.s32.totalorder %v38, %v82
    %vm171 = vcmp.eq.s32.totalorder %v38, %v85
    %vm172 = vcmp.eq.s32.totalorder %v38, %v88
    %vm173 = vcmp.eq.s32.totalorder %v38, %v91
    %vm174 = vcmp.eq.s32.totalorder %v38, %v94
    %vm175 = vcmp.eq.s32.totalorder %v38, %v97
    %vm176 = vcmp.eq.s32.totalorder %v38, %v100
    %vm177 = vcmp.eq.s32.totalorder %v38, %v103
    %vm178 = vcmp.eq.s32.totalorder %v38, %v106
    %vm179 = vcmp.eq.s32.totalorder %v38, %v109
    %vm180 = vcmp.eq.s32.totalorder %v38, %v112
    %vm181 = vcmp.eq.s32.totalorder %v38, %v115
    %vm182 = vcmp.eq.s32.totalorder %v38, %v118
    %vm183 = vcmp.eq.s32.totalorder %v38, %v121
    %vm184 = vcmp.eq.s32.totalorder %v38, %v124
    %vm185 = vcmp.eq.s32.totalorder %v38, %v127
    %vm186 = vcmp.eq.s32.totalorder %v38, %v130
    %vm187 = vcmp.eq.s32.totalorder %v38, %v133
    %vm188 = vcmp.eq.s32.totalorder %v38, %v136
    %vm189 = vcmp.eq.s32.totalorder %v38, %v139
    %vm190 = vcmp.eq.s32.totalorder %v38, %v142
    %vm191 = vcmp.eq.s32.totalorder %v38, %v145
    %vm192 = vcmp.eq.s32.totalorder %v38, %v148
    %vm193 = vcmp.eq.s32.totalorder %v38, %v151
    %vm194 = vcmp.eq.s32.totalorder %v38, %v154
    %vm195 = vcmp.eq.s32.totalorder %v38, %v157
    %vm196 = vcmp.eq.s32.totalorder %v38, %v160
    %vm197 = vcmp.eq.s32.totalorder %v38, %v163
    %vm198 = vcmp.eq.s32.totalorder %v38, %v166
    %v199 = vsel %vm167, 1, 0
    %v200 = vsel %vm168, 1, 0
    %v201 = vsel %vm169, 1, 0
    %v202 = vsel %vm170, 1, 0
    %v203 = vsel %vm171, 1, 0
    %v204 = vsel %vm172, 1, 0
    %v205 = vsel %vm173, 1, 0
    %v206 = vsel %vm174, 1, 0
    %v207 = vsel %vm175, 1, 0
    %v208 = vsel %vm176, 1, 0
    %v209 = vsel %vm177, 1, 0
    %v210 = vsel %vm178, 1, 0
    %v211 = vsel %vm179, 1, 0
    %v212 = vsel %vm180, 1, 0
    %v213 = vsel %vm181, 1, 0
    %v214 = vsel %vm182, 1, 0
    %v215 = vsel %vm183, 1, 0
    %v216 = vsel %vm184, 1, 0
    %v217 = vsel %vm185, 1, 0
    %v218 = vsel %vm186, 1, 0
    %v219 = vsel %vm187, 1, 0
    %v220 = vsel %vm188, 1, 0
    %v221 = vsel %vm189, 1, 0
    %v222 = vsel %vm190, 1, 0
    %v223 = vsel %vm191, 1, 0
    %v224 = vsel %vm192, 1, 0
    %v225 = vsel %vm193, 1, 0
    %v226 = vsel %vm194, 1, 0
    %v227 = vsel %vm195, 1, 0
    %v228 = vsel %vm196, 1, 0
    %v229 = vsel %vm197, 1, 0
    %v230 = vsel %vm198, 1, 0
    %v231 = vcvt.s32.f32 %v199
    %v232 = vcvt.s32.f32 %v200
    %v233 = vcvt.s32.f32 %v201
    %v234 = vcvt.s32.f32 %v202
    %v235 = vcvt.s32.f32 %v203
    %v236 = vcvt.s32.f32 %v204
    %v237 = vcvt.s32.f32 %v205
    %v238 = vcvt.s32.f32 %v206
    %v239 = vcvt.s32.f32 %v207
    %v240 = vcvt.s32.f32 %v208
    %v241 = vcvt.s32.f32 %v209
    %v242 = vcvt.s32.f32 %v210
    %v243 = vcvt.s32.f32 %v211
    %v244 = vcvt.s32.f32 %v212
    %v245 = vcvt.s32.f32 %v213
    %v246 = vcvt.s32.f32 %v214
    %v247 = vcvt.s32.f32 %v215
    %v248 = vcvt.s32.f32 %v216
    %v249 = vcvt.s32.f32 %v217
    %v250 = vcvt.s32.f32 %v218
    %v251 = vcvt.s32.f32 %v219
    %v252 = vcvt.s32.f32 %v220
    %v253 = vcvt.s32.f32 %v221
    %v254 = vcvt.s32.f32 %v222
    %v255 = vcvt.s32.f32 %v223
    %v256 = vcvt.s32.f32 %v224
    %v257 = vcvt.s32.f32 %v225
    %v258 = vcvt.s32.f32 %v226
    %v259 = vcvt.s32.f32 %v227
    %v260 = vcvt.s32.f32 %v228
    %v261 = vcvt.s32.f32 %v229
    %v262 = vcvt.s32.f32 %v230
    %v263 = vld [vmem:[%s2] sm:$0xff]
    %v264 = vld [vmem:[%s2 + $0x8] sm:$0xff]
    %v265 = vld [vmem:[%s2 + $0x10] sm:$0xff]
    %v266 = vld [vmem:[%s2 + $0x18] sm:$0xff]
    %v267 = vld [vmem:[%s2 + $0x20] sm:$0xff]
    %v268 = vld [vmem:[%s2 + $0x28] sm:$0xff]
    %v269 = vld [vmem:[%s2 + $0x30] sm:$0xff]
    %v270 = vld [vmem:[%s2 + $0x38] sm:$0xff]
    %vm271 = vcmask 523264
    %v273 = vsel %vm271, %v231, 0
    %v276 = vsel %vm271, %v232, 0
    %v279 = vsel %vm271, %v233, 0
    %v282 = vsel %vm271, %v234, 0
    %v285 = vsel %vm271, %v235, 0
    %v288 = vsel %vm271, %v236, 0
    %v291 = vsel %vm271, %v237, 0
    %v294 = vsel %vm271, %v238, 0
    %v297 = vsel %vm271, %v239, 0
    %v300 = vsel %vm271, %v240, 0
    %v303 = vsel %vm271, %v241, 0
    %v306 = vsel %vm271, %v242, 0
    %v309 = vsel %vm271, %v243, 0
    %v312 = vsel %vm271, %v244, 0
    %v315 = vsel %vm271, %v245, 0
    %v318 = vsel %vm271, %v246, 0
    %v321 = vsel %vm271, %v247, 0
    %v324 = vsel %vm271, %v248, 0
    %v327 = vsel %vm271, %v249, 0
    %v330 = vsel %vm271, %v250, 0
    %v333 = vsel %vm271, %v251, 0
    %v336 = vsel %vm271, %v252, 0
    %v339 = vsel %vm271, %v253, 0
    %v342 = vsel %vm271, %v254, 0
    %v345 = vsel %vm271, %v255, 0
    %v348 = vsel %vm271, %v256, 0
    %v351 = vsel %vm271, %v257, 0
    %v354 = vsel %vm271, %v258, 0
    %v357 = vsel %vm271, %v259, 0
    %v360 = vsel %vm271, %v260, 0
    %v363 = vsel %vm271, %v261, 0
    %v366 = vsel %vm271, %v262, 0
    %368 = vmatprep.subr.mxu0 0.0
    %369 = vmatpush1.msra.mxu0 0.0
    %370 = vmatprep.subr.mxu0 0.0
    %371 = vmatpush1.msra.mxu0 0.0
    %372 = vmatprep.subr.mxu0 0.0
    %373 = vmatpush1.msra.mxu0 0.0
    %374 = vmatprep.subr.mxu0 0.0
    %375 = vmatpush1.msra.mxu0 0.0
    %376 = vmatprep.subr.mxu0 0.0
    %377 = vmatpush1.msra.mxu0 0.0
    %378 = vmatprep.subr.mxu0 0.0
    %379 = vmatpush1.msra.mxu0 0.0
    %380 = vmatprep.subr.mxu0 0.0
    %381 = vmatpush1.msra.mxu0 0.0
    %382 = vmatprep.subr.mxu0 0.0
    %383 = vmatpush1.msra.mxu0 0.0
    %384 = vmatprep.subr.mxu0 0.0
    %385 = vmatpush1.msra.mxu0 %v270
    %386 = vmatprep.subr.mxu0 0.0
    %387 = vmatpush1.msra.mxu0 %v269
    %388 = vmatprep.subr.mxu0 0.0
    %389 = vmatpush1.msra.mxu0 %v268
    %390 = vmatprep.subr.mxu0 0.0
    %391 = vmatpush1.msra.mxu0 %v267
    %392 = vmatprep.subr.mxu0 0.0
    %393 = vmatpush1.msra.mxu0 %v266
    %394 = vmatprep.subr.mxu0 0.0
    %395 = vmatpush1.msra.mxu0 %v265
    %396 = vmatprep.subr.mxu0 0.0
    %397 = vmatpush1.msra.mxu0 %v264
    %398 = vmatprep.subr.mxu0 0.0
    %399 = vmatpush1.msra.mxu0 %v263
    %400 = vmatprep.subr.mxu0 0.0
    %401 = vmatpush2.msra.mxu0 0.0
    %402 = vmatprep.subr.mxu0 0.0
    %403 = vmatpush2.msra.mxu0 0.0
    %404 = vmatprep.subr.mxu0 0.0
    %405 = vmatpush2.msra.mxu0 0.0
    %406 = vmatprep.subr.mxu0 0.0
    %407 = vmatpush2.msra.mxu0 0.0
    %408 = vmatprep.subr.mxu0 0.0
    %409 = vmatpush2.msra.mxu0 0.0
    %410 = vmatprep.subr.mxu0 0.0
    %411 = vmatpush2.msra.mxu0 0.0
    %412 = vmatprep.subr.mxu0 0.0
    %413 = vmatpush2.msra.mxu0 0.0
    %414 = vmatprep.subr.mxu0 0.0
    %415 = vmatpush2.msra.mxu0 0.0
    %416 = vmatprep.subr.mxu0 0.0
    %417 = vmatpush2.msra.mxu0 0.0
    %418 = vmatprep.subr.mxu0 0.0
    %419 = vmatpush2.msra.mxu0 0.0
    %420 = vmatprep.subr.mxu0 0.0
    %421 = vmatpush2.msra.mxu0 0.0
    %422 = vmatprep.subr.mxu0 0.0
    %423 = vmatpush2.msra.mxu0 0.0
    %424 = vmatprep.subr.mxu0 0.0
    %425 = vmatpush2.msra.mxu0 0.0
    %426 = vmatprep.subr.mxu0 0.0
    %427 = vmatpush2.msra.mxu0 0.0
    %428 = vmatprep.subr.mxu0 0.0
    %429 = vmatpush2.msra.mxu0 0.0
    %430 = vmatprep.subr.mxu0 0.0
    %431 = vmatpush2.msra.mxu0 0.0
    %432 = vmatprep.mubr.f32.mxu0 0.0
    %433 = vmatmul.mubr.f32.gmra.mxu0 %v273
    %v434 = vpop.f32.mrf.mxu0
    %v435 = vadd.f32 0.0, %v434
    %v436 = vpop.f32.mrf.mxu0
    %437 = vmatprep.mubr.f32.mxu0 0.0
    %438 = vmatmul.mubr.f32.gmra.mxu0 %v276
    %v439 = vpop.f32.mrf.mxu0
    %v440 = vadd.f32 0.0, %v439
    %v441 = vpop.f32.mrf.mxu0
    %442 = vmatprep.mubr.f32.mxu0 0.0
    %443 = vmatmul.mubr.f32.gmra.mxu0 %v279
    %v444 = vpop.f32.mrf.mxu0
    %v445 = vadd.f32 0.0, %v444
    %v446 = vpop.f32.mrf.mxu0
    %447 = vmatprep.mubr.f32.mxu0 0.0
    %448 = vmatmul.mubr.f32.gmra.mxu0 %v282
    %v449 = vpop.f32.mrf.mxu0
    %v450 = vadd.f32 0.0, %v449
    %v451 = vpop.f32.mrf.mxu0
    %452 = vmatprep.mubr.f32.mxu0 0.0
    %453 = vmatmul.mubr.f32.gmra.mxu0 %v285
    %v454 = vpop.f32.mrf.mxu0
    %v455 = vadd.f32 0.0, %v454
    %v456 = vpop.f32.mrf.mxu0
    %457 = vmatprep.mubr.f32.mxu0 0.0
    %458 = vmatmul.mubr.f32.gmra.mxu0 %v288
    %v459 = vpop.f32.mrf.mxu0
    %v460 = vadd.f32 0.0, %v459
    %v461 = vpop.f32.mrf.mxu0
    %462 = vmatprep.mubr.f32.mxu0 0.0
    %463 = vmatmul.mubr.f32.gmra.mxu0 %v291
    %v464 = vpop.f32.mrf.mxu0
    %v465 = vadd.f32 0.0, %v464
    %v466 = vpop.f32.mrf.mxu0
    %467 = vmatprep.mubr.f32.mxu0 0.0
    %468 = vmatmul.mubr.f32.gmra.mxu0 %v294
    %v469 = vpop.f32.mrf.mxu0
    %v470 = vadd.f32 0.0, %v469
    %v471 = vpop.f32.mrf.mxu0
    %472 = vmatprep.mubr.f32.mxu0 0.0
    %473 = vmatmul.mubr.f32.gmra.mxu0 %v297
    %v474 = vpop.f32.mrf.mxu0
    %v475 = vadd.f32 0.0, %v474
    %v476 = vpop.f32.mrf.mxu0
    %477 = vmatprep.mubr.f32.mxu0 0.0
    %478 = vmatmul.mubr.f32.gmra.mxu0 %v300
    %v479 = vpop.f32.mrf.mxu0
    %v480 = vadd.f32 0.0, %v479
    %v481 = vpop.f32.mrf.mxu0
    %482 = vmatprep.mubr.f32.mxu0 0.0
    %483 = vmatmul.mubr.f32.gmra.mxu0 %v303
    %v484 = vpop.f32.mrf.mxu0
    %v485 = vadd.f32 0.0, %v484
    %v486 = vpop.f32.mrf.mxu0
    %487 = vmatprep.mubr.f32.mxu0 0.0
    %488 = vmatmul.mubr.f32.gmra.mxu0 %v306
    %v489 = vpop.f32.mrf.mxu0
    %v490 = vadd.f32 0.0, %v489
    %v491 = vpop.f32.mrf.mxu0
    %492 = vmatprep.mubr.f32.mxu0 0.0
    %493 = vmatmul.mubr.f32.gmra.mxu0 %v309
    %v494 = vpop.f32.mrf.mxu0
    %v495 = vadd.f32 0.0, %v494
    %v496 = vpop.f32.mrf.mxu0
    %497 = vmatprep.mubr.f32.mxu0 0.0
    %498 = vmatmul.mubr.f32.gmra.mxu0 %v312
    %v499 = vpop.f32.mrf.mxu0
    %v500 = vadd.f32 0.0, %v499
    %v501 = vpop.f32.mrf.mxu0
    %502 = vmatprep.mubr.f32.mxu0 0.0
    %503 = vmatmul.mubr.f32.gmra.mxu0 %v315
    %v504 = vpop.f32.mrf.mxu0
    %v505 = vadd.f32 0.0, %v504
    %v506 = vpop.f32.mrf.mxu0
    %507 = vmatprep.mubr.f32.mxu0 0.0
    %508 = vmatmul.mubr.f32.gmra.mxu0 %v318
    %v509 = vpop.f32.mrf.mxu0
    %v510 = vadd.f32 0.0, %v509
    %v511 = vpop.f32.mrf.mxu0
    %512 = vmatprep.mubr.f32.mxu0 0.0
    %513 = vmatmul.mubr.f32.gmra.mxu0 %v321
    %v514 = vpop.f32.mrf.mxu0
    %v515 = vadd.f32 0.0, %v514
    %v516 = vpop.f32.mrf.mxu0
    %517 = vmatprep.mubr.f32.mxu0 0.0
    %518 = vmatmul.mubr.f32.gmra.mxu0 %v324
    %v519 = vpop.f32.mrf.mxu0
    %v520 = vadd.f32 0.0, %v519
    %v521 = vpop.f32.mrf.mxu0
    %522 = vmatprep.mubr.f32.mxu0 0.0
    %523 = vmatmul.mubr.f32.gmra.mxu0 %v327
    %v524 = vpop.f32.mrf.mxu0
    %v525 = vadd.f32 0.0, %v524
    %v526 = vpop.f32.mrf.mxu0
    %527 = vmatprep.mubr.f32.mxu0 0.0
    %528 = vmatmul.mubr.f32.gmra.mxu0 %v330
    %v529 = vpop.f32.mrf.mxu0
    %v530 = vadd.f32 0.0, %v529
    %v531 = vpop.f32.mrf.mxu0
    %532 = vmatprep.mubr.f32.mxu0 0.0
    %533 = vmatmul.mubr.f32.gmra.mxu0 %v333
    %v534 = vpop.f32.mrf.mxu0
    %v535 = vadd.f32 0.0, %v534
    %v536 = vpop.f32.mrf.mxu0
    %537 = vmatprep.mubr.f32.mxu0 0.0
    %538 = vmatmul.mubr.f32.gmra.mxu0 %v336
    %v539 = vpop.f32.mrf.mxu0
    %v540 = vadd.f32 0.0, %v539
    %v541 = vpop.f32.mrf.mxu0
    %542 = vmatprep.mubr.f32.mxu0 0.0
    %543 = vmatmul.mubr.f32.gmra.mxu0 %v339
    %v544 = vpop.f32.mrf.mxu0
    %v545 = vadd.f32 0.0, %v544
    %v546 = vpop.f32.mrf.mxu0
    %547 = vmatprep.mubr.f32.mxu0 0.0
    %548 = vmatmul.mubr.f32.gmra.mxu0 %v342
    %v549 = vpop.f32.mrf.mxu0
    %v550 = vadd.f32 0.0, %v549
    %v551 = vpop.f32.mrf.mxu0
    %552 = vmatprep.mubr.f32.mxu0 0.0
    %553 = vmatmul.mubr.f32.gmra.mxu0 %v345
    %v554 = vpop.f32.mrf.mxu0
    %v555 = vadd.f32 0.0, %v554
    %v556 = vpop.f32.mrf.mxu0
    %557 = vmatprep.mubr.f32.mxu0 0.0
    %558 = vmatmul.mubr.f32.gmra.mxu0 %v348
    %v559 = vpop.f32.mrf.mxu0
    %v560 = vadd.f32 0.0, %v559
    %v561 = vpop.f32.mrf.mxu0
    %562 = vmatprep.mubr.f32.mxu0 0.0
    %563 = vmatmul.mubr.f32.gmra.mxu0 %v351
    %v564 = vpop.f32.mrf.mxu0
    %v565 = vadd.f32 0.0, %v564
    %v566 = vpop.f32.mrf.mxu0
    %567 = vmatprep.mubr.f32.mxu0 0.0
    %568 = vmatmul.mubr.f32.gmra.mxu0 %v354
    %v569 = vpop.f32.mrf.mxu0
    %v570 = vadd.f32 0.0, %v569
    %v571 = vpop.f32.mrf.mxu0
    %572 = vmatprep.mubr.f32.mxu0 0.0
    %573 = vmatmul.mubr.f32.gmra.mxu0 %v357
    %v574 = vpop.f32.mrf.mxu0
    %v575 = vadd.f32 0.0, %v574
    %v576 = vpop.f32.mrf.mxu0
    %577 = vmatprep.mubr.f32.mxu0 0.0
    %578 = vmatmul.mubr.f32.gmra.mxu0 %v360
    %v579 = vpop.f32.mrf.mxu0
    %v580 = vadd.f32 0.0, %v579
    %v581 = vpop.f32.mrf.mxu0
    %582 = vmatprep.mubr.f32.mxu0 0.0
    %583 = vmatmul.mubr.f32.gmra.mxu0 %v363
    %v584 = vpop.f32.mrf.mxu0
    %v585 = vadd.f32 0.0, %v584
    %v586 = vpop.f32.mrf.mxu0
    %587 = vmatprep.mubr.f32.mxu0 0.0
    %588 = vmatmul.mubr.f32.gmra.mxu0 %v366
    %v589 = vpop.f32.mrf.mxu0
    %v590 = vadd.f32 0.0, %v589
    %v591 = vpop.f32.mrf.mxu0
    %592 = vdwg.mxu0
    %v593 = vld [vmem:[%s1] sm:$0xf]
    %v594 = vld [vmem:[%s1 + $0x4] sm:$0xf]
    %v595 = vld [vmem:[%s1 + $0x8] sm:$0xf]
    %v596 = vld [vmem:[%s1 + $0xc] sm:$0xf]
    %v597 = vld [vmem:[%s1 + $0x10] sm:$0xf]
    %v598 = vld [vmem:[%s1 + $0x14] sm:$0xf]
    %v599 = vld [vmem:[%s1 + $0x18] sm:$0xf]
    %v600 = vld [vmem:[%s1 + $0x1c] sm:$0xf]
    %v601 = vld [vmem:[%s1 + $0x20] sm:$0xf]
    %v602 = vld [vmem:[%s1 + $0x24] sm:$0xf]
    %v603 = vld [vmem:[%s1 + $0x28] sm:$0xf]
    %v604 = vld [vmem:[%s1 + $0x2c] sm:$0xf]
    %v605 = vld [vmem:[%s1 + $0x30] sm:$0xf]
    %v606 = vld [vmem:[%s1 + $0x34] sm:$0xf]
    %v607 = vld [vmem:[%s1 + $0x38] sm:$0xf]
    %v608 = vld [vmem:[%s1 + $0x3c] sm:$0xf]
    %v609 = vld [vmem:[%s1 + $0x40] sm:$0xf]
    %v610 = vld [vmem:[%s1 + $0x44] sm:$0xf]
    %v611 = vld [vmem:[%s1 + $0x48] sm:$0xf]
    %v612 = vld [vmem:[%s1 + $0x4c] sm:$0xf]
    %v613 = vld [vmem:[%s1 + $0x50] sm:$0xf]
    %v614 = vld [vmem:[%s1 + $0x54] sm:$0xf]
    %v615 = vld [vmem:[%s1 + $0x58] sm:$0xf]
    %v616 = vld [vmem:[%s1 + $0x5c] sm:$0xf]
    %v617 = vld [vmem:[%s1 + $0x60] sm:$0xf]
    %v618 = vld [vmem:[%s1 + $0x64] sm:$0xf]
    %v619 = vld [vmem:[%s1 + $0x68] sm:$0xf]
    %v620 = vld [vmem:[%s1 + $0x6c] sm:$0xf]
    %v621 = vld [vmem:[%s1 + $0x70] sm:$0xf]
    %v622 = vld [vmem:[%s1 + $0x74] sm:$0xf]
    %v623 = vld [vmem:[%s1 + $0x78] sm:$0xf]
    %v624 = vld [vmem:[%s1 + $0x7c] sm:$0xf]
    %v625 = vunpack.c.l.bf16 %v593
    %v626 = vunpack.c.l.bf16 %v594
    %v627 = vunpack.c.l.bf16 %v595
    %v628 = vunpack.c.l.bf16 %v596
    %v629 = vunpack.c.l.bf16 %v597
    %v630 = vunpack.c.l.bf16 %v598
    %v631 = vunpack.c.l.bf16 %v599
    %v632 = vunpack.c.l.bf16 %v600
    %v633 = vunpack.c.l.bf16 %v601
    %v634 = vunpack.c.l.bf16 %v602
    %v635 = vunpack.c.l.bf16 %v603
    %v636 = vunpack.c.l.bf16 %v604
    %v637 = vunpack.c.l.bf16 %v605
    %v638 = vunpack.c.l.bf16 %v606
    %v639 = vunpack.c.l.bf16 %v607
    %v640 = vunpack.c.l.bf16 %v608
    %v641 = vunpack.c.l.bf16 %v609
    %v642 = vunpack.c.l.bf16 %v610
    %v643 = vunpack.c.l.bf16 %v611
    %v644 = vunpack.c.l.bf16 %v612
    %v645 = vunpack.c.l.bf16 %v613
    %v646 = vunpack.c.l.bf16 %v614
    %v647 = vunpack.c.l.bf16 %v615
    %v648 = vunpack.c.l.bf16 %v616
    %v649 = vunpack.c.l.bf16 %v617
    %v650 = vunpack.c.l.bf16 %v618
    %v651 = vunpack.c.l.bf16 %v619
    %v652 = vunpack.c.l.bf16 %v620
    %v653 = vunpack.c.l.bf16 %v621
    %v654 = vunpack.c.l.bf16 %v622
    %v655 = vunpack.c.l.bf16 %v623
    %v656 = vunpack.c.l.bf16 %v624
    %v657 = vmul.f32 %v435, %v625
    %v658 = vmul.f32 %v440, %v626
    %v659 = vmul.f32 %v445, %v627
    %v660 = vmul.f32 %v450, %v628
    %v661 = vmul.f32 %v455, %v629
    %v662 = vmul.f32 %v460, %v630
    %v663 = vmul.f32 %v465, %v631
    %v664 = vmul.f32 %v470, %v632
    %v665 = vmul.f32 %v475, %v633
    %v666 = vmul.f32 %v480, %v634
    %v667 = vmul.f32 %v485, %v635
    %v668 = vmul.f32 %v490, %v636
    %v669 = vmul.f32 %v495, %v637
    %v670 = vmul.f32 %v500, %v638
    %v671 = vmul.f32 %v505, %v639
    %v672 = vmul.f32 %v510, %v640
    %v673 = vmul.f32 %v515, %v641
    %v674 = vmul.f32 %v520, %v642
    %v675 = vmul.f32 %v525, %v643
    %v676 = vmul.f32 %v530, %v644
    %v677 = vmul.f32 %v535, %v645
    %v678 = vmul.f32 %v540, %v646
    %v679 = vmul.f32 %v545, %v647
    %v680 = vmul.f32 %v550, %v648
    %v681 = vmul.f32 %v555, %v649
    %v682 = vmul.f32 %v560, %v650
    %v683 = vmul.f32 %v565, %v651
    %v684 = vmul.f32 %v570, %v652
    %v685 = vmul.f32 %v575, %v653
    %v686 = vmul.f32 %v580, %v654
    %v687 = vmul.f32 %v585, %v655
    %v688 = vmul.f32 %v590, %v656
    %v689 = vpack.c.bf16 %v658, %v657
    %v690 = vpack.c.bf16 %v660, %v659
    %v691 = vpack.c.bf16 %v662, %v661
    %v692 = vpack.c.bf16 %v664, %v663
    %v693 = vpack.c.bf16 %v666, %v665
    %v694 = vpack.c.bf16 %v668, %v667
    %v695 = vpack.c.bf16 %v670, %v669
    %v696 = vpack.c.bf16 %v672, %v671
    %v697 = vpack.c.bf16 %v674, %v673
    %v698 = vpack.c.bf16 %v676, %v675
    %v699 = vpack.c.bf16 %v678, %v677
    %v700 = vpack.c.bf16 %v680, %v679
    %v701 = vpack.c.bf16 %v682, %v681
    %v702 = vpack.c.bf16 %v684, %v683
    %v703 = vpack.c.bf16 %v686, %v685
    %v704 = vpack.c.bf16 %v688, %v687
    %v705 = vld [vmem:[%s3] sm:$0xff]
    %v706 = vld [vmem:[%s3 + $0x8] sm:$0xf]
    %v707 = vld [vmem:[%s3 + $0xc] sm:$0xff]
    %v708 = vld [vmem:[%s3 + $0x14] sm:$0xf]
    %v709 = vld [vmem:[%s3 + $0x18] sm:$0xff]
    %v710 = vld [vmem:[%s3 + $0x20] sm:$0xf]
    %v711 = vld [vmem:[%s3 + $0x24] sm:$0xff]
    %v712 = vld [vmem:[%s3 + $0x2c] sm:$0xf]
    %v713 = vld [vmem:[%s3 + $0x30] sm:$0xff]
    %v714 = vld [vmem:[%s3 + $0x38] sm:$0xf]
    %v715 = vld [vmem:[%s3 + $0x3c] sm:$0xff]
    %v716 = vld [vmem:[%s3 + $0x44] sm:$0xf]
    %v717 = vld [vmem:[%s3 + $0x48] sm:$0xff]
    %v718 = vld [vmem:[%s3 + $0x50] sm:$0xf]
    %v719 = vld [vmem:[%s3 + $0x54] sm:$0xff]
    %v720 = vld [vmem:[%s3 + $0x5c] sm:$0xf]
    %v721 = vld [vmem:[%s3 + $0x60] sm:$0xff]
    %v722 = vld [vmem:[%s3 + $0x68] sm:$0xf]
    %v723 = vld [vmem:[%s3 + $0x6c] sm:$0xff]
    %v724 = vld [vmem:[%s3 + $0x74] sm:$0xf]
    %v725 = vld [vmem:[%s3 + $0x78] sm:$0xff]
    %v726 = vld [vmem:[%s3 + $0x80] sm:$0xf]
    %v727 = vld [vmem:[%s3 + $0x84] sm:$0xff]
    %v728 = vld [vmem:[%s3 + $0x8c] sm:$0xf]
    %v729 = vld [vmem:[%s3 + $0x90] sm:$0xff]
    %v730 = vld [vmem:[%s3 + $0x98] sm:$0xf]
    %v731 = vld [vmem:[%s3 + $0x9c] sm:$0xff]
    %v732 = vld [vmem:[%s3 + $0xa4] sm:$0xf]
    %v733 = vld [vmem:[%s3 + $0xa8] sm:$0xff]
    %v734 = vld [vmem:[%s3 + $0xb0] sm:$0xf]
    %v735 = vld [vmem:[%s3 + $0xb4] sm:$0xff]
    %v736 = vld [vmem:[%s3 + $0xbc] sm:$0xf]
    %v737 = vld [vmem:[%s4] sm:$0x7]
    %v739 = vlaneseq
    %v740 = vshrl.u32 %v739, 7
    %v741 = vsub.s32 0, %v740
    %v742 = vrot.slane %v737, %v741
    %v743 = vlaneseq
    %v744 = vshrl.u32 %v743, 7
    %v745 = vsub.s32 1, %v744
    %v746 = vrot.slane %v737, %v745
    %v747 = vlaneseq
    %v748 = vshrl.u32 %v747, 7
    %v749 = vsub.s32 2, %v748
    %v750 = vrot.slane %v737, %v749
    %v786 = vunpack.c.l.b16 %v705
    %v787 = vunpack.c.h.b16 %v705
    %v788 = vunpack.c.l.b16 %v706
    %v789 = vunpack.c.l.b16 %v707
    %v790 = vunpack.c.h.b16 %v707
    %v791 = vunpack.c.l.b16 %v708
    %v792 = vunpack.c.l.b16 %v709
    %v793 = vunpack.c.h.b16 %v709
    %v794 = vunpack.c.l.b16 %v710
    %v795 = vunpack.c.l.b16 %v711
    %v796 = vunpack.c.h.b16 %v711
    %v797 = vunpack.c.l.b16 %v712
    %v798 = vunpack.c.l.b16 %v713
    %v799 = vunpack.c.h.b16 %v713
    %v800 = vunpack.c.l.b16 %v714
    %v801 = vunpack.c.l.b16 %v715
    %v802 = vunpack.c.h.b16 %v715
    %v803 = vunpack.c.l.b16 %v716
    %v804 = vunpack.c.l.b16 %v717
    %v805 = vunpack.c.h.b16 %v717
    %v806 = vunpack.c.l.b16 %v718
    %v807 = vunpack.c.l.b16 %v719
    %v808 = vunpack.c.h.b16 %v719
    %v809 = vunpack.c.l.b16 %v720
    %v810 = vunpack.c.l.b16 %v721
    %v811 = vunpack.c.h.b16 %v721
    %v812 = vunpack.c.l.b16 %v722
    %v813 = vunpack.c.l.b16 %v723
    %v814 = vunpack.c.h.b16 %v723
    %v815 = vunpack.c.l.b16 %v724
    %v816 = vunpack.c.l.b16 %v725
    %v817 = vunpack.c.h.b16 %v725
    %v818 = vunpack.c.l.b16 %v726
    %v819 = vunpack.c.l.b16 %v727
    %v820 = vunpack.c.h.b16 %v727
    %v821 = vunpack.c.l.b16 %v728
    %v822 = vunpack.c.l.b16 %v729
    %v823 = vunpack.c.h.b16 %v729
    %v824 = vunpack.c.l.b16 %v730
    %v825 = vunpack.c.l.b16 %v731
    %v826 = vunpack.c.h.b16 %v731
    %v827 = vunpack.c.l.b16 %v732
    %v828 = vunpack.c.l.b16 %v733
    %v829 = vunpack.c.h.b16 %v733
    %v830 = vunpack.c.l.b16 %v734
    %v831 = vunpack.c.l.b16 %v735
    %v832 = vunpack.c.h.b16 %v735
    %v833 = vunpack.c.l.b16 %v736
    %v834 = vpack.c.b16 %v789, %v786
    %v835 = vpack.c.b16 %v790, %v787
    %v836 = vpack.c.b16 %v791, %v788
    %v837 = vpack.c.b16 %v795, %v792
    %v838 = vpack.c.b16 %v796, %v793
    %v839 = vpack.c.b16 %v797, %v794
    %v840 = vpack.c.b16 %v801, %v798
    %v841 = vpack.c.b16 %v802, %v799
    %v842 = vpack.c.b16 %v803, %v800
    %v843 = vpack.c.b16 %v807, %v804
    %v844 = vpack.c.b16 %v808, %v805
    %v845 = vpack.c.b16 %v809, %v806
    %v846 = vpack.c.b16 %v813, %v810
    %v847 = vpack.c.b16 %v814, %v811
    %v848 = vpack.c.b16 %v815, %v812
    %v849 = vpack.c.b16 %v819, %v816
    %v850 = vpack.c.b16 %v820, %v817
    %v851 = vpack.c.b16 %v821, %v818
    %v852 = vpack.c.b16 %v825, %v822
    %v853 = vpack.c.b16 %v826, %v823
    %v854 = vpack.c.b16 %v827, %v824
    %v855 = vpack.c.b16 %v831, %v828
    %v856 = vpack.c.b16 %v832, %v829
    %v857 = vpack.c.b16 %v833, %v830
    %882 = vmatprep.subr.bf16.mxu0 %v856
    %883 = vmatpush1.bf16.msra.mxu0 %v855
    %884 = vmatprep.subr.bf16.mxu0 %v853
    %885 = vmatpush1.bf16.msra.mxu0 %v852
    %886 = vmatprep.subr.bf16.mxu0 %v850
    %887 = vmatpush1.bf16.msra.mxu0 %v849
    %888 = vmatprep.subr.bf16.mxu0 %v847
    %889 = vmatpush1.bf16.msra.mxu0 %v846
    %890 = vmatprep.subr.bf16.mxu0 %v844
    %891 = vmatpush1.bf16.msra.mxu0 %v843
    %892 = vmatprep.subr.bf16.mxu0 %v841
    %893 = vmatpush1.bf16.msra.mxu0 %v840
    %894 = vmatprep.subr.bf16.mxu0 %v838
    %895 = vmatpush1.bf16.msra.mxu0 %v837
    %896 = vmatprep.subr.bf16.mxu0 %v835
    %897 = vmatpush1.bf16.msra.mxu0 %v834
    %898 = vmatprep.subr.bf16.mxu0 0
    %899 = vmatpush2.bf16.msra.mxu0 0
    %900 = vmatprep.subr.bf16.mxu0 0
    %901 = vmatpush2.bf16.msra.mxu0 0
    %902 = vmatprep.subr.bf16.mxu0 0
    %903 = vmatpush2.bf16.msra.mxu0 0
    %904 = vmatprep.subr.bf16.mxu0 0
    %905 = vmatpush2.bf16.msra.mxu0 0
    %906 = vmatprep.subr.bf16.mxu0 0
    %907 = vmatpush2.bf16.msra.mxu0 0
    %908 = vmatprep.subr.bf16.mxu0 0
    %909 = vmatpush2.bf16.msra.mxu0 0
    %910 = vmatprep.subr.bf16.mxu0 0
    %911 = vmatpush2.bf16.msra.mxu0 0
    %912 = vmatprep.subr.bf16.mxu0 0
    %913 = vmatpush2.bf16.msra.mxu0 0
    %914 = vmatprep.mubr.bf16.mxu0 0
    %915 = vmatmul.mubr.bf16.gmra.mxu0 %v689
    %v916 = vpop.f32.mrf.mxu0
    %v917 = vadd.f32 %v742, %v916
    %v918 = vpop.f32.mrf.mxu0
    %v919 = vadd.f32 %v746, %v918
    %v920 = vpop.f32.mrf.mxu0
    %v921 = vadd.f32 %v742, %v920
    %v922 = vpop.f32.mrf.mxu0
    %v923 = vadd.f32 %v746, %v922
    %924 = vmatprep.mubr.bf16.mxu0 0
    %925 = vmatmul.mubr.bf16.gmra.mxu0 %v690
    %v926 = vpop.f32.mrf.mxu0
    %v927 = vadd.f32 %v742, %v926
    %v928 = vpop.f32.mrf.mxu0
    %v929 = vadd.f32 %v746, %v928
    %v930 = vpop.f32.mrf.mxu0
    %v931 = vadd.f32 %v742, %v930
    %v932 = vpop.f32.mrf.mxu0
    %v933 = vadd.f32 %v746, %v932
    %934 = vmatprep.mubr.bf16.mxu0 0
    %935 = vmatmul.mubr.bf16.gmra.mxu0 %v691
    %v936 = vpop.f32.mrf.mxu0
    %v937 = vadd.f32 %v742, %v936
    %v938 = vpop.f32.mrf.mxu0
    %v939 = vadd.f32 %v746, %v938
    %v940 = vpop.f32.mrf.mxu0
    %v941 = vadd.f32 %v742, %v940
    %v942 = vpop.f32.mrf.mxu0
    %v943 = vadd.f32 %v746, %v942
    %944 = vmatprep.mubr.bf16.mxu0 0
    %945 = vmatmul.mubr.bf16.gmra.mxu0 %v692
    %v946 = vpop.f32.mrf.mxu0
    %v947 = vadd.f32 %v742, %v946
    %v948 = vpop.f32.mrf.mxu0
    %v949 = vadd.f32 %v746, %v948
    %v950 = vpop.f32.mrf.mxu0
    %v951 = vadd.f32 %v742, %v950
    %v952 = vpop.f32.mrf.mxu0
    %v953 = vadd.f32 %v746, %v952
    %954 = vmatprep.mubr.bf16.mxu0 0
    %955 = vmatmul.mubr.bf16.gmra.mxu0 %v693
    %v956 = vpop.f32.mrf.mxu0
    %v957 = vadd.f32 %v742, %v956
    %v958 = vpop.f32.mrf.mxu0
    %v959 = vadd.f32 %v746, %v958
    %v960 = vpop.f32.mrf.mxu0
    %v961 = vadd.f32 %v742, %v960
    %v962 = vpop.f32.mrf.mxu0
    %v963 = vadd.f32 %v746, %v962
    %964 = vmatprep.mubr.bf16.mxu0 0
    %965 = vmatmul.mubr.bf16.gmra.mxu0 %v694
    %v966 = vpop.f32.mrf.mxu0
    %v967 = vadd.f32 %v742, %v966
    %v968 = vpop.f32.mrf.mxu0
    %v969 = vadd.f32 %v746, %v968
    %v970 = vpop.f32.mrf.mxu0
    %v971 = vadd.f32 %v742, %v970
    %v972 = vpop.f32.mrf.mxu0
    %v973 = vadd.f32 %v746, %v972
    %974 = vmatprep.mubr.bf16.mxu0 0
    %975 = vmatmul.mubr.bf16.gmra.mxu0 %v695
    %v976 = vpop.f32.mrf.mxu0
    %v977 = vadd.f32 %v742, %v976
    %v978 = vpop.f32.mrf.mxu0
    %v979 = vadd.f32 %v746, %v978
    %v980 = vpop.f32.mrf.mxu0
    %v981 = vadd.f32 %v742, %v980
    %v982 = vpop.f32.mrf.mxu0
    %v983 = vadd.f32 %v746, %v982
    %984 = vmatprep.mubr.bf16.mxu0 0
    %985 = vmatmul.mubr.bf16.gmra.mxu0 %v696
    %v986 = vpop.f32.mrf.mxu0
    %v987 = vadd.f32 %v742, %v986
    %v988 = vpop.f32.mrf.mxu0
    %v989 = vadd.f32 %v746, %v988
    %v990 = vpop.f32.mrf.mxu0
    %v991 = vadd.f32 %v742, %v990
    %v992 = vpop.f32.mrf.mxu0
    %v993 = vadd.f32 %v746, %v992
    %994 = vmatprep.mubr.bf16.mxu0 0
    %995 = vmatmul.mubr.bf16.gmra.mxu0 %v697
    %v996 = vpop.f32.mrf.mxu0
    %v997 = vadd.f32 %v742, %v996
    %v998 = vpop.f32.mrf.mxu0
    %v999 = vadd.f32 %v746, %v998
    %v1000 = vpop.f32.mrf.mxu0
    %v1001 = vadd.f32 %v742, %v1000
    %v1002 = vpop.f32.mrf.mxu0
    %v1003 = vadd.f32 %v746, %v1002
    %1004 = vmatprep.mubr.bf16.mxu0 0
    %1005 = vmatmul.mubr.bf16.gmra.mxu0 %v698
    %v1006 = vpop.f32.mrf.mxu0
    %v1007 = vadd.f32 %v742, %v1006
    %v1008 = vpop.f32.mrf.mxu0
    %v1009 = vadd.f32 %v746, %v1008
    %v1010 = vpop.f32.mrf.mxu0
    %v1011 = vadd.f32 %v742, %v1010
    %v1012 = vpop.f32.mrf.mxu0
    %v1013 = vadd.f32 %v746, %v1012
    %1014 = vmatprep.mubr.bf16.mxu0 0
    %1015 = vmatmul.mubr.bf16.gmra.mxu0 %v699
    %v1016 = vpop.f32.mrf.mxu0
    %v1017 = vadd.f32 %v742, %v1016
    %v1018 = vpop.f32.mrf.mxu0
    %v1019 = vadd.f32 %v746, %v1018
    %v1020 = vpop.f32.mrf.mxu0
    %v1021 = vadd.f32 %v742, %v1020
    %v1022 = vpop.f32.mrf.mxu0
    %v1023 = vadd.f32 %v746, %v1022
    %1024 = vmatprep.mubr.bf16.mxu0 0
    %1025 = vmatmul.mubr.bf16.gmra.mxu0 %v700
    %v1026 = vpop.f32.mrf.mxu0
    %v1027 = vadd.f32 %v742, %v1026
    %v1028 = vpop.f32.mrf.mxu0
    %v1029 = vadd.f32 %v746, %v1028
    %v1030 = vpop.f32.mrf.mxu0
    %v1031 = vadd.f32 %v742, %v1030
    %v1032 = vpop.f32.mrf.mxu0
    %v1033 = vadd.f32 %v746, %v1032
    %1034 = vmatprep.mubr.bf16.mxu0 0
    %1035 = vmatmul.mubr.bf16.gmra.mxu0 %v701
    %v1036 = vpop.f32.mrf.mxu0
    %v1037 = vadd.f32 %v742, %v1036
    %v1038 = vpop.f32.mrf.mxu0
    %v1039 = vadd.f32 %v746, %v1038
    %v1040 = vpop.f32.mrf.mxu0
    %v1041 = vadd.f32 %v742, %v1040
    %v1042 = vpop.f32.mrf.mxu0
    %v1043 = vadd.f32 %v746, %v1042
    %1044 = vmatprep.mubr.bf16.mxu0 0
    %1045 = vmatmul.mubr.bf16.gmra.mxu0 %v702
    %v1046 = vpop.f32.mrf.mxu0
    %v1047 = vadd.f32 %v742, %v1046
    %v1048 = vpop.f32.mrf.mxu0
    %v1049 = vadd.f32 %v746, %v1048
    %v1050 = vpop.f32.mrf.mxu0
    %v1051 = vadd.f32 %v742, %v1050
    %v1052 = vpop.f32.mrf.mxu0
    %v1053 = vadd.f32 %v746, %v1052
    %1054 = vmatprep.mubr.bf16.mxu0 0
    %1055 = vmatmul.mubr.bf16.gmra.mxu0 %v703
    %v1056 = vpop.f32.mrf.mxu0
    %v1057 = vadd.f32 %v742, %v1056
    %v1058 = vpop.f32.mrf.mxu0
    %v1059 = vadd.f32 %v746, %v1058
    %v1060 = vpop.f32.mrf.mxu0
    %v1061 = vadd.f32 %v742, %v1060
    %v1062 = vpop.f32.mrf.mxu0
    %v1063 = vadd.f32 %v746, %v1062
    %1064 = vmatprep.mubr.bf16.mxu0 0
    %1065 = vmatmul.mubr.bf16.gmra.mxu0 %v704
    %v1066 = vpop.f32.mrf.mxu0
    %v1067 = vadd.f32 %v742, %v1066
    %v1068 = vpop.f32.mrf.mxu0
    %v1069 = vadd.f32 %v746, %v1068
    %v1070 = vpop.f32.mrf.mxu0
    %v1071 = vadd.f32 %v742, %v1070
    %v1072 = vpop.f32.mrf.mxu0
    %v1073 = vadd.f32 %v746, %v1072
    %1074 = vdwg.mxu0
    %1075 = vmatprep.subr.bf16.mxu0 0
    %1076 = vmatpush1.bf16.msra.mxu0 %v857
    %1077 = vmatprep.subr.bf16.mxu0 0
    %1078 = vmatpush1.bf16.msra.mxu0 %v854
    %1079 = vmatprep.subr.bf16.mxu0 0
    %1080 = vmatpush1.bf16.msra.mxu0 %v851
    %1081 = vmatprep.subr.bf16.mxu0 0
    %1082 = vmatpush1.bf16.msra.mxu0 %v848
    %1083 = vmatprep.subr.bf16.mxu0 0
    %1084 = vmatpush1.bf16.msra.mxu0 %v845
    %1085 = vmatprep.subr.bf16.mxu0 0
    %1086 = vmatpush1.bf16.msra.mxu0 %v842
    %1087 = vmatprep.subr.bf16.mxu0 0
    %1088 = vmatpush1.bf16.msra.mxu0 %v839
    %1089 = vmatprep.subr.bf16.mxu0 0
    %1090 = vmatpush1.bf16.msra.mxu0 %v836
    %1091 = vmatprep.subr.bf16.mxu0 0
    %1092 = vmatpush2.bf16.msra.mxu0 0
    %1093 = vmatprep.subr.bf16.mxu0 0
    %1094 = vmatpush2.bf16.msra.mxu0 0
    %1095 = vmatprep.subr.bf16.mxu0 0
    %1096 = vmatpush2.bf16.msra.mxu0 0
    %1097 = vmatprep.subr.bf16.mxu0 0
    %1098 = vmatpush2.bf16.msra.mxu0 0
    %1099 = vmatprep.subr.bf16.mxu0 0
    %1100 = vmatpush2.bf16.msra.mxu0 0
    %1101 = vmatprep.subr.bf16.mxu0 0
    %1102 = vmatpush2.bf16.msra.mxu0 0
    %1103 = vmatprep.subr.bf16.mxu0 0
    %1104 = vmatpush2.bf16.msra.mxu0 0
    %1105 = vmatprep.subr.bf16.mxu0 0
    %1106 = vmatpush2.bf16.msra.mxu0 0
    %1107 = vmatprep.mubr.bf16.mxu0 0
    %1108 = vmatmul.mubr.bf16.gmra.mxu0 %v689
    %v1109 = vpop.f32.mrf.mxu0
    %v1110 = vadd.f32 %v750, %v1109
    %v1111 = vpop.f32.mrf.mxu0
    %v1112 = vpop.f32.mrf.mxu0
    %v1113 = vadd.f32 %v750, %v1112
    %v1114 = vpop.f32.mrf.mxu0
    %1115 = vmatprep.mubr.bf16.mxu0 0
    %1116 = vmatmul.mubr.bf16.gmra.mxu0 %v690
    %v1117 = vpop.f32.mrf.mxu0
    %v1118 = vadd.f32 %v750, %v1117
    %v1119 = vpop.f32.mrf.mxu0
    %v1120 = vpop.f32.mrf.mxu0
    %v1121 = vadd.f32 %v750, %v1120
    %v1122 = vpop.f32.mrf.mxu0
    %1123 = vmatprep.mubr.bf16.mxu0 0
    %1124 = vmatmul.mubr.bf16.gmra.mxu0 %v691
    %v1125 = vpop.f32.mrf.mxu0
    %v1126 = vadd.f32 %v750, %v1125
    %v1127 = vpop.f32.mrf.mxu0
    %v1128 = vpop.f32.mrf.mxu0
    %v1129 = vadd.f32 %v750, %v1128
    %v1130 = vpop.f32.mrf.mxu0
    %1131 = vmatprep.mubr.bf16.mxu0 0
    %1132 = vmatmul.mubr.bf16.gmra.mxu0 %v692
    %v1133 = vpop.f32.mrf.mxu0
    %v1134 = vadd.f32 %v750, %v1133
    %v1135 = vpop.f32.mrf.mxu0
    %v1136 = vpop.f32.mrf.mxu0
    %v1137 = vadd.f32 %v750, %v1136
    %v1138 = vpop.f32.mrf.mxu0
    %1139 = vmatprep.mubr.bf16.mxu0 0
    %1140 = vmatmul.mubr.bf16.gmra.mxu0 %v693
    %v1141 = vpop.f32.mrf.mxu0
    %v1142 = vadd.f32 %v750, %v1141
    %v1143 = vpop.f32.mrf.mxu0
    %v1144 = vpop.f32.mrf.mxu0
    %v1145 = vadd.f32 %v750, %v1144
    %v1146 = vpop.f32.mrf.mxu0
    %1147 = vmatprep.mubr.bf16.mxu0 0
    %1148 = vmatmul.mubr.bf16.gmra.mxu0 %v694
    %v1149 = vpop.f32.mrf.mxu0
    %v1150 = vadd.f32 %v750, %v1149
    %v1151 = vpop.f32.mrf.mxu0
    %v1152 = vpop.f32.mrf.mxu0
    %v1153 = vadd.f32 %v750, %v1152
    %v1154 = vpop.f32.mrf.mxu0
    %1155 = vmatprep.mubr.bf16.mxu0 0
    %1156 = vmatmul.mubr.bf16.gmra.mxu0 %v695
    %v1157 = vpop.f32.mrf.mxu0
    %v1158 = vadd.f32 %v750, %v1157
    %v1159 = vpop.f32.mrf.mxu0
    %v1160 = vpop.f32.mrf.mxu0
    %v1161 = vadd.f32 %v750, %v1160
    %v1162 = vpop.f32.mrf.mxu0
    %1163 = vmatprep.mubr.bf16.mxu0 0
    %1164 = vmatmul.mubr.bf16.gmra.mxu0 %v696
    %v1165 = vpop.f32.mrf.mxu0
    %v1166 = vadd.f32 %v750, %v1165
    %v1167 = vpop.f32.mrf.mxu0
    %v1168 = vpop.f32.mrf.mxu0
    %v1169 = vadd.f32 %v750, %v1168
    %v1170 = vpop.f32.mrf.mxu0
    %1171 = vmatprep.mubr.bf16.mxu0 0
    %1172 = vmatmul.mubr.bf16.gmra.mxu0 %v697
    %v1173 = vpop.f32.mrf.mxu0
    %v1174 = vadd.f32 %v750, %v1173
    %v1175 = vpop.f32.mrf.mxu0
    %v1176 = vpop.f32.mrf.mxu0
    %v1177 = vadd.f32 %v750, %v1176
    %v1178 = vpop.f32.mrf.mxu0
    %1179 = vmatprep.mubr.bf16.mxu0 0
    %1180 = vmatmul.mubr.bf16.gmra.mxu0 %v698
    %v1181 = vpop.f32.mrf.mxu0
    %v1182 = vadd.f32 %v750, %v1181
    %v1183 = vpop.f32.mrf.mxu0
    %v1184 = vpop.f32.mrf.mxu0
    %v1185 = vadd.f32 %v750, %v1184
    %v1186 = vpop.f32.mrf.mxu0
    %1187 = vmatprep.mubr.bf16.mxu0 0
    %1188 = vmatmul.mubr.bf16.gmra.mxu0 %v699
    %v1189 = vpop.f32.mrf.mxu0
    %v1190 = vadd.f32 %v750, %v1189
    %v1191 = vpop.f32.mrf.mxu0
    %v1192 = vpop.f32.mrf.mxu0
    %v1193 = vadd.f32 %v750, %v1192
    %v1194 = vpop.f32.mrf.mxu0
    %1195 = vmatprep.mubr.bf16.mxu0 0
    %1196 = vmatmul.mubr.bf16.gmra.mxu0 %v700
    %v1197 = vpop.f32.mrf.mxu0
    %v1198 = vadd.f32 %v750, %v1197
    %v1199 = vpop.f32.mrf.mxu0
    %v1200 = vpop.f32.mrf.mxu0
    %v1201 = vadd.f32 %v750, %v1200
    %v1202 = vpop.f32.mrf.mxu0
    %1203 = vmatprep.mubr.bf16.mxu0 0
    %1204 = vmatmul.mubr.bf16.gmra.mxu0 %v701
    %v1205 = vpop.f32.mrf.mxu0
    %v1206 = vadd.f32 %v750, %v1205
    %v1207 = vpop.f32.mrf.mxu0
    %v1208 = vpop.f32.mrf.mxu0
    %v1209 = vadd.f32 %v750, %v1208
    %v1210 = vpop.f32.mrf.mxu0
    %1211 = vmatprep.mubr.bf16.mxu0 0
    %1212 = vmatmul.mubr.bf16.gmra.mxu0 %v702
    %v1213 = vpop.f32.mrf.mxu0
    %v1214 = vadd.f32 %v750, %v1213
    %v1215 = vpop.f32.mrf.mxu0
    %v1216 = vpop.f32.mrf.mxu0
    %v1217 = vadd.f32 %v750, %v1216
    %v1218 = vpop.f32.mrf.mxu0
    %1219 = vmatprep.mubr.bf16.mxu0 0
    %1220 = vmatmul.mubr.bf16.gmra.mxu0 %v703
    %v1221 = vpop.f32.mrf.mxu0
    %v1222 = vadd.f32 %v750, %v1221
    %v1223 = vpop.f32.mrf.mxu0
    %v1224 = vpop.f32.mrf.mxu0
    %v1225 = vadd.f32 %v750, %v1224
    %v1226 = vpop.f32.mrf.mxu0
    %1227 = vmatprep.mubr.bf16.mxu0 0
    %1228 = vmatmul.mubr.bf16.gmra.mxu0 %v704
    %v1229 = vpop.f32.mrf.mxu0
    %v1230 = vadd.f32 %v750, %v1229
    %v1231 = vpop.f32.mrf.mxu0
    %v1232 = vpop.f32.mrf.mxu0
    %v1233 = vadd.f32 %v750, %v1232
    %v1234 = vpop.f32.mrf.mxu0
    %1235 = vdwg.mxu0
    %v1236 = vpack.c.bf16 %v921, %v917
    %v1237 = vpack.c.bf16 %v931, %v927
    %v1238 = vpack.c.bf16 %v941, %v937
    %v1239 = vpack.c.bf16 %v951, %v947
    %v1240 = vpack.c.bf16 %v961, %v957
    %v1241 = vpack.c.bf16 %v971, %v967
    %v1242 = vpack.c.bf16 %v981, %v977
    %v1243 = vpack.c.bf16 %v991, %v987
    %v1244 = vpack.c.bf16 %v1001, %v997
    %v1245 = vpack.c.bf16 %v1011, %v1007
    %v1246 = vpack.c.bf16 %v1021, %v1017
    %v1247 = vpack.c.bf16 %v1031, %v1027
    %v1248 = vpack.c.bf16 %v1041, %v1037
    %v1249 = vpack.c.bf16 %v1051, %v1047
    %v1250 = vpack.c.bf16 %v1061, %v1057
    %v1251 = vpack.c.bf16 %v1071, %v1067
    %v1252 = vpack.c.bf16 %v923, %v919
    %v1253 = vpack.c.bf16 %v933, %v929
    %v1254 = vpack.c.bf16 %v943, %v939
    %v1255 = vpack.c.bf16 %v953, %v949
    %v1256 = vpack.c.bf16 %v963, %v959
    %v1257 = vpack.c.bf16 %v973, %v969
    %v1258 = vpack.c.bf16 %v983, %v979
    %v1259 = vpack.c.bf16 %v993, %v989
    %v1260 = vpack.c.bf16 %v1003, %v999
    %v1261 = vpack.c.bf16 %v1013, %v1009
    %v1262 = vpack.c.bf16 %v1023, %v1019
    %v1263 = vpack.c.bf16 %v1033, %v1029
    %v1264 = vpack.c.bf16 %v1043, %v1039
    %v1265 = vpack.c.bf16 %v1053, %v1049
    %v1266 = vpack.c.bf16 %v1063, %v1059
    %v1267 = vpack.c.bf16 %v1073, %v1069
    %v1268 = vpack.c.bf16 %v1113, %v1110
    %v1269 = vpack.c.bf16 %v1121, %v1118
    %v1270 = vpack.c.bf16 %v1129, %v1126
    %v1271 = vpack.c.bf16 %v1137, %v1134
    %v1272 = vpack.c.bf16 %v1145, %v1142
    %v1273 = vpack.c.bf16 %v1153, %v1150
    %v1274 = vpack.c.bf16 %v1161, %v1158
    %v1275 = vpack.c.bf16 %v1169, %v1166
    %v1276 = vpack.c.bf16 %v1177, %v1174
    %v1277 = vpack.c.bf16 %v1185, %v1182
    %v1278 = vpack.c.bf16 %v1193, %v1190
    %v1279 = vpack.c.bf16 %v1201, %v1198
    %v1280 = vpack.c.bf16 %v1209, %v1206
    %v1281 = vpack.c.bf16 %v1217, %v1214
    %v1282 = vpack.c.bf16 %v1225, %v1222
    %v1283 = vpack.c.bf16 %v1233, %v1230
    %vm1284 = vcmask 261120
    %v1286 = vsel %vm1284, %v1236, 0
    %v1289 = vsel %vm1284, %v1252, 0
    %1291 = vmatprep.subr.bf16.mxu0 0
    %1292 = vmatpush1.bf16.xpose.msra.mxu0 0
    %1293 = vmatprep.subr.bf16.mxu0 0
    %1294 = vmatpush1.bf16.xpose.msra.mxu0 0
    %1295 = vmatprep.subr.bf16.mxu0 0
    %1296 = vmatpush1.bf16.xpose.msra.mxu0 0
    %1297 = vmatprep.subr.bf16.mxu0 0
    %1298 = vmatpush1.bf16.xpose.msra.mxu0 0
    %1299 = vmatprep.subr.bf16.mxu0 0
    %1300 = vmatpush1.bf16.xpose.msra.mxu0 0
    %1301 = vmatprep.subr.bf16.mxu0 0
    %1302 = vmatpush1.bf16.xpose.msra.mxu0 0
    %1303 = vmatprep.subr.bf16.mxu0 0
    %1304 = vmatpush1.bf16.xpose.msra.mxu0 0
    %1305 = vmatprep.subr.bf16.mxu0 0
    %1306 = vmatpush1.bf16.xpose.msra.mxu0 %v1289
    %1307 = vmatprep.subr.bf16.mxu0 0
    %1308 = vmatpush2.bf16.xpose.msra.mxu0 0
    %1309 = vmatprep.subr.bf16.mxu0 0
    %1310 = vmatpush2.bf16.xpose.msra.mxu0 0
    %1311 = vmatprep.subr.bf16.mxu0 0
    %1312 = vmatpush2.bf16.xpose.msra.mxu0 0
    %1313 = vmatprep.subr.bf16.mxu0 0
    %1314 = vmatpush2.bf16.xpose.msra.mxu0 0
    %1315 = vmatprep.subr.bf16.mxu0 0
    %1316 = vmatpush2.bf16.xpose.msra.mxu0 0
    %1317 = vmatprep.subr.bf16.mxu0 0
    %1318 = vmatpush2.bf16.xpose.msra.mxu0 0
    %1319 = vmatprep.subr.bf16.mxu0 0
    %1320 = vmatpush2.bf16.xpose.msra.mxu0 0
    %1321 = vmatprep.subr.bf16.mxu0 0
    %1322 = vmatpush2.bf16.xpose.msra.mxu0 0
    %1323 = vmatprep.mubr.bf16.mxu0 0
    %1324 = vmatmul.mubr.bf16.gmra.mxu0 %v1286
    %v1325 = vpop.f32.mrf.mxu0
    %v1326 = vadd.f32 0.0, %v1325
    %v1327 = vpop.f32.mrf.mxu0
    %v1328 = vpop.f32.mrf.mxu0
    %v1329 = vadd.f32 0.0, %v1328
    %v1330 = vpop.f32.mrf.mxu0
    %1331 = vdwg.mxu0
    %v1333 = vsel %vm1284, %v1237, 0
    %v1336 = vsel %vm1284, %v1253, 0
    %1338 = vmatprep.subr.bf16.mxu0 0
    %1339 = vmatpush1.bf16.xpose.msra.mxu0 0
    %1340 = vmatprep.subr.bf16.mxu0 0
    %1341 = vmatpush1.bf16.xpose.msra.mxu0 0
    %1342 = vmatprep.subr.bf16.mxu0 0
    %1343 = vmatpush1.bf16.xpose.msra.mxu0 0
    %1344 = vmatprep.subr.bf16.mxu0 0
    %1345 = vmatpush1.bf16.xpose.msra.mxu0 0
    %1346 = vmatprep.subr.bf16.mxu0 0
    %1347 = vmatpush1.bf16.xpose.msra.mxu0 0
    %1348 = vmatprep.subr.bf16.mxu0 0
    %1349 = vmatpush1.bf16.xpose.msra.mxu0 0
    %1350 = vmatprep.subr.bf16.mxu0 0
    %1351 = vmatpush1.bf16.xpose.msra.mxu0 0
    %1352 = vmatprep.subr.bf16.mxu0 0
    %1353 = vmatpush1.bf16.xpose.msra.mxu0 %v1336
    %1354 = vmatprep.subr.bf16.mxu0 0
    %1355 = vmatpush2.bf16.xpose.msra.mxu0 0
    %1356 = vmatprep.subr.bf16.mxu0 0
    %1357 = vmatpush2.bf16.xpose.msra.mxu0 0
    %1358 = vmatprep.subr.bf16.mxu0 0
    %1359 = vmatpush2.bf16.xpose.msra.mxu0 0
    %1360 = vmatprep.subr.bf16.mxu0 0
    %1361 = vmatpush2.bf16.xpose.msra.mxu0 0
    %1362 = vmatprep.subr.bf16.mxu0 0
    %1363 = vmatpush2.bf16.xpose.msra.mxu0 0
    %1364 = vmatprep.subr.bf16.mxu0 0
    %1365 = vmatpush2.bf16.xpose.msra.mxu0 0
    %1366 = vmatprep.subr.bf16.mxu0 0
    %1367 = vmatpush2.bf16.xpose.msra.mxu0 0
    %1368 = vmatprep.subr.bf16.mxu0 0
    %1369 = vmatpush2.bf16.xpose.msra.mxu0 0
    %1370 = vmatprep.mubr.bf16.mxu0 0
    %1371 = vmatmul.mubr.bf16.gmra.mxu0 %v1333
    %v1372 = vpop.f32.mrf.mxu0
    %v1373 = vadd.f32 0.0, %v1372
    %v1374 = vpop.f32.mrf.mxu0
    %v1375 = vpop.f32.mrf.mxu0
    %v1376 = vadd.f32 0.0, %v1375
    %v1377 = vpop.f32.mrf.mxu0
    %1378 = vdwg.mxu0
    %v1380 = vsel %vm1284, %v1238, 0
    %v1383 = vsel %vm1284, %v1254, 0
    %1385 = vmatprep.subr.bf16.mxu0 0
    %1386 = vmatpush1.bf16.xpose.msra.mxu0 0
    %1387 = vmatprep.subr.bf16.mxu0 0
    %1388 = vmatpush1.bf16.xpose.msra.mxu0 0
    %1389 = vmatprep.subr.bf16.mxu0 0
    %1390 = vmatpush1.bf16.xpose.msra.mxu0 0
    %1391 = vmatprep.subr.bf16.mxu0 0
    %1392 = vmatpush1.bf16.xpose.msra.mxu0 0
    %1393 = vmatprep.subr.bf16.mxu0 0
    %1394 = vmatpush1.bf16.xpose.msra.mxu0 0
    %1395 = vmatprep.subr.bf16.mxu0 0
    %1396 = vmatpush1.bf16.xpose.msra.mxu0 0
    %1397 = vmatprep.subr.bf16.mxu0 0
    %1398 = vmatpush1.bf16.xpose.msra.mxu0 0
    %1399 = vmatprep.subr.bf16.mxu0 0
    %1400 = vmatpush1.bf16.xpose.msra.mxu0 %v1383
    %1401 = vmatprep.subr.bf16.mxu0 0
    %1402 = vmatpush2.bf16.xpose.msra.mxu0 0
    %1403 = vmatprep.subr.bf16.mxu0 0
    %1404 = vmatpush2.bf16.xpose.msra.mxu0 0
    %1405 = vmatprep.subr.bf16.mxu0 0
    %1406 = vmatpush2.bf16.xpose.msra.mxu0 0
    %1407 = vmatprep.subr.bf16.mxu0 0
    %1408 = vmatpush2.bf16.xpose.msra.mxu0 0
    %1409 = vmatprep.subr.bf16.mxu0 0
    %1410 = vmatpush2.bf16.xpose.msra.mxu0 0
    %1411 = vmatprep.subr.bf16.mxu0 0
    %1412 = vmatpush2.bf16.xpose.msra.mxu0 0
    %1413 = vmatprep.subr.bf16.mxu0 0
    %1414 = vmatpush2.bf16.xpose.msra.mxu0 0
    %1415 = vmatprep.subr.bf16.mxu0 0
    %1416 = vmatpush2.bf16.xpose.msra.mxu0 0
    %1417 = vmatprep.mubr.bf16.mxu0 0
    %1418 = vmatmul.mubr.bf16.gmra.mxu0 %v1380
    %v1419 = vpop.f32.mrf.mxu0
    %v1420 = vadd.f32 0.0, %v1419
    %v1421 = vpop.f32.mrf.mxu0
    %v1422 = vpop.f32.mrf.mxu0
    %v1423 = vadd.f32 0.0, %v1422
    %v1424 = vpop.f32.mrf.mxu0
    %1425 = vdwg.mxu0
    %v1427 = vsel %vm1284, %v1239, 0
    %v1430 = vsel %vm1284, %v1255, 0
    %1432 = vmatprep.subr.bf16.mxu0 0
    %1433 = vmatpush1.bf16.xpose.msra.mxu0 0
    %1434 = vmatprep.subr.bf16.mxu0 0
    %1435 = vmatpush1.bf16.xpose.msra.mxu0 0
    %1436 = vmatprep.subr.bf16.mxu0 0
    %1437 = vmatpush1.bf16.xpose.msra.mxu0 0
    %1438 = vmatprep.subr.bf16.mxu0 0
    %1439 = vmatpush1.bf16.xpose.msra.mxu0 0
    %1440 = vmatprep.subr.bf16.mxu0 0
    %1441 = vmatpush1.bf16.xpose.msra.mxu0 0
    %1442 = vmatprep.subr.bf16.mxu0 0
    %1443 = vmatpush1.bf16.xpose.msra.mxu0 0
    %1444 = vmatprep.subr.bf16.mxu0 0
    %1445 = vmatpush1.bf16.xpose.msra.mxu0 0
    %1446 = vmatprep.subr.bf16.mxu0 0
    %1447 = vmatpush1.bf16.xpose.msra.mxu0 %v1430
    %1448 = vmatprep.subr.bf16.mxu0 0
    %1449 = vmatpush2.bf16.xpose.msra.mxu0 0
    %1450 = vmatprep.subr.bf16.mxu0 0
    %1451 = vmatpush2.bf16.xpose.msra.mxu0 0
    %1452 = vmatprep.subr.bf16.mxu0 0
    %1453 = vmatpush2.bf16.xpose.msra.mxu0 0
    %1454 = vmatprep.subr.bf16.mxu0 0
    %1455 = vmatpush2.bf16.xpose.msra.mxu0 0
    %1456 = vmatprep.subr.bf16.mxu0 0
    %1457 = vmatpush2.bf16.xpose.msra.mxu0 0
    %1458 = vmatprep.subr.bf16.mxu0 0
    %1459 = vmatpush2.bf16.xpose.msra.mxu0 0
    %1460 = vmatprep.subr.bf16.mxu0 0
    %1461 = vmatpush2.bf16.xpose.msra.mxu0 0
    %1462 = vmatprep.subr.bf16.mxu0 0
    %1463 = vmatpush2.bf16.xpose.msra.mxu0 0
    %1464 = vmatprep.mubr.bf16.mxu0 0
    %1465 = vmatmul.mubr.bf16.gmra.mxu0 %v1427
    %v1466 = vpop.f32.mrf.mxu0
    %v1467 = vadd.f32 0.0, %v1466
    %v1468 = vpop.f32.mrf.mxu0
    %v1469 = vpop.f32.mrf.mxu0
    %v1470 = vadd.f32 0.0, %v1469
    %v1471 = vpop.f32.mrf.mxu0
    %1472 = vdwg.mxu0
    %v1474 = vsel %vm1284, %v1240, 0
    %v1477 = vsel %vm1284, %v1256, 0
    %1479 = vmatprep.subr.bf16.mxu0 0
    %1480 = vmatpush1.bf16.xpose.msra.mxu0 0
    %1481 = vmatprep.subr.bf16.mxu0 0
    %1482 = vmatpush1.bf16.xpose.msra.mxu0 0
    %1483 = vmatprep.subr.bf16.mxu0 0
    %1484 = vmatpush1.bf16.xpose.msra.mxu0 0
    %1485 = vmatprep.subr.bf16.mxu0 0
    %1486 = vmatpush1.bf16.xpose.msra.mxu0 0
    %1487 = vmatprep.subr.bf16.mxu0 0
    %1488 = vmatpush1.bf16.xpose.msra.mxu0 0
    %1489 = vmatprep.subr.bf16.mxu0 0
    %1490 = vmatpush1.bf16.xpose.msra.mxu0 0
    %1491 = vmatprep.subr.bf16.mxu0 0
    %1492 = vmatpush1.bf16.xpose.msra.mxu0 0
    %1493 = vmatprep.subr.bf16.mxu0 0
    %1494 = vmatpush1.bf16.xpose.msra.mxu0 %v1477
    %1495 = vmatprep.subr.bf16.mxu0 0
    %1496 = vmatpush2.bf16.xpose.msra.mxu0 0
    %1497 = vmatprep.subr.bf16.mxu0 0
    %1498 = vmatpush2.bf16.xpose.msra.mxu0 0
    %1499 = vmatprep.subr.bf16.mxu0 0
    %1500 = vmatpush2.bf16.xpose.msra.mxu0 0
    %1501 = vmatprep.subr.bf16.mxu0 0
    %1502 = vmatpush2.bf16.xpose.msra.mxu0 0
    %1503 = vmatprep.subr.bf16.mxu0 0
    %1504 = vmatpush2.bf16.xpose.msra.mxu0 0
    %1505 = vmatprep.subr.bf16.mxu0 0
    %1506 = vmatpush2.bf16.xpose.msra.mxu0 0
    %1507 = vmatprep.subr.bf16.mxu0 0
    %1508 = vmatpush2.bf16.xpose.msra.mxu0 0
    %1509 = vmatprep.subr.bf16.mxu0 0
    %1510 = vmatpush2.bf16.xpose.msra.mxu0 0
    %1511 = vmatprep.mubr.bf16.mxu0 0
    %1512 = vmatmul.mubr.bf16.gmra.mxu0 %v1474
    %v1513 = vpop.f32.mrf.mxu0
    %v1514 = vadd.f32 0.0, %v1513
    %v1515 = vpop.f32.mrf.mxu0
    %v1516 = vpop.f32.mrf.mxu0
    %v1517 = vadd.f32 0.0, %v1516
    %v1518 = vpop.f32.mrf.mxu0
    %1519 = vdwg.mxu0
    %v1521 = vsel %vm1284, %v1241, 0
    %v1524 = vsel %vm1284, %v1257, 0
    %1526 = vmatprep.subr.bf16.mxu0 0
    %1527 = vmatpush1.bf16.xpose.msra.mxu0 0
    %1528 = vmatprep.subr.bf16.mxu0 0
    %1529 = vmatpush1.bf16.xpose.msra.mxu0 0
    %1530 = vmatprep.subr.bf16.mxu0 0
    %1531 = vmatpush1.bf16.xpose.msra.mxu0 0
    %1532 = vmatprep.subr.bf16.mxu0 0
    %1533 = vmatpush1.bf16.xpose.msra.mxu0 0
    %1534 = vmatprep.subr.bf16.mxu0 0
    %1535 = vmatpush1.bf16.xpose.msra.mxu0 0
    %1536 = vmatprep.subr.bf16.mxu0 0
    %1537 = vmatpush1.bf16.xpose.msra.mxu0 0
    %1538 = vmatprep.subr.bf16.mxu0 0
    %1539 = vmatpush1.bf16.xpose.msra.mxu0 0
    %1540 = vmatprep.subr.bf16.mxu0 0
    %1541 = vmatpush1.bf16.xpose.msra.mxu0 %v1524
    %1542 = vmatprep.subr.bf16.mxu0 0
    %1543 = vmatpush2.bf16.xpose.msra.mxu0 0
    %1544 = vmatprep.subr.bf16.mxu0 0
    %1545 = vmatpush2.bf16.xpose.msra.mxu0 0
    %1546 = vmatprep.subr.bf16.mxu0 0
    %1547 = vmatpush2.bf16.xpose.msra.mxu0 0
    %1548 = vmatprep.subr.bf16.mxu0 0
    %1549 = vmatpush2.bf16.xpose.msra.mxu0 0
    %1550 = vmatprep.subr.bf16.mxu0 0
    %1551 = vmatpush2.bf16.xpose.msra.mxu0 0
    %1552 = vmatprep.subr.bf16.mxu0 0
    %1553 = vmatpush2.bf16.xpose.msra.mxu0 0
    %1554 = vmatprep.subr.bf16.mxu0 0
    %1555 = vmatpush2.bf16.xpose.msra.mxu0 0
    %1556 = vmatprep.subr.bf16.mxu0 0
    %1557 = vmatpush2.bf16.xpose.msra.mxu0 0
    %1558 = vmatprep.mubr.bf16.mxu0 0
    %1559 = vmatmul.mubr.bf16.gmra.mxu0 %v1521
    %v1560 = vpop.f32.mrf.mxu0
    %v1561 = vadd.f32 0.0, %v1560
    %v1562 = vpop.f32.mrf.mxu0
    %v1563 = vpop.f32.mrf.mxu0
    %v1564 = vadd.f32 0.0, %v1563
    %v1565 = vpop.f32.mrf.mxu0
    %1566 = vdwg.mxu0
    %v1568 = vsel %vm1284, %v1242, 0
    %v1571 = vsel %vm1284, %v1258, 0
    %1573 = vmatprep.subr.bf16.mxu0 0
    %1574 = vmatpush1.bf16.xpose.msra.mxu0 0
    %1575 = vmatprep.subr.bf16.mxu0 0
    %1576 = vmatpush1.bf16.xpose.msra.mxu0 0
    %1577 = vmatprep.subr.bf16.mxu0 0
    %1578 = vmatpush1.bf16.xpose.msra.mxu0 0
    %1579 = vmatprep.subr.bf16.mxu0 0
    %1580 = vmatpush1.bf16.xpose.msra.mxu0 0
    %1581 = vmatprep.subr.bf16.mxu0 0
    %1582 = vmatpush1.bf16.xpose.msra.mxu0 0
    %1583 = vmatprep.subr.bf16.mxu0 0
    %1584 = vmatpush1.bf16.xpose.msra.mxu0 0
    %1585 = vmatprep.subr.bf16.mxu0 0
    %1586 = vmatpush1.bf16.xpose.msra.mxu0 0
    %1587 = vmatprep.subr.bf16.mxu0 0
    %1588 = vmatpush1.bf16.xpose.msra.mxu0 %v1571
    %1589 = vmatprep.subr.bf16.mxu0 0
    %1590 = vmatpush2.bf16.xpose.msra.mxu0 0
    %1591 = vmatprep.subr.bf16.mxu0 0
    %1592 = vmatpush2.bf16.xpose.msra.mxu0 0
    %1593 = vmatprep.subr.bf16.mxu0 0
    %1594 = vmatpush2.bf16.xpose.msra.mxu0 0
    %1595 = vmatprep.subr.bf16.mxu0 0
    %1596 = vmatpush2.bf16.xpose.msra.mxu0 0
    %1597 = vmatprep.subr.bf16.mxu0 0
    %1598 = vmatpush2.bf16.xpose.msra.mxu0 0
    %1599 = vmatprep.subr.bf16.mxu0 0
    %1600 = vmatpush2.bf16.xpose.msra.mxu0 0
    %1601 = vmatprep.subr.bf16.mxu0 0
    %1602 = vmatpush2.bf16.xpose.msra.mxu0 0
    %1603 = vmatprep.subr.bf16.mxu0 0
    %1604 = vmatpush2.bf16.xpose.msra.mxu0 0
    %1605 = vmatprep.mubr.bf16.mxu0 0
    %1606 = vmatmul.mubr.bf16.gmra.mxu0 %v1568
    %v1607 = vpop.f32.mrf.mxu0
    %v1608 = vadd.f32 0.0, %v1607
    %v1609 = vpop.f32.mrf.mxu0
    %v1610 = vpop.f32.mrf.mxu0
    %v1611 = vadd.f32 0.0, %v1610
    %v1612 = vpop.f32.mrf.mxu0
    %1613 = vdwg.mxu0
    %v1615 = vsel %vm1284, %v1243, 0
    %v1618 = vsel %vm1284, %v1259, 0
    %1620 = vmatprep.subr.bf16.mxu0 0
    %1621 = vmatpush1.bf16.xpose.msra.mxu0 0
    %1622 = vmatprep.subr.bf16.mxu0 0
    %1623 = vmatpush1.bf16.xpose.msra.mxu0 0
    %1624 = vmatprep.subr.bf16.mxu0 0
    %1625 = vmatpush1.bf16.xpose.msra.mxu0 0
    %1626 = vmatprep.subr.bf16.mxu0 0
    %1627 = vmatpush1.bf16.xpose.msra.mxu0 0
    %1628 = vmatprep.subr.bf16.mxu0 0
    %1629 = vmatpush1.bf16.xpose.msra.mxu0 0
    %1630 = vmatprep.subr.bf16.mxu0 0
    %1631 = vmatpush1.bf16.xpose.msra.mxu0 0
    %1632 = vmatprep.subr.bf16.mxu0 0
    %1633 = vmatpush1.bf16.xpose.msra.mxu0 0
    %1634 = vmatprep.subr.bf16.mxu0 0
    %1635 = vmatpush1.bf16.xpose.msra.mxu0 %v1618
    %1636 = vmatprep.subr.bf16.mxu0 0
    %1637 = vmatpush2.bf16.xpose.msra.mxu0 0
    %1638 = vmatprep.subr.bf16.mxu0 0
    %1639 = vmatpush2.bf16.xpose.msra.mxu0 0
    %1640 = vmatprep.subr.bf16.mxu0 0
    %1641 = vmatpush2.bf16.xpose.msra.mxu0 0
    %1642 = vmatprep.subr.bf16.mxu0 0
    %1643 = vmatpush2.bf16.xpose.msra.mxu0 0
    %1644 = vmatprep.subr.bf16.mxu0 0
    %1645 = vmatpush2.bf16.xpose.msra.mxu0 0
    %1646 = vmatprep.subr.bf16.mxu0 0
    %1647 = vmatpush2.bf16.xpose.msra.mxu0 0
    %1648 = vmatprep.subr.bf16.mxu0 0
    %1649 = vmatpush2.bf16.xpose.msra.mxu0 0
    %1650 = vmatprep.subr.bf16.mxu0 0
    %1651 = vmatpush2.bf16.xpose.msra.mxu0 0
    %1652 = vmatprep.mubr.bf16.mxu0 0
    %1653 = vmatmul.mubr.bf16.gmra.mxu0 %v1615
    %v1654 = vpop.f32.mrf.mxu0
    %v1655 = vadd.f32 0.0, %v1654
    %v1656 = vpop.f32.mrf.mxu0
    %v1657 = vpop.f32.mrf.mxu0
    %v1658 = vadd.f32 0.0, %v1657
    %v1659 = vpop.f32.mrf.mxu0
    %1660 = vdwg.mxu0
    %v1662 = vsel %vm1284, %v1244, 0
    %v1665 = vsel %vm1284, %v1260, 0
    %1667 = vmatprep.subr.bf16.mxu0 0
    %1668 = vmatpush1.bf16.xpose.msra.mxu0 0
    %1669 = vmatprep.subr.bf16.mxu0 0
    %1670 = vmatpush1.bf16.xpose.msra.mxu0 0
    %1671 = vmatprep.subr.bf16.mxu0 0
    %1672 = vmatpush1.bf16.xpose.msra.mxu0 0
    %1673 = vmatprep.subr.bf16.mxu0 0
    %1674 = vmatpush1.bf16.xpose.msra.mxu0 0
    %1675 = vmatprep.subr.bf16.mxu0 0
    %1676 = vmatpush1.bf16.xpose.msra.mxu0 0
    %1677 = vmatprep.subr.bf16.mxu0 0
    %1678 = vmatpush1.bf16.xpose.msra.mxu0 0
    %1679 = vmatprep.subr.bf16.mxu0 0
    %1680 = vmatpush1.bf16.xpose.msra.mxu0 0
    %1681 = vmatprep.subr.bf16.mxu0 0
    %1682 = vmatpush1.bf16.xpose.msra.mxu0 %v1665
    %1683 = vmatprep.subr.bf16.mxu0 0
    %1684 = vmatpush2.bf16.xpose.msra.mxu0 0
    %1685 = vmatprep.subr.bf16.mxu0 0
    %1686 = vmatpush2.bf16.xpose.msra.mxu0 0
    %1687 = vmatprep.subr.bf16.mxu0 0
    %1688 = vmatpush2.bf16.xpose.msra.mxu0 0
    %1689 = vmatprep.subr.bf16.mxu0 0
    %1690 = vmatpush2.bf16.xpose.msra.mxu0 0
    %1691 = vmatprep.subr.bf16.mxu0 0
    %1692 = vmatpush2.bf16.xpose.msra.mxu0 0
    %1693 = vmatprep.subr.bf16.mxu0 0
    %1694 = vmatpush2.bf16.xpose.msra.mxu0 0
    %1695 = vmatprep.subr.bf16.mxu0 0
    %1696 = vmatpush2.bf16.xpose.msra.mxu0 0
    %1697 = vmatprep.subr.bf16.mxu0 0
    %1698 = vmatpush2.bf16.xpose.msra.mxu0 0
    %1699 = vmatprep.mubr.bf16.mxu0 0
    %1700 = vmatmul.mubr.bf16.gmra.mxu0 %v1662
    %v1701 = vpop.f32.mrf.mxu0
    %v1702 = vadd.f32 0.0, %v1701
    %v1703 = vpop.f32.mrf.mxu0
    %v1704 = vpop.f32.mrf.mxu0
    %v1705 = vadd.f32 0.0, %v1704
    %v1706 = vpop.f32.mrf.mxu0
    %1707 = vdwg.mxu0
    %v1709 = vsel %vm1284, %v1245, 0
    %v1712 = vsel %vm1284, %v1261, 0
    %1714 = vmatprep.subr.bf16.mxu0 0
    %1715 = vmatpush1.bf16.xpose.msra.mxu0 0
    %1716 = vmatprep.subr.bf16.mxu0 0
    %1717 = vmatpush1.bf16.xpose.msra.mxu0 0
    %1718 = vmatprep.subr.bf16.mxu0 0
    %1719 = vmatpush1.bf16.xpose.msra.mxu0 0
    %1720 = vmatprep.subr.bf16.mxu0 0
    %1721 = vmatpush1.bf16.xpose.msra.mxu0 0
    %1722 = vmatprep.subr.bf16.mxu0 0
    %1723 = vmatpush1.bf16.xpose.msra.mxu0 0
    %1724 = vmatprep.subr.bf16.mxu0 0
    %1725 = vmatpush1.bf16.xpose.msra.mxu0 0
    %1726 = vmatprep.subr.bf16.mxu0 0
    %1727 = vmatpush1.bf16.xpose.msra.mxu0 0
    %1728 = vmatprep.subr.bf16.mxu0 0
    %1729 = vmatpush1.bf16.xpose.msra.mxu0 %v1712
    %1730 = vmatprep.subr.bf16.mxu0 0
    %1731 = vmatpush2.bf16.xpose.msra.mxu0 0
    %1732 = vmatprep.subr.bf16.mxu0 0
    %1733 = vmatpush2.bf16.xpose.msra.mxu0 0
    %1734 = vmatprep.subr.bf16.mxu0 0
    %1735 = vmatpush2.bf16.xpose.msra.mxu0 0
    %1736 = vmatprep.subr.bf16.mxu0 0
    %1737 = vmatpush2.bf16.xpose.msra.mxu0 0
    %1738 = vmatprep.subr.bf16.mxu0 0
    %1739 = vmatpush2.bf16.xpose.msra.mxu0 0
    %1740 = vmatprep.subr.bf16.mxu0 0
    %1741 = vmatpush2.bf16.xpose.msra.mxu0 0
    %1742 = vmatprep.subr.bf16.mxu0 0
    %1743 = vmatpush2.bf16.xpose.msra.mxu0 0
    %1744 = vmatprep.subr.bf16.mxu0 0
    %1745 = vmatpush2.bf16.xpose.msra.mxu0 0
    %1746 = vmatprep.mubr.bf16.mxu0 0
    %1747 = vmatmul.mubr.bf16.gmra.mxu0 %v1709
    %v1748 = vpop.f32.mrf.mxu0
    %v1749 = vadd.f32 0.0, %v1748
    %v1750 = vpop.f32.mrf.mxu0
    %v1751 = vpop.f32.mrf.mxu0
    %v1752 = vadd.f32 0.0, %v1751
    %v1753 = vpop.f32.mrf.mxu0
    %1754 = vdwg.mxu0
    %v1756 = vsel %vm1284, %v1246, 0
    %v1759 = vsel %vm1284, %v1262, 0
    %1761 = vmatprep.subr.bf16.mxu0 0
    %1762 = vmatpush1.bf16.xpose.msra.mxu0 0
    %1763 = vmatprep.subr.bf16.mxu0 0
    %1764 = vmatpush1.bf16.xpose.msra.mxu0 0
    %1765 = vmatprep.subr.bf16.mxu0 0
    %1766 = vmatpush1.bf16.xpose.msra.mxu0 0
    %1767 = vmatprep.subr.bf16.mxu0 0
    %1768 = vmatpush1.bf16.xpose.msra.mxu0 0
    %1769 = vmatprep.subr.bf16.mxu0 0
    %1770 = vmatpush1.bf16.xpose.msra.mxu0 0
    %1771 = vmatprep.subr.bf16.mxu0 0
    %1772 = vmatpush1.bf16.xpose.msra.mxu0 0
    %1773 = vmatprep.subr.bf16.mxu0 0
    %1774 = vmatpush1.bf16.xpose.msra.mxu0 0
    %1775 = vmatprep.subr.bf16.mxu0 0
    %1776 = vmatpush1.bf16.xpose.msra.mxu0 %v1759
    %1777 = vmatprep.subr.bf16.mxu0 0
    %1778 = vmatpush2.bf16.xpose.msra.mxu0 0
    %1779 = vmatprep.subr.bf16.mxu0 0
    %1780 = vmatpush2.bf16.xpose.msra.mxu0 0
    %1781 = vmatprep.subr.bf16.mxu0 0
    %1782 = vmatpush2.bf16.xpose.msra.mxu0 0
    %1783 = vmatprep.subr.bf16.mxu0 0
    %1784 = vmatpush2.bf16.xpose.msra.mxu0 0
    %1785 = vmatprep.subr.bf16.mxu0 0
    %1786 = vmatpush2.bf16.xpose.msra.mxu0 0
    %1787 = vmatprep.subr.bf16.mxu0 0
    %1788 = vmatpush2.bf16.xpose.msra.mxu0 0
    %1789 = vmatprep.subr.bf16.mxu0 0
    %1790 = vmatpush2.bf16.xpose.msra.mxu0 0
    %1791 = vmatprep.subr.bf16.mxu0 0
    %1792 = vmatpush2.bf16.xpose.msra.mxu0 0
    %1793 = vmatprep.mubr.bf16.mxu0 0
    %1794 = vmatmul.mubr.bf16.gmra.mxu0 %v1756
    %v1795 = vpop.f32.mrf.mxu0
    %v1796 = vadd.f32 0.0, %v1795
    %v1797 = vpop.f32.mrf.mxu0
    %v1798 = vpop.f32.mrf.mxu0
    %v1799 = vadd.f32 0.0, %v1798
    %v1800 = vpop.f32.mrf.mxu0
    %1801 = vdwg.mxu0
    %v1803 = vsel %vm1284, %v1247, 0
    %v1806 = vsel %vm1284, %v1263, 0
    %1808 = vmatprep.subr.bf16.mxu0 0
    %1809 = vmatpush1.bf16.xpose.msra.mxu0 0
    %1810 = vmatprep.subr.bf16.mxu0 0
    %1811 = vmatpush1.bf16.xpose.msra.mxu0 0
    %1812 = vmatprep.subr.bf16.mxu0 0
    %1813 = vmatpush1.bf16.xpose.msra.mxu0 0
    %1814 = vmatprep.subr.bf16.mxu0 0
    %1815 = vmatpush1.bf16.xpose.msra.mxu0 0
    %1816 = vmatprep.subr.bf16.mxu0 0
    %1817 = vmatpush1.bf16.xpose.msra.mxu0 0
    %1818 = vmatprep.subr.bf16.mxu0 0
    %1819 = vmatpush1.bf16.xpose.msra.mxu0 0
    %1820 = vmatprep.subr.bf16.mxu0 0
    %1821 = vmatpush1.bf16.xpose.msra.mxu0 0
    %1822 = vmatprep.subr.bf16.mxu0 0
    %1823 = vmatpush1.bf16.xpose.msra.mxu0 %v1806
    %1824 = vmatprep.subr.bf16.mxu0 0
    %1825 = vmatpush2.bf16.xpose.msra.mxu0 0
    %1826 = vmatprep.subr.bf16.mxu0 0
    %1827 = vmatpush2.bf16.xpose.msra.mxu0 0
    %1828 = vmatprep.subr.bf16.mxu0 0
    %1829 = vmatpush2.bf16.xpose.msra.mxu0 0
    %1830 = vmatprep.subr.bf16.mxu0 0
    %1831 = vmatpush2.bf16.xpose.msra.mxu0 0
    %1832 = vmatprep.subr.bf16.mxu0 0
    %1833 = vmatpush2.bf16.xpose.msra.mxu0 0
    %1834 = vmatprep.subr.bf16.mxu0 0
    %1835 = vmatpush2.bf16.xpose.msra.mxu0 0
    %1836 = vmatprep.subr.bf16.mxu0 0
    %1837 = vmatpush2.bf16.xpose.msra.mxu0 0
    %1838 = vmatprep.subr.bf16.mxu0 0
    %1839 = vmatpush2.bf16.xpose.msra.mxu0 0
    %1840 = vmatprep.mubr.bf16.mxu0 0
    %1841 = vmatmul.mubr.bf16.gmra.mxu0 %v1803
    %v1842 = vpop.f32.mrf.mxu0
    %v1843 = vadd.f32 0.0, %v1842
    %v1844 = vpop.f32.mrf.mxu0
    %v1845 = vpop.f32.mrf.mxu0
    %v1846 = vadd.f32 0.0, %v1845
    %v1847 = vpop.f32.mrf.mxu0
    %1848 = vdwg.mxu0
    %v1850 = vsel %vm1284, %v1248, 0
    %v1853 = vsel %vm1284, %v1264, 0
    %1855 = vmatprep.subr.bf16.mxu0 0
    %1856 = vmatpush1.bf16.xpose.msra.mxu0 0
    %1857 = vmatprep.subr.bf16.mxu0 0
    %1858 = vmatpush1.bf16.xpose.msra.mxu0 0
    %1859 = vmatprep.subr.bf16.mxu0 0
    %1860 = vmatpush1.bf16.xpose.msra.mxu0 0
    %1861 = vmatprep.subr.bf16.mxu0 0
    %1862 = vmatpush1.bf16.xpose.msra.mxu0 0
    %1863 = vmatprep.subr.bf16.mxu0 0
    %1864 = vmatpush1.bf16.xpose.msra.mxu0 0
    %1865 = vmatprep.subr.bf16.mxu0 0
    %1866 = vmatpush1.bf16.xpose.msra.mxu0 0
    %1867 = vmatprep.subr.bf16.mxu0 0
    %1868 = vmatpush1.bf16.xpose.msra.mxu0 0
    %1869 = vmatprep.subr.bf16.mxu0 0
    %1870 = vmatpush1.bf16.xpose.msra.mxu0 %v1853
    %1871 = vmatprep.subr.bf16.mxu0 0
    %1872 = vmatpush2.bf16.xpose.msra.mxu0 0
    %1873 = vmatprep.subr.bf16.mxu0 0
    %1874 = vmatpush2.bf16.xpose.msra.mxu0 0
    %1875 = vmatprep.subr.bf16.mxu0 0
    %1876 = vmatpush2.bf16.xpose.msra.mxu0 0
    %1877 = vmatprep.subr.bf16.mxu0 0
    %1878 = vmatpush2.bf16.xpose.msra.mxu0 0
    %1879 = vmatprep.subr.bf16.mxu0 0
    %1880 = vmatpush2.bf16.xpose.msra.mxu0 0
    %1881 = vmatprep.subr.bf16.mxu0 0
    %1882 = vmatpush2.bf16.xpose.msra.mxu0 0
    %1883 = vmatprep.subr.bf16.mxu0 0
    %1884 = vmatpush2.bf16.xpose.msra.mxu0 0
    %1885 = vmatprep.subr.bf16.mxu0 0
    %1886 = vmatpush2.bf16.xpose.msra.mxu0 0
    %1887 = vmatprep.mubr.bf16.mxu0 0
    %1888 = vmatmul.mubr.bf16.gmra.mxu0 %v1850
    %v1889 = vpop.f32.mrf.mxu0
    %v1890 = vadd.f32 0.0, %v1889
    %v1891 = vpop.f32.mrf.mxu0
    %v1892 = vpop.f32.mrf.mxu0
    %v1893 = vadd.f32 0.0, %v1892
    %v1894 = vpop.f32.mrf.mxu0
    %1895 = vdwg.mxu0
    %v1897 = vsel %vm1284, %v1249, 0
    %v1900 = vsel %vm1284, %v1265, 0
    %1902 = vmatprep.subr.bf16.mxu0 0
    %1903 = vmatpush1.bf16.xpose.msra.mxu0 0
    %1904 = vmatprep.subr.bf16.mxu0 0
    %1905 = vmatpush1.bf16.xpose.msra.mxu0 0
    %1906 = vmatprep.subr.bf16.mxu0 0
    %1907 = vmatpush1.bf16.xpose.msra.mxu0 0
    %1908 = vmatprep.subr.bf16.mxu0 0
    %1909 = vmatpush1.bf16.xpose.msra.mxu0 0
    %1910 = vmatprep.subr.bf16.mxu0 0
    %1911 = vmatpush1.bf16.xpose.msra.mxu0 0
    %1912 = vmatprep.subr.bf16.mxu0 0
    %1913 = vmatpush1.bf16.xpose.msra.mxu0 0
    %1914 = vmatprep.subr.bf16.mxu0 0
    %1915 = vmatpush1.bf16.xpose.msra.mxu0 0
    %1916 = vmatprep.subr.bf16.mxu0 0
    %1917 = vmatpush1.bf16.xpose.msra.mxu0 %v1900
    %1918 = vmatprep.subr.bf16.mxu0 0
    %1919 = vmatpush2.bf16.xpose.msra.mxu0 0
    %1920 = vmatprep.subr.bf16.mxu0 0
    %1921 = vmatpush2.bf16.xpose.msra.mxu0 0
    %1922 = vmatprep.subr.bf16.mxu0 0
    %1923 = vmatpush2.bf16.xpose.msra.mxu0 0
    %1924 = vmatprep.subr.bf16.mxu0 0
    %1925 = vmatpush2.bf16.xpose.msra.mxu0 0
    %1926 = vmatprep.subr.bf16.mxu0 0
    %1927 = vmatpush2.bf16.xpose.msra.mxu0 0
    %1928 = vmatprep.subr.bf16.mxu0 0
    %1929 = vmatpush2.bf16.xpose.msra.mxu0 0
    %1930 = vmatprep.subr.bf16.mxu0 0
    %1931 = vmatpush2.bf16.xpose.msra.mxu0 0
    %1932 = vmatprep.subr.bf16.mxu0 0
    %1933 = vmatpush2.bf16.xpose.msra.mxu0 0
    %1934 = vmatprep.mubr.bf16.mxu0 0
    %1935 = vmatmul.mubr.bf16.gmra.mxu0 %v1897
    %v1936 = vpop.f32.mrf.mxu0
    %v1937 = vadd.f32 0.0, %v1936
    %v1938 = vpop.f32.mrf.mxu0
    %v1939 = vpop.f32.mrf.mxu0
    %v1940 = vadd.f32 0.0, %v1939
    %v1941 = vpop.f32.mrf.mxu0
    %1942 = vdwg.mxu0
    %v1944 = vsel %vm1284, %v1250, 0
    %v1947 = vsel %vm1284, %v1266, 0
    %1949 = vmatprep.subr.bf16.mxu0 0
    %1950 = vmatpush1.bf16.xpose.msra.mxu0 0
    %1951 = vmatprep.subr.bf16.mxu0 0
    %1952 = vmatpush1.bf16.xpose.msra.mxu0 0
    %1953 = vmatprep.subr.bf16.mxu0 0
    %1954 = vmatpush1.bf16.xpose.msra.mxu0 0
    %1955 = vmatprep.subr.bf16.mxu0 0
    %1956 = vmatpush1.bf16.xpose.msra.mxu0 0
    %1957 = vmatprep.subr.bf16.mxu0 0
    %1958 = vmatpush1.bf16.xpose.msra.mxu0 0
    %1959 = vmatprep.subr.bf16.mxu0 0
    %1960 = vmatpush1.bf16.xpose.msra.mxu0 0
    %1961 = vmatprep.subr.bf16.mxu0 0
    %1962 = vmatpush1.bf16.xpose.msra.mxu0 0
    %1963 = vmatprep.subr.bf16.mxu0 0
    %1964 = vmatpush1.bf16.xpose.msra.mxu0 %v1947
    %1965 = vmatprep.subr.bf16.mxu0 0
    %1966 = vmatpush2.bf16.xpose.msra.mxu0 0
    %1967 = vmatprep.subr.bf16.mxu0 0
    %1968 = vmatpush2.bf16.xpose.msra.mxu0 0
    %1969 = vmatprep.subr.bf16.mxu0 0
    %1970 = vmatpush2.bf16.xpose.msra.mxu0 0
    %1971 = vmatprep.subr.bf16.mxu0 0
    %1972 = vmatpush2.bf16.xpose.msra.mxu0 0
    %1973 = vmatprep.subr.bf16.mxu0 0
    %1974 = vmatpush2.bf16.xpose.msra.mxu0 0
    %1975 = vmatprep.subr.bf16.mxu0 0
    %1976 = vmatpush2.bf16.xpose.msra.mxu0 0
    %1977 = vmatprep.subr.bf16.mxu0 0
    %1978 = vmatpush2.bf16.xpose.msra.mxu0 0
    %1979 = vmatprep.subr.bf16.mxu0 0
    %1980 = vmatpush2.bf16.xpose.msra.mxu0 0
    %1981 = vmatprep.mubr.bf16.mxu0 0
    %1982 = vmatmul.mubr.bf16.gmra.mxu0 %v1944
    %v1983 = vpop.f32.mrf.mxu0
    %v1984 = vadd.f32 0.0, %v1983
    %v1985 = vpop.f32.mrf.mxu0
    %v1986 = vpop.f32.mrf.mxu0
    %v1987 = vadd.f32 0.0, %v1986
    %v1988 = vpop.f32.mrf.mxu0
    %1989 = vdwg.mxu0
    %v1991 = vsel %vm1284, %v1251, 0
    %v1994 = vsel %vm1284, %v1267, 0
    %1996 = vmatprep.subr.bf16.mxu0 0
    %1997 = vmatpush1.bf16.xpose.msra.mxu0 0
    %1998 = vmatprep.subr.bf16.mxu0 0
    %1999 = vmatpush1.bf16.xpose.msra.mxu0 0
    %2000 = vmatprep.subr.bf16.mxu0 0
    %2001 = vmatpush1.bf16.xpose.msra.mxu0 0
    %2002 = vmatprep.subr.bf16.mxu0 0
    %2003 = vmatpush1.bf16.xpose.msra.mxu0 0
    %2004 = vmatprep.subr.bf16.mxu0 0
    %2005 = vmatpush1.bf16.xpose.msra.mxu0 0
    %2006 = vmatprep.subr.bf16.mxu0 0
    %2007 = vmatpush1.bf16.xpose.msra.mxu0 0
    %2008 = vmatprep.subr.bf16.mxu0 0
    %2009 = vmatpush1.bf16.xpose.msra.mxu0 0
    %2010 = vmatprep.subr.bf16.mxu0 0
    %2011 = vmatpush1.bf16.xpose.msra.mxu0 %v1994
    %2012 = vmatprep.subr.bf16.mxu0 0
    %2013 = vmatpush2.bf16.xpose.msra.mxu0 0
    %2014 = vmatprep.subr.bf16.mxu0 0
    %2015 = vmatpush2.bf16.xpose.msra.mxu0 0
    %2016 = vmatprep.subr.bf16.mxu0 0
    %2017 = vmatpush2.bf16.xpose.msra.mxu0 0
    %2018 = vmatprep.subr.bf16.mxu0 0
    %2019 = vmatpush2.bf16.xpose.msra.mxu0 0
    %2020 = vmatprep.subr.bf16.mxu0 0
    %2021 = vmatpush2.bf16.xpose.msra.mxu0 0
    %2022 = vmatprep.subr.bf16.mxu0 0
    %2023 = vmatpush2.bf16.xpose.msra.mxu0 0
    %2024 = vmatprep.subr.bf16.mxu0 0
    %2025 = vmatpush2.bf16.xpose.msra.mxu0 0
    %2026 = vmatprep.subr.bf16.mxu0 0
    %2027 = vmatpush2.bf16.xpose.msra.mxu0 0
    %2028 = vmatprep.mubr.bf16.mxu0 0
    %2029 = vmatmul.mubr.bf16.gmra.mxu0 %v1991
    %v2030 = vpop.f32.mrf.mxu0
    %v2031 = vadd.f32 0.0, %v2030
    %v2032 = vpop.f32.mrf.mxu0
    %v2033 = vpop.f32.mrf.mxu0
    %v2034 = vadd.f32 0.0, %v2033
    %v2035 = vpop.f32.mrf.mxu0
    %2036 = vdwg.mxu0
    %v2037 = vmul.f32 %v1326, 0.17677669
    %v2038 = vmul.f32 %v1329, 0.17677669
    %v2039 = vmul.f32 %v1373, 0.17677669
    %v2040 = vmul.f32 %v1376, 0.17677669
    %v2041 = vmul.f32 %v1420, 0.17677669
    %v2042 = vmul.f32 %v1423, 0.17677669
    %v2043 = vmul.f32 %v1467, 0.17677669
    %v2044 = vmul.f32 %v1470, 0.17677669
    %v2045 = vmul.f32 %v1514, 0.17677669
    %v2046 = vmul.f32 %v1517, 0.17677669
    %v2047 = vmul.f32 %v1561, 0.17677669
    %v2048 = vmul.f32 %v1564, 0.17677669
    %v2049 = vmul.f32 %v1608, 0.17677669
    %v2050 = vmul.f32 %v1611, 0.17677669
    %v2051 = vmul.f32 %v1655, 0.17677669
    %v2052 = vmul.f32 %v1658, 0.17677669
    %v2053 = vmul.f32 %v1702, 0.17677669
    %v2054 = vmul.f32 %v1705, 0.17677669
    %v2055 = vmul.f32 %v1749, 0.17677669
    %v2056 = vmul.f32 %v1752, 0.17677669
    %v2057 = vmul.f32 %v1796, 0.17677669
    %v2058 = vmul.f32 %v1799, 0.17677669
    %v2059 = vmul.f32 %v1843, 0.17677669
    %v2060 = vmul.f32 %v1846, 0.17677669
    %v2061 = vmul.f32 %v1890, 0.17677669
    %v2062 = vmul.f32 %v1893, 0.17677669
    %v2063 = vmul.f32 %v1937, 0.17677669
    %v2064 = vmul.f32 %v1940, 0.17677669
    %v2065 = vmul.f32 %v1984, 0.17677669
    %v2066 = vmul.f32 %v1987, 0.17677669
    %v2067 = vmul.f32 %v2031, 0.17677669
    %v2068 = vmul.f32 %v2034, 0.17677669
    %vm2069 = vcmask 130048
    %v2070 = vsel %vm2069, %v2037, -inf
    %2071 = vmax.xlane.f32.xlu0 %v2070
    %v2072 = vpop.xlane.xlu0 %2071
    %v2073 = vsel %vm2069, %v2038, -inf
    %2074 = vmax.xlane.f32.xlu0 %v2073
    %v2075 = vpop.xlane.xlu0 %2074
    %v2076 = vsel %vm2069, %v2039, -inf
    %2077 = vmax.xlane.f32.xlu0 %v2076
    %v2078 = vpop.xlane.xlu0 %2077
    %v2079 = vsel %vm2069, %v2040, -inf
    %2080 = vmax.xlane.f32.xlu0 %v2079
    %v2081 = vpop.xlane.xlu0 %2080
    %v2082 = vsel %vm2069, %v2041, -inf
    %2083 = vmax.xlane.f32.xlu0 %v2082
    %v2084 = vpop.xlane.xlu0 %2083
    %v2085 = vsel %vm2069, %v2042, -inf
    %2086 = vmax.xlane.f32.xlu0 %v2085
    %v2087 = vpop.xlane.xlu0 %2086
    %v2088 = vsel %vm2069, %v2043, -inf
    %2089 = vmax.xlane.f32.xlu0 %v2088
    %v2090 = vpop.xlane.xlu0 %2089
    %v2091 = vsel %vm2069, %v2044, -inf
    %2092 = vmax.xlane.f32.xlu0 %v2091
    %v2093 = vpop.xlane.xlu0 %2092
    %v2094 = vsel %vm2069, %v2045, -inf
    %2095 = vmax.xlane.f32.xlu0 %v2094
    %v2096 = vpop.xlane.xlu0 %2095
    %v2097 = vsel %vm2069, %v2046, -inf
    %2098 = vmax.xlane.f32.xlu0 %v2097
    %v2099 = vpop.xlane.xlu0 %2098
    %v2100 = vsel %vm2069, %v2047, -inf
    %2101 = vmax.xlane.f32.xlu0 %v2100
    %v2102 = vpop.xlane.xlu0 %2101
    %v2103 = vsel %vm2069, %v2048, -inf
    %2104 = vmax.xlane.f32.xlu0 %v2103
    %v2105 = vpop.xlane.xlu0 %2104
    %v2106 = vsel %vm2069, %v2049, -inf
    %2107 = vmax.xlane.f32.xlu0 %v2106
    %v2108 = vpop.xlane.xlu0 %2107
    %v2109 = vsel %vm2069, %v2050, -inf
    %2110 = vmax.xlane.f32.xlu0 %v2109
    %v2111 = vpop.xlane.xlu0 %2110
    %v2112 = vsel %vm2069, %v2051, -inf
    %2113 = vmax.xlane.f32.xlu0 %v2112
    %v2114 = vpop.xlane.xlu0 %2113
    %v2115 = vsel %vm2069, %v2052, -inf
    %2116 = vmax.xlane.f32.xlu0 %v2115
    %v2117 = vpop.xlane.xlu0 %2116
    %v2118 = vsel %vm2069, %v2053, -inf
    %2119 = vmax.xlane.f32.xlu0 %v2118
    %v2120 = vpop.xlane.xlu0 %2119
    %v2121 = vsel %vm2069, %v2054, -inf
    %2122 = vmax.xlane.f32.xlu0 %v2121
    %v2123 = vpop.xlane.xlu0 %2122
    %v2124 = vsel %vm2069, %v2055, -inf
    %2125 = vmax.xlane.f32.xlu0 %v2124
    %v2126 = vpop.xlane.xlu0 %2125
    %v2127 = vsel %vm2069, %v2056, -inf
    %2128 = vmax.xlane.f32.xlu0 %v2127
    %v2129 = vpop.xlane.xlu0 %2128
    %v2130 = vsel %vm2069, %v2057, -inf
    %2131 = vmax.xlane.f32.xlu0 %v2130
    %v2132 = vpop.xlane.xlu0 %2131
    %v2133 = vsel %vm2069, %v2058, -inf
    %2134 = vmax.xlane.f32.xlu0 %v2133
    %v2135 = vpop.xlane.xlu0 %2134
    %v2136 = vsel %vm2069, %v2059, -inf
    %2137 = vmax.xlane.f32.xlu0 %v2136
    %v2138 = vpop.xlane.xlu0 %2137
    %v2139 = vsel %vm2069, %v2060, -inf
    %2140 = vmax.xlane.f32.xlu0 %v2139
    %v2141 = vpop.xlane.xlu0 %2140
    %v2142 = vsel %vm2069, %v2061, -inf
    %2143 = vmax.xlane.f32.xlu0 %v2142
    %v2144 = vpop.xlane.xlu0 %2143
    %v2145 = vsel %vm2069, %v2062, -inf
    %2146 = vmax.xlane.f32.xlu0 %v2145
    %v2147 = vpop.xlane.xlu0 %2146
    %v2148 = vsel %vm2069, %v2063, -inf
    %2149 = vmax.xlane.f32.xlu0 %v2148
    %v2150 = vpop.xlane.xlu0 %2149
    %v2151 = vsel %vm2069, %v2064, -inf
    %2152 = vmax.xlane.f32.xlu0 %v2151
    %v2153 = vpop.xlane.xlu0 %2152
    %v2154 = vsel %vm2069, %v2065, -inf
    %2155 = vmax.xlane.f32.xlu0 %v2154
    %v2156 = vpop.xlane.xlu0 %2155
    %v2157 = vsel %vm2069, %v2066, -inf
    %2158 = vmax.xlane.f32.xlu0 %v2157
    %v2159 = vpop.xlane.xlu0 %2158
    %v2160 = vsel %vm2069, %v2067, -inf
    %2161 = vmax.xlane.f32.xlu0 %v2160
    %v2162 = vpop.xlane.xlu0 %2161
    %v2163 = vsel %vm2069, %v2068, -inf
    %2164 = vmax.xlane.f32.xlu0 %v2163
    %v2165 = vpop.xlane.xlu0 %2164
    %v2166 = vsub.f32 %v2037, %v2072
    %v2167 = vsub.f32 %v2038, %v2075
    %v2168 = vsub.f32 %v2039, %v2078
    %v2169 = vsub.f32 %v2040, %v2081
    %v2170 = vsub.f32 %v2041, %v2084
    %v2171 = vsub.f32 %v2042, %v2087
    %v2172 = vsub.f32 %v2043, %v2090
    %v2173 = vsub.f32 %v2044, %v2093
    %v2174 = vsub.f32 %v2045, %v2096
    %v2175 = vsub.f32 %v2046, %v2099
    %v2176 = vsub.f32 %v2047, %v2102
    %v2177 = vsub.f32 %v2048, %v2105
    %v2178 = vsub.f32 %v2049, %v2108
    %v2179 = vsub.f32 %v2050, %v2111
    %v2180 = vsub.f32 %v2051, %v2114
    %v2181 = vsub.f32 %v2052, %v2117
    %v2182 = vsub.f32 %v2053, %v2120
    %v2183 = vsub.f32 %v2054, %v2123
    %v2184 = vsub.f32 %v2055, %v2126
    %v2185 = vsub.f32 %v2056, %v2129
    %v2186 = vsub.f32 %v2057, %v2132
    %v2187 = vsub.f32 %v2058, %v2135
    %v2188 = vsub.f32 %v2059, %v2138
    %v2189 = vsub.f32 %v2060, %v2141
    %v2190 = vsub.f32 %v2061, %v2144
    %v2191 = vsub.f32 %v2062, %v2147
    %v2192 = vsub.f32 %v2063, %v2150
    %v2193 = vsub.f32 %v2064, %v2153
    %v2194 = vsub.f32 %v2065, %v2156
    %v2195 = vsub.f32 %v2066, %v2159
    %v2196 = vsub.f32 %v2067, %v2162
    %v2197 = vsub.f32 %v2068, %v2165
    %v2198 = vmul.f32 %v2166, 1.442695
    %v2199 = vpow.pop %v2198
    %v2200 = vmul.f32 %v2167, 1.442695
    %v2201 = vpow.pop %v2200
    %v2202 = vmul.f32 %v2168, 1.442695
    %v2203 = vpow.pop %v2202
    %v2204 = vmul.f32 %v2169, 1.442695
    %v2205 = vpow.pop %v2204
    %v2206 = vmul.f32 %v2170, 1.442695
    %v2207 = vpow.pop %v2206
    %v2208 = vmul.f32 %v2171, 1.442695
    %v2209 = vpow.pop %v2208
    %v2210 = vmul.f32 %v2172, 1.442695
    %v2211 = vpow.pop %v2210
    %v2212 = vmul.f32 %v2173, 1.442695
    %v2213 = vpow.pop %v2212
    %v2214 = vmul.f32 %v2174, 1.442695
    %v2215 = vpow.pop %v2214
    %v2216 = vmul.f32 %v2175, 1.442695
    %v2217 = vpow.pop %v2216
    %v2218 = vmul.f32 %v2176, 1.442695
    %v2219 = vpow.pop %v2218
    %v2220 = vmul.f32 %v2177, 1.442695
    %v2221 = vpow.pop %v2220
    %v2222 = vmul.f32 %v2178, 1.442695
    %v2223 = vpow.pop %v2222
    %v2224 = vmul.f32 %v2179, 1.442695
    %v2225 = vpow.pop %v2224
    %v2226 = vmul.f32 %v2180, 1.442695
    %v2227 = vpow.pop %v2226
    %v2228 = vmul.f32 %v2181, 1.442695
    %v2229 = vpow.pop %v2228
    %v2230 = vmul.f32 %v2182, 1.442695
    %v2231 = vpow.pop %v2230
    %v2232 = vmul.f32 %v2183, 1.442695
    %v2233 = vpow.pop %v2232
    %v2234 = vmul.f32 %v2184, 1.442695
    %v2235 = vpow.pop %v2234
    %v2236 = vmul.f32 %v2185, 1.442695
    %v2237 = vpow.pop %v2236
    %v2238 = vmul.f32 %v2186, 1.442695
    %v2239 = vpow.pop %v2238
    %v2240 = vmul.f32 %v2187, 1.442695
    %v2241 = vpow.pop %v2240
    %v2242 = vmul.f32 %v2188, 1.442695
    %v2243 = vpow.pop %v2242
    %v2244 = vmul.f32 %v2189, 1.442695
    %v2245 = vpow.pop %v2244
    %v2246 = vmul.f32 %v2190, 1.442695
    %v2247 = vpow.pop %v2246
    %v2248 = vmul.f32 %v2191, 1.442695
    %v2249 = vpow.pop %v2248
    %v2250 = vmul.f32 %v2192, 1.442695
    %v2251 = vpow.pop %v2250
    %v2252 = vmul.f32 %v2193, 1.442695
    %v2253 = vpow.pop %v2252
    %v2254 = vmul.f32 %v2194, 1.442695
    %v2255 = vpow.pop %v2254
    %v2256 = vmul.f32 %v2195, 1.442695
    %v2257 = vpow.pop %v2256
    %v2258 = vmul.f32 %v2196, 1.442695
    %v2259 = vpow.pop %v2258
    %v2260 = vmul.f32 %v2197, 1.442695
    %v2261 = vpow.pop %v2260
    %v2262 = vsel %vm2069, %v2199, 0.0
    %2263 = vadd.xlane.f32.xlu0 %v2262
    %v2264 = vpop.xlane.xlu0 %2263
    %v2265 = vsel %vm2069, %v2201, 0.0
    %2266 = vadd.xlane.f32.xlu0 %v2265
    %v2267 = vpop.xlane.xlu0 %2266
    %v2268 = vsel %vm2069, %v2203, 0.0
    %2269 = vadd.xlane.f32.xlu0 %v2268
    %v2270 = vpop.xlane.xlu0 %2269
    %v2271 = vsel %vm2069, %v2205, 0.0
    %2272 = vadd.xlane.f32.xlu0 %v2271
    %v2273 = vpop.xlane.xlu0 %2272
    %v2274 = vsel %vm2069, %v2207, 0.0
    %2275 = vadd.xlane.f32.xlu0 %v2274
    %v2276 = vpop.xlane.xlu0 %2275
    %v2277 = vsel %vm2069, %v2209, 0.0
    %2278 = vadd.xlane.f32.xlu0 %v2277
    %v2279 = vpop.xlane.xlu0 %2278
    %v2280 = vsel %vm2069, %v2211, 0.0
    %2281 = vadd.xlane.f32.xlu0 %v2280
    %v2282 = vpop.xlane.xlu0 %2281
    %v2283 = vsel %vm2069, %v2213, 0.0
    %2284 = vadd.xlane.f32.xlu0 %v2283
    %v2285 = vpop.xlane.xlu0 %2284
    %v2286 = vsel %vm2069, %v2215, 0.0
    %2287 = vadd.xlane.f32.xlu0 %v2286
    %v2288 = vpop.xlane.xlu0 %2287
    %v2289 = vsel %vm2069, %v2217, 0.0
    %2290 = vadd.xlane.f32.xlu0 %v2289
    %v2291 = vpop.xlane.xlu0 %2290
    %v2292 = vsel %vm2069, %v2219, 0.0
    %2293 = vadd.xlane.f32.xlu0 %v2292
    %v2294 = vpop.xlane.xlu0 %2293
    %v2295 = vsel %vm2069, %v2221, 0.0
    %2296 = vadd.xlane.f32.xlu0 %v2295
    %v2297 = vpop.xlane.xlu0 %2296
    %v2298 = vsel %vm2069, %v2223, 0.0
    %2299 = vadd.xlane.f32.xlu0 %v2298
    %v2300 = vpop.xlane.xlu0 %2299
    %v2301 = vsel %vm2069, %v2225, 0.0
    %2302 = vadd.xlane.f32.xlu0 %v2301
    %v2303 = vpop.xlane.xlu0 %2302
    %v2304 = vsel %vm2069, %v2227, 0.0
    %2305 = vadd.xlane.f32.xlu0 %v2304
    %v2306 = vpop.xlane.xlu0 %2305
    %v2307 = vsel %vm2069, %v2229, 0.0
    %2308 = vadd.xlane.f32.xlu0 %v2307
    %v2309 = vpop.xlane.xlu0 %2308
    %v2310 = vsel %vm2069, %v2231, 0.0
    %2311 = vadd.xlane.f32.xlu0 %v2310
    %v2312 = vpop.xlane.xlu0 %2311
    %v2313 = vsel %vm2069, %v2233, 0.0
    %2314 = vadd.xlane.f32.xlu0 %v2313
    %v2315 = vpop.xlane.xlu0 %2314
    %v2316 = vsel %vm2069, %v2235, 0.0
    %2317 = vadd.xlane.f32.xlu0 %v2316
    %v2318 = vpop.xlane.xlu0 %2317
    %v2319 = vsel %vm2069, %v2237, 0.0
    %2320 = vadd.xlane.f32.xlu0 %v2319
    %v2321 = vpop.xlane.xlu0 %2320
    %v2322 = vsel %vm2069, %v2239, 0.0
    %2323 = vadd.xlane.f32.xlu0 %v2322
    %v2324 = vpop.xlane.xlu0 %2323
    %v2325 = vsel %vm2069, %v2241, 0.0
    %2326 = vadd.xlane.f32.xlu0 %v2325
    %v2327 = vpop.xlane.xlu0 %2326
    %v2328 = vsel %vm2069, %v2243, 0.0
    %2329 = vadd.xlane.f32.xlu0 %v2328
    %v2330 = vpop.xlane.xlu0 %2329
    %v2331 = vsel %vm2069, %v2245, 0.0
    %2332 = vadd.xlane.f32.xlu0 %v2331
    %v2333 = vpop.xlane.xlu0 %2332
    %v2334 = vsel %vm2069, %v2247, 0.0
    %2335 = vadd.xlane.f32.xlu0 %v2334
    %v2336 = vpop.xlane.xlu0 %2335
    %v2337 = vsel %vm2069, %v2249, 0.0
    %2338 = vadd.xlane.f32.xlu0 %v2337
    %v2339 = vpop.xlane.xlu0 %2338
    %v2340 = vsel %vm2069, %v2251, 0.0
    %2341 = vadd.xlane.f32.xlu0 %v2340
    %v2342 = vpop.xlane.xlu0 %2341
    %v2343 = vsel %vm2069, %v2253, 0.0
    %2344 = vadd.xlane.f32.xlu0 %v2343
    %v2345 = vpop.xlane.xlu0 %2344
    %v2346 = vsel %vm2069, %v2255, 0.0
    %2347 = vadd.xlane.f32.xlu0 %v2346
    %v2348 = vpop.xlane.xlu0 %2347
    %v2349 = vsel %vm2069, %v2257, 0.0
    %2350 = vadd.xlane.f32.xlu0 %v2349
    %v2351 = vpop.xlane.xlu0 %2350
    %v2352 = vsel %vm2069, %v2259, 0.0
    %2353 = vadd.xlane.f32.xlu0 %v2352
    %v2354 = vpop.xlane.xlu0 %2353
    %v2355 = vsel %vm2069, %v2261, 0.0
    %2356 = vadd.xlane.f32.xlu0 %v2355
    %v2357 = vpop.xlane.xlu0 %2356
    %v2358 = vrcp.pop %v2264
    %v2359 = vmul.f32 %v2199, %v2358
    %v2360 = vrcp.pop %v2267
    %v2361 = vmul.f32 %v2201, %v2360
    %v2362 = vrcp.pop %v2270
    %v2363 = vmul.f32 %v2203, %v2362
    %v2364 = vrcp.pop %v2273
    %v2365 = vmul.f32 %v2205, %v2364
    %v2366 = vrcp.pop %v2276
    %v2367 = vmul.f32 %v2207, %v2366
    %v2368 = vrcp.pop %v2279
    %v2369 = vmul.f32 %v2209, %v2368
    %v2370 = vrcp.pop %v2282
    %v2371 = vmul.f32 %v2211, %v2370
    %v2372 = vrcp.pop %v2285
    %v2373 = vmul.f32 %v2213, %v2372
    %v2374 = vrcp.pop %v2288
    %v2375 = vmul.f32 %v2215, %v2374
    %v2376 = vrcp.pop %v2291
    %v2377 = vmul.f32 %v2217, %v2376
    %v2378 = vrcp.pop %v2294
    %v2379 = vmul.f32 %v2219, %v2378
    %v2380 = vrcp.pop %v2297
    %v2381 = vmul.f32 %v2221, %v2380
    %v2382 = vrcp.pop %v2300
    %v2383 = vmul.f32 %v2223, %v2382
    %v2384 = vrcp.pop %v2303
    %v2385 = vmul.f32 %v2225, %v2384
    %v2386 = vrcp.pop %v2306
    %v2387 = vmul.f32 %v2227, %v2386
    %v2388 = vrcp.pop %v2309
    %v2389 = vmul.f32 %v2229, %v2388
    %v2390 = vrcp.pop %v2312
    %v2391 = vmul.f32 %v2231, %v2390
    %v2392 = vrcp.pop %v2315
    %v2393 = vmul.f32 %v2233, %v2392
    %v2394 = vrcp.pop %v2318
    %v2395 = vmul.f32 %v2235, %v2394
    %v2396 = vrcp.pop %v2321
    %v2397 = vmul.f32 %v2237, %v2396
    %v2398 = vrcp.pop %v2324
    %v2399 = vmul.f32 %v2239, %v2398
    %v2400 = vrcp.pop %v2327
    %v2401 = vmul.f32 %v2241, %v2400
    %v2402 = vrcp.pop %v2330
    %v2403 = vmul.f32 %v2243, %v2402
    %v2404 = vrcp.pop %v2333
    %v2405 = vmul.f32 %v2245, %v2404
    %v2406 = vrcp.pop %v2336
    %v2407 = vmul.f32 %v2247, %v2406
    %v2408 = vrcp.pop %v2339
    %v2409 = vmul.f32 %v2249, %v2408
    %v2410 = vrcp.pop %v2342
    %v2411 = vmul.f32 %v2251, %v2410
    %v2412 = vrcp.pop %v2345
    %v2413 = vmul.f32 %v2253, %v2412
    %v2414 = vrcp.pop %v2348
    %v2415 = vmul.f32 %v2255, %v2414
    %v2416 = vrcp.pop %v2351
    %v2417 = vmul.f32 %v2257, %v2416
    %v2418 = vrcp.pop %v2354
    %v2419 = vmul.f32 %v2259, %v2418
    %v2420 = vrcp.pop %v2357
    %v2421 = vmul.f32 %v2261, %v2420
    %v2422 = vpack.c.bf16 %v2361, %v2359
    %v2423 = vpack.c.bf16 %v2365, %v2363
    %v2424 = vpack.c.bf16 %v2369, %v2367
    %v2425 = vpack.c.bf16 %v2373, %v2371
    %v2426 = vpack.c.bf16 %v2377, %v2375
    %v2427 = vpack.c.bf16 %v2381, %v2379
    %v2428 = vpack.c.bf16 %v2385, %v2383
    %v2429 = vpack.c.bf16 %v2389, %v2387
    %v2430 = vpack.c.bf16 %v2393, %v2391
    %v2431 = vpack.c.bf16 %v2397, %v2395
    %v2432 = vpack.c.bf16 %v2401, %v2399
    %v2433 = vpack.c.bf16 %v2405, %v2403
    %v2434 = vpack.c.bf16 %v2409, %v2407
    %v2435 = vpack.c.bf16 %v2413, %v2411
    %v2436 = vpack.c.bf16 %v2417, %v2415
    %v2437 = vpack.c.bf16 %v2421, %v2419
    %v2439 = vsel %vm2069, %v2422, 0
    %2441 = vmatprep.subr.bf16.mxu0 0
    %2442 = vmatpush1.bf16.msra.mxu0 0
    %2443 = vmatprep.subr.bf16.mxu0 0
    %2444 = vmatpush1.bf16.msra.mxu0 0
    %2445 = vmatprep.subr.bf16.mxu0 0
    %2446 = vmatpush1.bf16.msra.mxu0 0
    %2447 = vmatprep.subr.bf16.mxu0 0
    %2448 = vmatpush1.bf16.msra.mxu0 0
    %2449 = vmatprep.subr.bf16.mxu0 0
    %2450 = vmatpush1.bf16.msra.mxu0 0
    %2451 = vmatprep.subr.bf16.mxu0 0
    %2452 = vmatpush1.bf16.msra.mxu0 0
    %2453 = vmatprep.subr.bf16.mxu0 0
    %2454 = vmatpush1.bf16.msra.mxu0 0
    %2455 = vmatprep.subr.bf16.mxu0 0
    %2456 = vmatpush1.bf16.msra.mxu0 %v1268
    %2457 = vmatprep.subr.bf16.mxu0 0
    %2458 = vmatpush2.bf16.msra.mxu0 0
    %2459 = vmatprep.subr.bf16.mxu0 0
    %2460 = vmatpush2.bf16.msra.mxu0 0
    %2461 = vmatprep.subr.bf16.mxu0 0
    %2462 = vmatpush2.bf16.msra.mxu0 0
    %2463 = vmatprep.subr.bf16.mxu0 0
    %2464 = vmatpush2.bf16.msra.mxu0 0
    %2465 = vmatprep.subr.bf16.mxu0 0
    %2466 = vmatpush2.bf16.msra.mxu0 0
    %2467 = vmatprep.subr.bf16.mxu0 0
    %2468 = vmatpush2.bf16.msra.mxu0 0
    %2469 = vmatprep.subr.bf16.mxu0 0
    %2470 = vmatpush2.bf16.msra.mxu0 0
    %2471 = vmatprep.subr.bf16.mxu0 0
    %2472 = vmatpush2.bf16.msra.mxu0 0
    %2473 = vmatprep.mubr.bf16.mxu0 0
    %2474 = vmatmul.mubr.bf16.gmra.mxu0 %v2439
    %v2475 = vpop.f32.mrf.mxu0
    %v2476 = vadd.f32 0.0, %v2475
    %v2477 = vpop.f32.mrf.mxu0
    %v2478 = vpop.f32.mrf.mxu0
    %v2479 = vadd.f32 0.0, %v2478
    %v2480 = vpop.f32.mrf.mxu0
    %2481 = vdwg.mxu0
    %v2483 = vsel %vm2069, %v2423, 0
    %2485 = vmatprep.subr.bf16.mxu0 0
    %2486 = vmatpush1.bf16.msra.mxu0 0
    %2487 = vmatprep.subr.bf16.mxu0 0
    %2488 = vmatpush1.bf16.msra.mxu0 0
    %2489 = vmatprep.subr.bf16.mxu0 0
    %2490 = vmatpush1.bf16.msra.mxu0 0
    %2491 = vmatprep.subr.bf16.mxu0 0
    %2492 = vmatpush1.bf16.msra.mxu0 0
    %2493 = vmatprep.subr.bf16.mxu0 0
    %2494 = vmatpush1.bf16.msra.mxu0 0
    %2495 = vmatprep.subr.bf16.mxu0 0
    %2496 = vmatpush1.bf16.msra.mxu0 0
    %2497 = vmatprep.subr.bf16.mxu0 0
    %2498 = vmatpush1.bf16.msra.mxu0 0
    %2499 = vmatprep.subr.bf16.mxu0 0
    %2500 = vmatpush1.bf16.msra.mxu0 %v1269
    %2501 = vmatprep.subr.bf16.mxu0 0
    %2502 = vmatpush2.bf16.msra.mxu0 0
    %2503 = vmatprep.subr.bf16.mxu0 0
    %2504 = vmatpush2.bf16.msra.mxu0 0
    %2505 = vmatprep.subr.bf16.mxu0 0
    %2506 = vmatpush2.bf16.msra.mxu0 0
    %2507 = vmatprep.subr.bf16.mxu0 0
    %2508 = vmatpush2.bf16.msra.mxu0 0
    %2509 = vmatprep.subr.bf16.mxu0 0
    %2510 = vmatpush2.bf16.msra.mxu0 0
    %2511 = vmatprep.subr.bf16.mxu0 0
    %2512 = vmatpush2.bf16.msra.mxu0 0
    %2513 = vmatprep.subr.bf16.mxu0 0
    %2514 = vmatpush2.bf16.msra.mxu0 0
    %2515 = vmatprep.subr.bf16.mxu0 0
    %2516 = vmatpush2.bf16.msra.mxu0 0
    %2517 = vmatprep.mubr.bf16.mxu0 0
    %2518 = vmatmul.mubr.bf16.gmra.mxu0 %v2483
    %v2519 = vpop.f32.mrf.mxu0
    %v2520 = vadd.f32 0.0, %v2519
    %v2521 = vpop.f32.mrf.mxu0
    %v2522 = vpop.f32.mrf.mxu0
    %v2523 = vadd.f32 0.0, %v2522
    %v2524 = vpop.f32.mrf.mxu0
    %2525 = vdwg.mxu0
    %v2527 = vsel %vm2069, %v2424, 0
    %2529 = vmatprep.subr.bf16.mxu0 0
    %2530 = vmatpush1.bf16.msra.mxu0 0
    %2531 = vmatprep.subr.bf16.mxu0 0
    %2532 = vmatpush1.bf16.msra.mxu0 0
    %2533 = vmatprep.subr.bf16.mxu0 0
    %2534 = vmatpush1.bf16.msra.mxu0 0
    %2535 = vmatprep.subr.bf16.mxu0 0
    %2536 = vmatpush1.bf16.msra.mxu0 0
    %2537 = vmatprep.subr.bf16.mxu0 0
    %2538 = vmatpush1.bf16.msra.mxu0 0
    %2539 = vmatprep.subr.bf16.mxu0 0
    %2540 = vmatpush1.bf16.msra.mxu0 0
    %2541 = vmatprep.subr.bf16.mxu0 0
    %2542 = vmatpush1.bf16.msra.mxu0 0
    %2543 = vmatprep.subr.bf16.mxu0 0
    %2544 = vmatpush1.bf16.msra.mxu0 %v1270
    %2545 = vmatprep.subr.bf16.mxu0 0
    %2546 = vmatpush2.bf16.msra.mxu0 0
    %2547 = vmatprep.subr.bf16.mxu0 0
    %2548 = vmatpush2.bf16.msra.mxu0 0
    %2549 = vmatprep.subr.bf16.mxu0 0
    %2550 = vmatpush2.bf16.msra.mxu0 0
    %2551 = vmatprep.subr.bf16.mxu0 0
    %2552 = vmatpush2.bf16.msra.mxu0 0
    %2553 = vmatprep.subr.bf16.mxu0 0
    %2554 = vmatpush2.bf16.msra.mxu0 0
    %2555 = vmatprep.subr.bf16.mxu0 0
    %2556 = vmatpush2.bf16.msra.mxu0 0
    %2557 = vmatprep.subr.bf16.mxu0 0
    %2558 = vmatpush2.bf16.msra.mxu0 0
    %2559 = vmatprep.subr.bf16.mxu0 0
    %2560 = vmatpush2.bf16.msra.mxu0 0
    %2561 = vmatprep.mubr.bf16.mxu0 0
    %2562 = vmatmul.mubr.bf16.gmra.mxu0 %v2527
    %v2563 = vpop.f32.mrf.mxu0
    %v2564 = vadd.f32 0.0, %v2563
    %v2565 = vpop.f32.mrf.mxu0
    %v2566 = vpop.f32.mrf.mxu0
    %v2567 = vadd.f32 0.0, %v2566
    %v2568 = vpop.f32.mrf.mxu0
    %2569 = vdwg.mxu0
    %v2571 = vsel %vm2069, %v2425, 0
    %2573 = vmatprep.subr.bf16.mxu0 0
    %2574 = vmatpush1.bf16.msra.mxu0 0
    %2575 = vmatprep.subr.bf16.mxu0 0
    %2576 = vmatpush1.bf16.msra.mxu0 0
    %2577 = vmatprep.subr.bf16.mxu0 0
    %2578 = vmatpush1.bf16.msra.mxu0 0
    %2579 = vmatprep.subr.bf16.mxu0 0
    %2580 = vmatpush1.bf16.msra.mxu0 0
    %2581 = vmatprep.subr.bf16.mxu0 0
    %2582 = vmatpush1.bf16.msra.mxu0 0
    %2583 = vmatprep.subr.bf16.mxu0 0
    %2584 = vmatpush1.bf16.msra.mxu0 0
    %2585 = vmatprep.subr.bf16.mxu0 0
    %2586 = vmatpush1.bf16.msra.mxu0 0
    %2587 = vmatprep.subr.bf16.mxu0 0
    %2588 = vmatpush1.bf16.msra.mxu0 %v1271
    %2589 = vmatprep.subr.bf16.mxu0 0
    %2590 = vmatpush2.bf16.msra.mxu0 0
    %2591 = vmatprep.subr.bf16.mxu0 0
    %2592 = vmatpush2.bf16.msra.mxu0 0
    %2593 = vmatprep.subr.bf16.mxu0 0
    %2594 = vmatpush2.bf16.msra.mxu0 0
    %2595 = vmatprep.subr.bf16.mxu0 0
    %2596 = vmatpush2.bf16.msra.mxu0 0
    %2597 = vmatprep.subr.bf16.mxu0 0
    %2598 = vmatpush2.bf16.msra.mxu0 0
    %2599 = vmatprep.subr.bf16.mxu0 0
    %2600 = vmatpush2.bf16.msra.mxu0 0
    %2601 = vmatprep.subr.bf16.mxu0 0
    %2602 = vmatpush2.bf16.msra.mxu0 0
    %2603 = vmatprep.subr.bf16.mxu0 0
    %2604 = vmatpush2.bf16.msra.mxu0 0
    %2605 = vmatprep.mubr.bf16.mxu0 0
    %2606 = vmatmul.mubr.bf16.gmra.mxu0 %v2571
    %v2607 = vpop.f32.mrf.mxu0
    %v2608 = vadd.f32 0.0, %v2607
    %v2609 = vpop.f32.mrf.mxu0
    %v2610 = vpop.f32.mrf.mxu0
    %v2611 = vadd.f32 0.0, %v2610
    %v2612 = vpop.f32.mrf.mxu0
    %2613 = vdwg.mxu0
    %v2615 = vsel %vm2069, %v2426, 0
    %2617 = vmatprep.subr.bf16.mxu0 0
    %2618 = vmatpush1.bf16.msra.mxu0 0
    %2619 = vmatprep.subr.bf16.mxu0 0
    %2620 = vmatpush1.bf16.msra.mxu0 0
    %2621 = vmatprep.subr.bf16.mxu0 0
    %2622 = vmatpush1.bf16.msra.mxu0 0
    %2623 = vmatprep.subr.bf16.mxu0 0
    %2624 = vmatpush1.bf16.msra.mxu0 0
    %2625 = vmatprep.subr.bf16.mxu0 0
    %2626 = vmatpush1.bf16.msra.mxu0 0
    %2627 = vmatprep.subr.bf16.mxu0 0
    %2628 = vmatpush1.bf16.msra.mxu0 0
    %2629 = vmatprep.subr.bf16.mxu0 0
    %2630 = vmatpush1.bf16.msra.mxu0 0
    %2631 = vmatprep.subr.bf16.mxu0 0
    %2632 = vmatpush1.bf16.msra.mxu0 %v1272
    %2633 = vmatprep.subr.bf16.mxu0 0
    %2634 = vmatpush2.bf16.msra.mxu0 0
    %2635 = vmatprep.subr.bf16.mxu0 0
    %2636 = vmatpush2.bf16.msra.mxu0 0
    %2637 = vmatprep.subr.bf16.mxu0 0
    %2638 = vmatpush2.bf16.msra.mxu0 0
    %2639 = vmatprep.subr.bf16.mxu0 0
    %2640 = vmatpush2.bf16.msra.mxu0 0
    %2641 = vmatprep.subr.bf16.mxu0 0
    %2642 = vmatpush2.bf16.msra.mxu0 0
    %2643 = vmatprep.subr.bf16.mxu0 0
    %2644 = vmatpush2.bf16.msra.mxu0 0
    %2645 = vmatprep.subr.bf16.mxu0 0
    %2646 = vmatpush2.bf16.msra.mxu0 0
    %2647 = vmatprep.subr.bf16.mxu0 0
    %2648 = vmatpush2.bf16.msra.mxu0 0
    %2649 = vmatprep.mubr.bf16.mxu0 0
    %2650 = vmatmul.mubr.bf16.gmra.mxu0 %v2615
    %v2651 = vpop.f32.mrf.mxu0
    %v2652 = vadd.f32 0.0, %v2651
    %v2653 = vpop.f32.mrf.mxu0
    %v2654 = vpop.f32.mrf.mxu0
    %v2655 = vadd.f32 0.0, %v2654
    %v2656 = vpop.f32.mrf.mxu0
    %2657 = vdwg.mxu0
    %v2659 = vsel %vm2069, %v2427, 0
    %2661 = vmatprep.subr.bf16.mxu0 0
    %2662 = vmatpush1.bf16.msra.mxu0 0
    %2663 = vmatprep.subr.bf16.mxu0 0
    %2664 = vmatpush1.bf16.msra.mxu0 0
    %2665 = vmatprep.subr.bf16.mxu0 0
    %2666 = vmatpush1.bf16.msra.mxu0 0
    %2667 = vmatprep.subr.bf16.mxu0 0
    %2668 = vmatpush1.bf16.msra.mxu0 0
    %2669 = vmatprep.subr.bf16.mxu0 0
    %2670 = vmatpush1.bf16.msra.mxu0 0
    %2671 = vmatprep.subr.bf16.mxu0 0
    %2672 = vmatpush1.bf16.msra.mxu0 0
    %2673 = vmatprep.subr.bf16.mxu0 0
    %2674 = vmatpush1.bf16.msra.mxu0 0
    %2675 = vmatprep.subr.bf16.mxu0 0
    %2676 = vmatpush1.bf16.msra.mxu0 %v1273
    %2677 = vmatprep.subr.bf16.mxu0 0
    %2678 = vmatpush2.bf16.msra.mxu0 0
    %2679 = vmatprep.subr.bf16.mxu0 0
    %2680 = vmatpush2.bf16.msra.mxu0 0
    %2681 = vmatprep.subr.bf16.mxu0 0
    %2682 = vmatpush2.bf16.msra.mxu0 0
    %2683 = vmatprep.subr.bf16.mxu0 0
    %2684 = vmatpush2.bf16.msra.mxu0 0
    %2685 = vmatprep.subr.bf16.mxu0 0
    %2686 = vmatpush2.bf16.msra.mxu0 0
    %2687 = vmatprep.subr.bf16.mxu0 0
    %2688 = vmatpush2.bf16.msra.mxu0 0
    %2689 = vmatprep.subr.bf16.mxu0 0
    %2690 = vmatpush2.bf16.msra.mxu0 0
    %2691 = vmatprep.subr.bf16.mxu0 0
    %2692 = vmatpush2.bf16.msra.mxu0 0
    %2693 = vmatprep.mubr.bf16.mxu0 0
    %2694 = vmatmul.mubr.bf16.gmra.mxu0 %v2659
    %v2695 = vpop.f32.mrf.mxu0
    %v2696 = vadd.f32 0.0, %v2695
    %v2697 = vpop.f32.mrf.mxu0
    %v2698 = vpop.f32.mrf.mxu0
    %v2699 = vadd.f32 0.0, %v2698
    %v2700 = vpop.f32.mrf.mxu0
    %2701 = vdwg.mxu0
    %v2703 = vsel %vm2069, %v2428, 0
    %2705 = vmatprep.subr.bf16.mxu0 0
    %2706 = vmatpush1.bf16.msra.mxu0 0
    %2707 = vmatprep.subr.bf16.mxu0 0
    %2708 = vmatpush1.bf16.msra.mxu0 0
    %2709 = vmatprep.subr.bf16.mxu0 0
    %2710 = vmatpush1.bf16.msra.mxu0 0
    %2711 = vmatprep.subr.bf16.mxu0 0
    %2712 = vmatpush1.bf16.msra.mxu0 0
    %2713 = vmatprep.subr.bf16.mxu0 0
    %2714 = vmatpush1.bf16.msra.mxu0 0
    %2715 = vmatprep.subr.bf16.mxu0 0
    %2716 = vmatpush1.bf16.msra.mxu0 0
    %2717 = vmatprep.subr.bf16.mxu0 0
    %2718 = vmatpush1.bf16.msra.mxu0 0
    %2719 = vmatprep.subr.bf16.mxu0 0
    %2720 = vmatpush1.bf16.msra.mxu0 %v1274
    %2721 = vmatprep.subr.bf16.mxu0 0
    %2722 = vmatpush2.bf16.msra.mxu0 0
    %2723 = vmatprep.subr.bf16.mxu0 0
    %2724 = vmatpush2.bf16.msra.mxu0 0
    %2725 = vmatprep.subr.bf16.mxu0 0
    %2726 = vmatpush2.bf16.msra.mxu0 0
    %2727 = vmatprep.subr.bf16.mxu0 0
    %2728 = vmatpush2.bf16.msra.mxu0 0
    %2729 = vmatprep.subr.bf16.mxu0 0
    %2730 = vmatpush2.bf16.msra.mxu0 0
    %2731 = vmatprep.subr.bf16.mxu0 0
    %2732 = vmatpush2.bf16.msra.mxu0 0
    %2733 = vmatprep.subr.bf16.mxu0 0
    %2734 = vmatpush2.bf16.msra.mxu0 0
    %2735 = vmatprep.subr.bf16.mxu0 0
    %2736 = vmatpush2.bf16.msra.mxu0 0
    %2737 = vmatprep.mubr.bf16.mxu0 0
    %2738 = vmatmul.mubr.bf16.gmra.mxu0 %v2703
    %v2739 = vpop.f32.mrf.mxu0
    %v2740 = vadd.f32 0.0, %v2739
    %v2741 = vpop.f32.mrf.mxu0
    %v2742 = vpop.f32.mrf.mxu0
    %v2743 = vadd.f32 0.0, %v2742
    %v2744 = vpop.f32.mrf.mxu0
    %2745 = vdwg.mxu0
    %v2747 = vsel %vm2069, %v2429, 0
    %2749 = vmatprep.subr.bf16.mxu0 0
    %2750 = vmatpush1.bf16.msra.mxu0 0
    %2751 = vmatprep.subr.bf16.mxu0 0
    %2752 = vmatpush1.bf16.msra.mxu0 0
    %2753 = vmatprep.subr.bf16.mxu0 0
    %2754 = vmatpush1.bf16.msra.mxu0 0
    %2755 = vmatprep.subr.bf16.mxu0 0
    %2756 = vmatpush1.bf16.msra.mxu0 0
    %2757 = vmatprep.subr.bf16.mxu0 0
    %2758 = vmatpush1.bf16.msra.mxu0 0
    %2759 = vmatprep.subr.bf16.mxu0 0
    %2760 = vmatpush1.bf16.msra.mxu0 0
    %2761 = vmatprep.subr.bf16.mxu0 0
    %2762 = vmatpush1.bf16.msra.mxu0 0
    %2763 = vmatprep.subr.bf16.mxu0 0
    %2764 = vmatpush1.bf16.msra.mxu0 %v1275
    %2765 = vmatprep.subr.bf16.mxu0 0
    %2766 = vmatpush2.bf16.msra.mxu0 0
    %2767 = vmatprep.subr.bf16.mxu0 0
    %2768 = vmatpush2.bf16.msra.mxu0 0
    %2769 = vmatprep.subr.bf16.mxu0 0
    %2770 = vmatpush2.bf16.msra.mxu0 0
    %2771 = vmatprep.subr.bf16.mxu0 0
    %2772 = vmatpush2.bf16.msra.mxu0 0
    %2773 = vmatprep.subr.bf16.mxu0 0
    %2774 = vmatpush2.bf16.msra.mxu0 0
    %2775 = vmatprep.subr.bf16.mxu0 0
    %2776 = vmatpush2.bf16.msra.mxu0 0
    %2777 = vmatprep.subr.bf16.mxu0 0
    %2778 = vmatpush2.bf16.msra.mxu0 0
    %2779 = vmatprep.subr.bf16.mxu0 0
    %2780 = vmatpush2.bf16.msra.mxu0 0
    %2781 = vmatprep.mubr.bf16.mxu0 0
    %2782 = vmatmul.mubr.bf16.gmra.mxu0 %v2747
    %v2783 = vpop.f32.mrf.mxu0
    %v2784 = vadd.f32 0.0, %v2783
    %v2785 = vpop.f32.mrf.mxu0
    %v2786 = vpop.f32.mrf.mxu0
    %v2787 = vadd.f32 0.0, %v2786
    %v2788 = vpop.f32.mrf.mxu0
    %2789 = vdwg.mxu0
    %v2791 = vsel %vm2069, %v2430, 0
    %2793 = vmatprep.subr.bf16.mxu0 0
    %2794 = vmatpush1.bf16.msra.mxu0 0
    %2795 = vmatprep.subr.bf16.mxu0 0
    %2796 = vmatpush1.bf16.msra.mxu0 0
    %2797 = vmatprep.subr.bf16.mxu0 0
    %2798 = vmatpush1.bf16.msra.mxu0 0
    %2799 = vmatprep.subr.bf16.mxu0 0
    %2800 = vmatpush1.bf16.msra.mxu0 0
    %2801 = vmatprep.subr.bf16.mxu0 0
    %2802 = vmatpush1.bf16.msra.mxu0 0
    %2803 = vmatprep.subr.bf16.mxu0 0
    %2804 = vmatpush1.bf16.msra.mxu0 0
    %2805 = vmatprep.subr.bf16.mxu0 0
    %2806 = vmatpush1.bf16.msra.mxu0 0
    %2807 = vmatprep.subr.bf16.mxu0 0
    %2808 = vmatpush1.bf16.msra.mxu0 %v1276
    %2809 = vmatprep.subr.bf16.mxu0 0
    %2810 = vmatpush2.bf16.msra.mxu0 0
    %2811 = vmatprep.subr.bf16.mxu0 0
    %2812 = vmatpush2.bf16.msra.mxu0 0
    %2813 = vmatprep.subr.bf16.mxu0 0
    %2814 = vmatpush2.bf16.msra.mxu0 0
    %2815 = vmatprep.subr.bf16.mxu0 0
    %2816 = vmatpush2.bf16.msra.mxu0 0
    %2817 = vmatprep.subr.bf16.mxu0 0
    %2818 = vmatpush2.bf16.msra.mxu0 0
    %2819 = vmatprep.subr.bf16.mxu0 0
    %2820 = vmatpush2.bf16.msra.mxu0 0
    %2821 = vmatprep.subr.bf16.mxu0 0
    %2822 = vmatpush2.bf16.msra.mxu0 0
    %2823 = vmatprep.subr.bf16.mxu0 0
    %2824 = vmatpush2.bf16.msra.mxu0 0
    %2825 = vmatprep.mubr.bf16.mxu0 0
    %2826 = vmatmul.mubr.bf16.gmra.mxu0 %v2791
    %v2827 = vpop.f32.mrf.mxu0
    %v2828 = vadd.f32 0.0, %v2827
    %v2829 = vpop.f32.mrf.mxu0
    %v2830 = vpop.f32.mrf.mxu0
    %v2831 = vadd.f32 0.0, %v2830
    %v2832 = vpop.f32.mrf.mxu0
    %2833 = vdwg.mxu0
    %v2835 = vsel %vm2069, %v2431, 0
    %2837 = vmatprep.subr.bf16.mxu0 0
    %2838 = vmatpush1.bf16.msra.mxu0 0
    %2839 = vmatprep.subr.bf16.mxu0 0
    %2840 = vmatpush1.bf16.msra.mxu0 0
    %2841 = vmatprep.subr.bf16.mxu0 0
    %2842 = vmatpush1.bf16.msra.mxu0 0
    %2843 = vmatprep.subr.bf16.mxu0 0
    %2844 = vmatpush1.bf16.msra.mxu0 0
    %2845 = vmatprep.subr.bf16.mxu0 0
    %2846 = vmatpush1.bf16.msra.mxu0 0
    %2847 = vmatprep.subr.bf16.mxu0 0
    %2848 = vmatpush1.bf16.msra.mxu0 0
    %2849 = vmatprep.subr.bf16.mxu0 0
    %2850 = vmatpush1.bf16.msra.mxu0 0
    %2851 = vmatprep.subr.bf16.mxu0 0
    %2852 = vmatpush1.bf16.msra.mxu0 %v1277
    %2853 = vmatprep.subr.bf16.mxu0 0
    %2854 = vmatpush2.bf16.msra.mxu0 0
    %2855 = vmatprep.subr.bf16.mxu0 0
    %2856 = vmatpush2.bf16.msra.mxu0 0
    %2857 = vmatprep.subr.bf16.mxu0 0
    %2858 = vmatpush2.bf16.msra.mxu0 0
    %2859 = vmatprep.subr.bf16.mxu0 0
    %2860 = vmatpush2.bf16.msra.mxu0 0
    %2861 = vmatprep.subr.bf16.mxu0 0
    %2862 = vmatpush2.bf16.msra.mxu0 0
    %2863 = vmatprep.subr.bf16.mxu0 0
    %2864 = vmatpush2.bf16.msra.mxu0 0
    %2865 = vmatprep.subr.bf16.mxu0 0
    %2866 = vmatpush2.bf16.msra.mxu0 0
    %2867 = vmatprep.subr.bf16.mxu0 0
    %2868 = vmatpush2.bf16.msra.mxu0 0
    %2869 = vmatprep.mubr.bf16.mxu0 0
    %2870 = vmatmul.mubr.bf16.gmra.mxu0 %v2835
    %v2871 = vpop.f32.mrf.mxu0
    %v2872 = vadd.f32 0.0, %v2871
    %v2873 = vpop.f32.mrf.mxu0
    %v2874 = vpop.f32.mrf.mxu0
    %v2875 = vadd.f32 0.0, %v2874
    %v2876 = vpop.f32.mrf.mxu0
    %2877 = vdwg.mxu0
    %v2879 = vsel %vm2069, %v2432, 0
    %2881 = vmatprep.subr.bf16.mxu0 0
    %2882 = vmatpush1.bf16.msra.mxu0 0
    %2883 = vmatprep.subr.bf16.mxu0 0
    %2884 = vmatpush1.bf16.msra.mxu0 0
    %2885 = vmatprep.subr.bf16.mxu0 0
    %2886 = vmatpush1.bf16.msra.mxu0 0
    %2887 = vmatprep.subr.bf16.mxu0 0
    %2888 = vmatpush1.bf16.msra.mxu0 0
    %2889 = vmatprep.subr.bf16.mxu0 0
    %2890 = vmatpush1.bf16.msra.mxu0 0
    %2891 = vmatprep.subr.bf16.mxu0 0
    %2892 = vmatpush1.bf16.msra.mxu0 0
    %2893 = vmatprep.subr.bf16.mxu0 0
    %2894 = vmatpush1.bf16.msra.mxu0 0
    %2895 = vmatprep.subr.bf16.mxu0 0
    %2896 = vmatpush1.bf16.msra.mxu0 %v1278
    %2897 = vmatprep.subr.bf16.mxu0 0
    %2898 = vmatpush2.bf16.msra.mxu0 0
    %2899 = vmatprep.subr.bf16.mxu0 0
    %2900 = vmatpush2.bf16.msra.mxu0 0
    %2901 = vmatprep.subr.bf16.mxu0 0
    %2902 = vmatpush2.bf16.msra.mxu0 0
    %2903 = vmatprep.subr.bf16.mxu0 0
    %2904 = vmatpush2.bf16.msra.mxu0 0
    %2905 = vmatprep.subr.bf16.mxu0 0
    %2906 = vmatpush2.bf16.msra.mxu0 0
    %2907 = vmatprep.subr.bf16.mxu0 0
    %2908 = vmatpush2.bf16.msra.mxu0 0
    %2909 = vmatprep.subr.bf16.mxu0 0
    %2910 = vmatpush2.bf16.msra.mxu0 0
    %2911 = vmatprep.subr.bf16.mxu0 0
    %2912 = vmatpush2.bf16.msra.mxu0 0
    %2913 = vmatprep.mubr.bf16.mxu0 0
    %2914 = vmatmul.mubr.bf16.gmra.mxu0 %v2879
    %v2915 = vpop.f32.mrf.mxu0
    %v2916 = vadd.f32 0.0, %v2915
    %v2917 = vpop.f32.mrf.mxu0
    %v2918 = vpop.f32.mrf.mxu0
    %v2919 = vadd.f32 0.0, %v2918
    %v2920 = vpop.f32.mrf.mxu0
    %2921 = vdwg.mxu0
    %v2923 = vsel %vm2069, %v2433, 0
    %2925 = vmatprep.subr.bf16.mxu0 0
    %2926 = vmatpush1.bf16.msra.mxu0 0
    %2927 = vmatprep.subr.bf16.mxu0 0
    %2928 = vmatpush1.bf16.msra.mxu0 0
    %2929 = vmatprep.subr.bf16.mxu0 0
    %2930 = vmatpush1.bf16.msra.mxu0 0
    %2931 = vmatprep.subr.bf16.mxu0 0
    %2932 = vmatpush1.bf16.msra.mxu0 0
    %2933 = vmatprep.subr.bf16.mxu0 0
    %2934 = vmatpush1.bf16.msra.mxu0 0
    %2935 = vmatprep.subr.bf16.mxu0 0
    %2936 = vmatpush1.bf16.msra.mxu0 0
    %2937 = vmatprep.subr.bf16.mxu0 0
    %2938 = vmatpush1.bf16.msra.mxu0 0
    %2939 = vmatprep.subr.bf16.mxu0 0
    %2940 = vmatpush1.bf16.msra.mxu0 %v1279
    %2941 = vmatprep.subr.bf16.mxu0 0
    %2942 = vmatpush2.bf16.msra.mxu0 0
    %2943 = vmatprep.subr.bf16.mxu0 0
    %2944 = vmatpush2.bf16.msra.mxu0 0
    %2945 = vmatprep.subr.bf16.mxu0 0
    %2946 = vmatpush2.bf16.msra.mxu0 0
    %2947 = vmatprep.subr.bf16.mxu0 0
    %2948 = vmatpush2.bf16.msra.mxu0 0
    %2949 = vmatprep.subr.bf16.mxu0 0
    %2950 = vmatpush2.bf16.msra.mxu0 0
    %2951 = vmatprep.subr.bf16.mxu0 0
    %2952 = vmatpush2.bf16.msra.mxu0 0
    %2953 = vmatprep.subr.bf16.mxu0 0
    %2954 = vmatpush2.bf16.msra.mxu0 0
    %2955 = vmatprep.subr.bf16.mxu0 0
    %2956 = vmatpush2.bf16.msra.mxu0 0
    %2957 = vmatprep.mubr.bf16.mxu0 0
    %2958 = vmatmul.mubr.bf16.gmra.mxu0 %v2923
    %v2959 = vpop.f32.mrf.mxu0
    %v2960 = vadd.f32 0.0, %v2959
    %v2961 = vpop.f32.mrf.mxu0
    %v2962 = vpop.f32.mrf.mxu0
    %v2963 = vadd.f32 0.0, %v2962
    %v2964 = vpop.f32.mrf.mxu0
    %2965 = vdwg.mxu0
    %v2967 = vsel %vm2069, %v2434, 0
    %2969 = vmatprep.subr.bf16.mxu0 0
    %2970 = vmatpush1.bf16.msra.mxu0 0
    %2971 = vmatprep.subr.bf16.mxu0 0
    %2972 = vmatpush1.bf16.msra.mxu0 0
    %2973 = vmatprep.subr.bf16.mxu0 0
    %2974 = vmatpush1.bf16.msra.mxu0 0
    %2975 = vmatprep.subr.bf16.mxu0 0
    %2976 = vmatpush1.bf16.msra.mxu0 0
    %2977 = vmatprep.subr.bf16.mxu0 0
    %2978 = vmatpush1.bf16.msra.mxu0 0
    %2979 = vmatprep.subr.bf16.mxu0 0
    %2980 = vmatpush1.bf16.msra.mxu0 0
    %2981 = vmatprep.subr.bf16.mxu0 0
    %2982 = vmatpush1.bf16.msra.mxu0 0
    %2983 = vmatprep.subr.bf16.mxu0 0
    %2984 = vmatpush1.bf16.msra.mxu0 %v1280
    %2985 = vmatprep.subr.bf16.mxu0 0
    %2986 = vmatpush2.bf16.msra.mxu0 0
    %2987 = vmatprep.subr.bf16.mxu0 0
    %2988 = vmatpush2.bf16.msra.mxu0 0
    %2989 = vmatprep.subr.bf16.mxu0 0
    %2990 = vmatpush2.bf16.msra.mxu0 0
    %2991 = vmatprep.subr.bf16.mxu0 0
    %2992 = vmatpush2.bf16.msra.mxu0 0
    %2993 = vmatprep.subr.bf16.mxu0 0
    %2994 = vmatpush2.bf16.msra.mxu0 0
    %2995 = vmatprep.subr.bf16.mxu0 0
    %2996 = vmatpush2.bf16.msra.mxu0 0
    %2997 = vmatprep.subr.bf16.mxu0 0
    %2998 = vmatpush2.bf16.msra.mxu0 0
    %2999 = vmatprep.subr.bf16.mxu0 0
    %3000 = vmatpush2.bf16.msra.mxu0 0
    %3001 = vmatprep.mubr.bf16.mxu0 0
    %3002 = vmatmul.mubr.bf16.gmra.mxu0 %v2967
    %v3003 = vpop.f32.mrf.mxu0
    %v3004 = vadd.f32 0.0, %v3003
    %v3005 = vpop.f32.mrf.mxu0
    %v3006 = vpop.f32.mrf.mxu0
    %v3007 = vadd.f32 0.0, %v3006
    %v3008 = vpop.f32.mrf.mxu0
    %3009 = vdwg.mxu0
    %v3011 = vsel %vm2069, %v2435, 0
    %3013 = vmatprep.subr.bf16.mxu0 0
    %3014 = vmatpush1.bf16.msra.mxu0 0
    %3015 = vmatprep.subr.bf16.mxu0 0
    %3016 = vmatpush1.bf16.msra.mxu0 0
    %3017 = vmatprep.subr.bf16.mxu0 0
    %3018 = vmatpush1.bf16.msra.mxu0 0
    %3019 = vmatprep.subr.bf16.mxu0 0
    %3020 = vmatpush1.bf16.msra.mxu0 0
    %3021 = vmatprep.subr.bf16.mxu0 0
    %3022 = vmatpush1.bf16.msra.mxu0 0
    %3023 = vmatprep.subr.bf16.mxu0 0
    %3024 = vmatpush1.bf16.msra.mxu0 0
    %3025 = vmatprep.subr.bf16.mxu0 0
    %3026 = vmatpush1.bf16.msra.mxu0 0
    %3027 = vmatprep.subr.bf16.mxu0 0
    %3028 = vmatpush1.bf16.msra.mxu0 %v1281
    %3029 = vmatprep.subr.bf16.mxu0 0
    %3030 = vmatpush2.bf16.msra.mxu0 0
    %3031 = vmatprep.subr.bf16.mxu0 0
    %3032 = vmatpush2.bf16.msra.mxu0 0
    %3033 = vmatprep.subr.bf16.mxu0 0
    %3034 = vmatpush2.bf16.msra.mxu0 0
    %3035 = vmatprep.subr.bf16.mxu0 0
    %3036 = vmatpush2.bf16.msra.mxu0 0
    %3037 = vmatprep.subr.bf16.mxu0 0
    %3038 = vmatpush2.bf16.msra.mxu0 0
    %3039 = vmatprep.subr.bf16.mxu0 0
    %3040 = vmatpush2.bf16.msra.mxu0 0
    %3041 = vmatprep.subr.bf16.mxu0 0
    %3042 = vmatpush2.bf16.msra.mxu0 0
    %3043 = vmatprep.subr.bf16.mxu0 0
    %3044 = vmatpush2.bf16.msra.mxu0 0
    %3045 = vmatprep.mubr.bf16.mxu0 0
    %3046 = vmatmul.mubr.bf16.gmra.mxu0 %v3011
    %v3047 = vpop.f32.mrf.mxu0
    %v3048 = vadd.f32 0.0, %v3047
    %v3049 = vpop.f32.mrf.mxu0
    %v3050 = vpop.f32.mrf.mxu0
    %v3051 = vadd.f32 0.0, %v3050
    %v3052 = vpop.f32.mrf.mxu0
    %3053 = vdwg.mxu0
    %v3055 = vsel %vm2069, %v2436, 0
    %3057 = vmatprep.subr.bf16.mxu0 0
    %3058 = vmatpush1.bf16.msra.mxu0 0
    %3059 = vmatprep.subr.bf16.mxu0 0
    %3060 = vmatpush1.bf16.msra.mxu0 0
    %3061 = vmatprep.subr.bf16.mxu0 0
    %3062 = vmatpush1.bf16.msra.mxu0 0
    %3063 = vmatprep.subr.bf16.mxu0 0
    %3064 = vmatpush1.bf16.msra.mxu0 0
    %3065 = vmatprep.subr.bf16.mxu0 0
    %3066 = vmatpush1.bf16.msra.mxu0 0
    %3067 = vmatprep.subr.bf16.mxu0 0
    %3068 = vmatpush1.bf16.msra.mxu0 0
    %3069 = vmatprep.subr.bf16.mxu0 0
    %3070 = vmatpush1.bf16.msra.mxu0 0
    %3071 = vmatprep.subr.bf16.mxu0 0
    %3072 = vmatpush1.bf16.msra.mxu0 %v1282
    %3073 = vmatprep.subr.bf16.mxu0 0
    %3074 = vmatpush2.bf16.msra.mxu0 0
    %3075 = vmatprep.subr.bf16.mxu0 0
    %3076 = vmatpush2.bf16.msra.mxu0 0
    %3077 = vmatprep.subr.bf16.mxu0 0
    %3078 = vmatpush2.bf16.msra.mxu0 0
    %3079 = vmatprep.subr.bf16.mxu0 0
    %3080 = vmatpush2.bf16.msra.mxu0 0
    %3081 = vmatprep.subr.bf16.mxu0 0
    %3082 = vmatpush2.bf16.msra.mxu0 0
    %3083 = vmatprep.subr.bf16.mxu0 0
    %3084 = vmatpush2.bf16.msra.mxu0 0
    %3085 = vmatprep.subr.bf16.mxu0 0
    %3086 = vmatpush2.bf16.msra.mxu0 0
    %3087 = vmatprep.subr.bf16.mxu0 0
    %3088 = vmatpush2.bf16.msra.mxu0 0
    %3089 = vmatprep.mubr.bf16.mxu0 0
    %3090 = vmatmul.mubr.bf16.gmra.mxu0 %v3055
    %v3091 = vpop.f32.mrf.mxu0
    %v3092 = vadd.f32 0.0, %v3091
    %v3093 = vpop.f32.mrf.mxu0
    %v3094 = vpop.f32.mrf.mxu0
    %v3095 = vadd.f32 0.0, %v3094
    %v3096 = vpop.f32.mrf.mxu0
    %3097 = vdwg.mxu0
    %v3099 = vsel %vm2069, %v2437, 0
    %3101 = vmatprep.subr.bf16.mxu0 0
    %3102 = vmatpush1.bf16.msra.mxu0 0
    %3103 = vmatprep.subr.bf16.mxu0 0
    %3104 = vmatpush1.bf16.msra.mxu0 0
    %3105 = vmatprep.subr.bf16.mxu0 0
    %3106 = vmatpush1.bf16.msra.mxu0 0
    %3107 = vmatprep.subr.bf16.mxu0 0
    %3108 = vmatpush1.bf16.msra.mxu0 0
    %3109 = vmatprep.subr.bf16.mxu0 0
    %3110 = vmatpush1.bf16.msra.mxu0 0
    %3111 = vmatprep.subr.bf16.mxu0 0
    %3112 = vmatpush1.bf16.msra.mxu0 0
    %3113 = vmatprep.subr.bf16.mxu0 0
    %3114 = vmatpush1.bf16.msra.mxu0 0
    %3115 = vmatprep.subr.bf16.mxu0 0
    %3116 = vmatpush1.bf16.msra.mxu0 %v1283
    %3117 = vmatprep.subr.bf16.mxu0 0
    %3118 = vmatpush2.bf16.msra.mxu0 0
    %3119 = vmatprep.subr.bf16.mxu0 0
    %3120 = vmatpush2.bf16.msra.mxu0 0
    %3121 = vmatprep.subr.bf16.mxu0 0
    %3122 = vmatpush2.bf16.msra.mxu0 0
    %3123 = vmatprep.subr.bf16.mxu0 0
    %3124 = vmatpush2.bf16.msra.mxu0 0
    %3125 = vmatprep.subr.bf16.mxu0 0
    %3126 = vmatpush2.bf16.msra.mxu0 0
    %3127 = vmatprep.subr.bf16.mxu0 0
    %3128 = vmatpush2.bf16.msra.mxu0 0
    %3129 = vmatprep.subr.bf16.mxu0 0
    %3130 = vmatpush2.bf16.msra.mxu0 0
    %3131 = vmatprep.subr.bf16.mxu0 0
    %3132 = vmatpush2.bf16.msra.mxu0 0
    %3133 = vmatprep.mubr.bf16.mxu0 0
    %3134 = vmatmul.mubr.bf16.gmra.mxu0 %v3099
    %v3135 = vpop.f32.mrf.mxu0
    %v3136 = vadd.f32 0.0, %v3135
    %v3137 = vpop.f32.mrf.mxu0
    %v3138 = vpop.f32.mrf.mxu0
    %v3139 = vadd.f32 0.0, %v3138
    %v3140 = vpop.f32.mrf.mxu0
    %3141 = vdwg.mxu0
    %v3142 = vpack.c.bf16 %v2479, %v2476
    %v3143 = vpack.c.bf16 %v2523, %v2520
    %v3144 = vpack.c.bf16 %v2567, %v2564
    %v3145 = vpack.c.bf16 %v2611, %v2608
    %v3146 = vpack.c.bf16 %v2655, %v2652
    %v3147 = vpack.c.bf16 %v2699, %v2696
    %v3148 = vpack.c.bf16 %v2743, %v2740
    %v3149 = vpack.c.bf16 %v2787, %v2784
    %v3150 = vpack.c.bf16 %v2831, %v2828
    %v3151 = vpack.c.bf16 %v2875, %v2872
    %v3152 = vpack.c.bf16 %v2919, %v2916
    %v3153 = vpack.c.bf16 %v2963, %v2960
    %v3154 = vpack.c.bf16 %v3007, %v3004
    %v3155 = vpack.c.bf16 %v3051, %v3048
    %v3156 = vpack.c.bf16 %v3095, %v3092
    %v3157 = vpack.c.bf16 %v3139, %v3136
    %3159 = vrot.lane.b32.xlu0 %v1236, 96
    %v3160 = vpop.permute.xlu0 %3159
    %3162 = vrot.lane.b32.xlu0 %v1252, 96
    %v3163 = vpop.permute.xlu0 %3162
    %v3165 = vsel %vm1284, %v3160, 0
    %v3168 = vsel %vm1284, %v3163, 0
    %3170 = vmatprep.subr.bf16.mxu0 0
    %3171 = vmatpush1.bf16.xpose.msra.mxu0 0
    %3172 = vmatprep.subr.bf16.mxu0 0
    %3173 = vmatpush1.bf16.xpose.msra.mxu0 0
    %3174 = vmatprep.subr.bf16.mxu0 0
    %3175 = vmatpush1.bf16.xpose.msra.mxu0 0
    %3176 = vmatprep.subr.bf16.mxu0 0
    %3177 = vmatpush1.bf16.xpose.msra.mxu0 0
    %3178 = vmatprep.subr.bf16.mxu0 0
    %3179 = vmatpush1.bf16.xpose.msra.mxu0 0
    %3180 = vmatprep.subr.bf16.mxu0 0
    %3181 = vmatpush1.bf16.xpose.msra.mxu0 0
    %3182 = vmatprep.subr.bf16.mxu0 0
    %3183 = vmatpush1.bf16.xpose.msra.mxu0 0
    %3184 = vmatprep.subr.bf16.mxu0 0
    %3185 = vmatpush1.bf16.xpose.msra.mxu0 %v3168
    %3186 = vmatprep.subr.bf16.mxu0 0
    %3187 = vmatpush2.bf16.xpose.msra.mxu0 0
    %3188 = vmatprep.subr.bf16.mxu0 0
    %3189 = vmatpush2.bf16.xpose.msra.mxu0 0
    %3190 = vmatprep.subr.bf16.mxu0 0
    %3191 = vmatpush2.bf16.xpose.msra.mxu0 0
    %3192 = vmatprep.subr.bf16.mxu0 0
    %3193 = vmatpush2.bf16.xpose.msra.mxu0 0
    %3194 = vmatprep.subr.bf16.mxu0 0
    %3195 = vmatpush2.bf16.xpose.msra.mxu0 0
    %3196 = vmatprep.subr.bf16.mxu0 0
    %3197 = vmatpush2.bf16.xpose.msra.mxu0 0
    %3198 = vmatprep.subr.bf16.mxu0 0
    %3199 = vmatpush2.bf16.xpose.msra.mxu0 0
    %3200 = vmatprep.subr.bf16.mxu0 0
    %3201 = vmatpush2.bf16.xpose.msra.mxu0 0
    %3202 = vmatprep.mubr.bf16.mxu0 0
    %3203 = vmatmul.mubr.bf16.gmra.mxu0 %v3165
    %v3204 = vpop.f32.mrf.mxu0
    %v3205 = vadd.f32 0.0, %v3204
    %v3206 = vpop.f32.mrf.mxu0
    %v3207 = vpop.f32.mrf.mxu0
    %v3208 = vadd.f32 0.0, %v3207
    %v3209 = vpop.f32.mrf.mxu0
    %3210 = vdwg.mxu0
    %3212 = vrot.lane.b32.xlu0 %v1237, 96
    %v3213 = vpop.permute.xlu0 %3212
    %3215 = vrot.lane.b32.xlu0 %v1253, 96
    %v3216 = vpop.permute.xlu0 %3215
    %v3218 = vsel %vm1284, %v3213, 0
    %v3221 = vsel %vm1284, %v3216, 0
    %3223 = vmatprep.subr.bf16.mxu0 0
    %3224 = vmatpush1.bf16.xpose.msra.mxu0 0
    %3225 = vmatprep.subr.bf16.mxu0 0
    %3226 = vmatpush1.bf16.xpose.msra.mxu0 0
    %3227 = vmatprep.subr.bf16.mxu0 0
    %3228 = vmatpush1.bf16.xpose.msra.mxu0 0
    %3229 = vmatprep.subr.bf16.mxu0 0
    %3230 = vmatpush1.bf16.xpose.msra.mxu0 0
    %3231 = vmatprep.subr.bf16.mxu0 0
    %3232 = vmatpush1.bf16.xpose.msra.mxu0 0
    %3233 = vmatprep.subr.bf16.mxu0 0
    %3234 = vmatpush1.bf16.xpose.msra.mxu0 0
    %3235 = vmatprep.subr.bf16.mxu0 0
    %3236 = vmatpush1.bf16.xpose.msra.mxu0 0
    %3237 = vmatprep.subr.bf16.mxu0 0
    %3238 = vmatpush1.bf16.xpose.msra.mxu0 %v3221
    %3239 = vmatprep.subr.bf16.mxu0 0
    %3240 = vmatpush2.bf16.xpose.msra.mxu0 0
    %3241 = vmatprep.subr.bf16.mxu0 0
    %3242 = vmatpush2.bf16.xpose.msra.mxu0 0
    %3243 = vmatprep.subr.bf16.mxu0 0
    %3244 = vmatpush2.bf16.xpose.msra.mxu0 0
    %3245 = vmatprep.subr.bf16.mxu0 0
    %3246 = vmatpush2.bf16.xpose.msra.mxu0 0
    %3247 = vmatprep.subr.bf16.mxu0 0
    %3248 = vmatpush2.bf16.xpose.msra.mxu0 0
    %3249 = vmatprep.subr.bf16.mxu0 0
    %3250 = vmatpush2.bf16.xpose.msra.mxu0 0
    %3251 = vmatprep.subr.bf16.mxu0 0
    %3252 = vmatpush2.bf16.xpose.msra.mxu0 0
    %3253 = vmatprep.subr.bf16.mxu0 0
    %3254 = vmatpush2.bf16.xpose.msra.mxu0 0
    %3255 = vmatprep.mubr.bf16.mxu0 0
    %3256 = vmatmul.mubr.bf16.gmra.mxu0 %v3218
    %v3257 = vpop.f32.mrf.mxu0
    %v3258 = vadd.f32 0.0, %v3257
    %v3259 = vpop.f32.mrf.mxu0
    %v3260 = vpop.f32.mrf.mxu0
    %v3261 = vadd.f32 0.0, %v3260
    %v3262 = vpop.f32.mrf.mxu0
    %3263 = vdwg.mxu0
    %3265 = vrot.lane.b32.xlu0 %v1238, 96
    %v3266 = vpop.permute.xlu0 %3265
    %3268 = vrot.lane.b32.xlu0 %v1254, 96
    %v3269 = vpop.permute.xlu0 %3268
    %v3271 = vsel %vm1284, %v3266, 0
    %v3274 = vsel %vm1284, %v3269, 0
    %3276 = vmatprep.subr.bf16.mxu0 0
    %3277 = vmatpush1.bf16.xpose.msra.mxu0 0
    %3278 = vmatprep.subr.bf16.mxu0 0
    %3279 = vmatpush1.bf16.xpose.msra.mxu0 0
    %3280 = vmatprep.subr.bf16.mxu0 0
    %3281 = vmatpush1.bf16.xpose.msra.mxu0 0
    %3282 = vmatprep.subr.bf16.mxu0 0
    %3283 = vmatpush1.bf16.xpose.msra.mxu0 0
    %3284 = vmatprep.subr.bf16.mxu0 0
    %3285 = vmatpush1.bf16.xpose.msra.mxu0 0
    %3286 = vmatprep.subr.bf16.mxu0 0
    %3287 = vmatpush1.bf16.xpose.msra.mxu0 0
    %3288 = vmatprep.subr.bf16.mxu0 0
    %3289 = vmatpush1.bf16.xpose.msra.mxu0 0
    %3290 = vmatprep.subr.bf16.mxu0 0
    %3291 = vmatpush1.bf16.xpose.msra.mxu0 %v3274
    %3292 = vmatprep.subr.bf16.mxu0 0
    %3293 = vmatpush2.bf16.xpose.msra.mxu0 0
    %3294 = vmatprep.subr.bf16.mxu0 0
    %3295 = vmatpush2.bf16.xpose.msra.mxu0 0
    %3296 = vmatprep.subr.bf16.mxu0 0
    %3297 = vmatpush2.bf16.xpose.msra.mxu0 0
    %3298 = vmatprep.subr.bf16.mxu0 0
    %3299 = vmatpush2.bf16.xpose.msra.mxu0 0
    %3300 = vmatprep.subr.bf16.mxu0 0
    %3301 = vmatpush2.bf16.xpose.msra.mxu0 0
    %3302 = vmatprep.subr.bf16.mxu0 0
    %3303 = vmatpush2.bf16.xpose.msra.mxu0 0
    %3304 = vmatprep.subr.bf16.mxu0 0
    %3305 = vmatpush2.bf16.xpose.msra.mxu0 0
    %3306 = vmatprep.subr.bf16.mxu0 0
    %3307 = vmatpush2.bf16.xpose.msra.mxu0 0
    %3308 = vmatprep.mubr.bf16.mxu0 0
    %3309 = vmatmul.mubr.bf16.gmra.mxu0 %v3271
    %v3310 = vpop.f32.mrf.mxu0
    %v3311 = vadd.f32 0.0, %v3310
    %v3312 = vpop.f32.mrf.mxu0
    %v3313 = vpop.f32.mrf.mxu0
    %v3314 = vadd.f32 0.0, %v3313
    %v3315 = vpop.f32.mrf.mxu0
    %3316 = vdwg.mxu0
    %3318 = vrot.lane.b32.xlu0 %v1239, 96
    %v3319 = vpop.permute.xlu0 %3318
    %3321 = vrot.lane.b32.xlu0 %v1255, 96
    %v3322 = vpop.permute.xlu0 %3321
    %v3324 = vsel %vm1284, %v3319, 0
    %v3327 = vsel %vm1284, %v3322, 0
    %3329 = vmatprep.subr.bf16.mxu0 0
    %3330 = vmatpush1.bf16.xpose.msra.mxu0 0
    %3331 = vmatprep.subr.bf16.mxu0 0
    %3332 = vmatpush1.bf16.xpose.msra.mxu0 0
    %3333 = vmatprep.subr.bf16.mxu0 0
    %3334 = vmatpush1.bf16.xpose.msra.mxu0 0
    %3335 = vmatprep.subr.bf16.mxu0 0
    %3336 = vmatpush1.bf16.xpose.msra.mxu0 0
    %3337 = vmatprep.subr.bf16.mxu0 0
    %3338 = vmatpush1.bf16.xpose.msra.mxu0 0
    %3339 = vmatprep.subr.bf16.mxu0 0
    %3340 = vmatpush1.bf16.xpose.msra.mxu0 0
    %3341 = vmatprep.subr.bf16.mxu0 0
    %3342 = vmatpush1.bf16.xpose.msra.mxu0 0
    %3343 = vmatprep.subr.bf16.mxu0 0
    %3344 = vmatpush1.bf16.xpose.msra.mxu0 %v3327
    %3345 = vmatprep.subr.bf16.mxu0 0
    %3346 = vmatpush2.bf16.xpose.msra.mxu0 0
    %3347 = vmatprep.subr.bf16.mxu0 0
    %3348 = vmatpush2.bf16.xpose.msra.mxu0 0
    %3349 = vmatprep.subr.bf16.mxu0 0
    %3350 = vmatpush2.bf16.xpose.msra.mxu0 0
    %3351 = vmatprep.subr.bf16.mxu0 0
    %3352 = vmatpush2.bf16.xpose.msra.mxu0 0
    %3353 = vmatprep.subr.bf16.mxu0 0
    %3354 = vmatpush2.bf16.xpose.msra.mxu0 0
    %3355 = vmatprep.subr.bf16.mxu0 0
    %3356 = vmatpush2.bf16.xpose.msra.mxu0 0
    %3357 = vmatprep.subr.bf16.mxu0 0
    %3358 = vmatpush2.bf16.xpose.msra.mxu0 0
    %3359 = vmatprep.subr.bf16.mxu0 0
    %3360 = vmatpush2.bf16.xpose.msra.mxu0 0
    %3361 = vmatprep.mubr.bf16.mxu0 0
    %3362 = vmatmul.mubr.bf16.gmra.mxu0 %v3324
    %v3363 = vpop.f32.mrf.mxu0
    %v3364 = vadd.f32 0.0, %v3363
    %v3365 = vpop.f32.mrf.mxu0
    %v3366 = vpop.f32.mrf.mxu0
    %v3367 = vadd.f32 0.0, %v3366
    %v3368 = vpop.f32.mrf.mxu0
    %3369 = vdwg.mxu0
    %3371 = vrot.lane.b32.xlu0 %v1240, 96
    %v3372 = vpop.permute.xlu0 %3371
    %3374 = vrot.lane.b32.xlu0 %v1256, 96
    %v3375 = vpop.permute.xlu0 %3374
    %v3377 = vsel %vm1284, %v3372, 0
    %v3380 = vsel %vm1284, %v3375, 0
    %3382 = vmatprep.subr.bf16.mxu0 0
    %3383 = vmatpush1.bf16.xpose.msra.mxu0 0
    %3384 = vmatprep.subr.bf16.mxu0 0
    %3385 = vmatpush1.bf16.xpose.msra.mxu0 0
    %3386 = vmatprep.subr.bf16.mxu0 0
    %3387 = vmatpush1.bf16.xpose.msra.mxu0 0
    %3388 = vmatprep.subr.bf16.mxu0 0
    %3389 = vmatpush1.bf16.xpose.msra.mxu0 0
    %3390 = vmatprep.subr.bf16.mxu0 0
    %3391 = vmatpush1.bf16.xpose.msra.mxu0 0
    %3392 = vmatprep.subr.bf16.mxu0 0
    %3393 = vmatpush1.bf16.xpose.msra.mxu0 0
    %3394 = vmatprep.subr.bf16.mxu0 0
    %3395 = vmatpush1.bf16.xpose.msra.mxu0 0
    %3396 = vmatprep.subr.bf16.mxu0 0
    %3397 = vmatpush1.bf16.xpose.msra.mxu0 %v3380
    %3398 = vmatprep.subr.bf16.mxu0 0
    %3399 = vmatpush2.bf16.xpose.msra.mxu0 0
    %3400 = vmatprep.subr.bf16.mxu0 0
    %3401 = vmatpush2.bf16.xpose.msra.mxu0 0
    %3402 = vmatprep.subr.bf16.mxu0 0
    %3403 = vmatpush2.bf16.xpose.msra.mxu0 0
    %3404 = vmatprep.subr.bf16.mxu0 0
    %3405 = vmatpush2.bf16.xpose.msra.mxu0 0
    %3406 = vmatprep.subr.bf16.mxu0 0
    %3407 = vmatpush2.bf16.xpose.msra.mxu0 0
    %3408 = vmatprep.subr.bf16.mxu0 0
    %3409 = vmatpush2.bf16.xpose.msra.mxu0 0
    %3410 = vmatprep.subr.bf16.mxu0 0
    %3411 = vmatpush2.bf16.xpose.msra.mxu0 0
    %3412 = vmatprep.subr.bf16.mxu0 0
    %3413 = vmatpush2.bf16.xpose.msra.mxu0 0
    %3414 = vmatprep.mubr.bf16.mxu0 0
    %3415 = vmatmul.mubr.bf16.gmra.mxu0 %v3377
    %v3416 = vpop.f32.mrf.mxu0
    %v3417 = vadd.f32 0.0, %v3416
    %v3418 = vpop.f32.mrf.mxu0
    %v3419 = vpop.f32.mrf.mxu0
    %v3420 = vadd.f32 0.0, %v3419
    %v3421 = vpop.f32.mrf.mxu0
    %3422 = vdwg.mxu0
    %3424 = vrot.lane.b32.xlu0 %v1241, 96
    %v3425 = vpop.permute.xlu0 %3424
    %3427 = vrot.lane.b32.xlu0 %v1257, 96
    %v3428 = vpop.permute.xlu0 %3427
    %v3430 = vsel %vm1284, %v3425, 0
    %v3433 = vsel %vm1284, %v3428, 0
    %3435 = vmatprep.subr.bf16.mxu0 0
    %3436 = vmatpush1.bf16.xpose.msra.mxu0 0
    %3437 = vmatprep.subr.bf16.mxu0 0
    %3438 = vmatpush1.bf16.xpose.msra.mxu0 0
    %3439 = vmatprep.subr.bf16.mxu0 0
    %3440 = vmatpush1.bf16.xpose.msra.mxu0 0
    %3441 = vmatprep.subr.bf16.mxu0 0
    %3442 = vmatpush1.bf16.xpose.msra.mxu0 0
    %3443 = vmatprep.subr.bf16.mxu0 0
    %3444 = vmatpush1.bf16.xpose.msra.mxu0 0
    %3445 = vmatprep.subr.bf16.mxu0 0
    %3446 = vmatpush1.bf16.xpose.msra.mxu0 0
    %3447 = vmatprep.subr.bf16.mxu0 0
    %3448 = vmatpush1.bf16.xpose.msra.mxu0 0
    %3449 = vmatprep.subr.bf16.mxu0 0
    %3450 = vmatpush1.bf16.xpose.msra.mxu0 %v3433
    %3451 = vmatprep.subr.bf16.mxu0 0
    %3452 = vmatpush2.bf16.xpose.msra.mxu0 0
    %3453 = vmatprep.subr.bf16.mxu0 0
    %3454 = vmatpush2.bf16.xpose.msra.mxu0 0
    %3455 = vmatprep.subr.bf16.mxu0 0
    %3456 = vmatpush2.bf16.xpose.msra.mxu0 0
    %3457 = vmatprep.subr.bf16.mxu0 0
    %3458 = vmatpush2.bf16.xpose.msra.mxu0 0
    %3459 = vmatprep.subr.bf16.mxu0 0
    %3460 = vmatpush2.bf16.xpose.msra.mxu0 0
    %3461 = vmatprep.subr.bf16.mxu0 0
    %3462 = vmatpush2.bf16.xpose.msra.mxu0 0
    %3463 = vmatprep.subr.bf16.mxu0 0
    %3464 = vmatpush2.bf16.xpose.msra.mxu0 0
    %3465 = vmatprep.subr.bf16.mxu0 0
    %3466 = vmatpush2.bf16.xpose.msra.mxu0 0
    %3467 = vmatprep.mubr.bf16.mxu0 0
    %3468 = vmatmul.mubr.bf16.gmra.mxu0 %v3430
    %v3469 = vpop.f32.mrf.mxu0
    %v3470 = vadd.f32 0.0, %v3469
    %v3471 = vpop.f32.mrf.mxu0
    %v3472 = vpop.f32.mrf.mxu0
    %v3473 = vadd.f32 0.0, %v3472
    %v3474 = vpop.f32.mrf.mxu0
    %3475 = vdwg.mxu0
    %3477 = vrot.lane.b32.xlu0 %v1242, 96
    %v3478 = vpop.permute.xlu0 %3477
    %3480 = vrot.lane.b32.xlu0 %v1258, 96
    %v3481 = vpop.permute.xlu0 %3480
    %v3483 = vsel %vm1284, %v3478, 0
    %v3486 = vsel %vm1284, %v3481, 0
    %3488 = vmatprep.subr.bf16.mxu0 0
    %3489 = vmatpush1.bf16.xpose.msra.mxu0 0
    %3490 = vmatprep.subr.bf16.mxu0 0
    %3491 = vmatpush1.bf16.xpose.msra.mxu0 0
    %3492 = vmatprep.subr.bf16.mxu0 0
    %3493 = vmatpush1.bf16.xpose.msra.mxu0 0
    %3494 = vmatprep.subr.bf16.mxu0 0
    %3495 = vmatpush1.bf16.xpose.msra.mxu0 0
    %3496 = vmatprep.subr.bf16.mxu0 0
    %3497 = vmatpush1.bf16.xpose.msra.mxu0 0
    %3498 = vmatprep.subr.bf16.mxu0 0
    %3499 = vmatpush1.bf16.xpose.msra.mxu0 0
    %3500 = vmatprep.subr.bf16.mxu0 0
    %3501 = vmatpush1.bf16.xpose.msra.mxu0 0
    %3502 = vmatprep.subr.bf16.mxu0 0
    %3503 = vmatpush1.bf16.xpose.msra.mxu0 %v3486
    %3504 = vmatprep.subr.bf16.mxu0 0
    %3505 = vmatpush2.bf16.xpose.msra.mxu0 0
    %3506 = vmatprep.subr.bf16.mxu0 0
    %3507 = vmatpush2.bf16.xpose.msra.mxu0 0
    %3508 = vmatprep.subr.bf16.mxu0 0
    %3509 = vmatpush2.bf16.xpose.msra.mxu0 0
    %3510 = vmatprep.subr.bf16.mxu0 0
    %3511 = vmatpush2.bf16.xpose.msra.mxu0 0
    %3512 = vmatprep.subr.bf16.mxu0 0
    %3513 = vmatpush2.bf16.xpose.msra.mxu0 0
    %3514 = vmatprep.subr.bf16.mxu0 0
    %3515 = vmatpush2.bf16.xpose.msra.mxu0 0
    %3516 = vmatprep.subr.bf16.mxu0 0
    %3517 = vmatpush2.bf16.xpose.msra.mxu0 0
    %3518 = vmatprep.subr.bf16.mxu0 0
    %3519 = vmatpush2.bf16.xpose.msra.mxu0 0
    %3520 = vmatprep.mubr.bf16.mxu0 0
    %3521 = vmatmul.mubr.bf16.gmra.mxu0 %v3483
    %v3522 = vpop.f32.mrf.mxu0
    %v3523 = vadd.f32 0.0, %v3522
    %v3524 = vpop.f32.mrf.mxu0
    %v3525 = vpop.f32.mrf.mxu0
    %v3526 = vadd.f32 0.0, %v3525
    %v3527 = vpop.f32.mrf.mxu0
    %3528 = vdwg.mxu0
    %3530 = vrot.lane.b32.xlu0 %v1243, 96
    %v3531 = vpop.permute.xlu0 %3530
    %3533 = vrot.lane.b32.xlu0 %v1259, 96
    %v3534 = vpop.permute.xlu0 %3533
    %v3536 = vsel %vm1284, %v3531, 0
    %v3539 = vsel %vm1284, %v3534, 0
    %3541 = vmatprep.subr.bf16.mxu0 0
    %3542 = vmatpush1.bf16.xpose.msra.mxu0 0
    %3543 = vmatprep.subr.bf16.mxu0 0
    %3544 = vmatpush1.bf16.xpose.msra.mxu0 0
    %3545 = vmatprep.subr.bf16.mxu0 0
    %3546 = vmatpush1.bf16.xpose.msra.mxu0 0
    %3547 = vmatprep.subr.bf16.mxu0 0
    %3548 = vmatpush1.bf16.xpose.msra.mxu0 0
    %3549 = vmatprep.subr.bf16.mxu0 0
    %3550 = vmatpush1.bf16.xpose.msra.mxu0 0
    %3551 = vmatprep.subr.bf16.mxu0 0
    %3552 = vmatpush1.bf16.xpose.msra.mxu0 0
    %3553 = vmatprep.subr.bf16.mxu0 0
    %3554 = vmatpush1.bf16.xpose.msra.mxu0 0
    %3555 = vmatprep.subr.bf16.mxu0 0
    %3556 = vmatpush1.bf16.xpose.msra.mxu0 %v3539
    %3557 = vmatprep.subr.bf16.mxu0 0
    %3558 = vmatpush2.bf16.xpose.msra.mxu0 0
    %3559 = vmatprep.subr.bf16.mxu0 0
    %3560 = vmatpush2.bf16.xpose.msra.mxu0 0
    %3561 = vmatprep.subr.bf16.mxu0 0
    %3562 = vmatpush2.bf16.xpose.msra.mxu0 0
    %3563 = vmatprep.subr.bf16.mxu0 0
    %3564 = vmatpush2.bf16.xpose.msra.mxu0 0
    %3565 = vmatprep.subr.bf16.mxu0 0
    %3566 = vmatpush2.bf16.xpose.msra.mxu0 0
    %3567 = vmatprep.subr.bf16.mxu0 0
    %3568 = vmatpush2.bf16.xpose.msra.mxu0 0
    %3569 = vmatprep.subr.bf16.mxu0 0
    %3570 = vmatpush2.bf16.xpose.msra.mxu0 0
    %3571 = vmatprep.subr.bf16.mxu0 0
    %3572 = vmatpush2.bf16.xpose.msra.mxu0 0
    %3573 = vmatprep.mubr.bf16.mxu0 0
    %3574 = vmatmul.mubr.bf16.gmra.mxu0 %v3536
    %v3575 = vpop.f32.mrf.mxu0
    %v3576 = vadd.f32 0.0, %v3575
    %v3577 = vpop.f32.mrf.mxu0
    %v3578 = vpop.f32.mrf.mxu0
    %v3579 = vadd.f32 0.0, %v3578
    %v3580 = vpop.f32.mrf.mxu0
    %3581 = vdwg.mxu0
    %3583 = vrot.lane.b32.xlu0 %v1244, 96
    %v3584 = vpop.permute.xlu0 %3583
    %3586 = vrot.lane.b32.xlu0 %v1260, 96
    %v3587 = vpop.permute.xlu0 %3586
    %v3589 = vsel %vm1284, %v3584, 0
    %v3592 = vsel %vm1284, %v3587, 0
    %3594 = vmatprep.subr.bf16.mxu0 0
    %3595 = vmatpush1.bf16.xpose.msra.mxu0 0
    %3596 = vmatprep.subr.bf16.mxu0 0
    %3597 = vmatpush1.bf16.xpose.msra.mxu0 0
    %3598 = vmatprep.subr.bf16.mxu0 0
    %3599 = vmatpush1.bf16.xpose.msra.mxu0 0
    %3600 = vmatprep.subr.bf16.mxu0 0
    %3601 = vmatpush1.bf16.xpose.msra.mxu0 0
    %3602 = vmatprep.subr.bf16.mxu0 0
    %3603 = vmatpush1.bf16.xpose.msra.mxu0 0
    %3604 = vmatprep.subr.bf16.mxu0 0
    %3605 = vmatpush1.bf16.xpose.msra.mxu0 0
    %3606 = vmatprep.subr.bf16.mxu0 0
    %3607 = vmatpush1.bf16.xpose.msra.mxu0 0
    %3608 = vmatprep.subr.bf16.mxu0 0
    %3609 = vmatpush1.bf16.xpose.msra.mxu0 %v3592
    %3610 = vmatprep.subr.bf16.mxu0 0
    %3611 = vmatpush2.bf16.xpose.msra.mxu0 0
    %3612 = vmatprep.subr.bf16.mxu0 0
    %3613 = vmatpush2.bf16.xpose.msra.mxu0 0
    %3614 = vmatprep.subr.bf16.mxu0 0
    %3615 = vmatpush2.bf16.xpose.msra.mxu0 0
    %3616 = vmatprep.subr.bf16.mxu0 0
    %3617 = vmatpush2.bf16.xpose.msra.mxu0 0
    %3618 = vmatprep.subr.bf16.mxu0 0
    %3619 = vmatpush2.bf16.xpose.msra.mxu0 0
    %3620 = vmatprep.subr.bf16.mxu0 0
    %3621 = vmatpush2.bf16.xpose.msra.mxu0 0
    %3622 = vmatprep.subr.bf16.mxu0 0
    %3623 = vmatpush2.bf16.xpose.msra.mxu0 0
    %3624 = vmatprep.subr.bf16.mxu0 0
    %3625 = vmatpush2.bf16.xpose.msra.mxu0 0
    %3626 = vmatprep.mubr.bf16.mxu0 0
    %3627 = vmatmul.mubr.bf16.gmra.mxu0 %v3589
    %v3628 = vpop.f32.mrf.mxu0
    %v3629 = vadd.f32 0.0, %v3628
    %v3630 = vpop.f32.mrf.mxu0
    %v3631 = vpop.f32.mrf.mxu0
    %v3632 = vadd.f32 0.0, %v3631
    %v3633 = vpop.f32.mrf.mxu0
    %3634 = vdwg.mxu0
    %3636 = vrot.lane.b32.xlu0 %v1245, 96
    %v3637 = vpop.permute.xlu0 %3636
    %3639 = vrot.lane.b32.xlu0 %v1261, 96
    %v3640 = vpop.permute.xlu0 %3639
    %v3642 = vsel %vm1284, %v3637, 0
    %v3645 = vsel %vm1284, %v3640, 0
    %3647 = vmatprep.subr.bf16.mxu0 0
    %3648 = vmatpush1.bf16.xpose.msra.mxu0 0
    %3649 = vmatprep.subr.bf16.mxu0 0
    %3650 = vmatpush1.bf16.xpose.msra.mxu0 0
    %3651 = vmatprep.subr.bf16.mxu0 0
    %3652 = vmatpush1.bf16.xpose.msra.mxu0 0
    %3653 = vmatprep.subr.bf16.mxu0 0
    %3654 = vmatpush1.bf16.xpose.msra.mxu0 0
    %3655 = vmatprep.subr.bf16.mxu0 0
    %3656 = vmatpush1.bf16.xpose.msra.mxu0 0
    %3657 = vmatprep.subr.bf16.mxu0 0
    %3658 = vmatpush1.bf16.xpose.msra.mxu0 0
    %3659 = vmatprep.subr.bf16.mxu0 0
    %3660 = vmatpush1.bf16.xpose.msra.mxu0 0
    %3661 = vmatprep.subr.bf16.mxu0 0
    %3662 = vmatpush1.bf16.xpose.msra.mxu0 %v3645
    %3663 = vmatprep.subr.bf16.mxu0 0
    %3664 = vmatpush2.bf16.xpose.msra.mxu0 0
    %3665 = vmatprep.subr.bf16.mxu0 0
    %3666 = vmatpush2.bf16.xpose.msra.mxu0 0
    %3667 = vmatprep.subr.bf16.mxu0 0
    %3668 = vmatpush2.bf16.xpose.msra.mxu0 0
    %3669 = vmatprep.subr.bf16.mxu0 0
    %3670 = vmatpush2.bf16.xpose.msra.mxu0 0
    %3671 = vmatprep.subr.bf16.mxu0 0
    %3672 = vmatpush2.bf16.xpose.msra.mxu0 0
    %3673 = vmatprep.subr.bf16.mxu0 0
    %3674 = vmatpush2.bf16.xpose.msra.mxu0 0
    %3675 = vmatprep.subr.bf16.mxu0 0
    %3676 = vmatpush2.bf16.xpose.msra.mxu0 0
    %3677 = vmatprep.subr.bf16.mxu0 0
    %3678 = vmatpush2.bf16.xpose.msra.mxu0 0
    %3679 = vmatprep.mubr.bf16.mxu0 0
    %3680 = vmatmul.mubr.bf16.gmra.mxu0 %v3642
    %v3681 = vpop.f32.mrf.mxu0
    %v3682 = vadd.f32 0.0, %v3681
    %v3683 = vpop.f32.mrf.mxu0
    %v3684 = vpop.f32.mrf.mxu0
    %v3685 = vadd.f32 0.0, %v3684
    %v3686 = vpop.f32.mrf.mxu0
    %3687 = vdwg.mxu0
    %3689 = vrot.lane.b32.xlu0 %v1246, 96
    %v3690 = vpop.permute.xlu0 %3689
    %3692 = vrot.lane.b32.xlu0 %v1262, 96
    %v3693 = vpop.permute.xlu0 %3692
    %v3695 = vsel %vm1284, %v3690, 0
    %v3698 = vsel %vm1284, %v3693, 0
    %3700 = vmatprep.subr.bf16.mxu0 0
    %3701 = vmatpush1.bf16.xpose.msra.mxu0 0
    %3702 = vmatprep.subr.bf16.mxu0 0
    %3703 = vmatpush1.bf16.xpose.msra.mxu0 0
    %3704 = vmatprep.subr.bf16.mxu0 0
    %3705 = vmatpush1.bf16.xpose.msra.mxu0 0
    %3706 = vmatprep.subr.bf16.mxu0 0
    %3707 = vmatpush1.bf16.xpose.msra.mxu0 0
    %3708 = vmatprep.subr.bf16.mxu0 0
    %3709 = vmatpush1.bf16.xpose.msra.mxu0 0
    %3710 = vmatprep.subr.bf16.mxu0 0
    %3711 = vmatpush1.bf16.xpose.msra.mxu0 0
    %3712 = vmatprep.subr.bf16.mxu0 0
    %3713 = vmatpush1.bf16.xpose.msra.mxu0 0
    %3714 = vmatprep.subr.bf16.mxu0 0
    %3715 = vmatpush1.bf16.xpose.msra.mxu0 %v3698
    %3716 = vmatprep.subr.bf16.mxu0 0
    %3717 = vmatpush2.bf16.xpose.msra.mxu0 0
    %3718 = vmatprep.subr.bf16.mxu0 0
    %3719 = vmatpush2.bf16.xpose.msra.mxu0 0
    %3720 = vmatprep.subr.bf16.mxu0 0
    %3721 = vmatpush2.bf16.xpose.msra.mxu0 0
    %3722 = vmatprep.subr.bf16.mxu0 0
    %3723 = vmatpush2.bf16.xpose.msra.mxu0 0
    %3724 = vmatprep.subr.bf16.mxu0 0
    %3725 = vmatpush2.bf16.xpose.msra.mxu0 0
    %3726 = vmatprep.subr.bf16.mxu0 0
    %3727 = vmatpush2.bf16.xpose.msra.mxu0 0
    %3728 = vmatprep.subr.bf16.mxu0 0
    %3729 = vmatpush2.bf16.xpose.msra.mxu0 0
    %3730 = vmatprep.subr.bf16.mxu0 0
    %3731 = vmatpush2.bf16.xpose.msra.mxu0 0
    %3732 = vmatprep.mubr.bf16.mxu0 0
    %3733 = vmatmul.mubr.bf16.gmra.mxu0 %v3695
    %v3734 = vpop.f32.mrf.mxu0
    %v3735 = vadd.f32 0.0, %v3734
    %v3736 = vpop.f32.mrf.mxu0
    %v3737 = vpop.f32.mrf.mxu0
    %v3738 = vadd.f32 0.0, %v3737
    %v3739 = vpop.f32.mrf.mxu0
    %3740 = vdwg.mxu0
    %3742 = vrot.lane.b32.xlu0 %v1247, 96
    %v3743 = vpop.permute.xlu0 %3742
    %3745 = vrot.lane.b32.xlu0 %v1263, 96
    %v3746 = vpop.permute.xlu0 %3745
    %v3748 = vsel %vm1284, %v3743, 0
    %v3751 = vsel %vm1284, %v3746, 0
    %3753 = vmatprep.subr.bf16.mxu0 0
    %3754 = vmatpush1.bf16.xpose.msra.mxu0 0
    %3755 = vmatprep.subr.bf16.mxu0 0
    %3756 = vmatpush1.bf16.xpose.msra.mxu0 0
    %3757 = vmatprep.subr.bf16.mxu0 0
    %3758 = vmatpush1.bf16.xpose.msra.mxu0 0
    %3759 = vmatprep.subr.bf16.mxu0 0
    %3760 = vmatpush1.bf16.xpose.msra.mxu0 0
    %3761 = vmatprep.subr.bf16.mxu0 0
    %3762 = vmatpush1.bf16.xpose.msra.mxu0 0
    %3763 = vmatprep.subr.bf16.mxu0 0
    %3764 = vmatpush1.bf16.xpose.msra.mxu0 0
    %3765 = vmatprep.subr.bf16.mxu0 0
    %3766 = vmatpush1.bf16.xpose.msra.mxu0 0
    %3767 = vmatprep.subr.bf16.mxu0 0
    %3768 = vmatpush1.bf16.xpose.msra.mxu0 %v3751
    %3769 = vmatprep.subr.bf16.mxu0 0
    %3770 = vmatpush2.bf16.xpose.msra.mxu0 0
    %3771 = vmatprep.subr.bf16.mxu0 0
    %3772 = vmatpush2.bf16.xpose.msra.mxu0 0
    %3773 = vmatprep.subr.bf16.mxu0 0
    %3774 = vmatpush2.bf16.xpose.msra.mxu0 0
    %3775 = vmatprep.subr.bf16.mxu0 0
    %3776 = vmatpush2.bf16.xpose.msra.mxu0 0
    %3777 = vmatprep.subr.bf16.mxu0 0
    %3778 = vmatpush2.bf16.xpose.msra.mxu0 0
    %3779 = vmatprep.subr.bf16.mxu0 0
    %3780 = vmatpush2.bf16.xpose.msra.mxu0 0
    %3781 = vmatprep.subr.bf16.mxu0 0
    %3782 = vmatpush2.bf16.xpose.msra.mxu0 0
    %3783 = vmatprep.subr.bf16.mxu0 0
    %3784 = vmatpush2.bf16.xpose.msra.mxu0 0
    %3785 = vmatprep.mubr.bf16.mxu0 0
    %3786 = vmatmul.mubr.bf16.gmra.mxu0 %v3748
    %v3787 = vpop.f32.mrf.mxu0
    %v3788 = vadd.f32 0.0, %v3787
    %v3789 = vpop.f32.mrf.mxu0
    %v3790 = vpop.f32.mrf.mxu0
    %v3791 = vadd.f32 0.0, %v3790
    %v3792 = vpop.f32.mrf.mxu0
    %3793 = vdwg.mxu0
    %3795 = vrot.lane.b32.xlu0 %v1248, 96
    %v3796 = vpop.permute.xlu0 %3795
    %3798 = vrot.lane.b32.xlu0 %v1264, 96
    %v3799 = vpop.permute.xlu0 %3798
    %v3801 = vsel %vm1284, %v3796, 0
    %v3804 = vsel %vm1284, %v3799, 0
    %3806 = vmatprep.subr.bf16.mxu0 0
    %3807 = vmatpush1.bf16.xpose.msra.mxu0 0
    %3808 = vmatprep.subr.bf16.mxu0 0
    %3809 = vmatpush1.bf16.xpose.msra.mxu0 0
    %3810 = vmatprep.subr.bf16.mxu0 0
    %3811 = vmatpush1.bf16.xpose.msra.mxu0 0
    %3812 = vmatprep.subr.bf16.mxu0 0
    %3813 = vmatpush1.bf16.xpose.msra.mxu0 0
    %3814 = vmatprep.subr.bf16.mxu0 0
    %3815 = vmatpush1.bf16.xpose.msra.mxu0 0
    %3816 = vmatprep.subr.bf16.mxu0 0
    %3817 = vmatpush1.bf16.xpose.msra.mxu0 0
    %3818 = vmatprep.subr.bf16.mxu0 0
    %3819 = vmatpush1.bf16.xpose.msra.mxu0 0
    %3820 = vmatprep.subr.bf16.mxu0 0
    %3821 = vmatpush1.bf16.xpose.msra.mxu0 %v3804
    %3822 = vmatprep.subr.bf16.mxu0 0
    %3823 = vmatpush2.bf16.xpose.msra.mxu0 0
    %3824 = vmatprep.subr.bf16.mxu0 0
    %3825 = vmatpush2.bf16.xpose.msra.mxu0 0
    %3826 = vmatprep.subr.bf16.mxu0 0
    %3827 = vmatpush2.bf16.xpose.msra.mxu0 0
    %3828 = vmatprep.subr.bf16.mxu0 0
    %3829 = vmatpush2.bf16.xpose.msra.mxu0 0
    %3830 = vmatprep.subr.bf16.mxu0 0
    %3831 = vmatpush2.bf16.xpose.msra.mxu0 0
    %3832 = vmatprep.subr.bf16.mxu0 0
    %3833 = vmatpush2.bf16.xpose.msra.mxu0 0
    %3834 = vmatprep.subr.bf16.mxu0 0
    %3835 = vmatpush2.bf16.xpose.msra.mxu0 0
    %3836 = vmatprep.subr.bf16.mxu0 0
    %3837 = vmatpush2.bf16.xpose.msra.mxu0 0
    %3838 = vmatprep.mubr.bf16.mxu0 0
    %3839 = vmatmul.mubr.bf16.gmra.mxu0 %v3801
    %v3840 = vpop.f32.mrf.mxu0
    %v3841 = vadd.f32 0.0, %v3840
    %v3842 = vpop.f32.mrf.mxu0
    %v3843 = vpop.f32.mrf.mxu0
    %v3844 = vadd.f32 0.0, %v3843
    %v3845 = vpop.f32.mrf.mxu0
    %3846 = vdwg.mxu0
    %3848 = vrot.lane.b32.xlu0 %v1249, 96
    %v3849 = vpop.permute.xlu0 %3848
    %3851 = vrot.lane.b32.xlu0 %v1265, 96
    %v3852 = vpop.permute.xlu0 %3851
    %v3854 = vsel %vm1284, %v3849, 0
    %v3857 = vsel %vm1284, %v3852, 0
    %3859 = vmatprep.subr.bf16.mxu0 0
    %3860 = vmatpush1.bf16.xpose.msra.mxu0 0
    %3861 = vmatprep.subr.bf16.mxu0 0
    %3862 = vmatpush1.bf16.xpose.msra.mxu0 0
    %3863 = vmatprep.subr.bf16.mxu0 0
    %3864 = vmatpush1.bf16.xpose.msra.mxu0 0
    %3865 = vmatprep.subr.bf16.mxu0 0
    %3866 = vmatpush1.bf16.xpose.msra.mxu0 0
    %3867 = vmatprep.subr.bf16.mxu0 0
    %3868 = vmatpush1.bf16.xpose.msra.mxu0 0
    %3869 = vmatprep.subr.bf16.mxu0 0
    %3870 = vmatpush1.bf16.xpose.msra.mxu0 0
    %3871 = vmatprep.subr.bf16.mxu0 0
    %3872 = vmatpush1.bf16.xpose.msra.mxu0 0
    %3873 = vmatprep.subr.bf16.mxu0 0
    %3874 = vmatpush1.bf16.xpose.msra.mxu0 %v3857
    %3875 = vmatprep.subr.bf16.mxu0 0
    %3876 = vmatpush2.bf16.xpose.msra.mxu0 0
    %3877 = vmatprep.subr.bf16.mxu0 0
    %3878 = vmatpush2.bf16.xpose.msra.mxu0 0
    %3879 = vmatprep.subr.bf16.mxu0 0
    %3880 = vmatpush2.bf16.xpose.msra.mxu0 0
    %3881 = vmatprep.subr.bf16.mxu0 0
    %3882 = vmatpush2.bf16.xpose.msra.mxu0 0
    %3883 = vmatprep.subr.bf16.mxu0 0
    %3884 = vmatpush2.bf16.xpose.msra.mxu0 0
    %3885 = vmatprep.subr.bf16.mxu0 0
    %3886 = vmatpush2.bf16.xpose.msra.mxu0 0
    %3887 = vmatprep.subr.bf16.mxu0 0
    %3888 = vmatpush2.bf16.xpose.msra.mxu0 0
    %3889 = vmatprep.subr.bf16.mxu0 0
    %3890 = vmatpush2.bf16.xpose.msra.mxu0 0
    %3891 = vmatprep.mubr.bf16.mxu0 0
    %3892 = vmatmul.mubr.bf16.gmra.mxu0 %v3854
    %v3893 = vpop.f32.mrf.mxu0
    %v3894 = vadd.f32 0.0, %v3893
    %v3895 = vpop.f32.mrf.mxu0
    %v3896 = vpop.f32.mrf.mxu0
    %v3897 = vadd.f32 0.0, %v3896
    %v3898 = vpop.f32.mrf.mxu0
    %3899 = vdwg.mxu0
    %3901 = vrot.lane.b32.xlu0 %v1250, 96
    %v3902 = vpop.permute.xlu0 %3901
    %3904 = vrot.lane.b32.xlu0 %v1266, 96
    %v3905 = vpop.permute.xlu0 %3904
    %v3907 = vsel %vm1284, %v3902, 0
    %v3910 = vsel %vm1284, %v3905, 0
    %3912 = vmatprep.subr.bf16.mxu0 0
    %3913 = vmatpush1.bf16.xpose.msra.mxu0 0
    %3914 = vmatprep.subr.bf16.mxu0 0
    %3915 = vmatpush1.bf16.xpose.msra.mxu0 0
    %3916 = vmatprep.subr.bf16.mxu0 0
    %3917 = vmatpush1.bf16.xpose.msra.mxu0 0
    %3918 = vmatprep.subr.bf16.mxu0 0
    %3919 = vmatpush1.bf16.xpose.msra.mxu0 0
    %3920 = vmatprep.subr.bf16.mxu0 0
    %3921 = vmatpush1.bf16.xpose.msra.mxu0 0
    %3922 = vmatprep.subr.bf16.mxu0 0
    %3923 = vmatpush1.bf16.xpose.msra.mxu0 0
    %3924 = vmatprep.subr.bf16.mxu0 0
    %3925 = vmatpush1.bf16.xpose.msra.mxu0 0
    %3926 = vmatprep.subr.bf16.mxu0 0
    %3927 = vmatpush1.bf16.xpose.msra.mxu0 %v3910
    %3928 = vmatprep.subr.bf16.mxu0 0
    %3929 = vmatpush2.bf16.xpose.msra.mxu0 0
    %3930 = vmatprep.subr.bf16.mxu0 0
    %3931 = vmatpush2.bf16.xpose.msra.mxu0 0
    %3932 = vmatprep.subr.bf16.mxu0 0
    %3933 = vmatpush2.bf16.xpose.msra.mxu0 0
    %3934 = vmatprep.subr.bf16.mxu0 0
    %3935 = vmatpush2.bf16.xpose.msra.mxu0 0
    %3936 = vmatprep.subr.bf16.mxu0 0
    %3937 = vmatpush2.bf16.xpose.msra.mxu0 0
    %3938 = vmatprep.subr.bf16.mxu0 0
    %3939 = vmatpush2.bf16.xpose.msra.mxu0 0
    %3940 = vmatprep.subr.bf16.mxu0 0
    %3941 = vmatpush2.bf16.xpose.msra.mxu0 0
    %3942 = vmatprep.subr.bf16.mxu0 0
    %3943 = vmatpush2.bf16.xpose.msra.mxu0 0
    %3944 = vmatprep.mubr.bf16.mxu0 0
    %3945 = vmatmul.mubr.bf16.gmra.mxu0 %v3907
    %v3946 = vpop.f32.mrf.mxu0
    %v3947 = vadd.f32 0.0, %v3946
    %v3948 = vpop.f32.mrf.mxu0
    %v3949 = vpop.f32.mrf.mxu0
    %v3950 = vadd.f32 0.0, %v3949
    %v3951 = vpop.f32.mrf.mxu0
    %3952 = vdwg.mxu0
    %3954 = vrot.lane.b32.xlu0 %v1251, 96
    %v3955 = vpop.permute.xlu0 %3954
    %3957 = vrot.lane.b32.xlu0 %v1267, 96
    %v3958 = vpop.permute.xlu0 %3957
    %v3960 = vsel %vm1284, %v3955, 0
    %v3963 = vsel %vm1284, %v3958, 0
    %3965 = vmatprep.subr.bf16.mxu0 0
    %3966 = vmatpush1.bf16.xpose.msra.mxu0 0
    %3967 = vmatprep.subr.bf16.mxu0 0
    %3968 = vmatpush1.bf16.xpose.msra.mxu0 0
    %3969 = vmatprep.subr.bf16.mxu0 0
    %3970 = vmatpush1.bf16.xpose.msra.mxu0 0
    %3971 = vmatprep.subr.bf16.mxu0 0
    %3972 = vmatpush1.bf16.xpose.msra.mxu0 0
    %3973 = vmatprep.subr.bf16.mxu0 0
    %3974 = vmatpush1.bf16.xpose.msra.mxu0 0
    %3975 = vmatprep.subr.bf16.mxu0 0
    %3976 = vmatpush1.bf16.xpose.msra.mxu0 0
    %3977 = vmatprep.subr.bf16.mxu0 0
    %3978 = vmatpush1.bf16.xpose.msra.mxu0 0
    %3979 = vmatprep.subr.bf16.mxu0 0
    %3980 = vmatpush1.bf16.xpose.msra.mxu0 %v3963
    %3981 = vmatprep.subr.bf16.mxu0 0
    %3982 = vmatpush2.bf16.xpose.msra.mxu0 0
    %3983 = vmatprep.subr.bf16.mxu0 0
    %3984 = vmatpush2.bf16.xpose.msra.mxu0 0
    %3985 = vmatprep.subr.bf16.mxu0 0
    %3986 = vmatpush2.bf16.xpose.msra.mxu0 0
    %3987 = vmatprep.subr.bf16.mxu0 0
    %3988 = vmatpush2.bf16.xpose.msra.mxu0 0
    %3989 = vmatprep.subr.bf16.mxu0 0
    %3990 = vmatpush2.bf16.xpose.msra.mxu0 0
    %3991 = vmatprep.subr.bf16.mxu0 0
    %3992 = vmatpush2.bf16.xpose.msra.mxu0 0
    %3993 = vmatprep.subr.bf16.mxu0 0
    %3994 = vmatpush2.bf16.xpose.msra.mxu0 0
    %3995 = vmatprep.subr.bf16.mxu0 0
    %3996 = vmatpush2.bf16.xpose.msra.mxu0 0
    %3997 = vmatprep.mubr.bf16.mxu0 0
    %3998 = vmatmul.mubr.bf16.gmra.mxu0 %v3960
    %v3999 = vpop.f32.mrf.mxu0
    %v4000 = vadd.f32 0.0, %v3999
    %v4001 = vpop.f32.mrf.mxu0
    %v4002 = vpop.f32.mrf.mxu0
    %v4003 = vadd.f32 0.0, %v4002
    %v4004 = vpop.f32.mrf.mxu0
    %4005 = vdwg.mxu0
    %v4006 = vmul.f32 %v3205, 0.17677669
    %v4007 = vmul.f32 %v3208, 0.17677669
    %v4008 = vmul.f32 %v3258, 0.17677669
    %v4009 = vmul.f32 %v3261, 0.17677669
    %v4010 = vmul.f32 %v3311, 0.17677669
    %v4011 = vmul.f32 %v3314, 0.17677669
    %v4012 = vmul.f32 %v3364, 0.17677669
    %v4013 = vmul.f32 %v3367, 0.17677669
    %v4014 = vmul.f32 %v3417, 0.17677669
    %v4015 = vmul.f32 %v3420, 0.17677669
    %v4016 = vmul.f32 %v3470, 0.17677669
    %v4017 = vmul.f32 %v3473, 0.17677669
    %v4018 = vmul.f32 %v3523, 0.17677669
    %v4019 = vmul.f32 %v3526, 0.17677669
    %v4020 = vmul.f32 %v3576, 0.17677669
    %v4021 = vmul.f32 %v3579, 0.17677669
    %v4022 = vmul.f32 %v3629, 0.17677669
    %v4023 = vmul.f32 %v3632, 0.17677669
    %v4024 = vmul.f32 %v3682, 0.17677669
    %v4025 = vmul.f32 %v3685, 0.17677669
    %v4026 = vmul.f32 %v3735, 0.17677669
    %v4027 = vmul.f32 %v3738, 0.17677669
    %v4028 = vmul.f32 %v3788, 0.17677669
    %v4029 = vmul.f32 %v3791, 0.17677669
    %v4030 = vmul.f32 %v3841, 0.17677669
    %v4031 = vmul.f32 %v3844, 0.17677669
    %v4032 = vmul.f32 %v3894, 0.17677669
    %v4033 = vmul.f32 %v3897, 0.17677669
    %v4034 = vmul.f32 %v3947, 0.17677669
    %v4035 = vmul.f32 %v3950, 0.17677669
    %v4036 = vmul.f32 %v4000, 0.17677669
    %v4037 = vmul.f32 %v4003, 0.17677669
    %v4038 = vsel %vm2069, %v4006, -inf
    %4039 = vmax.xlane.f32.xlu0 %v4038
    %v4040 = vpop.xlane.xlu0 %4039
    %v4041 = vsel %vm2069, %v4007, -inf
    %4042 = vmax.xlane.f32.xlu0 %v4041
    %v4043 = vpop.xlane.xlu0 %4042
    %v4044 = vsel %vm2069, %v4008, -inf
    %4045 = vmax.xlane.f32.xlu0 %v4044
    %v4046 = vpop.xlane.xlu0 %4045
    %v4047 = vsel %vm2069, %v4009, -inf
    %4048 = vmax.xlane.f32.xlu0 %v4047
    %v4049 = vpop.xlane.xlu0 %4048
    %v4050 = vsel %vm2069, %v4010, -inf
    %4051 = vmax.xlane.f32.xlu0 %v4050
    %v4052 = vpop.xlane.xlu0 %4051
    %v4053 = vsel %vm2069, %v4011, -inf
    %4054 = vmax.xlane.f32.xlu0 %v4053
    %v4055 = vpop.xlane.xlu0 %4054
    %v4056 = vsel %vm2069, %v4012, -inf
    %4057 = vmax.xlane.f32.xlu0 %v4056
    %v4058 = vpop.xlane.xlu0 %4057
    %v4059 = vsel %vm2069, %v4013, -inf
    %4060 = vmax.xlane.f32.xlu0 %v4059
    %v4061 = vpop.xlane.xlu0 %4060
    %v4062 = vsel %vm2069, %v4014, -inf
    %4063 = vmax.xlane.f32.xlu0 %v4062
    %v4064 = vpop.xlane.xlu0 %4063
    %v4065 = vsel %vm2069, %v4015, -inf
    %4066 = vmax.xlane.f32.xlu0 %v4065
    %v4067 = vpop.xlane.xlu0 %4066
    %v4068 = vsel %vm2069, %v4016, -inf
    %4069 = vmax.xlane.f32.xlu0 %v4068
    %v4070 = vpop.xlane.xlu0 %4069
    %v4071 = vsel %vm2069, %v4017, -inf
    %4072 = vmax.xlane.f32.xlu0 %v4071
    %v4073 = vpop.xlane.xlu0 %4072
    %v4074 = vsel %vm2069, %v4018, -inf
    %4075 = vmax.xlane.f32.xlu0 %v4074
    %v4076 = vpop.xlane.xlu0 %4075
    %v4077 = vsel %vm2069, %v4019, -inf
    %4078 = vmax.xlane.f32.xlu0 %v4077
    %v4079 = vpop.xlane.xlu0 %4078
    %v4080 = vsel %vm2069, %v4020, -inf
    %4081 = vmax.xlane.f32.xlu0 %v4080
    %v4082 = vpop.xlane.xlu0 %4081
    %v4083 = vsel %vm2069, %v4021, -inf
    %4084 = vmax.xlane.f32.xlu0 %v4083
    %v4085 = vpop.xlane.xlu0 %4084
    %v4086 = vsel %vm2069, %v4022, -inf
    %4087 = vmax.xlane.f32.xlu0 %v4086
    %v4088 = vpop.xlane.xlu0 %4087
    %v4089 = vsel %vm2069, %v4023, -inf
    %4090 = vmax.xlane.f32.xlu0 %v4089
    %v4091 = vpop.xlane.xlu0 %4090
    %v4092 = vsel %vm2069, %v4024, -inf
    %4093 = vmax.xlane.f32.xlu0 %v4092
    %v4094 = vpop.xlane.xlu0 %4093
    %v4095 = vsel %vm2069, %v4025, -inf
    %4096 = vmax.xlane.f32.xlu0 %v4095
    %v4097 = vpop.xlane.xlu0 %4096
    %v4098 = vsel %vm2069, %v4026, -inf
    %4099 = vmax.xlane.f32.xlu0 %v4098
    %v4100 = vpop.xlane.xlu0 %4099
    %v4101 = vsel %vm2069, %v4027, -inf
    %4102 = vmax.xlane.f32.xlu0 %v4101
    %v4103 = vpop.xlane.xlu0 %4102
    %v4104 = vsel %vm2069, %v4028, -inf
    %4105 = vmax.xlane.f32.xlu0 %v4104
    %v4106 = vpop.xlane.xlu0 %4105
    %v4107 = vsel %vm2069, %v4029, -inf
    %4108 = vmax.xlane.f32.xlu0 %v4107
    %v4109 = vpop.xlane.xlu0 %4108
    %v4110 = vsel %vm2069, %v4030, -inf
    %4111 = vmax.xlane.f32.xlu0 %v4110
    %v4112 = vpop.xlane.xlu0 %4111
    %v4113 = vsel %vm2069, %v4031, -inf
    %4114 = vmax.xlane.f32.xlu0 %v4113
    %v4115 = vpop.xlane.xlu0 %4114
    %v4116 = vsel %vm2069, %v4032, -inf
    %4117 = vmax.xlane.f32.xlu0 %v4116
    %v4118 = vpop.xlane.xlu0 %4117
    %v4119 = vsel %vm2069, %v4033, -inf
    %4120 = vmax.xlane.f32.xlu0 %v4119
    %v4121 = vpop.xlane.xlu0 %4120
    %v4122 = vsel %vm2069, %v4034, -inf
    %4123 = vmax.xlane.f32.xlu0 %v4122
    %v4124 = vpop.xlane.xlu0 %4123
    %v4125 = vsel %vm2069, %v4035, -inf
    %4126 = vmax.xlane.f32.xlu0 %v4125
    %v4127 = vpop.xlane.xlu0 %4126
    %v4128 = vsel %vm2069, %v4036, -inf
    %4129 = vmax.xlane.f32.xlu0 %v4128
    %v4130 = vpop.xlane.xlu0 %4129
    %v4131 = vsel %vm2069, %v4037, -inf
    %4132 = vmax.xlane.f32.xlu0 %v4131
    %v4133 = vpop.xlane.xlu0 %4132
    %v4134 = vsub.f32 %v4006, %v4040
    %v4135 = vsub.f32 %v4007, %v4043
    %v4136 = vsub.f32 %v4008, %v4046
    %v4137 = vsub.f32 %v4009, %v4049
    %v4138 = vsub.f32 %v4010, %v4052
    %v4139 = vsub.f32 %v4011, %v4055
    %v4140 = vsub.f32 %v4012, %v4058
    %v4141 = vsub.f32 %v4013, %v4061
    %v4142 = vsub.f32 %v4014, %v4064
    %v4143 = vsub.f32 %v4015, %v4067
    %v4144 = vsub.f32 %v4016, %v4070
    %v4145 = vsub.f32 %v4017, %v4073
    %v4146 = vsub.f32 %v4018, %v4076
    %v4147 = vsub.f32 %v4019, %v4079
    %v4148 = vsub.f32 %v4020, %v4082
    %v4149 = vsub.f32 %v4021, %v4085
    %v4150 = vsub.f32 %v4022, %v4088
    %v4151 = vsub.f32 %v4023, %v4091
    %v4152 = vsub.f32 %v4024, %v4094
    %v4153 = vsub.f32 %v4025, %v4097
    %v4154 = vsub.f32 %v4026, %v4100
    %v4155 = vsub.f32 %v4027, %v4103
    %v4156 = vsub.f32 %v4028, %v4106
    %v4157 = vsub.f32 %v4029, %v4109
    %v4158 = vsub.f32 %v4030, %v4112
    %v4159 = vsub.f32 %v4031, %v4115
    %v4160 = vsub.f32 %v4032, %v4118
    %v4161 = vsub.f32 %v4033, %v4121
    %v4162 = vsub.f32 %v4034, %v4124
    %v4163 = vsub.f32 %v4035, %v4127
    %v4164 = vsub.f32 %v4036, %v4130
    %v4165 = vsub.f32 %v4037, %v4133
    %v4166 = vmul.f32 %v4134, 1.442695
    %v4167 = vpow.pop %v4166
    %v4168 = vmul.f32 %v4135, 1.442695
    %v4169 = vpow.pop %v4168
    %v4170 = vmul.f32 %v4136, 1.442695
    %v4171 = vpow.pop %v4170
    %v4172 = vmul.f32 %v4137, 1.442695
    %v4173 = vpow.pop %v4172
    %v4174 = vmul.f32 %v4138, 1.442695
    %v4175 = vpow.pop %v4174
    %v4176 = vmul.f32 %v4139, 1.442695
    %v4177 = vpow.pop %v4176
    %v4178 = vmul.f32 %v4140, 1.442695
    %v4179 = vpow.pop %v4178
    %v4180 = vmul.f32 %v4141, 1.442695
    %v4181 = vpow.pop %v4180
    %v4182 = vmul.f32 %v4142, 1.442695
    %v4183 = vpow.pop %v4182
    %v4184 = vmul.f32 %v4143, 1.442695
    %v4185 = vpow.pop %v4184
    %v4186 = vmul.f32 %v4144, 1.442695
    %v4187 = vpow.pop %v4186
    %v4188 = vmul.f32 %v4145, 1.442695
    %v4189 = vpow.pop %v4188
    %v4190 = vmul.f32 %v4146, 1.442695
    %v4191 = vpow.pop %v4190
    %v4192 = vmul.f32 %v4147, 1.442695
    %v4193 = vpow.pop %v4192
    %v4194 = vmul.f32 %v4148, 1.442695
    %v4195 = vpow.pop %v4194
    %v4196 = vmul.f32 %v4149, 1.442695
    %v4197 = vpow.pop %v4196
    %v4198 = vmul.f32 %v4150, 1.442695
    %v4199 = vpow.pop %v4198
    %v4200 = vmul.f32 %v4151, 1.442695
    %v4201 = vpow.pop %v4200
    %v4202 = vmul.f32 %v4152, 1.442695
    %v4203 = vpow.pop %v4202
    %v4204 = vmul.f32 %v4153, 1.442695
    %v4205 = vpow.pop %v4204
    %v4206 = vmul.f32 %v4154, 1.442695
    %v4207 = vpow.pop %v4206
    %v4208 = vmul.f32 %v4155, 1.442695
    %v4209 = vpow.pop %v4208
    %v4210 = vmul.f32 %v4156, 1.442695
    %v4211 = vpow.pop %v4210
    %v4212 = vmul.f32 %v4157, 1.442695
    %v4213 = vpow.pop %v4212
    %v4214 = vmul.f32 %v4158, 1.442695
    %v4215 = vpow.pop %v4214
    %v4216 = vmul.f32 %v4159, 1.442695
    %v4217 = vpow.pop %v4216
    %v4218 = vmul.f32 %v4160, 1.442695
    %v4219 = vpow.pop %v4218
    %v4220 = vmul.f32 %v4161, 1.442695
    %v4221 = vpow.pop %v4220
    %v4222 = vmul.f32 %v4162, 1.442695
    %v4223 = vpow.pop %v4222
    %v4224 = vmul.f32 %v4163, 1.442695
    %v4225 = vpow.pop %v4224
    %v4226 = vmul.f32 %v4164, 1.442695
    %v4227 = vpow.pop %v4226
    %v4228 = vmul.f32 %v4165, 1.442695
    %v4229 = vpow.pop %v4228
    %v4230 = vsel %vm2069, %v4167, 0.0
    %4231 = vadd.xlane.f32.xlu0 %v4230
    %v4232 = vpop.xlane.xlu0 %4231
    %v4233 = vsel %vm2069, %v4169, 0.0
    %4234 = vadd.xlane.f32.xlu0 %v4233
    %v4235 = vpop.xlane.xlu0 %4234
    %v4236 = vsel %vm2069, %v4171, 0.0
    %4237 = vadd.xlane.f32.xlu0 %v4236
    %v4238 = vpop.xlane.xlu0 %4237
    %v4239 = vsel %vm2069, %v4173, 0.0
    %4240 = vadd.xlane.f32.xlu0 %v4239
    %v4241 = vpop.xlane.xlu0 %4240
    %v4242 = vsel %vm2069, %v4175, 0.0
    %4243 = vadd.xlane.f32.xlu0 %v4242
    %v4244 = vpop.xlane.xlu0 %4243
    %v4245 = vsel %vm2069, %v4177, 0.0
    %4246 = vadd.xlane.f32.xlu0 %v4245
    %v4247 = vpop.xlane.xlu0 %4246
    %v4248 = vsel %vm2069, %v4179, 0.0
    %4249 = vadd.xlane.f32.xlu0 %v4248
    %v4250 = vpop.xlane.xlu0 %4249
    %v4251 = vsel %vm2069, %v4181, 0.0
    %4252 = vadd.xlane.f32.xlu0 %v4251
    %v4253 = vpop.xlane.xlu0 %4252
    %v4254 = vsel %vm2069, %v4183, 0.0
    %4255 = vadd.xlane.f32.xlu0 %v4254
    %v4256 = vpop.xlane.xlu0 %4255
    %v4257 = vsel %vm2069, %v4185, 0.0
    %4258 = vadd.xlane.f32.xlu0 %v4257
    %v4259 = vpop.xlane.xlu0 %4258
    %v4260 = vsel %vm2069, %v4187, 0.0
    %4261 = vadd.xlane.f32.xlu0 %v4260
    %v4262 = vpop.xlane.xlu0 %4261
    %v4263 = vsel %vm2069, %v4189, 0.0
    %4264 = vadd.xlane.f32.xlu0 %v4263
    %v4265 = vpop.xlane.xlu0 %4264
    %v4266 = vsel %vm2069, %v4191, 0.0
    %4267 = vadd.xlane.f32.xlu0 %v4266
    %v4268 = vpop.xlane.xlu0 %4267
    %v4269 = vsel %vm2069, %v4193, 0.0
    %4270 = vadd.xlane.f32.xlu0 %v4269
    %v4271 = vpop.xlane.xlu0 %4270
    %v4272 = vsel %vm2069, %v4195, 0.0
    %4273 = vadd.xlane.f32.xlu0 %v4272
    %v4274 = vpop.xlane.xlu0 %4273
    %v4275 = vsel %vm2069, %v4197, 0.0
    %4276 = vadd.xlane.f32.xlu0 %v4275
    %v4277 = vpop.xlane.xlu0 %4276
    %v4278 = vsel %vm2069, %v4199, 0.0
    %4279 = vadd.xlane.f32.xlu0 %v4278
    %v4280 = vpop.xlane.xlu0 %4279
    %v4281 = vsel %vm2069, %v4201, 0.0
    %4282 = vadd.xlane.f32.xlu0 %v4281
    %v4283 = vpop.xlane.xlu0 %4282
    %v4284 = vsel %vm2069, %v4203, 0.0
    %4285 = vadd.xlane.f32.xlu0 %v4284
    %v4286 = vpop.xlane.xlu0 %4285
    %v4287 = vsel %vm2069, %v4205, 0.0
    %4288 = vadd.xlane.f32.xlu0 %v4287
    %v4289 = vpop.xlane.xlu0 %4288
    %v4290 = vsel %vm2069, %v4207, 0.0
    %4291 = vadd.xlane.f32.xlu0 %v4290
    %v4292 = vpop.xlane.xlu0 %4291
    %v4293 = vsel %vm2069, %v4209, 0.0
    %4294 = vadd.xlane.f32.xlu0 %v4293
    %v4295 = vpop.xlane.xlu0 %4294
    %v4296 = vsel %vm2069, %v4211, 0.0
    %4297 = vadd.xlane.f32.xlu0 %v4296
    %v4298 = vpop.xlane.xlu0 %4297
    %v4299 = vsel %vm2069, %v4213, 0.0
    %4300 = vadd.xlane.f32.xlu0 %v4299
    %v4301 = vpop.xlane.xlu0 %4300
    %v4302 = vsel %vm2069, %v4215, 0.0
    %4303 = vadd.xlane.f32.xlu0 %v4302
    %v4304 = vpop.xlane.xlu0 %4303
    %v4305 = vsel %vm2069, %v4217, 0.0
    %4306 = vadd.xlane.f32.xlu0 %v4305
    %v4307 = vpop.xlane.xlu0 %4306
    %v4308 = vsel %vm2069, %v4219, 0.0
    %4309 = vadd.xlane.f32.xlu0 %v4308
    %v4310 = vpop.xlane.xlu0 %4309
    %v4311 = vsel %vm2069, %v4221, 0.0
    %4312 = vadd.xlane.f32.xlu0 %v4311
    %v4313 = vpop.xlane.xlu0 %4312
    %v4314 = vsel %vm2069, %v4223, 0.0
    %4315 = vadd.xlane.f32.xlu0 %v4314
    %v4316 = vpop.xlane.xlu0 %4315
    %v4317 = vsel %vm2069, %v4225, 0.0
    %4318 = vadd.xlane.f32.xlu0 %v4317
    %v4319 = vpop.xlane.xlu0 %4318
    %v4320 = vsel %vm2069, %v4227, 0.0
    %4321 = vadd.xlane.f32.xlu0 %v4320
    %v4322 = vpop.xlane.xlu0 %4321
    %v4323 = vsel %vm2069, %v4229, 0.0
    %4324 = vadd.xlane.f32.xlu0 %v4323
    %v4325 = vpop.xlane.xlu0 %4324
    %v4326 = vrcp.pop %v4232
    %v4327 = vmul.f32 %v4167, %v4326
    %v4328 = vrcp.pop %v4235
    %v4329 = vmul.f32 %v4169, %v4328
    %v4330 = vrcp.pop %v4238
    %v4331 = vmul.f32 %v4171, %v4330
    %v4332 = vrcp.pop %v4241
    %v4333 = vmul.f32 %v4173, %v4332
    %v4334 = vrcp.pop %v4244
    %v4335 = vmul.f32 %v4175, %v4334
    %v4336 = vrcp.pop %v4247
    %v4337 = vmul.f32 %v4177, %v4336
    %v4338 = vrcp.pop %v4250
    %v4339 = vmul.f32 %v4179, %v4338
    %v4340 = vrcp.pop %v4253
    %v4341 = vmul.f32 %v4181, %v4340
    %v4342 = vrcp.pop %v4256
    %v4343 = vmul.f32 %v4183, %v4342
    %v4344 = vrcp.pop %v4259
    %v4345 = vmul.f32 %v4185, %v4344
    %v4346 = vrcp.pop %v4262
    %v4347 = vmul.f32 %v4187, %v4346
    %v4348 = vrcp.pop %v4265
    %v4349 = vmul.f32 %v4189, %v4348
    %v4350 = vrcp.pop %v4268
    %v4351 = vmul.f32 %v4191, %v4350
    %v4352 = vrcp.pop %v4271
    %v4353 = vmul.f32 %v4193, %v4352
    %v4354 = vrcp.pop %v4274
    %v4355 = vmul.f32 %v4195, %v4354
    %v4356 = vrcp.pop %v4277
    %v4357 = vmul.f32 %v4197, %v4356
    %v4358 = vrcp.pop %v4280
    %v4359 = vmul.f32 %v4199, %v4358
    %v4360 = vrcp.pop %v4283
    %v4361 = vmul.f32 %v4201, %v4360
    %v4362 = vrcp.pop %v4286
    %v4363 = vmul.f32 %v4203, %v4362
    %v4364 = vrcp.pop %v4289
    %v4365 = vmul.f32 %v4205, %v4364
    %v4366 = vrcp.pop %v4292
    %v4367 = vmul.f32 %v4207, %v4366
    %v4368 = vrcp.pop %v4295
    %v4369 = vmul.f32 %v4209, %v4368
    %v4370 = vrcp.pop %v4298
    %v4371 = vmul.f32 %v4211, %v4370
    %v4372 = vrcp.pop %v4301
    %v4373 = vmul.f32 %v4213, %v4372
    %v4374 = vrcp.pop %v4304
    %v4375 = vmul.f32 %v4215, %v4374
    %v4376 = vrcp.pop %v4307
    %v4377 = vmul.f32 %v4217, %v4376
    %v4378 = vrcp.pop %v4310
    %v4379 = vmul.f32 %v4219, %v4378
    %v4380 = vrcp.pop %v4313
    %v4381 = vmul.f32 %v4221, %v4380
    %v4382 = vrcp.pop %v4316
    %v4383 = vmul.f32 %v4223, %v4382
    %v4384 = vrcp.pop %v4319
    %v4385 = vmul.f32 %v4225, %v4384
    %v4386 = vrcp.pop %v4322
    %v4387 = vmul.f32 %v4227, %v4386
    %v4388 = vrcp.pop %v4325
    %v4389 = vmul.f32 %v4229, %v4388
    %v4390 = vpack.c.bf16 %v4329, %v4327
    %v4391 = vpack.c.bf16 %v4333, %v4331
    %v4392 = vpack.c.bf16 %v4337, %v4335
    %v4393 = vpack.c.bf16 %v4341, %v4339
    %v4394 = vpack.c.bf16 %v4345, %v4343
    %v4395 = vpack.c.bf16 %v4349, %v4347
    %v4396 = vpack.c.bf16 %v4353, %v4351
    %v4397 = vpack.c.bf16 %v4357, %v4355
    %v4398 = vpack.c.bf16 %v4361, %v4359
    %v4399 = vpack.c.bf16 %v4365, %v4363
    %v4400 = vpack.c.bf16 %v4369, %v4367
    %v4401 = vpack.c.bf16 %v4373, %v4371
    %v4402 = vpack.c.bf16 %v4377, %v4375
    %v4403 = vpack.c.bf16 %v4381, %v4379
    %v4404 = vpack.c.bf16 %v4385, %v4383
    %v4405 = vpack.c.bf16 %v4389, %v4387
    %4407 = vrot.lane.b32.xlu0 %v1268, 96
    %v4408 = vpop.permute.xlu0 %4407
    %v4411 = vsel %vm2069, %v4390, 0
    %4413 = vmatprep.subr.bf16.mxu0 0
    %4414 = vmatpush1.bf16.msra.mxu0 0
    %4415 = vmatprep.subr.bf16.mxu0 0
    %4416 = vmatpush1.bf16.msra.mxu0 0
    %4417 = vmatprep.subr.bf16.mxu0 0
    %4418 = vmatpush1.bf16.msra.mxu0 0
    %4419 = vmatprep.subr.bf16.mxu0 0
    %4420 = vmatpush1.bf16.msra.mxu0 0
    %4421 = vmatprep.subr.bf16.mxu0 0
    %4422 = vmatpush1.bf16.msra.mxu0 0
    %4423 = vmatprep.subr.bf16.mxu0 0
    %4424 = vmatpush1.bf16.msra.mxu0 0
    %4425 = vmatprep.subr.bf16.mxu0 0
    %4426 = vmatpush1.bf16.msra.mxu0 0
    %4427 = vmatprep.subr.bf16.mxu0 0
    %4428 = vmatpush1.bf16.msra.mxu0 %v4408
    %4429 = vmatprep.subr.bf16.mxu0 0
    %4430 = vmatpush2.bf16.msra.mxu0 0
    %4431 = vmatprep.subr.bf16.mxu0 0
    %4432 = vmatpush2.bf16.msra.mxu0 0
    %4433 = vmatprep.subr.bf16.mxu0 0
    %4434 = vmatpush2.bf16.msra.mxu0 0
    %4435 = vmatprep.subr.bf16.mxu0 0
    %4436 = vmatpush2.bf16.msra.mxu0 0
    %4437 = vmatprep.subr.bf16.mxu0 0
    %4438 = vmatpush2.bf16.msra.mxu0 0
    %4439 = vmatprep.subr.bf16.mxu0 0
    %4440 = vmatpush2.bf16.msra.mxu0 0
    %4441 = vmatprep.subr.bf16.mxu0 0
    %4442 = vmatpush2.bf16.msra.mxu0 0
    %4443 = vmatprep.subr.bf16.mxu0 0
    %4444 = vmatpush2.bf16.msra.mxu0 0
    %4445 = vmatprep.mubr.bf16.mxu0 0
    %4446 = vmatmul.mubr.bf16.gmra.mxu0 %v4411
    %v4447 = vpop.f32.mrf.mxu0
    %v4448 = vadd.f32 0.0, %v4447
    %v4449 = vpop.f32.mrf.mxu0
    %v4450 = vpop.f32.mrf.mxu0
    %v4451 = vadd.f32 0.0, %v4450
    %v4452 = vpop.f32.mrf.mxu0
    %4453 = vdwg.mxu0
    %4455 = vrot.lane.b32.xlu0 %v1269, 96
    %v4456 = vpop.permute.xlu0 %4455
    %v4459 = vsel %vm2069, %v4391, 0
    %4461 = vmatprep.subr.bf16.mxu0 0
    %4462 = vmatpush1.bf16.msra.mxu0 0
    %4463 = vmatprep.subr.bf16.mxu0 0
    %4464 = vmatpush1.bf16.msra.mxu0 0
    %4465 = vmatprep.subr.bf16.mxu0 0
    %4466 = vmatpush1.bf16.msra.mxu0 0
    %4467 = vmatprep.subr.bf16.mxu0 0
    %4468 = vmatpush1.bf16.msra.mxu0 0
    %4469 = vmatprep.subr.bf16.mxu0 0
    %4470 = vmatpush1.bf16.msra.mxu0 0
    %4471 = vmatprep.subr.bf16.mxu0 0
    %4472 = vmatpush1.bf16.msra.mxu0 0
    %4473 = vmatprep.subr.bf16.mxu0 0
    %4474 = vmatpush1.bf16.msra.mxu0 0
    %4475 = vmatprep.subr.bf16.mxu0 0
    %4476 = vmatpush1.bf16.msra.mxu0 %v4456
    %4477 = vmatprep.subr.bf16.mxu0 0
    %4478 = vmatpush2.bf16.msra.mxu0 0
    %4479 = vmatprep.subr.bf16.mxu0 0
    %4480 = vmatpush2.bf16.msra.mxu0 0
    %4481 = vmatprep.subr.bf16.mxu0 0
    %4482 = vmatpush2.bf16.msra.mxu0 0
    %4483 = vmatprep.subr.bf16.mxu0 0
    %4484 = vmatpush2.bf16.msra.mxu0 0
    %4485 = vmatprep.subr.bf16.mxu0 0
    %4486 = vmatpush2.bf16.msra.mxu0 0
    %4487 = vmatprep.subr.bf16.mxu0 0
    %4488 = vmatpush2.bf16.msra.mxu0 0
    %4489 = vmatprep.subr.bf16.mxu0 0
    %4490 = vmatpush2.bf16.msra.mxu0 0
    %4491 = vmatprep.subr.bf16.mxu0 0
    %4492 = vmatpush2.bf16.msra.mxu0 0
    %4493 = vmatprep.mubr.bf16.mxu0 0
    %4494 = vmatmul.mubr.bf16.gmra.mxu0 %v4459
    %v4495 = vpop.f32.mrf.mxu0
    %v4496 = vadd.f32 0.0, %v4495
    %v4497 = vpop.f32.mrf.mxu0
    %v4498 = vpop.f32.mrf.mxu0
    %v4499 = vadd.f32 0.0, %v4498
    %v4500 = vpop.f32.mrf.mxu0
    %4501 = vdwg.mxu0
    %4503 = vrot.lane.b32.xlu0 %v1270, 96
    %v4504 = vpop.permute.xlu0 %4503
    %v4507 = vsel %vm2069, %v4392, 0
    %4509 = vmatprep.subr.bf16.mxu0 0
    %4510 = vmatpush1.bf16.msra.mxu0 0
    %4511 = vmatprep.subr.bf16.mxu0 0
    %4512 = vmatpush1.bf16.msra.mxu0 0
    %4513 = vmatprep.subr.bf16.mxu0 0
    %4514 = vmatpush1.bf16.msra.mxu0 0
    %4515 = vmatprep.subr.bf16.mxu0 0
    %4516 = vmatpush1.bf16.msra.mxu0 0
    %4517 = vmatprep.subr.bf16.mxu0 0
    %4518 = vmatpush1.bf16.msra.mxu0 0
    %4519 = vmatprep.subr.bf16.mxu0 0
    %4520 = vmatpush1.bf16.msra.mxu0 0
    %4521 = vmatprep.subr.bf16.mxu0 0
    %4522 = vmatpush1.bf16.msra.mxu0 0
    %4523 = vmatprep.subr.bf16.mxu0 0
    %4524 = vmatpush1.bf16.msra.mxu0 %v4504
    %4525 = vmatprep.subr.bf16.mxu0 0
    %4526 = vmatpush2.bf16.msra.mxu0 0
    %4527 = vmatprep.subr.bf16.mxu0 0
    %4528 = vmatpush2.bf16.msra.mxu0 0
    %4529 = vmatprep.subr.bf16.mxu0 0
    %4530 = vmatpush2.bf16.msra.mxu0 0
    %4531 = vmatprep.subr.bf16.mxu0 0
    %4532 = vmatpush2.bf16.msra.mxu0 0
    %4533 = vmatprep.subr.bf16.mxu0 0
    %4534 = vmatpush2.bf16.msra.mxu0 0
    %4535 = vmatprep.subr.bf16.mxu0 0
    %4536 = vmatpush2.bf16.msra.mxu0 0
    %4537 = vmatprep.subr.bf16.mxu0 0
    %4538 = vmatpush2.bf16.msra.mxu0 0
    %4539 = vmatprep.subr.bf16.mxu0 0
    %4540 = vmatpush2.bf16.msra.mxu0 0
    %4541 = vmatprep.mubr.bf16.mxu0 0
    %4542 = vmatmul.mubr.bf16.gmra.mxu0 %v4507
    %v4543 = vpop.f32.mrf.mxu0
    %v4544 = vadd.f32 0.0, %v4543
    %v4545 = vpop.f32.mrf.mxu0
    %v4546 = vpop.f32.mrf.mxu0
    %v4547 = vadd.f32 0.0, %v4546
    %v4548 = vpop.f32.mrf.mxu0
    %4549 = vdwg.mxu0
    %4551 = vrot.lane.b32.xlu0 %v1271, 96
    %v4552 = vpop.permute.xlu0 %4551
    %v4555 = vsel %vm2069, %v4393, 0
    %4557 = vmatprep.subr.bf16.mxu0 0
    %4558 = vmatpush1.bf16.msra.mxu0 0
    %4559 = vmatprep.subr.bf16.mxu0 0
    %4560 = vmatpush1.bf16.msra.mxu0 0
    %4561 = vmatprep.subr.bf16.mxu0 0
    %4562 = vmatpush1.bf16.msra.mxu0 0
    %4563 = vmatprep.subr.bf16.mxu0 0
    %4564 = vmatpush1.bf16.msra.mxu0 0
    %4565 = vmatprep.subr.bf16.mxu0 0
    %4566 = vmatpush1.bf16.msra.mxu0 0
    %4567 = vmatprep.subr.bf16.mxu0 0
    %4568 = vmatpush1.bf16.msra.mxu0 0
    %4569 = vmatprep.subr.bf16.mxu0 0
    %4570 = vmatpush1.bf16.msra.mxu0 0
    %4571 = vmatprep.subr.bf16.mxu0 0
    %4572 = vmatpush1.bf16.msra.mxu0 %v4552
    %4573 = vmatprep.subr.bf16.mxu0 0
    %4574 = vmatpush2.bf16.msra.mxu0 0
    %4575 = vmatprep.subr.bf16.mxu0 0
    %4576 = vmatpush2.bf16.msra.mxu0 0
    %4577 = vmatprep.subr.bf16.mxu0 0
    %4578 = vmatpush2.bf16.msra.mxu0 0
    %4579 = vmatprep.subr.bf16.mxu0 0
    %4580 = vmatpush2.bf16.msra.mxu0 0
    %4581 = vmatprep.subr.bf16.mxu0 0
    %4582 = vmatpush2.bf16.msra.mxu0 0
    %4583 = vmatprep.subr.bf16.mxu0 0
    %4584 = vmatpush2.bf16.msra.mxu0 0
    %4585 = vmatprep.subr.bf16.mxu0 0
    %4586 = vmatpush2.bf16.msra.mxu0 0
    %4587 = vmatprep.subr.bf16.mxu0 0
    %4588 = vmatpush2.bf16.msra.mxu0 0
    %4589 = vmatprep.mubr.bf16.mxu0 0
    %4590 = vmatmul.mubr.bf16.gmra.mxu0 %v4555
    %v4591 = vpop.f32.mrf.mxu0
    %v4592 = vadd.f32 0.0, %v4591
    %v4593 = vpop.f32.mrf.mxu0
    %v4594 = vpop.f32.mrf.mxu0
    %v4595 = vadd.f32 0.0, %v4594
    %v4596 = vpop.f32.mrf.mxu0
    %4597 = vdwg.mxu0
    %4599 = vrot.lane.b32.xlu0 %v1272, 96
    %v4600 = vpop.permute.xlu0 %4599
    %v4603 = vsel %vm2069, %v4394, 0
    %4605 = vmatprep.subr.bf16.mxu0 0
    %4606 = vmatpush1.bf16.msra.mxu0 0
    %4607 = vmatprep.subr.bf16.mxu0 0
    %4608 = vmatpush1.bf16.msra.mxu0 0
    %4609 = vmatprep.subr.bf16.mxu0 0
    %4610 = vmatpush1.bf16.msra.mxu0 0
    %4611 = vmatprep.subr.bf16.mxu0 0
    %4612 = vmatpush1.bf16.msra.mxu0 0
    %4613 = vmatprep.subr.bf16.mxu0 0
    %4614 = vmatpush1.bf16.msra.mxu0 0
    %4615 = vmatprep.subr.bf16.mxu0 0
    %4616 = vmatpush1.bf16.msra.mxu0 0
    %4617 = vmatprep.subr.bf16.mxu0 0
    %4618 = vmatpush1.bf16.msra.mxu0 0
    %4619 = vmatprep.subr.bf16.mxu0 0
    %4620 = vmatpush1.bf16.msra.mxu0 %v4600
    %4621 = vmatprep.subr.bf16.mxu0 0
    %4622 = vmatpush2.bf16.msra.mxu0 0
    %4623 = vmatprep.subr.bf16.mxu0 0
    %4624 = vmatpush2.bf16.msra.mxu0 0
    %4625 = vmatprep.subr.bf16.mxu0 0
    %4626 = vmatpush2.bf16.msra.mxu0 0
    %4627 = vmatprep.subr.bf16.mxu0 0
    %4628 = vmatpush2.bf16.msra.mxu0 0
    %4629 = vmatprep.subr.bf16.mxu0 0
    %4630 = vmatpush2.bf16.msra.mxu0 0
    %4631 = vmatprep.subr.bf16.mxu0 0
    %4632 = vmatpush2.bf16.msra.mxu0 0
    %4633 = vmatprep.subr.bf16.mxu0 0
    %4634 = vmatpush2.bf16.msra.mxu0 0
    %4635 = vmatprep.subr.bf16.mxu0 0
    %4636 = vmatpush2.bf16.msra.mxu0 0
    %4637 = vmatprep.mubr.bf16.mxu0 0
    %4638 = vmatmul.mubr.bf16.gmra.mxu0 %v4603
    %v4639 = vpop.f32.mrf.mxu0
    %v4640 = vadd.f32 0.0, %v4639
    %v4641 = vpop.f32.mrf.mxu0
    %v4642 = vpop.f32.mrf.mxu0
    %v4643 = vadd.f32 0.0, %v4642
    %v4644 = vpop.f32.mrf.mxu0
    %4645 = vdwg.mxu0
    %4647 = vrot.lane.b32.xlu0 %v1273, 96
    %v4648 = vpop.permute.xlu0 %4647
    %v4651 = vsel %vm2069, %v4395, 0
    %4653 = vmatprep.subr.bf16.mxu0 0
    %4654 = vmatpush1.bf16.msra.mxu0 0
    %4655 = vmatprep.subr.bf16.mxu0 0
    %4656 = vmatpush1.bf16.msra.mxu0 0
    %4657 = vmatprep.subr.bf16.mxu0 0
    %4658 = vmatpush1.bf16.msra.mxu0 0
    %4659 = vmatprep.subr.bf16.mxu0 0
    %4660 = vmatpush1.bf16.msra.mxu0 0
    %4661 = vmatprep.subr.bf16.mxu0 0
    %4662 = vmatpush1.bf16.msra.mxu0 0
    %4663 = vmatprep.subr.bf16.mxu0 0
    %4664 = vmatpush1.bf16.msra.mxu0 0
    %4665 = vmatprep.subr.bf16.mxu0 0
    %4666 = vmatpush1.bf16.msra.mxu0 0
    %4667 = vmatprep.subr.bf16.mxu0 0
    %4668 = vmatpush1.bf16.msra.mxu0 %v4648
    %4669 = vmatprep.subr.bf16.mxu0 0
    %4670 = vmatpush2.bf16.msra.mxu0 0
    %4671 = vmatprep.subr.bf16.mxu0 0
    %4672 = vmatpush2.bf16.msra.mxu0 0
    %4673 = vmatprep.subr.bf16.mxu0 0
    %4674 = vmatpush2.bf16.msra.mxu0 0
    %4675 = vmatprep.subr.bf16.mxu0 0
    %4676 = vmatpush2.bf16.msra.mxu0 0
    %4677 = vmatprep.subr.bf16.mxu0 0
    %4678 = vmatpush2.bf16.msra.mxu0 0
    %4679 = vmatprep.subr.bf16.mxu0 0
    %4680 = vmatpush2.bf16.msra.mxu0 0
    %4681 = vmatprep.subr.bf16.mxu0 0
    %4682 = vmatpush2.bf16.msra.mxu0 0
    %4683 = vmatprep.subr.bf16.mxu0 0
    %4684 = vmatpush2.bf16.msra.mxu0 0
    %4685 = vmatprep.mubr.bf16.mxu0 0
    %4686 = vmatmul.mubr.bf16.gmra.mxu0 %v4651
    %v4687 = vpop.f32.mrf.mxu0
    %v4688 = vadd.f32 0.0, %v4687
    %v4689 = vpop.f32.mrf.mxu0
    %v4690 = vpop.f32.mrf.mxu0
    %v4691 = vadd.f32 0.0, %v4690
    %v4692 = vpop.f32.mrf.mxu0
    %4693 = vdwg.mxu0
    %4695 = vrot.lane.b32.xlu0 %v1274, 96
    %v4696 = vpop.permute.xlu0 %4695
    %v4699 = vsel %vm2069, %v4396, 0
    %4701 = vmatprep.subr.bf16.mxu0 0
    %4702 = vmatpush1.bf16.msra.mxu0 0
    %4703 = vmatprep.subr.bf16.mxu0 0
    %4704 = vmatpush1.bf16.msra.mxu0 0
    %4705 = vmatprep.subr.bf16.mxu0 0
    %4706 = vmatpush1.bf16.msra.mxu0 0
    %4707 = vmatprep.subr.bf16.mxu0 0
    %4708 = vmatpush1.bf16.msra.mxu0 0
    %4709 = vmatprep.subr.bf16.mxu0 0
    %4710 = vmatpush1.bf16.msra.mxu0 0
    %4711 = vmatprep.subr.bf16.mxu0 0
    %4712 = vmatpush1.bf16.msra.mxu0 0
    %4713 = vmatprep.subr.bf16.mxu0 0
    %4714 = vmatpush1.bf16.msra.mxu0 0
    %4715 = vmatprep.subr.bf16.mxu0 0
    %4716 = vmatpush1.bf16.msra.mxu0 %v4696
    %4717 = vmatprep.subr.bf16.mxu0 0
    %4718 = vmatpush2.bf16.msra.mxu0 0
    %4719 = vmatprep.subr.bf16.mxu0 0
    %4720 = vmatpush2.bf16.msra.mxu0 0
    %4721 = vmatprep.subr.bf16.mxu0 0
    %4722 = vmatpush2.bf16.msra.mxu0 0
    %4723 = vmatprep.subr.bf16.mxu0 0
    %4724 = vmatpush2.bf16.msra.mxu0 0
    %4725 = vmatprep.subr.bf16.mxu0 0
    %4726 = vmatpush2.bf16.msra.mxu0 0
    %4727 = vmatprep.subr.bf16.mxu0 0
    %4728 = vmatpush2.bf16.msra.mxu0 0
    %4729 = vmatprep.subr.bf16.mxu0 0
    %4730 = vmatpush2.bf16.msra.mxu0 0
    %4731 = vmatprep.subr.bf16.mxu0 0
    %4732 = vmatpush2.bf16.msra.mxu0 0
    %4733 = vmatprep.mubr.bf16.mxu0 0
    %4734 = vmatmul.mubr.bf16.gmra.mxu0 %v4699
    %v4735 = vpop.f32.mrf.mxu0
    %v4736 = vadd.f32 0.0, %v4735
    %v4737 = vpop.f32.mrf.mxu0
    %v4738 = vpop.f32.mrf.mxu0
    %v4739 = vadd.f32 0.0, %v4738
    %v4740 = vpop.f32.mrf.mxu0
    %4741 = vdwg.mxu0
    %4743 = vrot.lane.b32.xlu0 %v1275, 96
    %v4744 = vpop.permute.xlu0 %4743
    %v4747 = vsel %vm2069, %v4397, 0
    %4749 = vmatprep.subr.bf16.mxu0 0
    %4750 = vmatpush1.bf16.msra.mxu0 0
    %4751 = vmatprep.subr.bf16.mxu0 0
    %4752 = vmatpush1.bf16.msra.mxu0 0
    %4753 = vmatprep.subr.bf16.mxu0 0
    %4754 = vmatpush1.bf16.msra.mxu0 0
    %4755 = vmatprep.subr.bf16.mxu0 0
    %4756 = vmatpush1.bf16.msra.mxu0 0
    %4757 = vmatprep.subr.bf16.mxu0 0
    %4758 = vmatpush1.bf16.msra.mxu0 0
    %4759 = vmatprep.subr.bf16.mxu0 0
    %4760 = vmatpush1.bf16.msra.mxu0 0
    %4761 = vmatprep.subr.bf16.mxu0 0
    %4762 = vmatpush1.bf16.msra.mxu0 0
    %4763 = vmatprep.subr.bf16.mxu0 0
    %4764 = vmatpush1.bf16.msra.mxu0 %v4744
    %4765 = vmatprep.subr.bf16.mxu0 0
    %4766 = vmatpush2.bf16.msra.mxu0 0
    %4767 = vmatprep.subr.bf16.mxu0 0
    %4768 = vmatpush2.bf16.msra.mxu0 0
    %4769 = vmatprep.subr.bf16.mxu0 0
    %4770 = vmatpush2.bf16.msra.mxu0 0
    %4771 = vmatprep.subr.bf16.mxu0 0
    %4772 = vmatpush2.bf16.msra.mxu0 0
    %4773 = vmatprep.subr.bf16.mxu0 0
    %4774 = vmatpush2.bf16.msra.mxu0 0
    %4775 = vmatprep.subr.bf16.mxu0 0
    %4776 = vmatpush2.bf16.msra.mxu0 0
    %4777 = vmatprep.subr.bf16.mxu0 0
    %4778 = vmatpush2.bf16.msra.mxu0 0
    %4779 = vmatprep.subr.bf16.mxu0 0
    %4780 = vmatpush2.bf16.msra.mxu0 0
    %4781 = vmatprep.mubr.bf16.mxu0 0
    %4782 = vmatmul.mubr.bf16.gmra.mxu0 %v4747
    %v4783 = vpop.f32.mrf.mxu0
    %v4784 = vadd.f32 0.0, %v4783
    %v4785 = vpop.f32.mrf.mxu0
    %v4786 = vpop.f32.mrf.mxu0
    %v4787 = vadd.f32 0.0, %v4786
    %v4788 = vpop.f32.mrf.mxu0
    %4789 = vdwg.mxu0
    %4791 = vrot.lane.b32.xlu0 %v1276, 96
    %v4792 = vpop.permute.xlu0 %4791
    %v4795 = vsel %vm2069, %v4398, 0
    %4797 = vmatprep.subr.bf16.mxu0 0
    %4798 = vmatpush1.bf16.msra.mxu0 0
    %4799 = vmatprep.subr.bf16.mxu0 0
    %4800 = vmatpush1.bf16.msra.mxu0 0
    %4801 = vmatprep.subr.bf16.mxu0 0
    %4802 = vmatpush1.bf16.msra.mxu0 0
    %4803 = vmatprep.subr.bf16.mxu0 0
    %4804 = vmatpush1.bf16.msra.mxu0 0
    %4805 = vmatprep.subr.bf16.mxu0 0
    %4806 = vmatpush1.bf16.msra.mxu0 0
    %4807 = vmatprep.subr.bf16.mxu0 0
    %4808 = vmatpush1.bf16.msra.mxu0 0
    %4809 = vmatprep.subr.bf16.mxu0 0
    %4810 = vmatpush1.bf16.msra.mxu0 0
    %4811 = vmatprep.subr.bf16.mxu0 0
    %4812 = vmatpush1.bf16.msra.mxu0 %v4792
    %4813 = vmatprep.subr.bf16.mxu0 0
    %4814 = vmatpush2.bf16.msra.mxu0 0
    %4815 = vmatprep.subr.bf16.mxu0 0
    %4816 = vmatpush2.bf16.msra.mxu0 0
    %4817 = vmatprep.subr.bf16.mxu0 0
    %4818 = vmatpush2.bf16.msra.mxu0 0
    %4819 = vmatprep.subr.bf16.mxu0 0
    %4820 = vmatpush2.bf16.msra.mxu0 0
    %4821 = vmatprep.subr.bf16.mxu0 0
    %4822 = vmatpush2.bf16.msra.mxu0 0
    %4823 = vmatprep.subr.bf16.mxu0 0
    %4824 = vmatpush2.bf16.msra.mxu0 0
    %4825 = vmatprep.subr.bf16.mxu0 0
    %4826 = vmatpush2.bf16.msra.mxu0 0
    %4827 = vmatprep.subr.bf16.mxu0 0
    %4828 = vmatpush2.bf16.msra.mxu0 0
    %4829 = vmatprep.mubr.bf16.mxu0 0
    %4830 = vmatmul.mubr.bf16.gmra.mxu0 %v4795
    %v4831 = vpop.f32.mrf.mxu0
    %v4832 = vadd.f32 0.0, %v4831
    %v4833 = vpop.f32.mrf.mxu0
    %v4834 = vpop.f32.mrf.mxu0
    %v4835 = vadd.f32 0.0, %v4834
    %v4836 = vpop.f32.mrf.mxu0
    %4837 = vdwg.mxu0
    %4839 = vrot.lane.b32.xlu0 %v1277, 96
    %v4840 = vpop.permute.xlu0 %4839
    %v4843 = vsel %vm2069, %v4399, 0
    %4845 = vmatprep.subr.bf16.mxu0 0
    %4846 = vmatpush1.bf16.msra.mxu0 0
    %4847 = vmatprep.subr.bf16.mxu0 0
    %4848 = vmatpush1.bf16.msra.mxu0 0
    %4849 = vmatprep.subr.bf16.mxu0 0
    %4850 = vmatpush1.bf16.msra.mxu0 0
    %4851 = vmatprep.subr.bf16.mxu0 0
    %4852 = vmatpush1.bf16.msra.mxu0 0
    %4853 = vmatprep.subr.bf16.mxu0 0
    %4854 = vmatpush1.bf16.msra.mxu0 0
    %4855 = vmatprep.subr.bf16.mxu0 0
    %4856 = vmatpush1.bf16.msra.mxu0 0
    %4857 = vmatprep.subr.bf16.mxu0 0
    %4858 = vmatpush1.bf16.msra.mxu0 0
    %4859 = vmatprep.subr.bf16.mxu0 0
    %4860 = vmatpush1.bf16.msra.mxu0 %v4840
    %4861 = vmatprep.subr.bf16.mxu0 0
    %4862 = vmatpush2.bf16.msra.mxu0 0
    %4863 = vmatprep.subr.bf16.mxu0 0
    %4864 = vmatpush2.bf16.msra.mxu0 0
    %4865 = vmatprep.subr.bf16.mxu0 0
    %4866 = vmatpush2.bf16.msra.mxu0 0
    %4867 = vmatprep.subr.bf16.mxu0 0
    %4868 = vmatpush2.bf16.msra.mxu0 0
    %4869 = vmatprep.subr.bf16.mxu0 0
    %4870 = vmatpush2.bf16.msra.mxu0 0
    %4871 = vmatprep.subr.bf16.mxu0 0
    %4872 = vmatpush2.bf16.msra.mxu0 0
    %4873 = vmatprep.subr.bf16.mxu0 0
    %4874 = vmatpush2.bf16.msra.mxu0 0
    %4875 = vmatprep.subr.bf16.mxu0 0
    %4876 = vmatpush2.bf16.msra.mxu0 0
    %4877 = vmatprep.mubr.bf16.mxu0 0
    %4878 = vmatmul.mubr.bf16.gmra.mxu0 %v4843
    %v4879 = vpop.f32.mrf.mxu0
    %v4880 = vadd.f32 0.0, %v4879
    %v4881 = vpop.f32.mrf.mxu0
    %v4882 = vpop.f32.mrf.mxu0
    %v4883 = vadd.f32 0.0, %v4882
    %v4884 = vpop.f32.mrf.mxu0
    %4885 = vdwg.mxu0
    %4887 = vrot.lane.b32.xlu0 %v1278, 96
    %v4888 = vpop.permute.xlu0 %4887
    %v4891 = vsel %vm2069, %v4400, 0
    %4893 = vmatprep.subr.bf16.mxu0 0
    %4894 = vmatpush1.bf16.msra.mxu0 0
    %4895 = vmatprep.subr.bf16.mxu0 0
    %4896 = vmatpush1.bf16.msra.mxu0 0
    %4897 = vmatprep.subr.bf16.mxu0 0
    %4898 = vmatpush1.bf16.msra.mxu0 0
    %4899 = vmatprep.subr.bf16.mxu0 0
    %4900 = vmatpush1.bf16.msra.mxu0 0
    %4901 = vmatprep.subr.bf16.mxu0 0
    %4902 = vmatpush1.bf16.msra.mxu0 0
    %4903 = vmatprep.subr.bf16.mxu0 0
    %4904 = vmatpush1.bf16.msra.mxu0 0
    %4905 = vmatprep.subr.bf16.mxu0 0
    %4906 = vmatpush1.bf16.msra.mxu0 0
    %4907 = vmatprep.subr.bf16.mxu0 0
    %4908 = vmatpush1.bf16.msra.mxu0 %v4888
    %4909 = vmatprep.subr.bf16.mxu0 0
    %4910 = vmatpush2.bf16.msra.mxu0 0
    %4911 = vmatprep.subr.bf16.mxu0 0
    %4912 = vmatpush2.bf16.msra.mxu0 0
    %4913 = vmatprep.subr.bf16.mxu0 0
    %4914 = vmatpush2.bf16.msra.mxu0 0
    %4915 = vmatprep.subr.bf16.mxu0 0
    %4916 = vmatpush2.bf16.msra.mxu0 0
    %4917 = vmatprep.subr.bf16.mxu0 0
    %4918 = vmatpush2.bf16.msra.mxu0 0
    %4919 = vmatprep.subr.bf16.mxu0 0
    %4920 = vmatpush2.bf16.msra.mxu0 0
    %4921 = vmatprep.subr.bf16.mxu0 0
    %4922 = vmatpush2.bf16.msra.mxu0 0
    %4923 = vmatprep.subr.bf16.mxu0 0
    %4924 = vmatpush2.bf16.msra.mxu0 0
    %4925 = vmatprep.mubr.bf16.mxu0 0
    %4926 = vmatmul.mubr.bf16.gmra.mxu0 %v4891
    %v4927 = vpop.f32.mrf.mxu0
    %v4928 = vadd.f32 0.0, %v4927
    %v4929 = vpop.f32.mrf.mxu0
    %v4930 = vpop.f32.mrf.mxu0
    %v4931 = vadd.f32 0.0, %v4930
    %v4932 = vpop.f32.mrf.mxu0
    %4933 = vdwg.mxu0
    %4935 = vrot.lane.b32.xlu0 %v1279, 96
    %v4936 = vpop.permute.xlu0 %4935
    %v4939 = vsel %vm2069, %v4401, 0
    %4941 = vmatprep.subr.bf16.mxu0 0
    %4942 = vmatpush1.bf16.msra.mxu0 0
    %4943 = vmatprep.subr.bf16.mxu0 0
    %4944 = vmatpush1.bf16.msra.mxu0 0
    %4945 = vmatprep.subr.bf16.mxu0 0
    %4946 = vmatpush1.bf16.msra.mxu0 0
    %4947 = vmatprep.subr.bf16.mxu0 0
    %4948 = vmatpush1.bf16.msra.mxu0 0
    %4949 = vmatprep.subr.bf16.mxu0 0
    %4950 = vmatpush1.bf16.msra.mxu0 0
    %4951 = vmatprep.subr.bf16.mxu0 0
    %4952 = vmatpush1.bf16.msra.mxu0 0
    %4953 = vmatprep.subr.bf16.mxu0 0
    %4954 = vmatpush1.bf16.msra.mxu0 0
    %4955 = vmatprep.subr.bf16.mxu0 0
    %4956 = vmatpush1.bf16.msra.mxu0 %v4936
    %4957 = vmatprep.subr.bf16.mxu0 0
    %4958 = vmatpush2.bf16.msra.mxu0 0
    %4959 = vmatprep.subr.bf16.mxu0 0
    %4960 = vmatpush2.bf16.msra.mxu0 0
    %4961 = vmatprep.subr.bf16.mxu0 0
    %4962 = vmatpush2.bf16.msra.mxu0 0
    %4963 = vmatprep.subr.bf16.mxu0 0
    %4964 = vmatpush2.bf16.msra.mxu0 0
    %4965 = vmatprep.subr.bf16.mxu0 0
    %4966 = vmatpush2.bf16.msra.mxu0 0
    %4967 = vmatprep.subr.bf16.mxu0 0
    %4968 = vmatpush2.bf16.msra.mxu0 0
    %4969 = vmatprep.subr.bf16.mxu0 0
    %4970 = vmatpush2.bf16.msra.mxu0 0
    %4971 = vmatprep.subr.bf16.mxu0 0
    %4972 = vmatpush2.bf16.msra.mxu0 0
    %4973 = vmatprep.mubr.bf16.mxu0 0
    %4974 = vmatmul.mubr.bf16.gmra.mxu0 %v4939
    %v4975 = vpop.f32.mrf.mxu0
    %v4976 = vadd.f32 0.0, %v4975
    %v4977 = vpop.f32.mrf.mxu0
    %v4978 = vpop.f32.mrf.mxu0
    %v4979 = vadd.f32 0.0, %v4978
    %v4980 = vpop.f32.mrf.mxu0
    %4981 = vdwg.mxu0
    %4983 = vrot.lane.b32.xlu0 %v1280, 96
    %v4984 = vpop.permute.xlu0 %4983
    %v4987 = vsel %vm2069, %v4402, 0
    %4989 = vmatprep.subr.bf16.mxu0 0
    %4990 = vmatpush1.bf16.msra.mxu0 0
    %4991 = vmatprep.subr.bf16.mxu0 0
    %4992 = vmatpush1.bf16.msra.mxu0 0
    %4993 = vmatprep.subr.bf16.mxu0 0
    %4994 = vmatpush1.bf16.msra.mxu0 0
    %4995 = vmatprep.subr.bf16.mxu0 0
    %4996 = vmatpush1.bf16.msra.mxu0 0
    %4997 = vmatprep.subr.bf16.mxu0 0
    %4998 = vmatpush1.bf16.msra.mxu0 0
    %4999 = vmatprep.subr.bf16.mxu0 0
    %5000 = vmatpush1.bf16.msra.mxu0 0
    %5001 = vmatprep.subr.bf16.mxu0 0
    %5002 = vmatpush1.bf16.msra.mxu0 0
    %5003 = vmatprep.subr.bf16.mxu0 0
    %5004 = vmatpush1.bf16.msra.mxu0 %v4984
    %5005 = vmatprep.subr.bf16.mxu0 0
    %5006 = vmatpush2.bf16.msra.mxu0 0
    %5007 = vmatprep.subr.bf16.mxu0 0
    %5008 = vmatpush2.bf16.msra.mxu0 0
    %5009 = vmatprep.subr.bf16.mxu0 0
    %5010 = vmatpush2.bf16.msra.mxu0 0
    %5011 = vmatprep.subr.bf16.mxu0 0
    %5012 = vmatpush2.bf16.msra.mxu0 0
    %5013 = vmatprep.subr.bf16.mxu0 0
    %5014 = vmatpush2.bf16.msra.mxu0 0
    %5015 = vmatprep.subr.bf16.mxu0 0
    %5016 = vmatpush2.bf16.msra.mxu0 0
    %5017 = vmatprep.subr.bf16.mxu0 0
    %5018 = vmatpush2.bf16.msra.mxu0 0
    %5019 = vmatprep.subr.bf16.mxu0 0
    %5020 = vmatpush2.bf16.msra.mxu0 0
    %5021 = vmatprep.mubr.bf16.mxu0 0
    %5022 = vmatmul.mubr.bf16.gmra.mxu0 %v4987
    %v5023 = vpop.f32.mrf.mxu0
    %v5024 = vadd.f32 0.0, %v5023
    %v5025 = vpop.f32.mrf.mxu0
    %v5026 = vpop.f32.mrf.mxu0
    %v5027 = vadd.f32 0.0, %v5026
    %v5028 = vpop.f32.mrf.mxu0
    %5029 = vdwg.mxu0
    %5031 = vrot.lane.b32.xlu0 %v1281, 96
    %v5032 = vpop.permute.xlu0 %5031
    %v5035 = vsel %vm2069, %v4403, 0
    %5037 = vmatprep.subr.bf16.mxu0 0
    %5038 = vmatpush1.bf16.msra.mxu0 0
    %5039 = vmatprep.subr.bf16.mxu0 0
    %5040 = vmatpush1.bf16.msra.mxu0 0
    %5041 = vmatprep.subr.bf16.mxu0 0
    %5042 = vmatpush1.bf16.msra.mxu0 0
    %5043 = vmatprep.subr.bf16.mxu0 0
    %5044 = vmatpush1.bf16.msra.mxu0 0
    %5045 = vmatprep.subr.bf16.mxu0 0
    %5046 = vmatpush1.bf16.msra.mxu0 0
    %5047 = vmatprep.subr.bf16.mxu0 0
    %5048 = vmatpush1.bf16.msra.mxu0 0
    %5049 = vmatprep.subr.bf16.mxu0 0
    %5050 = vmatpush1.bf16.msra.mxu0 0
    %5051 = vmatprep.subr.bf16.mxu0 0
    %5052 = vmatpush1.bf16.msra.mxu0 %v5032
    %5053 = vmatprep.subr.bf16.mxu0 0
    %5054 = vmatpush2.bf16.msra.mxu0 0
    %5055 = vmatprep.subr.bf16.mxu0 0
    %5056 = vmatpush2.bf16.msra.mxu0 0
    %5057 = vmatprep.subr.bf16.mxu0 0
    %5058 = vmatpush2.bf16.msra.mxu0 0
    %5059 = vmatprep.subr.bf16.mxu0 0
    %5060 = vmatpush2.bf16.msra.mxu0 0
    %5061 = vmatprep.subr.bf16.mxu0 0
    %5062 = vmatpush2.bf16.msra.mxu0 0
    %5063 = vmatprep.subr.bf16.mxu0 0
    %5064 = vmatpush2.bf16.msra.mxu0 0
    %5065 = vmatprep.subr.bf16.mxu0 0
    %5066 = vmatpush2.bf16.msra.mxu0 0
    %5067 = vmatprep.subr.bf16.mxu0 0
    %5068 = vmatpush2.bf16.msra.mxu0 0
    %5069 = vmatprep.mubr.bf16.mxu0 0
    %5070 = vmatmul.mubr.bf16.gmra.mxu0 %v5035
    %v5071 = vpop.f32.mrf.mxu0
    %v5072 = vadd.f32 0.0, %v5071
    %v5073 = vpop.f32.mrf.mxu0
    %v5074 = vpop.f32.mrf.mxu0
    %v5075 = vadd.f32 0.0, %v5074
    %v5076 = vpop.f32.mrf.mxu0
    %5077 = vdwg.mxu0
    %5079 = vrot.lane.b32.xlu0 %v1282, 96
    %v5080 = vpop.permute.xlu0 %5079
    %v5083 = vsel %vm2069, %v4404, 0
    %5085 = vmatprep.subr.bf16.mxu0 0
    %5086 = vmatpush1.bf16.msra.mxu0 0
    %5087 = vmatprep.subr.bf16.mxu0 0
    %5088 = vmatpush1.bf16.msra.mxu0 0
    %5089 = vmatprep.subr.bf16.mxu0 0
    %5090 = vmatpush1.bf16.msra.mxu0 0
    %5091 = vmatprep.subr.bf16.mxu0 0
    %5092 = vmatpush1.bf16.msra.mxu0 0
    %5093 = vmatprep.subr.bf16.mxu0 0
    %5094 = vmatpush1.bf16.msra.mxu0 0
    %5095 = vmatprep.subr.bf16.mxu0 0
    %5096 = vmatpush1.bf16.msra.mxu0 0
    %5097 = vmatprep.subr.bf16.mxu0 0
    %5098 = vmatpush1.bf16.msra.mxu0 0
    %5099 = vmatprep.subr.bf16.mxu0 0
    %5100 = vmatpush1.bf16.msra.mxu0 %v5080
    %5101 = vmatprep.subr.bf16.mxu0 0
    %5102 = vmatpush2.bf16.msra.mxu0 0
    %5103 = vmatprep.subr.bf16.mxu0 0
    %5104 = vmatpush2.bf16.msra.mxu0 0
    %5105 = vmatprep.subr.bf16.mxu0 0
    %5106 = vmatpush2.bf16.msra.mxu0 0
    %5107 = vmatprep.subr.bf16.mxu0 0
    %5108 = vmatpush2.bf16.msra.mxu0 0
    %5109 = vmatprep.subr.bf16.mxu0 0
    %5110 = vmatpush2.bf16.msra.mxu0 0
    %5111 = vmatprep.subr.bf16.mxu0 0
    %5112 = vmatpush2.bf16.msra.mxu0 0
    %5113 = vmatprep.subr.bf16.mxu0 0
    %5114 = vmatpush2.bf16.msra.mxu0 0
    %5115 = vmatprep.subr.bf16.mxu0 0
    %5116 = vmatpush2.bf16.msra.mxu0 0
    %5117 = vmatprep.mubr.bf16.mxu0 0
    %5118 = vmatmul.mubr.bf16.gmra.mxu0 %v5083
    %v5119 = vpop.f32.mrf.mxu0
    %v5120 = vadd.f32 0.0, %v5119
    %v5121 = vpop.f32.mrf.mxu0
    %v5122 = vpop.f32.mrf.mxu0
    %v5123 = vadd.f32 0.0, %v5122
    %v5124 = vpop.f32.mrf.mxu0
    %5125 = vdwg.mxu0
    %5127 = vrot.lane.b32.xlu0 %v1283, 96
    %v5128 = vpop.permute.xlu0 %5127
    %v5131 = vsel %vm2069, %v4405, 0
    %5133 = vmatprep.subr.bf16.mxu0 0
    %5134 = vmatpush1.bf16.msra.mxu0 0
    %5135 = vmatprep.subr.bf16.mxu0 0
    %5136 = vmatpush1.bf16.msra.mxu0 0
    %5137 = vmatprep.subr.bf16.mxu0 0
    %5138 = vmatpush1.bf16.msra.mxu0 0
    %5139 = vmatprep.subr.bf16.mxu0 0
    %5140 = vmatpush1.bf16.msra.mxu0 0
    %5141 = vmatprep.subr.bf16.mxu0 0
    %5142 = vmatpush1.bf16.msra.mxu0 0
    %5143 = vmatprep.subr.bf16.mxu0 0
    %5144 = vmatpush1.bf16.msra.mxu0 0
    %5145 = vmatprep.subr.bf16.mxu0 0
    %5146 = vmatpush1.bf16.msra.mxu0 0
    %5147 = vmatprep.subr.bf16.mxu0 0
    %5148 = vmatpush1.bf16.msra.mxu0 %v5128
    %5149 = vmatprep.subr.bf16.mxu0 0
    %5150 = vmatpush2.bf16.msra.mxu0 0
    %5151 = vmatprep.subr.bf16.mxu0 0
    %5152 = vmatpush2.bf16.msra.mxu0 0
    %5153 = vmatprep.subr.bf16.mxu0 0
    %5154 = vmatpush2.bf16.msra.mxu0 0
    %5155 = vmatprep.subr.bf16.mxu0 0
    %5156 = vmatpush2.bf16.msra.mxu0 0
    %5157 = vmatprep.subr.bf16.mxu0 0
    %5158 = vmatpush2.bf16.msra.mxu0 0
    %5159 = vmatprep.subr.bf16.mxu0 0
    %5160 = vmatpush2.bf16.msra.mxu0 0
    %5161 = vmatprep.subr.bf16.mxu0 0
    %5162 = vmatpush2.bf16.msra.mxu0 0
    %5163 = vmatprep.subr.bf16.mxu0 0
    %5164 = vmatpush2.bf16.msra.mxu0 0
    %5165 = vmatprep.mubr.bf16.mxu0 0
    %5166 = vmatmul.mubr.bf16.gmra.mxu0 %v5131
    %v5167 = vpop.f32.mrf.mxu0
    %v5168 = vadd.f32 0.0, %v5167
    %v5169 = vpop.f32.mrf.mxu0
    %v5170 = vpop.f32.mrf.mxu0
    %v5171 = vadd.f32 0.0, %v5170
    %v5172 = vpop.f32.mrf.mxu0
    %5173 = vdwg.mxu0
    %v5174 = vpack.c.bf16 %v4451, %v4448
    %v5175 = vpack.c.bf16 %v4499, %v4496
    %v5176 = vpack.c.bf16 %v4547, %v4544
    %v5177 = vpack.c.bf16 %v4595, %v4592
    %v5178 = vpack.c.bf16 %v4643, %v4640
    %v5179 = vpack.c.bf16 %v4691, %v4688
    %v5180 = vpack.c.bf16 %v4739, %v4736
    %v5181 = vpack.c.bf16 %v4787, %v4784
    %v5182 = vpack.c.bf16 %v4835, %v4832
    %v5183 = vpack.c.bf16 %v4883, %v4880
    %v5184 = vpack.c.bf16 %v4931, %v4928
    %v5185 = vpack.c.bf16 %v4979, %v4976
    %v5186 = vpack.c.bf16 %v5027, %v5024
    %v5187 = vpack.c.bf16 %v5075, %v5072
    %v5188 = vpack.c.bf16 %v5123, %v5120
    %v5189 = vpack.c.bf16 %v5171, %v5168
    %5190 = vrot.lane.b32.xlu0 %v1236, 64
    %v5191 = vpop.permute.xlu0 %5190
    %5192 = vrot.lane.b32.xlu0 %v1252, 64
    %v5193 = vpop.permute.xlu0 %5192
    %v5195 = vsel %vm1284, %v5191, 0
    %v5198 = vsel %vm1284, %v5193, 0
    %5200 = vmatprep.subr.bf16.mxu0 0
    %5201 = vmatpush1.bf16.xpose.msra.mxu0 0
    %5202 = vmatprep.subr.bf16.mxu0 0
    %5203 = vmatpush1.bf16.xpose.msra.mxu0 0
    %5204 = vmatprep.subr.bf16.mxu0 0
    %5205 = vmatpush1.bf16.xpose.msra.mxu0 0
    %5206 = vmatprep.subr.bf16.mxu0 0
    %5207 = vmatpush1.bf16.xpose.msra.mxu0 0
    %5208 = vmatprep.subr.bf16.mxu0 0
    %5209 = vmatpush1.bf16.xpose.msra.mxu0 0
    %5210 = vmatprep.subr.bf16.mxu0 0
    %5211 = vmatpush1.bf16.xpose.msra.mxu0 0
    %5212 = vmatprep.subr.bf16.mxu0 0
    %5213 = vmatpush1.bf16.xpose.msra.mxu0 0
    %5214 = vmatprep.subr.bf16.mxu0 0
    %5215 = vmatpush1.bf16.xpose.msra.mxu0 %v5198
    %5216 = vmatprep.subr.bf16.mxu0 0
    %5217 = vmatpush2.bf16.xpose.msra.mxu0 0
    %5218 = vmatprep.subr.bf16.mxu0 0
    %5219 = vmatpush2.bf16.xpose.msra.mxu0 0
    %5220 = vmatprep.subr.bf16.mxu0 0
    %5221 = vmatpush2.bf16.xpose.msra.mxu0 0
    %5222 = vmatprep.subr.bf16.mxu0 0
    %5223 = vmatpush2.bf16.xpose.msra.mxu0 0
    %5224 = vmatprep.subr.bf16.mxu0 0
    %5225 = vmatpush2.bf16.xpose.msra.mxu0 0
    %5226 = vmatprep.subr.bf16.mxu0 0
    %5227 = vmatpush2.bf16.xpose.msra.mxu0 0
    %5228 = vmatprep.subr.bf16.mxu0 0
    %5229 = vmatpush2.bf16.xpose.msra.mxu0 0
    %5230 = vmatprep.subr.bf16.mxu0 0
    %5231 = vmatpush2.bf16.xpose.msra.mxu0 0
    %5232 = vmatprep.mubr.bf16.mxu0 0
    %5233 = vmatmul.mubr.bf16.gmra.mxu0 %v5195
    %v5234 = vpop.f32.mrf.mxu0
    %v5235 = vadd.f32 0.0, %v5234
    %v5236 = vpop.f32.mrf.mxu0
    %v5237 = vpop.f32.mrf.mxu0
    %v5238 = vadd.f32 0.0, %v5237
    %v5239 = vpop.f32.mrf.mxu0
    %5240 = vdwg.mxu0
    %5241 = vrot.lane.b32.xlu0 %v1237, 64
    %v5242 = vpop.permute.xlu0 %5241
    %5243 = vrot.lane.b32.xlu0 %v1253, 64
    %v5244 = vpop.permute.xlu0 %5243
    %v5246 = vsel %vm1284, %v5242, 0
    %v5249 = vsel %vm1284, %v5244, 0
    %5251 = vmatprep.subr.bf16.mxu0 0
    %5252 = vmatpush1.bf16.xpose.msra.mxu0 0
    %5253 = vmatprep.subr.bf16.mxu0 0
    %5254 = vmatpush1.bf16.xpose.msra.mxu0 0
    %5255 = vmatprep.subr.bf16.mxu0 0
    %5256 = vmatpush1.bf16.xpose.msra.mxu0 0
    %5257 = vmatprep.subr.bf16.mxu0 0
    %5258 = vmatpush1.bf16.xpose.msra.mxu0 0
    %5259 = vmatprep.subr.bf16.mxu0 0
    %5260 = vmatpush1.bf16.xpose.msra.mxu0 0
    %5261 = vmatprep.subr.bf16.mxu0 0
    %5262 = vmatpush1.bf16.xpose.msra.mxu0 0
    %5263 = vmatprep.subr.bf16.mxu0 0
    %5264 = vmatpush1.bf16.xpose.msra.mxu0 0
    %5265 = vmatprep.subr.bf16.mxu0 0
    %5266 = vmatpush1.bf16.xpose.msra.mxu0 %v5249
    %5267 = vmatprep.subr.bf16.mxu0 0
    %5268 = vmatpush2.bf16.xpose.msra.mxu0 0
    %5269 = vmatprep.subr.bf16.mxu0 0
    %5270 = vmatpush2.bf16.xpose.msra.mxu0 0
    %5271 = vmatprep.subr.bf16.mxu0 0
    %5272 = vmatpush2.bf16.xpose.msra.mxu0 0
    %5273 = vmatprep.subr.bf16.mxu0 0
    %5274 = vmatpush2.bf16.xpose.msra.mxu0 0
    %5275 = vmatprep.subr.bf16.mxu0 0
    %5276 = vmatpush2.bf16.xpose.msra.mxu0 0
    %5277 = vmatprep.subr.bf16.mxu0 0
    %5278 = vmatpush2.bf16.xpose.msra.mxu0 0
    %5279 = vmatprep.subr.bf16.mxu0 0
    %5280 = vmatpush2.bf16.xpose.msra.mxu0 0
    %5281 = vmatprep.subr.bf16.mxu0 0
    %5282 = vmatpush2.bf16.xpose.msra.mxu0 0
    %5283 = vmatprep.mubr.bf16.mxu0 0
    %5284 = vmatmul.mubr.bf16.gmra.mxu0 %v5246
    %v5285 = vpop.f32.mrf.mxu0
    %v5286 = vadd.f32 0.0, %v5285
    %v5287 = vpop.f32.mrf.mxu0
    %v5288 = vpop.f32.mrf.mxu0
    %v5289 = vadd.f32 0.0, %v5288
    %v5290 = vpop.f32.mrf.mxu0
    %5291 = vdwg.mxu0
    %5292 = vrot.lane.b32.xlu0 %v1238, 64
    %v5293 = vpop.permute.xlu0 %5292
    %5294 = vrot.lane.b32.xlu0 %v1254, 64
    %v5295 = vpop.permute.xlu0 %5294
    %v5297 = vsel %vm1284, %v5293, 0
    %v5300 = vsel %vm1284, %v5295, 0
    %5302 = vmatprep.subr.bf16.mxu0 0
    %5303 = vmatpush1.bf16.xpose.msra.mxu0 0
    %5304 = vmatprep.subr.bf16.mxu0 0
    %5305 = vmatpush1.bf16.xpose.msra.mxu0 0
    %5306 = vmatprep.subr.bf16.mxu0 0
    %5307 = vmatpush1.bf16.xpose.msra.mxu0 0
    %5308 = vmatprep.subr.bf16.mxu0 0
    %5309 = vmatpush1.bf16.xpose.msra.mxu0 0
    %5310 = vmatprep.subr.bf16.mxu0 0
    %5311 = vmatpush1.bf16.xpose.msra.mxu0 0
    %5312 = vmatprep.subr.bf16.mxu0 0
    %5313 = vmatpush1.bf16.xpose.msra.mxu0 0
    %5314 = vmatprep.subr.bf16.mxu0 0
    %5315 = vmatpush1.bf16.xpose.msra.mxu0 0
    %5316 = vmatprep.subr.bf16.mxu0 0
    %5317 = vmatpush1.bf16.xpose.msra.mxu0 %v5300
    %5318 = vmatprep.subr.bf16.mxu0 0
    %5319 = vmatpush2.bf16.xpose.msra.mxu0 0
    %5320 = vmatprep.subr.bf16.mxu0 0
    %5321 = vmatpush2.bf16.xpose.msra.mxu0 0
    %5322 = vmatprep.subr.bf16.mxu0 0
    %5323 = vmatpush2.bf16.xpose.msra.mxu0 0
    %5324 = vmatprep.subr.bf16.mxu0 0
    %5325 = vmatpush2.bf16.xpose.msra.mxu0 0
    %5326 = vmatprep.subr.bf16.mxu0 0
    %5327 = vmatpush2.bf16.xpose.msra.mxu0 0
    %5328 = vmatprep.subr.bf16.mxu0 0
    %5329 = vmatpush2.bf16.xpose.msra.mxu0 0
    %5330 = vmatprep.subr.bf16.mxu0 0
    %5331 = vmatpush2.bf16.xpose.msra.mxu0 0
    %5332 = vmatprep.subr.bf16.mxu0 0
    %5333 = vmatpush2.bf16.xpose.msra.mxu0 0
    %5334 = vmatprep.mubr.bf16.mxu0 0
    %5335 = vmatmul.mubr.bf16.gmra.mxu0 %v5297
    %v5336 = vpop.f32.mrf.mxu0
    %v5337 = vadd.f32 0.0, %v5336
    %v5338 = vpop.f32.mrf.mxu0
    %v5339 = vpop.f32.mrf.mxu0
    %v5340 = vadd.f32 0.0, %v5339
    %v5341 = vpop.f32.mrf.mxu0
    %5342 = vdwg.mxu0
    %5343 = vrot.lane.b32.xlu0 %v1239, 64
    %v5344 = vpop.permute.xlu0 %5343
    %5345 = vrot.lane.b32.xlu0 %v1255, 64
    %v5346 = vpop.permute.xlu0 %5345
    %v5348 = vsel %vm1284, %v5344, 0
    %v5351 = vsel %vm1284, %v5346, 0
    %5353 = vmatprep.subr.bf16.mxu0 0
    %5354 = vmatpush1.bf16.xpose.msra.mxu0 0
    %5355 = vmatprep.subr.bf16.mxu0 0
    %5356 = vmatpush1.bf16.xpose.msra.mxu0 0
    %5357 = vmatprep.subr.bf16.mxu0 0
    %5358 = vmatpush1.bf16.xpose.msra.mxu0 0
    %5359 = vmatprep.subr.bf16.mxu0 0
    %5360 = vmatpush1.bf16.xpose.msra.mxu0 0
    %5361 = vmatprep.subr.bf16.mxu0 0
    %5362 = vmatpush1.bf16.xpose.msra.mxu0 0
    %5363 = vmatprep.subr.bf16.mxu0 0
    %5364 = vmatpush1.bf16.xpose.msra.mxu0 0
    %5365 = vmatprep.subr.bf16.mxu0 0
    %5366 = vmatpush1.bf16.xpose.msra.mxu0 0
    %5367 = vmatprep.subr.bf16.mxu0 0
    %5368 = vmatpush1.bf16.xpose.msra.mxu0 %v5351
    %5369 = vmatprep.subr.bf16.mxu0 0
    %5370 = vmatpush2.bf16.xpose.msra.mxu0 0
    %5371 = vmatprep.subr.bf16.mxu0 0
    %5372 = vmatpush2.bf16.xpose.msra.mxu0 0
    %5373 = vmatprep.subr.bf16.mxu0 0
    %5374 = vmatpush2.bf16.xpose.msra.mxu0 0
    %5375 = vmatprep.subr.bf16.mxu0 0
    %5376 = vmatpush2.bf16.xpose.msra.mxu0 0
    %5377 = vmatprep.subr.bf16.mxu0 0
    %5378 = vmatpush2.bf16.xpose.msra.mxu0 0
    %5379 = vmatprep.subr.bf16.mxu0 0
    %5380 = vmatpush2.bf16.xpose.msra.mxu0 0
    %5381 = vmatprep.subr.bf16.mxu0 0
    %5382 = vmatpush2.bf16.xpose.msra.mxu0 0
    %5383 = vmatprep.subr.bf16.mxu0 0
    %5384 = vmatpush2.bf16.xpose.msra.mxu0 0
    %5385 = vmatprep.mubr.bf16.mxu0 0
    %5386 = vmatmul.mubr.bf16.gmra.mxu0 %v5348
    %v5387 = vpop.f32.mrf.mxu0
    %v5388 = vadd.f32 0.0, %v5387
    %v5389 = vpop.f32.mrf.mxu0
    %v5390 = vpop.f32.mrf.mxu0
    %v5391 = vadd.f32 0.0, %v5390
    %v5392 = vpop.f32.mrf.mxu0
    %5393 = vdwg.mxu0
    %5394 = vrot.lane.b32.xlu0 %v1240, 64
    %v5395 = vpop.permute.xlu0 %5394
    %5396 = vrot.lane.b32.xlu0 %v1256, 64
    %v5397 = vpop.permute.xlu0 %5396
    %v5399 = vsel %vm1284, %v5395, 0
    %v5402 = vsel %vm1284, %v5397, 0
    %5404 = vmatprep.subr.bf16.mxu0 0
    %5405 = vmatpush1.bf16.xpose.msra.mxu0 0
    %5406 = vmatprep.subr.bf16.mxu0 0
    %5407 = vmatpush1.bf16.xpose.msra.mxu0 0
    %5408 = vmatprep.subr.bf16.mxu0 0
    %5409 = vmatpush1.bf16.xpose.msra.mxu0 0
    %5410 = vmatprep.subr.bf16.mxu0 0
    %5411 = vmatpush1.bf16.xpose.msra.mxu0 0
    %5412 = vmatprep.subr.bf16.mxu0 0
    %5413 = vmatpush1.bf16.xpose.msra.mxu0 0
    %5414 = vmatprep.subr.bf16.mxu0 0
    %5415 = vmatpush1.bf16.xpose.msra.mxu0 0
    %5416 = vmatprep.subr.bf16.mxu0 0
    %5417 = vmatpush1.bf16.xpose.msra.mxu0 0
    %5418 = vmatprep.subr.bf16.mxu0 0
    %5419 = vmatpush1.bf16.xpose.msra.mxu0 %v5402
    %5420 = vmatprep.subr.bf16.mxu0 0
    %5421 = vmatpush2.bf16.xpose.msra.mxu0 0
    %5422 = vmatprep.subr.bf16.mxu0 0
    %5423 = vmatpush2.bf16.xpose.msra.mxu0 0
    %5424 = vmatprep.subr.bf16.mxu0 0
    %5425 = vmatpush2.bf16.xpose.msra.mxu0 0
    %5426 = vmatprep.subr.bf16.mxu0 0
    %5427 = vmatpush2.bf16.xpose.msra.mxu0 0
    %5428 = vmatprep.subr.bf16.mxu0 0
    %5429 = vmatpush2.bf16.xpose.msra.mxu0 0
    %5430 = vmatprep.subr.bf16.mxu0 0
    %5431 = vmatpush2.bf16.xpose.msra.mxu0 0
    %5432 = vmatprep.subr.bf16.mxu0 0
    %5433 = vmatpush2.bf16.xpose.msra.mxu0 0
    %5434 = vmatprep.subr.bf16.mxu0 0
    %5435 = vmatpush2.bf16.xpose.msra.mxu0 0
    %5436 = vmatprep.mubr.bf16.mxu0 0
    %5437 = vmatmul.mubr.bf16.gmra.mxu0 %v5399
    %v5438 = vpop.f32.mrf.mxu0
    %v5439 = vadd.f32 0.0, %v5438
    %v5440 = vpop.f32.mrf.mxu0
    %v5441 = vpop.f32.mrf.mxu0
    %v5442 = vadd.f32 0.0, %v5441
    %v5443 = vpop.f32.mrf.mxu0
    %5444 = vdwg.mxu0
    %5445 = vrot.lane.b32.xlu0 %v1241, 64
    %v5446 = vpop.permute.xlu0 %5445
    %5447 = vrot.lane.b32.xlu0 %v1257, 64
    %v5448 = vpop.permute.xlu0 %5447
    %v5450 = vsel %vm1284, %v5446, 0
    %v5453 = vsel %vm1284, %v5448, 0
    %5455 = vmatprep.subr.bf16.mxu0 0
    %5456 = vmatpush1.bf16.xpose.msra.mxu0 0
    %5457 = vmatprep.subr.bf16.mxu0 0
    %5458 = vmatpush1.bf16.xpose.msra.mxu0 0
    %5459 = vmatprep.subr.bf16.mxu0 0
    %5460 = vmatpush1.bf16.xpose.msra.mxu0 0
    %5461 = vmatprep.subr.bf16.mxu0 0
    %5462 = vmatpush1.bf16.xpose.msra.mxu0 0
    %5463 = vmatprep.subr.bf16.mxu0 0
    %5464 = vmatpush1.bf16.xpose.msra.mxu0 0
    %5465 = vmatprep.subr.bf16.mxu0 0
    %5466 = vmatpush1.bf16.xpose.msra.mxu0 0
    %5467 = vmatprep.subr.bf16.mxu0 0
    %5468 = vmatpush1.bf16.xpose.msra.mxu0 0
    %5469 = vmatprep.subr.bf16.mxu0 0
    %5470 = vmatpush1.bf16.xpose.msra.mxu0 %v5453
    %5471 = vmatprep.subr.bf16.mxu0 0
    %5472 = vmatpush2.bf16.xpose.msra.mxu0 0
    %5473 = vmatprep.subr.bf16.mxu0 0
    %5474 = vmatpush2.bf16.xpose.msra.mxu0 0
    %5475 = vmatprep.subr.bf16.mxu0 0
    %5476 = vmatpush2.bf16.xpose.msra.mxu0 0
    %5477 = vmatprep.subr.bf16.mxu0 0
    %5478 = vmatpush2.bf16.xpose.msra.mxu0 0
    %5479 = vmatprep.subr.bf16.mxu0 0
    %5480 = vmatpush2.bf16.xpose.msra.mxu0 0
    %5481 = vmatprep.subr.bf16.mxu0 0
    %5482 = vmatpush2.bf16.xpose.msra.mxu0 0
    %5483 = vmatprep.subr.bf16.mxu0 0
    %5484 = vmatpush2.bf16.xpose.msra.mxu0 0
    %5485 = vmatprep.subr.bf16.mxu0 0
    %5486 = vmatpush2.bf16.xpose.msra.mxu0 0
    %5487 = vmatprep.mubr.bf16.mxu0 0
    %5488 = vmatmul.mubr.bf16.gmra.mxu0 %v5450
    %v5489 = vpop.f32.mrf.mxu0
    %v5490 = vadd.f32 0.0, %v5489
    %v5491 = vpop.f32.mrf.mxu0
    %v5492 = vpop.f32.mrf.mxu0
    %v5493 = vadd.f32 0.0, %v5492
    %v5494 = vpop.f32.mrf.mxu0
    %5495 = vdwg.mxu0
    %5496 = vrot.lane.b32.xlu0 %v1242, 64
    %v5497 = vpop.permute.xlu0 %5496
    %5498 = vrot.lane.b32.xlu0 %v1258, 64
    %v5499 = vpop.permute.xlu0 %5498
    %v5501 = vsel %vm1284, %v5497, 0
    %v5504 = vsel %vm1284, %v5499, 0
    %5506 = vmatprep.subr.bf16.mxu0 0
    %5507 = vmatpush1.bf16.xpose.msra.mxu0 0
    %5508 = vmatprep.subr.bf16.mxu0 0
    %5509 = vmatpush1.bf16.xpose.msra.mxu0 0
    %5510 = vmatprep.subr.bf16.mxu0 0
    %5511 = vmatpush1.bf16.xpose.msra.mxu0 0
    %5512 = vmatprep.subr.bf16.mxu0 0
    %5513 = vmatpush1.bf16.xpose.msra.mxu0 0
    %5514 = vmatprep.subr.bf16.mxu0 0
    %5515 = vmatpush1.bf16.xpose.msra.mxu0 0
    %5516 = vmatprep.subr.bf16.mxu0 0
    %5517 = vmatpush1.bf16.xpose.msra.mxu0 0
    %5518 = vmatprep.subr.bf16.mxu0 0
    %5519 = vmatpush1.bf16.xpose.msra.mxu0 0
    %5520 = vmatprep.subr.bf16.mxu0 0
    %5521 = vmatpush1.bf16.xpose.msra.mxu0 %v5504
    %5522 = vmatprep.subr.bf16.mxu0 0
    %5523 = vmatpush2.bf16.xpose.msra.mxu0 0
    %5524 = vmatprep.subr.bf16.mxu0 0
    %5525 = vmatpush2.bf16.xpose.msra.mxu0 0
    %5526 = vmatprep.subr.bf16.mxu0 0
    %5527 = vmatpush2.bf16.xpose.msra.mxu0 0
    %5528 = vmatprep.subr.bf16.mxu0 0
    %5529 = vmatpush2.bf16.xpose.msra.mxu0 0
    %5530 = vmatprep.subr.bf16.mxu0 0
    %5531 = vmatpush2.bf16.xpose.msra.mxu0 0
    %5532 = vmatprep.subr.bf16.mxu0 0
    %5533 = vmatpush2.bf16.xpose.msra.mxu0 0
    %5534 = vmatprep.subr.bf16.mxu0 0
    %5535 = vmatpush2.bf16.xpose.msra.mxu0 0
    %5536 = vmatprep.subr.bf16.mxu0 0
    %5537 = vmatpush2.bf16.xpose.msra.mxu0 0
    %5538 = vmatprep.mubr.bf16.mxu0 0
    %5539 = vmatmul.mubr.bf16.gmra.mxu0 %v5501
    %v5540 = vpop.f32.mrf.mxu0
    %v5541 = vadd.f32 0.0, %v5540
    %v5542 = vpop.f32.mrf.mxu0
    %v5543 = vpop.f32.mrf.mxu0
    %v5544 = vadd.f32 0.0, %v5543
    %v5545 = vpop.f32.mrf.mxu0
    %5546 = vdwg.mxu0
    %5547 = vrot.lane.b32.xlu0 %v1243, 64
    %v5548 = vpop.permute.xlu0 %5547
    %5549 = vrot.lane.b32.xlu0 %v1259, 64
    %v5550 = vpop.permute.xlu0 %5549
    %v5552 = vsel %vm1284, %v5548, 0
    %v5555 = vsel %vm1284, %v5550, 0
    %5557 = vmatprep.subr.bf16.mxu0 0
    %5558 = vmatpush1.bf16.xpose.msra.mxu0 0
    %5559 = vmatprep.subr.bf16.mxu0 0
    %5560 = vmatpush1.bf16.xpose.msra.mxu0 0
    %5561 = vmatprep.subr.bf16.mxu0 0
    %5562 = vmatpush1.bf16.xpose.msra.mxu0 0
    %5563 = vmatprep.subr.bf16.mxu0 0
    %5564 = vmatpush1.bf16.xpose.msra.mxu0 0
    %5565 = vmatprep.subr.bf16.mxu0 0
    %5566 = vmatpush1.bf16.xpose.msra.mxu0 0
    %5567 = vmatprep.subr.bf16.mxu0 0
    %5568 = vmatpush1.bf16.xpose.msra.mxu0 0
    %5569 = vmatprep.subr.bf16.mxu0 0
    %5570 = vmatpush1.bf16.xpose.msra.mxu0 0
    %5571 = vmatprep.subr.bf16.mxu0 0
    %5572 = vmatpush1.bf16.xpose.msra.mxu0 %v5555
    %5573 = vmatprep.subr.bf16.mxu0 0
    %5574 = vmatpush2.bf16.xpose.msra.mxu0 0
    %5575 = vmatprep.subr.bf16.mxu0 0
    %5576 = vmatpush2.bf16.xpose.msra.mxu0 0
    %5577 = vmatprep.subr.bf16.mxu0 0
    %5578 = vmatpush2.bf16.xpose.msra.mxu0 0
    %5579 = vmatprep.subr.bf16.mxu0 0
    %5580 = vmatpush2.bf16.xpose.msra.mxu0 0
    %5581 = vmatprep.subr.bf16.mxu0 0
    %5582 = vmatpush2.bf16.xpose.msra.mxu0 0
    %5583 = vmatprep.subr.bf16.mxu0 0
    %5584 = vmatpush2.bf16.xpose.msra.mxu0 0
    %5585 = vmatprep.subr.bf16.mxu0 0
    %5586 = vmatpush2.bf16.xpose.msra.mxu0 0
    %5587 = vmatprep.subr.bf16.mxu0 0
    %5588 = vmatpush2.bf16.xpose.msra.mxu0 0
    %5589 = vmatprep.mubr.bf16.mxu0 0
    %5590 = vmatmul.mubr.bf16.gmra.mxu0 %v5552
    %v5591 = vpop.f32.mrf.mxu0
    %v5592 = vadd.f32 0.0, %v5591
    %v5593 = vpop.f32.mrf.mxu0
    %v5594 = vpop.f32.mrf.mxu0
    %v5595 = vadd.f32 0.0, %v5594
    %v5596 = vpop.f32.mrf.mxu0
    %5597 = vdwg.mxu0
    %5598 = vrot.lane.b32.xlu0 %v1244, 64
    %v5599 = vpop.permute.xlu0 %5598
    %5600 = vrot.lane.b32.xlu0 %v1260, 64
    %v5601 = vpop.permute.xlu0 %5600
    %v5603 = vsel %vm1284, %v5599, 0
    %v5606 = vsel %vm1284, %v5601, 0
    %5608 = vmatprep.subr.bf16.mxu0 0
    %5609 = vmatpush1.bf16.xpose.msra.mxu0 0
    %5610 = vmatprep.subr.bf16.mxu0 0
    %5611 = vmatpush1.bf16.xpose.msra.mxu0 0
    %5612 = vmatprep.subr.bf16.mxu0 0
    %5613 = vmatpush1.bf16.xpose.msra.mxu0 0
    %5614 = vmatprep.subr.bf16.mxu0 0
    %5615 = vmatpush1.bf16.xpose.msra.mxu0 0
    %5616 = vmatprep.subr.bf16.mxu0 0
    %5617 = vmatpush1.bf16.xpose.msra.mxu0 0
    %5618 = vmatprep.subr.bf16.mxu0 0
    %5619 = vmatpush1.bf16.xpose.msra.mxu0 0
    %5620 = vmatprep.subr.bf16.mxu0 0
    %5621 = vmatpush1.bf16.xpose.msra.mxu0 0
    %5622 = vmatprep.subr.bf16.mxu0 0
    %5623 = vmatpush1.bf16.xpose.msra.mxu0 %v5606
    %5624 = vmatprep.subr.bf16.mxu0 0
    %5625 = vmatpush2.bf16.xpose.msra.mxu0 0
    %5626 = vmatprep.subr.bf16.mxu0 0
    %5627 = vmatpush2.bf16.xpose.msra.mxu0 0
    %5628 = vmatprep.subr.bf16.mxu0 0
    %5629 = vmatpush2.bf16.xpose.msra.mxu0 0
    %5630 = vmatprep.subr.bf16.mxu0 0
    %5631 = vmatpush2.bf16.xpose.msra.mxu0 0
    %5632 = vmatprep.subr.bf16.mxu0 0
    %5633 = vmatpush2.bf16.xpose.msra.mxu0 0
    %5634 = vmatprep.subr.bf16.mxu0 0
    %5635 = vmatpush2.bf16.xpose.msra.mxu0 0
    %5636 = vmatprep.subr.bf16.mxu0 0
    %5637 = vmatpush2.bf16.xpose.msra.mxu0 0
    %5638 = vmatprep.subr.bf16.mxu0 0
    %5639 = vmatpush2.bf16.xpose.msra.mxu0 0
    %5640 = vmatprep.mubr.bf16.mxu0 0
    %5641 = vmatmul.mubr.bf16.gmra.mxu0 %v5603
    %v5642 = vpop.f32.mrf.mxu0
    %v5643 = vadd.f32 0.0, %v5642
    %v5644 = vpop.f32.mrf.mxu0
    %v5645 = vpop.f32.mrf.mxu0
    %v5646 = vadd.f32 0.0, %v5645
    %v5647 = vpop.f32.mrf.mxu0
    %5648 = vdwg.mxu0
    %5649 = vrot.lane.b32.xlu0 %v1245, 64
    %v5650 = vpop.permute.xlu0 %5649
    %5651 = vrot.lane.b32.xlu0 %v1261, 64
    %v5652 = vpop.permute.xlu0 %5651
    %v5654 = vsel %vm1284, %v5650, 0
    %v5657 = vsel %vm1284, %v5652, 0
    %5659 = vmatprep.subr.bf16.mxu0 0
    %5660 = vmatpush1.bf16.xpose.msra.mxu0 0
    %5661 = vmatprep.subr.bf16.mxu0 0
    %5662 = vmatpush1.bf16.xpose.msra.mxu0 0
    %5663 = vmatprep.subr.bf16.mxu0 0
    %5664 = vmatpush1.bf16.xpose.msra.mxu0 0
    %5665 = vmatprep.subr.bf16.mxu0 0
    %5666 = vmatpush1.bf16.xpose.msra.mxu0 0
    %5667 = vmatprep.subr.bf16.mxu0 0
    %5668 = vmatpush1.bf16.xpose.msra.mxu0 0
    %5669 = vmatprep.subr.bf16.mxu0 0
    %5670 = vmatpush1.bf16.xpose.msra.mxu0 0
    %5671 = vmatprep.subr.bf16.mxu0 0
    %5672 = vmatpush1.bf16.xpose.msra.mxu0 0
    %5673 = vmatprep.subr.bf16.mxu0 0
    %5674 = vmatpush1.bf16.xpose.msra.mxu0 %v5657
    %5675 = vmatprep.subr.bf16.mxu0 0
    %5676 = vmatpush2.bf16.xpose.msra.mxu0 0
    %5677 = vmatprep.subr.bf16.mxu0 0
    %5678 = vmatpush2.bf16.xpose.msra.mxu0 0
    %5679 = vmatprep.subr.bf16.mxu0 0
    %5680 = vmatpush2.bf16.xpose.msra.mxu0 0
    %5681 = vmatprep.subr.bf16.mxu0 0
    %5682 = vmatpush2.bf16.xpose.msra.mxu0 0
    %5683 = vmatprep.subr.bf16.mxu0 0
    %5684 = vmatpush2.bf16.xpose.msra.mxu0 0
    %5685 = vmatprep.subr.bf16.mxu0 0
    %5686 = vmatpush2.bf16.xpose.msra.mxu0 0
    %5687 = vmatprep.subr.bf16.mxu0 0
    %5688 = vmatpush2.bf16.xpose.msra.mxu0 0
    %5689 = vmatprep.subr.bf16.mxu0 0
    %5690 = vmatpush2.bf16.xpose.msra.mxu0 0
    %5691 = vmatprep.mubr.bf16.mxu0 0
    %5692 = vmatmul.mubr.bf16.gmra.mxu0 %v5654
    %v5693 = vpop.f32.mrf.mxu0
    %v5694 = vadd.f32 0.0, %v5693
    %v5695 = vpop.f32.mrf.mxu0
    %v5696 = vpop.f32.mrf.mxu0
    %v5697 = vadd.f32 0.0, %v5696
    %v5698 = vpop.f32.mrf.mxu0
    %5699 = vdwg.mxu0
    %5700 = vrot.lane.b32.xlu0 %v1246, 64
    %v5701 = vpop.permute.xlu0 %5700
    %5702 = vrot.lane.b32.xlu0 %v1262, 64
    %v5703 = vpop.permute.xlu0 %5702
    %v5705 = vsel %vm1284, %v5701, 0
    %v5708 = vsel %vm1284, %v5703, 0
    %5710 = vmatprep.subr.bf16.mxu0 0
    %5711 = vmatpush1.bf16.xpose.msra.mxu0 0
    %5712 = vmatprep.subr.bf16.mxu0 0
    %5713 = vmatpush1.bf16.xpose.msra.mxu0 0
    %5714 = vmatprep.subr.bf16.mxu0 0
    %5715 = vmatpush1.bf16.xpose.msra.mxu0 0
    %5716 = vmatprep.subr.bf16.mxu0 0
    %5717 = vmatpush1.bf16.xpose.msra.mxu0 0
    %5718 = vmatprep.subr.bf16.mxu0 0
    %5719 = vmatpush1.bf16.xpose.msra.mxu0 0
    %5720 = vmatprep.subr.bf16.mxu0 0
    %5721 = vmatpush1.bf16.xpose.msra.mxu0 0
    %5722 = vmatprep.subr.bf16.mxu0 0
    %5723 = vmatpush1.bf16.xpose.msra.mxu0 0
    %5724 = vmatprep.subr.bf16.mxu0 0
    %5725 = vmatpush1.bf16.xpose.msra.mxu0 %v5708
    %5726 = vmatprep.subr.bf16.mxu0 0
    %5727 = vmatpush2.bf16.xpose.msra.mxu0 0
    %5728 = vmatprep.subr.bf16.mxu0 0
    %5729 = vmatpush2.bf16.xpose.msra.mxu0 0
    %5730 = vmatprep.subr.bf16.mxu0 0
    %5731 = vmatpush2.bf16.xpose.msra.mxu0 0
    %5732 = vmatprep.subr.bf16.mxu0 0
    %5733 = vmatpush2.bf16.xpose.msra.mxu0 0
    %5734 = vmatprep.subr.bf16.mxu0 0
    %5735 = vmatpush2.bf16.xpose.msra.mxu0 0
    %5736 = vmatprep.subr.bf16.mxu0 0
    %5737 = vmatpush2.bf16.xpose.msra.mxu0 0
    %5738 = vmatprep.subr.bf16.mxu0 0
    %5739 = vmatpush2.bf16.xpose.msra.mxu0 0
    %5740 = vmatprep.subr.bf16.mxu0 0
    %5741 = vmatpush2.bf16.xpose.msra.mxu0 0
    %5742 = vmatprep.mubr.bf16.mxu0 0
    %5743 = vmatmul.mubr.bf16.gmra.mxu0 %v5705
    %v5744 = vpop.f32.mrf.mxu0
    %v5745 = vadd.f32 0.0, %v5744
    %v5746 = vpop.f32.mrf.mxu0
    %v5747 = vpop.f32.mrf.mxu0
    %v5748 = vadd.f32 0.0, %v5747
    %v5749 = vpop.f32.mrf.mxu0
    %5750 = vdwg.mxu0
    %5751 = vrot.lane.b32.xlu0 %v1247, 64
    %v5752 = vpop.permute.xlu0 %5751
    %5753 = vrot.lane.b32.xlu0 %v1263, 64
    %v5754 = vpop.permute.xlu0 %5753
    %v5756 = vsel %vm1284, %v5752, 0
    %v5759 = vsel %vm1284, %v5754, 0
    %5761 = vmatprep.subr.bf16.mxu0 0
    %5762 = vmatpush1.bf16.xpose.msra.mxu0 0
    %5763 = vmatprep.subr.bf16.mxu0 0
    %5764 = vmatpush1.bf16.xpose.msra.mxu0 0
    %5765 = vmatprep.subr.bf16.mxu0 0
    %5766 = vmatpush1.bf16.xpose.msra.mxu0 0
    %5767 = vmatprep.subr.bf16.mxu0 0
    %5768 = vmatpush1.bf16.xpose.msra.mxu0 0
    %5769 = vmatprep.subr.bf16.mxu0 0
    %5770 = vmatpush1.bf16.xpose.msra.mxu0 0
    %5771 = vmatprep.subr.bf16.mxu0 0
    %5772 = vmatpush1.bf16.xpose.msra.mxu0 0
    %5773 = vmatprep.subr.bf16.mxu0 0
    %5774 = vmatpush1.bf16.xpose.msra.mxu0 0
    %5775 = vmatprep.subr.bf16.mxu0 0
    %5776 = vmatpush1.bf16.xpose.msra.mxu0 %v5759
    %5777 = vmatprep.subr.bf16.mxu0 0
    %5778 = vmatpush2.bf16.xpose.msra.mxu0 0
    %5779 = vmatprep.subr.bf16.mxu0 0
    %5780 = vmatpush2.bf16.xpose.msra.mxu0 0
    %5781 = vmatprep.subr.bf16.mxu0 0
    %5782 = vmatpush2.bf16.xpose.msra.mxu0 0
    %5783 = vmatprep.subr.bf16.mxu0 0
    %5784 = vmatpush2.bf16.xpose.msra.mxu0 0
    %5785 = vmatprep.subr.bf16.mxu0 0
    %5786 = vmatpush2.bf16.xpose.msra.mxu0 0
    %5787 = vmatprep.subr.bf16.mxu0 0
    %5788 = vmatpush2.bf16.xpose.msra.mxu0 0
    %5789 = vmatprep.subr.bf16.mxu0 0
    %5790 = vmatpush2.bf16.xpose.msra.mxu0 0
    %5791 = vmatprep.subr.bf16.mxu0 0
    %5792 = vmatpush2.bf16.xpose.msra.mxu0 0
    %5793 = vmatprep.mubr.bf16.mxu0 0
    %5794 = vmatmul.mubr.bf16.gmra.mxu0 %v5756
    %v5795 = vpop.f32.mrf.mxu0
    %v5796 = vadd.f32 0.0, %v5795
    %v5797 = vpop.f32.mrf.mxu0
    %v5798 = vpop.f32.mrf.mxu0
    %v5799 = vadd.f32 0.0, %v5798
    %v5800 = vpop.f32.mrf.mxu0
    %5801 = vdwg.mxu0
    %5802 = vrot.lane.b32.xlu0 %v1248, 64
    %v5803 = vpop.permute.xlu0 %5802
    %5804 = vrot.lane.b32.xlu0 %v1264, 64
    %v5805 = vpop.permute.xlu0 %5804
    %v5807 = vsel %vm1284, %v5803, 0
    %v5810 = vsel %vm1284, %v5805, 0
    %5812 = vmatprep.subr.bf16.mxu0 0
    %5813 = vmatpush1.bf16.xpose.msra.mxu0 0
    %5814 = vmatprep.subr.bf16.mxu0 0
    %5815 = vmatpush1.bf16.xpose.msra.mxu0 0
    %5816 = vmatprep.subr.bf16.mxu0 0
    %5817 = vmatpush1.bf16.xpose.msra.mxu0 0
    %5818 = vmatprep.subr.bf16.mxu0 0
    %5819 = vmatpush1.bf16.xpose.msra.mxu0 0
    %5820 = vmatprep.subr.bf16.mxu0 0
    %5821 = vmatpush1.bf16.xpose.msra.mxu0 0
    %5822 = vmatprep.subr.bf16.mxu0 0
    %5823 = vmatpush1.bf16.xpose.msra.mxu0 0
    %5824 = vmatprep.subr.bf16.mxu0 0
    %5825 = vmatpush1.bf16.xpose.msra.mxu0 0
    %5826 = vmatprep.subr.bf16.mxu0 0
    %5827 = vmatpush1.bf16.xpose.msra.mxu0 %v5810
    %5828 = vmatprep.subr.bf16.mxu0 0
    %5829 = vmatpush2.bf16.xpose.msra.mxu0 0
    %5830 = vmatprep.subr.bf16.mxu0 0
    %5831 = vmatpush2.bf16.xpose.msra.mxu0 0
    %5832 = vmatprep.subr.bf16.mxu0 0
    %5833 = vmatpush2.bf16.xpose.msra.mxu0 0
    %5834 = vmatprep.subr.bf16.mxu0 0
    %5835 = vmatpush2.bf16.xpose.msra.mxu0 0
    %5836 = vmatprep.subr.bf16.mxu0 0
    %5837 = vmatpush2.bf16.xpose.msra.mxu0 0
    %5838 = vmatprep.subr.bf16.mxu0 0
    %5839 = vmatpush2.bf16.xpose.msra.mxu0 0
    %5840 = vmatprep.subr.bf16.mxu0 0
    %5841 = vmatpush2.bf16.xpose.msra.mxu0 0
    %5842 = vmatprep.subr.bf16.mxu0 0
    %5843 = vmatpush2.bf16.xpose.msra.mxu0 0
    %5844 = vmatprep.mubr.bf16.mxu0 0
    %5845 = vmatmul.mubr.bf16.gmra.mxu0 %v5807
    %v5846 = vpop.f32.mrf.mxu0
    %v5847 = vadd.f32 0.0, %v5846
    %v5848 = vpop.f32.mrf.mxu0
    %v5849 = vpop.f32.mrf.mxu0
    %v5850 = vadd.f32 0.0, %v5849
    %v5851 = vpop.f32.mrf.mxu0
    %5852 = vdwg.mxu0
    %5853 = vrot.lane.b32.xlu0 %v1249, 64
    %v5854 = vpop.permute.xlu0 %5853
    %5855 = vrot.lane.b32.xlu0 %v1265, 64
    %v5856 = vpop.permute.xlu0 %5855
    %v5858 = vsel %vm1284, %v5854, 0
    %v5861 = vsel %vm1284, %v5856, 0
    %5863 = vmatprep.subr.bf16.mxu0 0
    %5864 = vmatpush1.bf16.xpose.msra.mxu0 0
    %5865 = vmatprep.subr.bf16.mxu0 0
    %5866 = vmatpush1.bf16.xpose.msra.mxu0 0
    %5867 = vmatprep.subr.bf16.mxu0 0
    %5868 = vmatpush1.bf16.xpose.msra.mxu0 0
    %5869 = vmatprep.subr.bf16.mxu0 0
    %5870 = vmatpush1.bf16.xpose.msra.mxu0 0
    %5871 = vmatprep.subr.bf16.mxu0 0
    %5872 = vmatpush1.bf16.xpose.msra.mxu0 0
    %5873 = vmatprep.subr.bf16.mxu0 0
    %5874 = vmatpush1.bf16.xpose.msra.mxu0 0
    %5875 = vmatprep.subr.bf16.mxu0 0
    %5876 = vmatpush1.bf16.xpose.msra.mxu0 0
    %5877 = vmatprep.subr.bf16.mxu0 0
    %5878 = vmatpush1.bf16.xpose.msra.mxu0 %v5861
    %5879 = vmatprep.subr.bf16.mxu0 0
    %5880 = vmatpush2.bf16.xpose.msra.mxu0 0
    %5881 = vmatprep.subr.bf16.mxu0 0
    %5882 = vmatpush2.bf16.xpose.msra.mxu0 0
    %5883 = vmatprep.subr.bf16.mxu0 0
    %5884 = vmatpush2.bf16.xpose.msra.mxu0 0
    %5885 = vmatprep.subr.bf16.mxu0 0
    %5886 = vmatpush2.bf16.xpose.msra.mxu0 0
    %5887 = vmatprep.subr.bf16.mxu0 0
    %5888 = vmatpush2.bf16.xpose.msra.mxu0 0
    %5889 = vmatprep.subr.bf16.mxu0 0
    %5890 = vmatpush2.bf16.xpose.msra.mxu0 0
    %5891 = vmatprep.subr.bf16.mxu0 0
    %5892 = vmatpush2.bf16.xpose.msra.mxu0 0
    %5893 = vmatprep.subr.bf16.mxu0 0
    %5894 = vmatpush2.bf16.xpose.msra.mxu0 0
    %5895 = vmatprep.mubr.bf16.mxu0 0
    %5896 = vmatmul.mubr.bf16.gmra.mxu0 %v5858
    %v5897 = vpop.f32.mrf.mxu0
    %v5898 = vadd.f32 0.0, %v5897
    %v5899 = vpop.f32.mrf.mxu0
    %v5900 = vpop.f32.mrf.mxu0
    %v5901 = vadd.f32 0.0, %v5900
    %v5902 = vpop.f32.mrf.mxu0
    %5903 = vdwg.mxu0
    %5904 = vrot.lane.b32.xlu0 %v1250, 64
    %v5905 = vpop.permute.xlu0 %5904
    %5906 = vrot.lane.b32.xlu0 %v1266, 64
    %v5907 = vpop.permute.xlu0 %5906
    %v5909 = vsel %vm1284, %v5905, 0
    %v5912 = vsel %vm1284, %v5907, 0
    %5914 = vmatprep.subr.bf16.mxu0 0
    %5915 = vmatpush1.bf16.xpose.msra.mxu0 0
    %5916 = vmatprep.subr.bf16.mxu0 0
    %5917 = vmatpush1.bf16.xpose.msra.mxu0 0
    %5918 = vmatprep.subr.bf16.mxu0 0
    %5919 = vmatpush1.bf16.xpose.msra.mxu0 0
    %5920 = vmatprep.subr.bf16.mxu0 0
    %5921 = vmatpush1.bf16.xpose.msra.mxu0 0
    %5922 = vmatprep.subr.bf16.mxu0 0
    %5923 = vmatpush1.bf16.xpose.msra.mxu0 0
    %5924 = vmatprep.subr.bf16.mxu0 0
    %5925 = vmatpush1.bf16.xpose.msra.mxu0 0
    %5926 = vmatprep.subr.bf16.mxu0 0
    %5927 = vmatpush1.bf16.xpose.msra.mxu0 0
    %5928 = vmatprep.subr.bf16.mxu0 0
    %5929 = vmatpush1.bf16.xpose.msra.mxu0 %v5912
    %5930 = vmatprep.subr.bf16.mxu0 0
    %5931 = vmatpush2.bf16.xpose.msra.mxu0 0
    %5932 = vmatprep.subr.bf16.mxu0 0
    %5933 = vmatpush2.bf16.xpose.msra.mxu0 0
    %5934 = vmatprep.subr.bf16.mxu0 0
    %5935 = vmatpush2.bf16.xpose.msra.mxu0 0
    %5936 = vmatprep.subr.bf16.mxu0 0
    %5937 = vmatpush2.bf16.xpose.msra.mxu0 0
    %5938 = vmatprep.subr.bf16.mxu0 0
    %5939 = vmatpush2.bf16.xpose.msra.mxu0 0
    %5940 = vmatprep.subr.bf16.mxu0 0
    %5941 = vmatpush2.bf16.xpose.msra.mxu0 0
    %5942 = vmatprep.subr.bf16.mxu0 0
    %5943 = vmatpush2.bf16.xpose.msra.mxu0 0
    %5944 = vmatprep.subr.bf16.mxu0 0
    %5945 = vmatpush2.bf16.xpose.msra.mxu0 0
    %5946 = vmatprep.mubr.bf16.mxu0 0
    %5947 = vmatmul.mubr.bf16.gmra.mxu0 %v5909
    %v5948 = vpop.f32.mrf.mxu0
    %v5949 = vadd.f32 0.0, %v5948
    %v5950 = vpop.f32.mrf.mxu0
    %v5951 = vpop.f32.mrf.mxu0
    %v5952 = vadd.f32 0.0, %v5951
    %v5953 = vpop.f32.mrf.mxu0
    %5954 = vdwg.mxu0
    %5955 = vrot.lane.b32.xlu0 %v1251, 64
    %v5956 = vpop.permute.xlu0 %5955
    %5957 = vrot.lane.b32.xlu0 %v1267, 64
    %v5958 = vpop.permute.xlu0 %5957
    %v5960 = vsel %vm1284, %v5956, 0
    %v5963 = vsel %vm1284, %v5958, 0
    %5965 = vmatprep.subr.bf16.mxu0 0
    %5966 = vmatpush1.bf16.xpose.msra.mxu0 0
    %5967 = vmatprep.subr.bf16.mxu0 0
    %5968 = vmatpush1.bf16.xpose.msra.mxu0 0
    %5969 = vmatprep.subr.bf16.mxu0 0
    %5970 = vmatpush1.bf16.xpose.msra.mxu0 0
    %5971 = vmatprep.subr.bf16.mxu0 0
    %5972 = vmatpush1.bf16.xpose.msra.mxu0 0
    %5973 = vmatprep.subr.bf16.mxu0 0
    %5974 = vmatpush1.bf16.xpose.msra.mxu0 0
    %5975 = vmatprep.subr.bf16.mxu0 0
    %5976 = vmatpush1.bf16.xpose.msra.mxu0 0
    %5977 = vmatprep.subr.bf16.mxu0 0
    %5978 = vmatpush1.bf16.xpose.msra.mxu0 0
    %5979 = vmatprep.subr.bf16.mxu0 0
    %5980 = vmatpush1.bf16.xpose.msra.mxu0 %v5963
    %5981 = vmatprep.subr.bf16.mxu0 0
    %5982 = vmatpush2.bf16.xpose.msra.mxu0 0
    %5983 = vmatprep.subr.bf16.mxu0 0
    %5984 = vmatpush2.bf16.xpose.msra.mxu0 0
    %5985 = vmatprep.subr.bf16.mxu0 0
    %5986 = vmatpush2.bf16.xpose.msra.mxu0 0
    %5987 = vmatprep.subr.bf16.mxu0 0
    %5988 = vmatpush2.bf16.xpose.msra.mxu0 0
    %5989 = vmatprep.subr.bf16.mxu0 0
    %5990 = vmatpush2.bf16.xpose.msra.mxu0 0
    %5991 = vmatprep.subr.bf16.mxu0 0
    %5992 = vmatpush2.bf16.xpose.msra.mxu0 0
    %5993 = vmatprep.subr.bf16.mxu0 0
    %5994 = vmatpush2.bf16.xpose.msra.mxu0 0
    %5995 = vmatprep.subr.bf16.mxu0 0
    %5996 = vmatpush2.bf16.xpose.msra.mxu0 0
    %5997 = vmatprep.mubr.bf16.mxu0 0
    %5998 = vmatmul.mubr.bf16.gmra.mxu0 %v5960
    %v5999 = vpop.f32.mrf.mxu0
    %v6000 = vadd.f32 0.0, %v5999
    %v6001 = vpop.f32.mrf.mxu0
    %v6002 = vpop.f32.mrf.mxu0
    %v6003 = vadd.f32 0.0, %v6002
    %v6004 = vpop.f32.mrf.mxu0
    %6005 = vdwg.mxu0
    %v6006 = vmul.f32 %v5235, 0.17677669
    %v6007 = vmul.f32 %v5238, 0.17677669
    %v6008 = vmul.f32 %v5286, 0.17677669
    %v6009 = vmul.f32 %v5289, 0.17677669
    %v6010 = vmul.f32 %v5337, 0.17677669
    %v6011 = vmul.f32 %v5340, 0.17677669
    %v6012 = vmul.f32 %v5388, 0.17677669
    %v6013 = vmul.f32 %v5391, 0.17677669
    %v6014 = vmul.f32 %v5439, 0.17677669
    %v6015 = vmul.f32 %v5442, 0.17677669
    %v6016 = vmul.f32 %v5490, 0.17677669
    %v6017 = vmul.f32 %v5493, 0.17677669
    %v6018 = vmul.f32 %v5541, 0.17677669
    %v6019 = vmul.f32 %v5544, 0.17677669
    %v6020 = vmul.f32 %v5592, 0.17677669
    %v6021 = vmul.f32 %v5595, 0.17677669
    %v6022 = vmul.f32 %v5643, 0.17677669
    %v6023 = vmul.f32 %v5646, 0.17677669
    %v6024 = vmul.f32 %v5694, 0.17677669
    %v6025 = vmul.f32 %v5697, 0.17677669
    %v6026 = vmul.f32 %v5745, 0.17677669
    %v6027 = vmul.f32 %v5748, 0.17677669
    %v6028 = vmul.f32 %v5796, 0.17677669
    %v6029 = vmul.f32 %v5799, 0.17677669
    %v6030 = vmul.f32 %v5847, 0.17677669
    %v6031 = vmul.f32 %v5850, 0.17677669
    %v6032 = vmul.f32 %v5898, 0.17677669
    %v6033 = vmul.f32 %v5901, 0.17677669
    %v6034 = vmul.f32 %v5949, 0.17677669
    %v6035 = vmul.f32 %v5952, 0.17677669
    %v6036 = vmul.f32 %v6000, 0.17677669
    %v6037 = vmul.f32 %v6003, 0.17677669
    %v6038 = vsel %vm2069, %v6006, -inf
    %6039 = vmax.xlane.f32.xlu0 %v6038
    %v6040 = vpop.xlane.xlu0 %6039
    %v6041 = vsel %vm2069, %v6007, -inf
    %6042 = vmax.xlane.f32.xlu0 %v6041
    %v6043 = vpop.xlane.xlu0 %6042
    %v6044 = vsel %vm2069, %v6008, -inf
    %6045 = vmax.xlane.f32.xlu0 %v6044
    %v6046 = vpop.xlane.xlu0 %6045
    %v6047 = vsel %vm2069, %v6009, -inf
    %6048 = vmax.xlane.f32.xlu0 %v6047
    %v6049 = vpop.xlane.xlu0 %6048
    %v6050 = vsel %vm2069, %v6010, -inf
    %6051 = vmax.xlane.f32.xlu0 %v6050
    %v6052 = vpop.xlane.xlu0 %6051
    %v6053 = vsel %vm2069, %v6011, -inf
    %6054 = vmax.xlane.f32.xlu0 %v6053
    %v6055 = vpop.xlane.xlu0 %6054
    %v6056 = vsel %vm2069, %v6012, -inf
    %6057 = vmax.xlane.f32.xlu0 %v6056
    %v6058 = vpop.xlane.xlu0 %6057
    %v6059 = vsel %vm2069, %v6013, -inf
    %6060 = vmax.xlane.f32.xlu0 %v6059
    %v6061 = vpop.xlane.xlu0 %6060
    %v6062 = vsel %vm2069, %v6014, -inf
    %6063 = vmax.xlane.f32.xlu0 %v6062
    %v6064 = vpop.xlane.xlu0 %6063
    %v6065 = vsel %vm2069, %v6015, -inf
    %6066 = vmax.xlane.f32.xlu0 %v6065
    %v6067 = vpop.xlane.xlu0 %6066
    %v6068 = vsel %vm2069, %v6016, -inf
    %6069 = vmax.xlane.f32.xlu0 %v6068
    %v6070 = vpop.xlane.xlu0 %6069
    %v6071 = vsel %vm2069, %v6017, -inf
    %6072 = vmax.xlane.f32.xlu0 %v6071
    %v6073 = vpop.xlane.xlu0 %6072
    %v6074 = vsel %vm2069, %v6018, -inf
    %6075 = vmax.xlane.f32.xlu0 %v6074
    %v6076 = vpop.xlane.xlu0 %6075
    %v6077 = vsel %vm2069, %v6019, -inf
    %6078 = vmax.xlane.f32.xlu0 %v6077
    %v6079 = vpop.xlane.xlu0 %6078
    %v6080 = vsel %vm2069, %v6020, -inf
    %6081 = vmax.xlane.f32.xlu0 %v6080
    %v6082 = vpop.xlane.xlu0 %6081
    %v6083 = vsel %vm2069, %v6021, -inf
    %6084 = vmax.xlane.f32.xlu0 %v6083
    %v6085 = vpop.xlane.xlu0 %6084
    %v6086 = vsel %vm2069, %v6022, -inf
    %6087 = vmax.xlane.f32.xlu0 %v6086
    %v6088 = vpop.xlane.xlu0 %6087
    %v6089 = vsel %vm2069, %v6023, -inf
    %6090 = vmax.xlane.f32.xlu0 %v6089
    %v6091 = vpop.xlane.xlu0 %6090
    %v6092 = vsel %vm2069, %v6024, -inf
    %6093 = vmax.xlane.f32.xlu0 %v6092
    %v6094 = vpop.xlane.xlu0 %6093
    %v6095 = vsel %vm2069, %v6025, -inf
    %6096 = vmax.xlane.f32.xlu0 %v6095
    %v6097 = vpop.xlane.xlu0 %6096
    %v6098 = vsel %vm2069, %v6026, -inf
    %6099 = vmax.xlane.f32.xlu0 %v6098
    %v6100 = vpop.xlane.xlu0 %6099
    %v6101 = vsel %vm2069, %v6027, -inf
    %6102 = vmax.xlane.f32.xlu0 %v6101
    %v6103 = vpop.xlane.xlu0 %6102
    %v6104 = vsel %vm2069, %v6028, -inf
    %6105 = vmax.xlane.f32.xlu0 %v6104
    %v6106 = vpop.xlane.xlu0 %6105
    %v6107 = vsel %vm2069, %v6029, -inf
    %6108 = vmax.xlane.f32.xlu0 %v6107
    %v6109 = vpop.xlane.xlu0 %6108
    %v6110 = vsel %vm2069, %v6030, -inf
    %6111 = vmax.xlane.f32.xlu0 %v6110
    %v6112 = vpop.xlane.xlu0 %6111
    %v6113 = vsel %vm2069, %v6031, -inf
    %6114 = vmax.xlane.f32.xlu0 %v6113
    %v6115 = vpop.xlane.xlu0 %6114
    %v6116 = vsel %vm2069, %v6032, -inf
    %6117 = vmax.xlane.f32.xlu0 %v6116
    %v6118 = vpop.xlane.xlu0 %6117
    %v6119 = vsel %vm2069, %v6033, -inf
    %6120 = vmax.xlane.f32.xlu0 %v6119
    %v6121 = vpop.xlane.xlu0 %6120
    %v6122 = vsel %vm2069, %v6034, -inf
    %6123 = vmax.xlane.f32.xlu0 %v6122
    %v6124 = vpop.xlane.xlu0 %6123
    %v6125 = vsel %vm2069, %v6035, -inf
    %6126 = vmax.xlane.f32.xlu0 %v6125
    %v6127 = vpop.xlane.xlu0 %6126
    %v6128 = vsel %vm2069, %v6036, -inf
    %6129 = vmax.xlane.f32.xlu0 %v6128
    %v6130 = vpop.xlane.xlu0 %6129
    %v6131 = vsel %vm2069, %v6037, -inf
    %6132 = vmax.xlane.f32.xlu0 %v6131
    %v6133 = vpop.xlane.xlu0 %6132
    %v6134 = vsub.f32 %v6006, %v6040
    %v6135 = vsub.f32 %v6007, %v6043
    %v6136 = vsub.f32 %v6008, %v6046
    %v6137 = vsub.f32 %v6009, %v6049
    %v6138 = vsub.f32 %v6010, %v6052
    %v6139 = vsub.f32 %v6011, %v6055
    %v6140 = vsub.f32 %v6012, %v6058
    %v6141 = vsub.f32 %v6013, %v6061
    %v6142 = vsub.f32 %v6014, %v6064
    %v6143 = vsub.f32 %v6015, %v6067
    %v6144 = vsub.f32 %v6016, %v6070
    %v6145 = vsub.f32 %v6017, %v6073
    %v6146 = vsub.f32 %v6018, %v6076
    %v6147 = vsub.f32 %v6019, %v6079
    %v6148 = vsub.f32 %v6020, %v6082
    %v6149 = vsub.f32 %v6021, %v6085
    %v6150 = vsub.f32 %v6022, %v6088
    %v6151 = vsub.f32 %v6023, %v6091
    %v6152 = vsub.f32 %v6024, %v6094
    %v6153 = vsub.f32 %v6025, %v6097
    %v6154 = vsub.f32 %v6026, %v6100
    %v6155 = vsub.f32 %v6027, %v6103
    %v6156 = vsub.f32 %v6028, %v6106
    %v6157 = vsub.f32 %v6029, %v6109
    %v6158 = vsub.f32 %v6030, %v6112
    %v6159 = vsub.f32 %v6031, %v6115
    %v6160 = vsub.f32 %v6032, %v6118
    %v6161 = vsub.f32 %v6033, %v6121
    %v6162 = vsub.f32 %v6034, %v6124
    %v6163 = vsub.f32 %v6035, %v6127
    %v6164 = vsub.f32 %v6036, %v6130
    %v6165 = vsub.f32 %v6037, %v6133
    %v6166 = vmul.f32 %v6134, 1.442695
    %v6167 = vpow.pop %v6166
    %v6168 = vmul.f32 %v6135, 1.442695
    %v6169 = vpow.pop %v6168
    %v6170 = vmul.f32 %v6136, 1.442695
    %v6171 = vpow.pop %v6170
    %v6172 = vmul.f32 %v6137, 1.442695
    %v6173 = vpow.pop %v6172
    %v6174 = vmul.f32 %v6138, 1.442695
    %v6175 = vpow.pop %v6174
    %v6176 = vmul.f32 %v6139, 1.442695
    %v6177 = vpow.pop %v6176
    %v6178 = vmul.f32 %v6140, 1.442695
    %v6179 = vpow.pop %v6178
    %v6180 = vmul.f32 %v6141, 1.442695
    %v6181 = vpow.pop %v6180
    %v6182 = vmul.f32 %v6142, 1.442695
    %v6183 = vpow.pop %v6182
    %v6184 = vmul.f32 %v6143, 1.442695
    %v6185 = vpow.pop %v6184
    %v6186 = vmul.f32 %v6144, 1.442695
    %v6187 = vpow.pop %v6186
    %v6188 = vmul.f32 %v6145, 1.442695
    %v6189 = vpow.pop %v6188
    %v6190 = vmul.f32 %v6146, 1.442695
    %v6191 = vpow.pop %v6190
    %v6192 = vmul.f32 %v6147, 1.442695
    %v6193 = vpow.pop %v6192
    %v6194 = vmul.f32 %v6148, 1.442695
    %v6195 = vpow.pop %v6194
    %v6196 = vmul.f32 %v6149, 1.442695
    %v6197 = vpow.pop %v6196
    %v6198 = vmul.f32 %v6150, 1.442695
    %v6199 = vpow.pop %v6198
    %v6200 = vmul.f32 %v6151, 1.442695
    %v6201 = vpow.pop %v6200
    %v6202 = vmul.f32 %v6152, 1.442695
    %v6203 = vpow.pop %v6202
    %v6204 = vmul.f32 %v6153, 1.442695
    %v6205 = vpow.pop %v6204
    %v6206 = vmul.f32 %v6154, 1.442695
    %v6207 = vpow.pop %v6206
    %v6208 = vmul.f32 %v6155, 1.442695
    %v6209 = vpow.pop %v6208
    %v6210 = vmul.f32 %v6156, 1.442695
    %v6211 = vpow.pop %v6210
    %v6212 = vmul.f32 %v6157, 1.442695
    %v6213 = vpow.pop %v6212
    %v6214 = vmul.f32 %v6158, 1.442695
    %v6215 = vpow.pop %v6214
    %v6216 = vmul.f32 %v6159, 1.442695
    %v6217 = vpow.pop %v6216
    %v6218 = vmul.f32 %v6160, 1.442695
    %v6219 = vpow.pop %v6218
    %v6220 = vmul.f32 %v6161, 1.442695
    %v6221 = vpow.pop %v6220
    %v6222 = vmul.f32 %v6162, 1.442695
    %v6223 = vpow.pop %v6222
    %v6224 = vmul.f32 %v6163, 1.442695
    %v6225 = vpow.pop %v6224
    %v6226 = vmul.f32 %v6164, 1.442695
    %v6227 = vpow.pop %v6226
    %v6228 = vmul.f32 %v6165, 1.442695
    %v6229 = vpow.pop %v6228
    %v6230 = vsel %vm2069, %v6167, 0.0
    %6231 = vadd.xlane.f32.xlu0 %v6230
    %v6232 = vpop.xlane.xlu0 %6231
    %v6233 = vsel %vm2069, %v6169, 0.0
    %6234 = vadd.xlane.f32.xlu0 %v6233
    %v6235 = vpop.xlane.xlu0 %6234
    %v6236 = vsel %vm2069, %v6171, 0.0
    %6237 = vadd.xlane.f32.xlu0 %v6236
    %v6238 = vpop.xlane.xlu0 %6237
    %v6239 = vsel %vm2069, %v6173, 0.0
    %6240 = vadd.xlane.f32.xlu0 %v6239
    %v6241 = vpop.xlane.xlu0 %6240
    %v6242 = vsel %vm2069, %v6175, 0.0
    %6243 = vadd.xlane.f32.xlu0 %v6242
    %v6244 = vpop.xlane.xlu0 %6243
    %v6245 = vsel %vm2069, %v6177, 0.0
    %6246 = vadd.xlane.f32.xlu0 %v6245
    %v6247 = vpop.xlane.xlu0 %6246
    %v6248 = vsel %vm2069, %v6179, 0.0
    %6249 = vadd.xlane.f32.xlu0 %v6248
    %v6250 = vpop.xlane.xlu0 %6249
    %v6251 = vsel %vm2069, %v6181, 0.0
    %6252 = vadd.xlane.f32.xlu0 %v6251
    %v6253 = vpop.xlane.xlu0 %6252
    %v6254 = vsel %vm2069, %v6183, 0.0
    %6255 = vadd.xlane.f32.xlu0 %v6254
    %v6256 = vpop.xlane.xlu0 %6255
    %v6257 = vsel %vm2069, %v6185, 0.0
    %6258 = vadd.xlane.f32.xlu0 %v6257
    %v6259 = vpop.xlane.xlu0 %6258
    %v6260 = vsel %vm2069, %v6187, 0.0
    %6261 = vadd.xlane.f32.xlu0 %v6260
    %v6262 = vpop.xlane.xlu0 %6261
    %v6263 = vsel %vm2069, %v6189, 0.0
    %6264 = vadd.xlane.f32.xlu0 %v6263
    %v6265 = vpop.xlane.xlu0 %6264
    %v6266 = vsel %vm2069, %v6191, 0.0
    %6267 = vadd.xlane.f32.xlu0 %v6266
    %v6268 = vpop.xlane.xlu0 %6267
    %v6269 = vsel %vm2069, %v6193, 0.0
    %6270 = vadd.xlane.f32.xlu0 %v6269
    %v6271 = vpop.xlane.xlu0 %6270
    %v6272 = vsel %vm2069, %v6195, 0.0
    %6273 = vadd.xlane.f32.xlu0 %v6272
    %v6274 = vpop.xlane.xlu0 %6273
    %v6275 = vsel %vm2069, %v6197, 0.0
    %6276 = vadd.xlane.f32.xlu0 %v6275
    %v6277 = vpop.xlane.xlu0 %6276
    %v6278 = vsel %vm2069, %v6199, 0.0
    %6279 = vadd.xlane.f32.xlu0 %v6278
    %v6280 = vpop.xlane.xlu0 %6279
    %v6281 = vsel %vm2069, %v6201, 0.0
    %6282 = vadd.xlane.f32.xlu0 %v6281
    %v6283 = vpop.xlane.xlu0 %6282
    %v6284 = vsel %vm2069, %v6203, 0.0
    %6285 = vadd.xlane.f32.xlu0 %v6284
    %v6286 = vpop.xlane.xlu0 %6285
    %v6287 = vsel %vm2069, %v6205, 0.0
    %6288 = vadd.xlane.f32.xlu0 %v6287
    %v6289 = vpop.xlane.xlu0 %6288
    %v6290 = vsel %vm2069, %v6207, 0.0
    %6291 = vadd.xlane.f32.xlu0 %v6290
    %v6292 = vpop.xlane.xlu0 %6291
    %v6293 = vsel %vm2069, %v6209, 0.0
    %6294 = vadd.xlane.f32.xlu0 %v6293
    %v6295 = vpop.xlane.xlu0 %6294
    %v6296 = vsel %vm2069, %v6211, 0.0
    %6297 = vadd.xlane.f32.xlu0 %v6296
    %v6298 = vpop.xlane.xlu0 %6297
    %v6299 = vsel %vm2069, %v6213, 0.0
    %6300 = vadd.xlane.f32.xlu0 %v6299
    %v6301 = vpop.xlane.xlu0 %6300
    %v6302 = vsel %vm2069, %v6215, 0.0
    %6303 = vadd.xlane.f32.xlu0 %v6302
    %v6304 = vpop.xlane.xlu0 %6303
    %v6305 = vsel %vm2069, %v6217, 0.0
    %6306 = vadd.xlane.f32.xlu0 %v6305
    %v6307 = vpop.xlane.xlu0 %6306
    %v6308 = vsel %vm2069, %v6219, 0.0
    %6309 = vadd.xlane.f32.xlu0 %v6308
    %v6310 = vpop.xlane.xlu0 %6309
    %v6311 = vsel %vm2069, %v6221, 0.0
    %6312 = vadd.xlane.f32.xlu0 %v6311
    %v6313 = vpop.xlane.xlu0 %6312
    %v6314 = vsel %vm2069, %v6223, 0.0
    %6315 = vadd.xlane.f32.xlu0 %v6314
    %v6316 = vpop.xlane.xlu0 %6315
    %v6317 = vsel %vm2069, %v6225, 0.0
    %6318 = vadd.xlane.f32.xlu0 %v6317
    %v6319 = vpop.xlane.xlu0 %6318
    %v6320 = vsel %vm2069, %v6227, 0.0
    %6321 = vadd.xlane.f32.xlu0 %v6320
    %v6322 = vpop.xlane.xlu0 %6321
    %v6323 = vsel %vm2069, %v6229, 0.0
    %6324 = vadd.xlane.f32.xlu0 %v6323
    %v6325 = vpop.xlane.xlu0 %6324
    %v6326 = vrcp.pop %v6232
    %v6327 = vmul.f32 %v6167, %v6326
    %v6328 = vrcp.pop %v6235
    %v6329 = vmul.f32 %v6169, %v6328
    %v6330 = vrcp.pop %v6238
    %v6331 = vmul.f32 %v6171, %v6330
    %v6332 = vrcp.pop %v6241
    %v6333 = vmul.f32 %v6173, %v6332
    %v6334 = vrcp.pop %v6244
    %v6335 = vmul.f32 %v6175, %v6334
    %v6336 = vrcp.pop %v6247
    %v6337 = vmul.f32 %v6177, %v6336
    %v6338 = vrcp.pop %v6250
    %v6339 = vmul.f32 %v6179, %v6338
    %v6340 = vrcp.pop %v6253
    %v6341 = vmul.f32 %v6181, %v6340
    %v6342 = vrcp.pop %v6256
    %v6343 = vmul.f32 %v6183, %v6342
    %v6344 = vrcp.pop %v6259
    %v6345 = vmul.f32 %v6185, %v6344
    %v6346 = vrcp.pop %v6262
    %v6347 = vmul.f32 %v6187, %v6346
    %v6348 = vrcp.pop %v6265
    %v6349 = vmul.f32 %v6189, %v6348
    %v6350 = vrcp.pop %v6268
    %v6351 = vmul.f32 %v6191, %v6350
    %v6352 = vrcp.pop %v6271
    %v6353 = vmul.f32 %v6193, %v6352
    %v6354 = vrcp.pop %v6274
    %v6355 = vmul.f32 %v6195, %v6354
    %v6356 = vrcp.pop %v6277
    %v6357 = vmul.f32 %v6197, %v6356
    %v6358 = vrcp.pop %v6280
    %v6359 = vmul.f32 %v6199, %v6358
    %v6360 = vrcp.pop %v6283
    %v6361 = vmul.f32 %v6201, %v6360
    %v6362 = vrcp.pop %v6286
    %v6363 = vmul.f32 %v6203, %v6362
    %v6364 = vrcp.pop %v6289
    %v6365 = vmul.f32 %v6205, %v6364
    %v6366 = vrcp.pop %v6292
    %v6367 = vmul.f32 %v6207, %v6366
    %v6368 = vrcp.pop %v6295
    %v6369 = vmul.f32 %v6209, %v6368
    %v6370 = vrcp.pop %v6298
    %v6371 = vmul.f32 %v6211, %v6370
    %v6372 = vrcp.pop %v6301
    %v6373 = vmul.f32 %v6213, %v6372
    %v6374 = vrcp.pop %v6304
    %v6375 = vmul.f32 %v6215, %v6374
    %v6376 = vrcp.pop %v6307
    %v6377 = vmul.f32 %v6217, %v6376
    %v6378 = vrcp.pop %v6310
    %v6379 = vmul.f32 %v6219, %v6378
    %v6380 = vrcp.pop %v6313
    %v6381 = vmul.f32 %v6221, %v6380
    %v6382 = vrcp.pop %v6316
    %v6383 = vmul.f32 %v6223, %v6382
    %v6384 = vrcp.pop %v6319
    %v6385 = vmul.f32 %v6225, %v6384
    %v6386 = vrcp.pop %v6322
    %v6387 = vmul.f32 %v6227, %v6386
    %v6388 = vrcp.pop %v6325
    %v6389 = vmul.f32 %v6229, %v6388
    %v6390 = vpack.c.bf16 %v6329, %v6327
    %v6391 = vpack.c.bf16 %v6333, %v6331
    %v6392 = vpack.c.bf16 %v6337, %v6335
    %v6393 = vpack.c.bf16 %v6341, %v6339
    %v6394 = vpack.c.bf16 %v6345, %v6343
    %v6395 = vpack.c.bf16 %v6349, %v6347
    %v6396 = vpack.c.bf16 %v6353, %v6351
    %v6397 = vpack.c.bf16 %v6357, %v6355
    %v6398 = vpack.c.bf16 %v6361, %v6359
    %v6399 = vpack.c.bf16 %v6365, %v6363
    %v6400 = vpack.c.bf16 %v6369, %v6367
    %v6401 = vpack.c.bf16 %v6373, %v6371
    %v6402 = vpack.c.bf16 %v6377, %v6375
    %v6403 = vpack.c.bf16 %v6381, %v6379
    %v6404 = vpack.c.bf16 %v6385, %v6383
    %v6405 = vpack.c.bf16 %v6389, %v6387
    %6406 = vrot.lane.b32.xlu0 %v1268, 64
    %v6407 = vpop.permute.xlu0 %6406
    %v6410 = vsel %vm2069, %v6390, 0
    %6412 = vmatprep.subr.bf16.mxu0 0
    %6413 = vmatpush1.bf16.msra.mxu0 0
    %6414 = vmatprep.subr.bf16.mxu0 0
    %6415 = vmatpush1.bf16.msra.mxu0 0
    %6416 = vmatprep.subr.bf16.mxu0 0
    %6417 = vmatpush1.bf16.msra.mxu0 0
    %6418 = vmatprep.subr.bf16.mxu0 0
    %6419 = vmatpush1.bf16.msra.mxu0 0
    %6420 = vmatprep.subr.bf16.mxu0 0
    %6421 = vmatpush1.bf16.msra.mxu0 0
    %6422 = vmatprep.subr.bf16.mxu0 0
    %6423 = vmatpush1.bf16.msra.mxu0 0
    %6424 = vmatprep.subr.bf16.mxu0 0
    %6425 = vmatpush1.bf16.msra.mxu0 0
    %6426 = vmatprep.subr.bf16.mxu0 0
    %6427 = vmatpush1.bf16.msra.mxu0 %v6407
    %6428 = vmatprep.subr.bf16.mxu0 0
    %6429 = vmatpush2.bf16.msra.mxu0 0
    %6430 = vmatprep.subr.bf16.mxu0 0
    %6431 = vmatpush2.bf16.msra.mxu0 0
    %6432 = vmatprep.subr.bf16.mxu0 0
    %6433 = vmatpush2.bf16.msra.mxu0 0
    %6434 = vmatprep.subr.bf16.mxu0 0
    %6435 = vmatpush2.bf16.msra.mxu0 0
    %6436 = vmatprep.subr.bf16.mxu0 0
    %6437 = vmatpush2.bf16.msra.mxu0 0
    %6438 = vmatprep.subr.bf16.mxu0 0
    %6439 = vmatpush2.bf16.msra.mxu0 0
    %6440 = vmatprep.subr.bf16.mxu0 0
    %6441 = vmatpush2.bf16.msra.mxu0 0
    %6442 = vmatprep.subr.bf16.mxu0 0
    %6443 = vmatpush2.bf16.msra.mxu0 0
    %6444 = vmatprep.mubr.bf16.mxu0 0
    %6445 = vmatmul.mubr.bf16.gmra.mxu0 %v6410
    %v6446 = vpop.f32.mrf.mxu0
    %v6447 = vadd.f32 0.0, %v6446
    %v6448 = vpop.f32.mrf.mxu0
    %v6449 = vpop.f32.mrf.mxu0
    %v6450 = vadd.f32 0.0, %v6449
    %v6451 = vpop.f32.mrf.mxu0
    %6452 = vdwg.mxu0
    %6453 = vrot.lane.b32.xlu0 %v1269, 64
    %v6454 = vpop.permute.xlu0 %6453
    %v6457 = vsel %vm2069, %v6391, 0
    %6459 = vmatprep.subr.bf16.mxu0 0
    %6460 = vmatpush1.bf16.msra.mxu0 0
    %6461 = vmatprep.subr.bf16.mxu0 0
    %6462 = vmatpush1.bf16.msra.mxu0 0
    %6463 = vmatprep.subr.bf16.mxu0 0
    %6464 = vmatpush1.bf16.msra.mxu0 0
    %6465 = vmatprep.subr.bf16.mxu0 0
    %6466 = vmatpush1.bf16.msra.mxu0 0
    %6467 = vmatprep.subr.bf16.mxu0 0
    %6468 = vmatpush1.bf16.msra.mxu0 0
    %6469 = vmatprep.subr.bf16.mxu0 0
    %6470 = vmatpush1.bf16.msra.mxu0 0
    %6471 = vmatprep.subr.bf16.mxu0 0
    %6472 = vmatpush1.bf16.msra.mxu0 0
    %6473 = vmatprep.subr.bf16.mxu0 0
    %6474 = vmatpush1.bf16.msra.mxu0 %v6454
    %6475 = vmatprep.subr.bf16.mxu0 0
    %6476 = vmatpush2.bf16.msra.mxu0 0
    %6477 = vmatprep.subr.bf16.mxu0 0
    %6478 = vmatpush2.bf16.msra.mxu0 0
    %6479 = vmatprep.subr.bf16.mxu0 0
    %6480 = vmatpush2.bf16.msra.mxu0 0
    %6481 = vmatprep.subr.bf16.mxu0 0
    %6482 = vmatpush2.bf16.msra.mxu0 0
    %6483 = vmatprep.subr.bf16.mxu0 0
    %6484 = vmatpush2.bf16.msra.mxu0 0
    %6485 = vmatprep.subr.bf16.mxu0 0
    %6486 = vmatpush2.bf16.msra.mxu0 0
    %6487 = vmatprep.subr.bf16.mxu0 0
    %6488 = vmatpush2.bf16.msra.mxu0 0
    %6489 = vmatprep.subr.bf16.mxu0 0
    %6490 = vmatpush2.bf16.msra.mxu0 0
    %6491 = vmatprep.mubr.bf16.mxu0 0
    %6492 = vmatmul.mubr.bf16.gmra.mxu0 %v6457
    %v6493 = vpop.f32.mrf.mxu0
    %v6494 = vadd.f32 0.0, %v6493
    %v6495 = vpop.f32.mrf.mxu0
    %v6496 = vpop.f32.mrf.mxu0
    %v6497 = vadd.f32 0.0, %v6496
    %v6498 = vpop.f32.mrf.mxu0
    %6499 = vdwg.mxu0
    %6500 = vrot.lane.b32.xlu0 %v1270, 64
    %v6501 = vpop.permute.xlu0 %6500
    %v6504 = vsel %vm2069, %v6392, 0
    %6506 = vmatprep.subr.bf16.mxu0 0
    %6507 = vmatpush1.bf16.msra.mxu0 0
    %6508 = vmatprep.subr.bf16.mxu0 0
    %6509 = vmatpush1.bf16.msra.mxu0 0
    %6510 = vmatprep.subr.bf16.mxu0 0
    %6511 = vmatpush1.bf16.msra.mxu0 0
    %6512 = vmatprep.subr.bf16.mxu0 0
    %6513 = vmatpush1.bf16.msra.mxu0 0
    %6514 = vmatprep.subr.bf16.mxu0 0
    %6515 = vmatpush1.bf16.msra.mxu0 0
    %6516 = vmatprep.subr.bf16.mxu0 0
    %6517 = vmatpush1.bf16.msra.mxu0 0
    %6518 = vmatprep.subr.bf16.mxu0 0
    %6519 = vmatpush1.bf16.msra.mxu0 0
    %6520 = vmatprep.subr.bf16.mxu0 0
    %6521 = vmatpush1.bf16.msra.mxu0 %v6501
    %6522 = vmatprep.subr.bf16.mxu0 0
    %6523 = vmatpush2.bf16.msra.mxu0 0
    %6524 = vmatprep.subr.bf16.mxu0 0
    %6525 = vmatpush2.bf16.msra.mxu0 0
    %6526 = vmatprep.subr.bf16.mxu0 0
    %6527 = vmatpush2.bf16.msra.mxu0 0
    %6528 = vmatprep.subr.bf16.mxu0 0
    %6529 = vmatpush2.bf16.msra.mxu0 0
    %6530 = vmatprep.subr.bf16.mxu0 0
    %6531 = vmatpush2.bf16.msra.mxu0 0
    %6532 = vmatprep.subr.bf16.mxu0 0
    %6533 = vmatpush2.bf16.msra.mxu0 0
    %6534 = vmatprep.subr.bf16.mxu0 0
    %6535 = vmatpush2.bf16.msra.mxu0 0
    %6536 = vmatprep.subr.bf16.mxu0 0
    %6537 = vmatpush2.bf16.msra.mxu0 0
    %6538 = vmatprep.mubr.bf16.mxu0 0
    %6539 = vmatmul.mubr.bf16.gmra.mxu0 %v6504
    %v6540 = vpop.f32.mrf.mxu0
    %v6541 = vadd.f32 0.0, %v6540
    %v6542 = vpop.f32.mrf.mxu0
    %v6543 = vpop.f32.mrf.mxu0
    %v6544 = vadd.f32 0.0, %v6543
    %v6545 = vpop.f32.mrf.mxu0
    %6546 = vdwg.mxu0
    %6547 = vrot.lane.b32.xlu0 %v1271, 64
    %v6548 = vpop.permute.xlu0 %6547
    %v6551 = vsel %vm2069, %v6393, 0
    %6553 = vmatprep.subr.bf16.mxu0 0
    %6554 = vmatpush1.bf16.msra.mxu0 0
    %6555 = vmatprep.subr.bf16.mxu0 0
    %6556 = vmatpush1.bf16.msra.mxu0 0
    %6557 = vmatprep.subr.bf16.mxu0 0
    %6558 = vmatpush1.bf16.msra.mxu0 0
    %6559 = vmatprep.subr.bf16.mxu0 0
    %6560 = vmatpush1.bf16.msra.mxu0 0
    %6561 = vmatprep.subr.bf16.mxu0 0
    %6562 = vmatpush1.bf16.msra.mxu0 0
    %6563 = vmatprep.subr.bf16.mxu0 0
    %6564 = vmatpush1.bf16.msra.mxu0 0
    %6565 = vmatprep.subr.bf16.mxu0 0
    %6566 = vmatpush1.bf16.msra.mxu0 0
    %6567 = vmatprep.subr.bf16.mxu0 0
    %6568 = vmatpush1.bf16.msra.mxu0 %v6548
    %6569 = vmatprep.subr.bf16.mxu0 0
    %6570 = vmatpush2.bf16.msra.mxu0 0
    %6571 = vmatprep.subr.bf16.mxu0 0
    %6572 = vmatpush2.bf16.msra.mxu0 0
    %6573 = vmatprep.subr.bf16.mxu0 0
    %6574 = vmatpush2.bf16.msra.mxu0 0
    %6575 = vmatprep.subr.bf16.mxu0 0
    %6576 = vmatpush2.bf16.msra.mxu0 0
    %6577 = vmatprep.subr.bf16.mxu0 0
    %6578 = vmatpush2.bf16.msra.mxu0 0
    %6579 = vmatprep.subr.bf16.mxu0 0
    %6580 = vmatpush2.bf16.msra.mxu0 0
    %6581 = vmatprep.subr.bf16.mxu0 0
    %6582 = vmatpush2.bf16.msra.mxu0 0
    %6583 = vmatprep.subr.bf16.mxu0 0
    %6584 = vmatpush2.bf16.msra.mxu0 0
    %6585 = vmatprep.mubr.bf16.mxu0 0
    %6586 = vmatmul.mubr.bf16.gmra.mxu0 %v6551
    %v6587 = vpop.f32.mrf.mxu0
    %v6588 = vadd.f32 0.0, %v6587
    %v6589 = vpop.f32.mrf.mxu0
    %v6590 = vpop.f32.mrf.mxu0
    %v6591 = vadd.f32 0.0, %v6590
    %v6592 = vpop.f32.mrf.mxu0
    %6593 = vdwg.mxu0
    %6594 = vrot.lane.b32.xlu0 %v1272, 64
    %v6595 = vpop.permute.xlu0 %6594
    %v6598 = vsel %vm2069, %v6394, 0
    %6600 = vmatprep.subr.bf16.mxu0 0
    %6601 = vmatpush1.bf16.msra.mxu0 0
    %6602 = vmatprep.subr.bf16.mxu0 0
    %6603 = vmatpush1.bf16.msra.mxu0 0
    %6604 = vmatprep.subr.bf16.mxu0 0
    %6605 = vmatpush1.bf16.msra.mxu0 0
    %6606 = vmatprep.subr.bf16.mxu0 0
    %6607 = vmatpush1.bf16.msra.mxu0 0
    %6608 = vmatprep.subr.bf16.mxu0 0
    %6609 = vmatpush1.bf16.msra.mxu0 0
    %6610 = vmatprep.subr.bf16.mxu0 0
    %6611 = vmatpush1.bf16.msra.mxu0 0
    %6612 = vmatprep.subr.bf16.mxu0 0
    %6613 = vmatpush1.bf16.msra.mxu0 0
    %6614 = vmatprep.subr.bf16.mxu0 0
    %6615 = vmatpush1.bf16.msra.mxu0 %v6595
    %6616 = vmatprep.subr.bf16.mxu0 0
    %6617 = vmatpush2.bf16.msra.mxu0 0
    %6618 = vmatprep.subr.bf16.mxu0 0
    %6619 = vmatpush2.bf16.msra.mxu0 0
    %6620 = vmatprep.subr.bf16.mxu0 0
    %6621 = vmatpush2.bf16.msra.mxu0 0
    %6622 = vmatprep.subr.bf16.mxu0 0
    %6623 = vmatpush2.bf16.msra.mxu0 0
    %6624 = vmatprep.subr.bf16.mxu0 0
    %6625 = vmatpush2.bf16.msra.mxu0 0
    %6626 = vmatprep.subr.bf16.mxu0 0
    %6627 = vmatpush2.bf16.msra.mxu0 0
    %6628 = vmatprep.subr.bf16.mxu0 0
    %6629 = vmatpush2.bf16.msra.mxu0 0
    %6630 = vmatprep.subr.bf16.mxu0 0
    %6631 = vmatpush2.bf16.msra.mxu0 0
    %6632 = vmatprep.mubr.bf16.mxu0 0
    %6633 = vmatmul.mubr.bf16.gmra.mxu0 %v6598
    %v6634 = vpop.f32.mrf.mxu0
    %v6635 = vadd.f32 0.0, %v6634
    %v6636 = vpop.f32.mrf.mxu0
    %v6637 = vpop.f32.mrf.mxu0
    %v6638 = vadd.f32 0.0, %v6637
    %v6639 = vpop.f32.mrf.mxu0
    %6640 = vdwg.mxu0
    %6641 = vrot.lane.b32.xlu0 %v1273, 64
    %v6642 = vpop.permute.xlu0 %6641
    %v6645 = vsel %vm2069, %v6395, 0
    %6647 = vmatprep.subr.bf16.mxu0 0
    %6648 = vmatpush1.bf16.msra.mxu0 0
    %6649 = vmatprep.subr.bf16.mxu0 0
    %6650 = vmatpush1.bf16.msra.mxu0 0
    %6651 = vmatprep.subr.bf16.mxu0 0
    %6652 = vmatpush1.bf16.msra.mxu0 0
    %6653 = vmatprep.subr.bf16.mxu0 0
    %6654 = vmatpush1.bf16.msra.mxu0 0
    %6655 = vmatprep.subr.bf16.mxu0 0
    %6656 = vmatpush1.bf16.msra.mxu0 0
    %6657 = vmatprep.subr.bf16.mxu0 0
    %6658 = vmatpush1.bf16.msra.mxu0 0
    %6659 = vmatprep.subr.bf16.mxu0 0
    %6660 = vmatpush1.bf16.msra.mxu0 0
    %6661 = vmatprep.subr.bf16.mxu0 0
    %6662 = vmatpush1.bf16.msra.mxu0 %v6642
    %6663 = vmatprep.subr.bf16.mxu0 0
    %6664 = vmatpush2.bf16.msra.mxu0 0
    %6665 = vmatprep.subr.bf16.mxu0 0
    %6666 = vmatpush2.bf16.msra.mxu0 0
    %6667 = vmatprep.subr.bf16.mxu0 0
    %6668 = vmatpush2.bf16.msra.mxu0 0
    %6669 = vmatprep.subr.bf16.mxu0 0
    %6670 = vmatpush2.bf16.msra.mxu0 0
    %6671 = vmatprep.subr.bf16.mxu0 0
    %6672 = vmatpush2.bf16.msra.mxu0 0
    %6673 = vmatprep.subr.bf16.mxu0 0
    %6674 = vmatpush2.bf16.msra.mxu0 0
    %6675 = vmatprep.subr.bf16.mxu0 0
    %6676 = vmatpush2.bf16.msra.mxu0 0
    %6677 = vmatprep.subr.bf16.mxu0 0
    %6678 = vmatpush2.bf16.msra.mxu0 0
    %6679 = vmatprep.mubr.bf16.mxu0 0
    %6680 = vmatmul.mubr.bf16.gmra.mxu0 %v6645
    %v6681 = vpop.f32.mrf.mxu0
    %v6682 = vadd.f32 0.0, %v6681
    %v6683 = vpop.f32.mrf.mxu0
    %v6684 = vpop.f32.mrf.mxu0
    %v6685 = vadd.f32 0.0, %v6684
    %v6686 = vpop.f32.mrf.mxu0
    %6687 = vdwg.mxu0
    %6688 = vrot.lane.b32.xlu0 %v1274, 64
    %v6689 = vpop.permute.xlu0 %6688
    %v6692 = vsel %vm2069, %v6396, 0
    %6694 = vmatprep.subr.bf16.mxu0 0
    %6695 = vmatpush1.bf16.msra.mxu0 0
    %6696 = vmatprep.subr.bf16.mxu0 0
    %6697 = vmatpush1.bf16.msra.mxu0 0
    %6698 = vmatprep.subr.bf16.mxu0 0
    %6699 = vmatpush1.bf16.msra.mxu0 0
    %6700 = vmatprep.subr.bf16.mxu0 0
    %6701 = vmatpush1.bf16.msra.mxu0 0
    %6702 = vmatprep.subr.bf16.mxu0 0
    %6703 = vmatpush1.bf16.msra.mxu0 0
    %6704 = vmatprep.subr.bf16.mxu0 0
    %6705 = vmatpush1.bf16.msra.mxu0 0
    %6706 = vmatprep.subr.bf16.mxu0 0
    %6707 = vmatpush1.bf16.msra.mxu0 0
    %6708 = vmatprep.subr.bf16.mxu0 0
    %6709 = vmatpush1.bf16.msra.mxu0 %v6689
    %6710 = vmatprep.subr.bf16.mxu0 0
    %6711 = vmatpush2.bf16.msra.mxu0 0
    %6712 = vmatprep.subr.bf16.mxu0 0
    %6713 = vmatpush2.bf16.msra.mxu0 0
    %6714 = vmatprep.subr.bf16.mxu0 0
    %6715 = vmatpush2.bf16.msra.mxu0 0
    %6716 = vmatprep.subr.bf16.mxu0 0
    %6717 = vmatpush2.bf16.msra.mxu0 0
    %6718 = vmatprep.subr.bf16.mxu0 0
    %6719 = vmatpush2.bf16.msra.mxu0 0
    %6720 = vmatprep.subr.bf16.mxu0 0
    %6721 = vmatpush2.bf16.msra.mxu0 0
    %6722 = vmatprep.subr.bf16.mxu0 0
    %6723 = vmatpush2.bf16.msra.mxu0 0
    %6724 = vmatprep.subr.bf16.mxu0 0
    %6725 = vmatpush2.bf16.msra.mxu0 0
    %6726 = vmatprep.mubr.bf16.mxu0 0
    %6727 = vmatmul.mubr.bf16.gmra.mxu0 %v6692
    %v6728 = vpop.f32.mrf.mxu0
    %v6729 = vadd.f32 0.0, %v6728
    %v6730 = vpop.f32.mrf.mxu0
    %v6731 = vpop.f32.mrf.mxu0
    %v6732 = vadd.f32 0.0, %v6731
    %v6733 = vpop.f32.mrf.mxu0
    %6734 = vdwg.mxu0
    %6735 = vrot.lane.b32.xlu0 %v1275, 64
    %v6736 = vpop.permute.xlu0 %6735
    %v6739 = vsel %vm2069, %v6397, 0
    %6741 = vmatprep.subr.bf16.mxu0 0
    %6742 = vmatpush1.bf16.msra.mxu0 0
    %6743 = vmatprep.subr.bf16.mxu0 0
    %6744 = vmatpush1.bf16.msra.mxu0 0
    %6745 = vmatprep.subr.bf16.mxu0 0
    %6746 = vmatpush1.bf16.msra.mxu0 0
    %6747 = vmatprep.subr.bf16.mxu0 0
    %6748 = vmatpush1.bf16.msra.mxu0 0
    %6749 = vmatprep.subr.bf16.mxu0 0
    %6750 = vmatpush1.bf16.msra.mxu0 0
    %6751 = vmatprep.subr.bf16.mxu0 0
    %6752 = vmatpush1.bf16.msra.mxu0 0
    %6753 = vmatprep.subr.bf16.mxu0 0
    %6754 = vmatpush1.bf16.msra.mxu0 0
    %6755 = vmatprep.subr.bf16.mxu0 0
    %6756 = vmatpush1.bf16.msra.mxu0 %v6736
    %6757 = vmatprep.subr.bf16.mxu0 0
    %6758 = vmatpush2.bf16.msra.mxu0 0
    %6759 = vmatprep.subr.bf16.mxu0 0
    %6760 = vmatpush2.bf16.msra.mxu0 0
    %6761 = vmatprep.subr.bf16.mxu0 0
    %6762 = vmatpush2.bf16.msra.mxu0 0
    %6763 = vmatprep.subr.bf16.mxu0 0
    %6764 = vmatpush2.bf16.msra.mxu0 0
    %6765 = vmatprep.subr.bf16.mxu0 0
    %6766 = vmatpush2.bf16.msra.mxu0 0
    %6767 = vmatprep.subr.bf16.mxu0 0
    %6768 = vmatpush2.bf16.msra.mxu0 0
    %6769 = vmatprep.subr.bf16.mxu0 0
    %6770 = vmatpush2.bf16.msra.mxu0 0
    %6771 = vmatprep.subr.bf16.mxu0 0
    %6772 = vmatpush2.bf16.msra.mxu0 0
    %6773 = vmatprep.mubr.bf16.mxu0 0
    %6774 = vmatmul.mubr.bf16.gmra.mxu0 %v6739
    %v6775 = vpop.f32.mrf.mxu0
    %v6776 = vadd.f32 0.0, %v6775
    %v6777 = vpop.f32.mrf.mxu0
    %v6778 = vpop.f32.mrf.mxu0
    %v6779 = vadd.f32 0.0, %v6778
    %v6780 = vpop.f32.mrf.mxu0
    %6781 = vdwg.mxu0
    %6782 = vrot.lane.b32.xlu0 %v1276, 64
    %v6783 = vpop.permute.xlu0 %6782
    %v6786 = vsel %vm2069, %v6398, 0
    %6788 = vmatprep.subr.bf16.mxu0 0
    %6789 = vmatpush1.bf16.msra.mxu0 0
    %6790 = vmatprep.subr.bf16.mxu0 0
    %6791 = vmatpush1.bf16.msra.mxu0 0
    %6792 = vmatprep.subr.bf16.mxu0 0
    %6793 = vmatpush1.bf16.msra.mxu0 0
    %6794 = vmatprep.subr.bf16.mxu0 0
    %6795 = vmatpush1.bf16.msra.mxu0 0
    %6796 = vmatprep.subr.bf16.mxu0 0
    %6797 = vmatpush1.bf16.msra.mxu0 0
    %6798 = vmatprep.subr.bf16.mxu0 0
    %6799 = vmatpush1.bf16.msra.mxu0 0
    %6800 = vmatprep.subr.bf16.mxu0 0
    %6801 = vmatpush1.bf16.msra.mxu0 0
    %6802 = vmatprep.subr.bf16.mxu0 0
    %6803 = vmatpush1.bf16.msra.mxu0 %v6783
    %6804 = vmatprep.subr.bf16.mxu0 0
    %6805 = vmatpush2.bf16.msra.mxu0 0
    %6806 = vmatprep.subr.bf16.mxu0 0
    %6807 = vmatpush2.bf16.msra.mxu0 0
    %6808 = vmatprep.subr.bf16.mxu0 0
    %6809 = vmatpush2.bf16.msra.mxu0 0
    %6810 = vmatprep.subr.bf16.mxu0 0
    %6811 = vmatpush2.bf16.msra.mxu0 0
    %6812 = vmatprep.subr.bf16.mxu0 0
    %6813 = vmatpush2.bf16.msra.mxu0 0
    %6814 = vmatprep.subr.bf16.mxu0 0
    %6815 = vmatpush2.bf16.msra.mxu0 0
    %6816 = vmatprep.subr.bf16.mxu0 0
    %6817 = vmatpush2.bf16.msra.mxu0 0
    %6818 = vmatprep.subr.bf16.mxu0 0
    %6819 = vmatpush2.bf16.msra.mxu0 0
    %6820 = vmatprep.mubr.bf16.mxu0 0
    %6821 = vmatmul.mubr.bf16.gmra.mxu0 %v6786
    %v6822 = vpop.f32.mrf.mxu0
    %v6823 = vadd.f32 0.0, %v6822
    %v6824 = vpop.f32.mrf.mxu0
    %v6825 = vpop.f32.mrf.mxu0
    %v6826 = vadd.f32 0.0, %v6825
    %v6827 = vpop.f32.mrf.mxu0
    %6828 = vdwg.mxu0
    %6829 = vrot.lane.b32.xlu0 %v1277, 64
    %v6830 = vpop.permute.xlu0 %6829
    %v6833 = vsel %vm2069, %v6399, 0
    %6835 = vmatprep.subr.bf16.mxu0 0
    %6836 = vmatpush1.bf16.msra.mxu0 0
    %6837 = vmatprep.subr.bf16.mxu0 0
    %6838 = vmatpush1.bf16.msra.mxu0 0
    %6839 = vmatprep.subr.bf16.mxu0 0
    %6840 = vmatpush1.bf16.msra.mxu0 0
    %6841 = vmatprep.subr.bf16.mxu0 0
    %6842 = vmatpush1.bf16.msra.mxu0 0
    %6843 = vmatprep.subr.bf16.mxu0 0
    %6844 = vmatpush1.bf16.msra.mxu0 0
    %6845 = vmatprep.subr.bf16.mxu0 0
    %6846 = vmatpush1.bf16.msra.mxu0 0
    %6847 = vmatprep.subr.bf16.mxu0 0
    %6848 = vmatpush1.bf16.msra.mxu0 0
    %6849 = vmatprep.subr.bf16.mxu0 0
    %6850 = vmatpush1.bf16.msra.mxu0 %v6830
    %6851 = vmatprep.subr.bf16.mxu0 0
    %6852 = vmatpush2.bf16.msra.mxu0 0
    %6853 = vmatprep.subr.bf16.mxu0 0
    %6854 = vmatpush2.bf16.msra.mxu0 0
    %6855 = vmatprep.subr.bf16.mxu0 0
    %6856 = vmatpush2.bf16.msra.mxu0 0
    %6857 = vmatprep.subr.bf16.mxu0 0
    %6858 = vmatpush2.bf16.msra.mxu0 0
    %6859 = vmatprep.subr.bf16.mxu0 0
    %6860 = vmatpush2.bf16.msra.mxu0 0
    %6861 = vmatprep.subr.bf16.mxu0 0
    %6862 = vmatpush2.bf16.msra.mxu0 0
    %6863 = vmatprep.subr.bf16.mxu0 0
    %6864 = vmatpush2.bf16.msra.mxu0 0
    %6865 = vmatprep.subr.bf16.mxu0 0
    %6866 = vmatpush2.bf16.msra.mxu0 0
    %6867 = vmatprep.mubr.bf16.mxu0 0
    %6868 = vmatmul.mubr.bf16.gmra.mxu0 %v6833
    %v6869 = vpop.f32.mrf.mxu0
    %v6870 = vadd.f32 0.0, %v6869
    %v6871 = vpop.f32.mrf.mxu0
    %v6872 = vpop.f32.mrf.mxu0
    %v6873 = vadd.f32 0.0, %v6872
    %v6874 = vpop.f32.mrf.mxu0
    %6875 = vdwg.mxu0
    %6876 = vrot.lane.b32.xlu0 %v1278, 64
    %v6877 = vpop.permute.xlu0 %6876
    %v6880 = vsel %vm2069, %v6400, 0
    %6882 = vmatprep.subr.bf16.mxu0 0
    %6883 = vmatpush1.bf16.msra.mxu0 0
    %6884 = vmatprep.subr.bf16.mxu0 0
    %6885 = vmatpush1.bf16.msra.mxu0 0
    %6886 = vmatprep.subr.bf16.mxu0 0
    %6887 = vmatpush1.bf16.msra.mxu0 0
    %6888 = vmatprep.subr.bf16.mxu0 0
    %6889 = vmatpush1.bf16.msra.mxu0 0
    %6890 = vmatprep.subr.bf16.mxu0 0
    %6891 = vmatpush1.bf16.msra.mxu0 0
    %6892 = vmatprep.subr.bf16.mxu0 0
    %6893 = vmatpush1.bf16.msra.mxu0 0
    %6894 = vmatprep.subr.bf16.mxu0 0
    %6895 = vmatpush1.bf16.msra.mxu0 0
    %6896 = vmatprep.subr.bf16.mxu0 0
    %6897 = vmatpush1.bf16.msra.mxu0 %v6877
    %6898 = vmatprep.subr.bf16.mxu0 0
    %6899 = vmatpush2.bf16.msra.mxu0 0
    %6900 = vmatprep.subr.bf16.mxu0 0
    %6901 = vmatpush2.bf16.msra.mxu0 0
    %6902 = vmatprep.subr.bf16.mxu0 0
    %6903 = vmatpush2.bf16.msra.mxu0 0
    %6904 = vmatprep.subr.bf16.mxu0 0
    %6905 = vmatpush2.bf16.msra.mxu0 0
    %6906 = vmatprep.subr.bf16.mxu0 0
    %6907 = vmatpush2.bf16.msra.mxu0 0
    %6908 = vmatprep.subr.bf16.mxu0 0
    %6909 = vmatpush2.bf16.msra.mxu0 0
    %6910 = vmatprep.subr.bf16.mxu0 0
    %6911 = vmatpush2.bf16.msra.mxu0 0
    %6912 = vmatprep.subr.bf16.mxu0 0
    %6913 = vmatpush2.bf16.msra.mxu0 0
    %6914 = vmatprep.mubr.bf16.mxu0 0
    %6915 = vmatmul.mubr.bf16.gmra.mxu0 %v6880
    %v6916 = vpop.f32.mrf.mxu0
    %v6917 = vadd.f32 0.0, %v6916
    %v6918 = vpop.f32.mrf.mxu0
    %v6919 = vpop.f32.mrf.mxu0
    %v6920 = vadd.f32 0.0, %v6919
    %v6921 = vpop.f32.mrf.mxu0
    %6922 = vdwg.mxu0
    %6923 = vrot.lane.b32.xlu0 %v1279, 64
    %v6924 = vpop.permute.xlu0 %6923
    %v6927 = vsel %vm2069, %v6401, 0
    %6929 = vmatprep.subr.bf16.mxu0 0
    %6930 = vmatpush1.bf16.msra.mxu0 0
    %6931 = vmatprep.subr.bf16.mxu0 0
    %6932 = vmatpush1.bf16.msra.mxu0 0
    %6933 = vmatprep.subr.bf16.mxu0 0
    %6934 = vmatpush1.bf16.msra.mxu0 0
    %6935 = vmatprep.subr.bf16.mxu0 0
    %6936 = vmatpush1.bf16.msra.mxu0 0
    %6937 = vmatprep.subr.bf16.mxu0 0
    %6938 = vmatpush1.bf16.msra.mxu0 0
    %6939 = vmatprep.subr.bf16.mxu0 0
    %6940 = vmatpush1.bf16.msra.mxu0 0
    %6941 = vmatprep.subr.bf16.mxu0 0
    %6942 = vmatpush1.bf16.msra.mxu0 0
    %6943 = vmatprep.subr.bf16.mxu0 0
    %6944 = vmatpush1.bf16.msra.mxu0 %v6924
    %6945 = vmatprep.subr.bf16.mxu0 0
    %6946 = vmatpush2.bf16.msra.mxu0 0
    %6947 = vmatprep.subr.bf16.mxu0 0
    %6948 = vmatpush2.bf16.msra.mxu0 0
    %6949 = vmatprep.subr.bf16.mxu0 0
    %6950 = vmatpush2.bf16.msra.mxu0 0
    %6951 = vmatprep.subr.bf16.mxu0 0
    %6952 = vmatpush2.bf16.msra.mxu0 0
    %6953 = vmatprep.subr.bf16.mxu0 0
    %6954 = vmatpush2.bf16.msra.mxu0 0
    %6955 = vmatprep.subr.bf16.mxu0 0
    %6956 = vmatpush2.bf16.msra.mxu0 0
    %6957 = vmatprep.subr.bf16.mxu0 0
    %6958 = vmatpush2.bf16.msra.mxu0 0
    %6959 = vmatprep.subr.bf16.mxu0 0
    %6960 = vmatpush2.bf16.msra.mxu0 0
    %6961 = vmatprep.mubr.bf16.mxu0 0
    %6962 = vmatmul.mubr.bf16.gmra.mxu0 %v6927
    %v6963 = vpop.f32.mrf.mxu0
    %v6964 = vadd.f32 0.0, %v6963
    %v6965 = vpop.f32.mrf.mxu0
    %v6966 = vpop.f32.mrf.mxu0
    %v6967 = vadd.f32 0.0, %v6966
    %v6968 = vpop.f32.mrf.mxu0
    %6969 = vdwg.mxu0
    %6970 = vrot.lane.b32.xlu0 %v1280, 64
    %v6971 = vpop.permute.xlu0 %6970
    %v6974 = vsel %vm2069, %v6402, 0
    %6976 = vmatprep.subr.bf16.mxu0 0
    %6977 = vmatpush1.bf16.msra.mxu0 0
    %6978 = vmatprep.subr.bf16.mxu0 0
    %6979 = vmatpush1.bf16.msra.mxu0 0
    %6980 = vmatprep.subr.bf16.mxu0 0
    %6981 = vmatpush1.bf16.msra.mxu0 0
    %6982 = vmatprep.subr.bf16.mxu0 0
    %6983 = vmatpush1.bf16.msra.mxu0 0
    %6984 = vmatprep.subr.bf16.mxu0 0
    %6985 = vmatpush1.bf16.msra.mxu0 0
    %6986 = vmatprep.subr.bf16.mxu0 0
    %6987 = vmatpush1.bf16.msra.mxu0 0
    %6988 = vmatprep.subr.bf16.mxu0 0
    %6989 = vmatpush1.bf16.msra.mxu0 0
    %6990 = vmatprep.subr.bf16.mxu0 0
    %6991 = vmatpush1.bf16.msra.mxu0 %v6971
    %6992 = vmatprep.subr.bf16.mxu0 0
    %6993 = vmatpush2.bf16.msra.mxu0 0
    %6994 = vmatprep.subr.bf16.mxu0 0
    %6995 = vmatpush2.bf16.msra.mxu0 0
    %6996 = vmatprep.subr.bf16.mxu0 0
    %6997 = vmatpush2.bf16.msra.mxu0 0
    %6998 = vmatprep.subr.bf16.mxu0 0
    %6999 = vmatpush2.bf16.msra.mxu0 0
    %7000 = vmatprep.subr.bf16.mxu0 0
    %7001 = vmatpush2.bf16.msra.mxu0 0
    %7002 = vmatprep.subr.bf16.mxu0 0
    %7003 = vmatpush2.bf16.msra.mxu0 0
    %7004 = vmatprep.subr.bf16.mxu0 0
    %7005 = vmatpush2.bf16.msra.mxu0 0
    %7006 = vmatprep.subr.bf16.mxu0 0
    %7007 = vmatpush2.bf16.msra.mxu0 0
    %7008 = vmatprep.mubr.bf16.mxu0 0
    %7009 = vmatmul.mubr.bf16.gmra.mxu0 %v6974
    %v7010 = vpop.f32.mrf.mxu0
    %v7011 = vadd.f32 0.0, %v7010
    %v7012 = vpop.f32.mrf.mxu0
    %v7013 = vpop.f32.mrf.mxu0
    %v7014 = vadd.f32 0.0, %v7013
    %v7015 = vpop.f32.mrf.mxu0
    %7016 = vdwg.mxu0
    %7017 = vrot.lane.b32.xlu0 %v1281, 64
    %v7018 = vpop.permute.xlu0 %7017
    %v7021 = vsel %vm2069, %v6403, 0
    %7023 = vmatprep.subr.bf16.mxu0 0
    %7024 = vmatpush1.bf16.msra.mxu0 0
    %7025 = vmatprep.subr.bf16.mxu0 0
    %7026 = vmatpush1.bf16.msra.mxu0 0
    %7027 = vmatprep.subr.bf16.mxu0 0
    %7028 = vmatpush1.bf16.msra.mxu0 0
    %7029 = vmatprep.subr.bf16.mxu0 0
    %7030 = vmatpush1.bf16.msra.mxu0 0
    %7031 = vmatprep.subr.bf16.mxu0 0
    %7032 = vmatpush1.bf16.msra.mxu0 0
    %7033 = vmatprep.subr.bf16.mxu0 0
    %7034 = vmatpush1.bf16.msra.mxu0 0
    %7035 = vmatprep.subr.bf16.mxu0 0
    %7036 = vmatpush1.bf16.msra.mxu0 0
    %7037 = vmatprep.subr.bf16.mxu0 0
    %7038 = vmatpush1.bf16.msra.mxu0 %v7018
    %7039 = vmatprep.subr.bf16.mxu0 0
    %7040 = vmatpush2.bf16.msra.mxu0 0
    %7041 = vmatprep.subr.bf16.mxu0 0
    %7042 = vmatpush2.bf16.msra.mxu0 0
    %7043 = vmatprep.subr.bf16.mxu0 0
    %7044 = vmatpush2.bf16.msra.mxu0 0
    %7045 = vmatprep.subr.bf16.mxu0 0
    %7046 = vmatpush2.bf16.msra.mxu0 0
    %7047 = vmatprep.subr.bf16.mxu0 0
    %7048 = vmatpush2.bf16.msra.mxu0 0
    %7049 = vmatprep.subr.bf16.mxu0 0
    %7050 = vmatpush2.bf16.msra.mxu0 0
    %7051 = vmatprep.subr.bf16.mxu0 0
    %7052 = vmatpush2.bf16.msra.mxu0 0
    %7053 = vmatprep.subr.bf16.mxu0 0
    %7054 = vmatpush2.bf16.msra.mxu0 0
    %7055 = vmatprep.mubr.bf16.mxu0 0
    %7056 = vmatmul.mubr.bf16.gmra.mxu0 %v7021
    %v7057 = vpop.f32.mrf.mxu0
    %v7058 = vadd.f32 0.0, %v7057
    %v7059 = vpop.f32.mrf.mxu0
    %v7060 = vpop.f32.mrf.mxu0
    %v7061 = vadd.f32 0.0, %v7060
    %v7062 = vpop.f32.mrf.mxu0
    %7063 = vdwg.mxu0
    %7064 = vrot.lane.b32.xlu0 %v1282, 64
    %v7065 = vpop.permute.xlu0 %7064
    %v7068 = vsel %vm2069, %v6404, 0
    %7070 = vmatprep.subr.bf16.mxu0 0
    %7071 = vmatpush1.bf16.msra.mxu0 0
    %7072 = vmatprep.subr.bf16.mxu0 0
    %7073 = vmatpush1.bf16.msra.mxu0 0
    %7074 = vmatprep.subr.bf16.mxu0 0
    %7075 = vmatpush1.bf16.msra.mxu0 0
    %7076 = vmatprep.subr.bf16.mxu0 0
    %7077 = vmatpush1.bf16.msra.mxu0 0
    %7078 = vmatprep.subr.bf16.mxu0 0
    %7079 = vmatpush1.bf16.msra.mxu0 0
    %7080 = vmatprep.subr.bf16.mxu0 0
    %7081 = vmatpush1.bf16.msra.mxu0 0
    %7082 = vmatprep.subr.bf16.mxu0 0
    %7083 = vmatpush1.bf16.msra.mxu0 0
    %7084 = vmatprep.subr.bf16.mxu0 0
    %7085 = vmatpush1.bf16.msra.mxu0 %v7065
    %7086 = vmatprep.subr.bf16.mxu0 0
    %7087 = vmatpush2.bf16.msra.mxu0 0
    %7088 = vmatprep.subr.bf16.mxu0 0
    %7089 = vmatpush2.bf16.msra.mxu0 0
    %7090 = vmatprep.subr.bf16.mxu0 0
    %7091 = vmatpush2.bf16.msra.mxu0 0
    %7092 = vmatprep.subr.bf16.mxu0 0
    %7093 = vmatpush2.bf16.msra.mxu0 0
    %7094 = vmatprep.subr.bf16.mxu0 0
    %7095 = vmatpush2.bf16.msra.mxu0 0
    %7096 = vmatprep.subr.bf16.mxu0 0
    %7097 = vmatpush2.bf16.msra.mxu0 0
    %7098 = vmatprep.subr.bf16.mxu0 0
    %7099 = vmatpush2.bf16.msra.mxu0 0
    %7100 = vmatprep.subr.bf16.mxu0 0
    %7101 = vmatpush2.bf16.msra.mxu0 0
    %7102 = vmatprep.mubr.bf16.mxu0 0
    %7103 = vmatmul.mubr.bf16.gmra.mxu0 %v7068
    %v7104 = vpop.f32.mrf.mxu0
    %v7105 = vadd.f32 0.0, %v7104
    %v7106 = vpop.f32.mrf.mxu0
    %v7107 = vpop.f32.mrf.mxu0
    %v7108 = vadd.f32 0.0, %v7107
    %v7109 = vpop.f32.mrf.mxu0
    %7110 = vdwg.mxu0
    %7111 = vrot.lane.b32.xlu0 %v1283, 64
    %v7112 = vpop.permute.xlu0 %7111
    %v7115 = vsel %vm2069, %v6405, 0
    %7117 = vmatprep.subr.bf16.mxu0 0
    %7118 = vmatpush1.bf16.msra.mxu0 0
    %7119 = vmatprep.subr.bf16.mxu0 0
    %7120 = vmatpush1.bf16.msra.mxu0 0
    %7121 = vmatprep.subr.bf16.mxu0 0
    %7122 = vmatpush1.bf16.msra.mxu0 0
    %7123 = vmatprep.subr.bf16.mxu0 0
    %7124 = vmatpush1.bf16.msra.mxu0 0
    %7125 = vmatprep.subr.bf16.mxu0 0
    %7126 = vmatpush1.bf16.msra.mxu0 0
    %7127 = vmatprep.subr.bf16.mxu0 0
    %7128 = vmatpush1.bf16.msra.mxu0 0
    %7129 = vmatprep.subr.bf16.mxu0 0
    %7130 = vmatpush1.bf16.msra.mxu0 0
    %7131 = vmatprep.subr.bf16.mxu0 0
    %7132 = vmatpush1.bf16.msra.mxu0 %v7112
    %7133 = vmatprep.subr.bf16.mxu0 0
    %7134 = vmatpush2.bf16.msra.mxu0 0
    %7135 = vmatprep.subr.bf16.mxu0 0
    %7136 = vmatpush2.bf16.msra.mxu0 0
    %7137 = vmatprep.subr.bf16.mxu0 0
    %7138 = vmatpush2.bf16.msra.mxu0 0
    %7139 = vmatprep.subr.bf16.mxu0 0
    %7140 = vmatpush2.bf16.msra.mxu0 0
    %7141 = vmatprep.subr.bf16.mxu0 0
    %7142 = vmatpush2.bf16.msra.mxu0 0
    %7143 = vmatprep.subr.bf16.mxu0 0
    %7144 = vmatpush2.bf16.msra.mxu0 0
    %7145 = vmatprep.subr.bf16.mxu0 0
    %7146 = vmatpush2.bf16.msra.mxu0 0
    %7147 = vmatprep.subr.bf16.mxu0 0
    %7148 = vmatpush2.bf16.msra.mxu0 0
    %7149 = vmatprep.mubr.bf16.mxu0 0
    %7150 = vmatmul.mubr.bf16.gmra.mxu0 %v7115
    %v7151 = vpop.f32.mrf.mxu0
    %v7152 = vadd.f32 0.0, %v7151
    %v7153 = vpop.f32.mrf.mxu0
    %v7154 = vpop.f32.mrf.mxu0
    %v7155 = vadd.f32 0.0, %v7154
    %v7156 = vpop.f32.mrf.mxu0
    %7157 = vdwg.mxu0
    %v7158 = vpack.c.bf16 %v6450, %v6447
    %v7159 = vpack.c.bf16 %v6497, %v6494
    %v7160 = vpack.c.bf16 %v6544, %v6541
    %v7161 = vpack.c.bf16 %v6591, %v6588
    %v7162 = vpack.c.bf16 %v6638, %v6635
    %v7163 = vpack.c.bf16 %v6685, %v6682
    %v7164 = vpack.c.bf16 %v6732, %v6729
    %v7165 = vpack.c.bf16 %v6779, %v6776
    %v7166 = vpack.c.bf16 %v6826, %v6823
    %v7167 = vpack.c.bf16 %v6873, %v6870
    %v7168 = vpack.c.bf16 %v6920, %v6917
    %v7169 = vpack.c.bf16 %v6967, %v6964
    %v7170 = vpack.c.bf16 %v7014, %v7011
    %v7171 = vpack.c.bf16 %v7061, %v7058
    %v7172 = vpack.c.bf16 %v7108, %v7105
    %v7173 = vpack.c.bf16 %v7155, %v7152
    %7174 = vrot.lane.b32.xlu0 %v1236, 32
    %v7175 = vpop.permute.xlu0 %7174
    %7176 = vrot.lane.b32.xlu0 %v1252, 32
    %v7177 = vpop.permute.xlu0 %7176
    %v7179 = vsel %vm1284, %v7175, 0
    %v7182 = vsel %vm1284, %v7177, 0
    %7184 = vmatprep.subr.bf16.mxu0 0
    %7185 = vmatpush1.bf16.xpose.msra.mxu0 0
    %7186 = vmatprep.subr.bf16.mxu0 0
    %7187 = vmatpush1.bf16.xpose.msra.mxu0 0
    %7188 = vmatprep.subr.bf16.mxu0 0
    %7189 = vmatpush1.bf16.xpose.msra.mxu0 0
    %7190 = vmatprep.subr.bf16.mxu0 0
    %7191 = vmatpush1.bf16.xpose.msra.mxu0 0
    %7192 = vmatprep.subr.bf16.mxu0 0
    %7193 = vmatpush1.bf16.xpose.msra.mxu0 0
    %7194 = vmatprep.subr.bf16.mxu0 0
    %7195 = vmatpush1.bf16.xpose.msra.mxu0 0
    %7196 = vmatprep.subr.bf16.mxu0 0
    %7197 = vmatpush1.bf16.xpose.msra.mxu0 0
    %7198 = vmatprep.subr.bf16.mxu0 0
    %7199 = vmatpush1.bf16.xpose.msra.mxu0 %v7182
    %7200 = vmatprep.subr.bf16.mxu0 0
    %7201 = vmatpush2.bf16.xpose.msra.mxu0 0
    %7202 = vmatprep.subr.bf16.mxu0 0
    %7203 = vmatpush2.bf16.xpose.msra.mxu0 0
    %7204 = vmatprep.subr.bf16.mxu0 0
    %7205 = vmatpush2.bf16.xpose.msra.mxu0 0
    %7206 = vmatprep.subr.bf16.mxu0 0
    %7207 = vmatpush2.bf16.xpose.msra.mxu0 0
    %7208 = vmatprep.subr.bf16.mxu0 0
    %7209 = vmatpush2.bf16.xpose.msra.mxu0 0
    %7210 = vmatprep.subr.bf16.mxu0 0
    %7211 = vmatpush2.bf16.xpose.msra.mxu0 0
    %7212 = vmatprep.subr.bf16.mxu0 0
    %7213 = vmatpush2.bf16.xpose.msra.mxu0 0
    %7214 = vmatprep.subr.bf16.mxu0 0
    %7215 = vmatpush2.bf16.xpose.msra.mxu0 0
    %7216 = vmatprep.mubr.bf16.mxu0 0
    %7217 = vmatmul.mubr.bf16.gmra.mxu0 %v7179
    %v7218 = vpop.f32.mrf.mxu0
    %v7219 = vadd.f32 0.0, %v7218
    %v7220 = vpop.f32.mrf.mxu0
    %v7221 = vpop.f32.mrf.mxu0
    %v7222 = vadd.f32 0.0, %v7221
    %v7223 = vpop.f32.mrf.mxu0
    %7224 = vdwg.mxu0
    %7225 = vrot.lane.b32.xlu0 %v1237, 32
    %v7226 = vpop.permute.xlu0 %7225
    %7227 = vrot.lane.b32.xlu0 %v1253, 32
    %v7228 = vpop.permute.xlu0 %7227
    %v7230 = vsel %vm1284, %v7226, 0
    %v7233 = vsel %vm1284, %v7228, 0
    %7235 = vmatprep.subr.bf16.mxu0 0
    %7236 = vmatpush1.bf16.xpose.msra.mxu0 0
    %7237 = vmatprep.subr.bf16.mxu0 0
    %7238 = vmatpush1.bf16.xpose.msra.mxu0 0
    %7239 = vmatprep.subr.bf16.mxu0 0
    %7240 = vmatpush1.bf16.xpose.msra.mxu0 0
    %7241 = vmatprep.subr.bf16.mxu0 0
    %7242 = vmatpush1.bf16.xpose.msra.mxu0 0
    %7243 = vmatprep.subr.bf16.mxu0 0
    %7244 = vmatpush1.bf16.xpose.msra.mxu0 0
    %7245 = vmatprep.subr.bf16.mxu0 0
    %7246 = vmatpush1.bf16.xpose.msra.mxu0 0
    %7247 = vmatprep.subr.bf16.mxu0 0
    %7248 = vmatpush1.bf16.xpose.msra.mxu0 0
    %7249 = vmatprep.subr.bf16.mxu0 0
    %7250 = vmatpush1.bf16.xpose.msra.mxu0 %v7233
    %7251 = vmatprep.subr.bf16.mxu0 0
    %7252 = vmatpush2.bf16.xpose.msra.mxu0 0
    %7253 = vmatprep.subr.bf16.mxu0 0
    %7254 = vmatpush2.bf16.xpose.msra.mxu0 0
    %7255 = vmatprep.subr.bf16.mxu0 0
    %7256 = vmatpush2.bf16.xpose.msra.mxu0 0
    %7257 = vmatprep.subr.bf16.mxu0 0
    %7258 = vmatpush2.bf16.xpose.msra.mxu0 0
    %7259 = vmatprep.subr.bf16.mxu0 0
    %7260 = vmatpush2.bf16.xpose.msra.mxu0 0
    %7261 = vmatprep.subr.bf16.mxu0 0
    %7262 = vmatpush2.bf16.xpose.msra.mxu0 0
    %7263 = vmatprep.subr.bf16.mxu0 0
    %7264 = vmatpush2.bf16.xpose.msra.mxu0 0
    %7265 = vmatprep.subr.bf16.mxu0 0
    %7266 = vmatpush2.bf16.xpose.msra.mxu0 0
    %7267 = vmatprep.mubr.bf16.mxu0 0
    %7268 = vmatmul.mubr.bf16.gmra.mxu0 %v7230
    %v7269 = vpop.f32.mrf.mxu0
    %v7270 = vadd.f32 0.0, %v7269
    %v7271 = vpop.f32.mrf.mxu0
    %v7272 = vpop.f32.mrf.mxu0
    %v7273 = vadd.f32 0.0, %v7272
    %v7274 = vpop.f32.mrf.mxu0
    %7275 = vdwg.mxu0
    %7276 = vrot.lane.b32.xlu0 %v1238, 32
    %v7277 = vpop.permute.xlu0 %7276
    %7278 = vrot.lane.b32.xlu0 %v1254, 32
    %v7279 = vpop.permute.xlu0 %7278
    %v7281 = vsel %vm1284, %v7277, 0
    %v7284 = vsel %vm1284, %v7279, 0
    %7286 = vmatprep.subr.bf16.mxu0 0
    %7287 = vmatpush1.bf16.xpose.msra.mxu0 0
    %7288 = vmatprep.subr.bf16.mxu0 0
    %7289 = vmatpush1.bf16.xpose.msra.mxu0 0
    %7290 = vmatprep.subr.bf16.mxu0 0
    %7291 = vmatpush1.bf16.xpose.msra.mxu0 0
    %7292 = vmatprep.subr.bf16.mxu0 0
    %7293 = vmatpush1.bf16.xpose.msra.mxu0 0
    %7294 = vmatprep.subr.bf16.mxu0 0
    %7295 = vmatpush1.bf16.xpose.msra.mxu0 0
    %7296 = vmatprep.subr.bf16.mxu0 0
    %7297 = vmatpush1.bf16.xpose.msra.mxu0 0
    %7298 = vmatprep.subr.bf16.mxu0 0
    %7299 = vmatpush1.bf16.xpose.msra.mxu0 0
    %7300 = vmatprep.subr.bf16.mxu0 0
    %7301 = vmatpush1.bf16.xpose.msra.mxu0 %v7284
    %7302 = vmatprep.subr.bf16.mxu0 0
    %7303 = vmatpush2.bf16.xpose.msra.mxu0 0
    %7304 = vmatprep.subr.bf16.mxu0 0
    %7305 = vmatpush2.bf16.xpose.msra.mxu0 0
    %7306 = vmatprep.subr.bf16.mxu0 0
    %7307 = vmatpush2.bf16.xpose.msra.mxu0 0
    %7308 = vmatprep.subr.bf16.mxu0 0
    %7309 = vmatpush2.bf16.xpose.msra.mxu0 0
    %7310 = vmatprep.subr.bf16.mxu0 0
    %7311 = vmatpush2.bf16.xpose.msra.mxu0 0
    %7312 = vmatprep.subr.bf16.mxu0 0
    %7313 = vmatpush2.bf16.xpose.msra.mxu0 0
    %7314 = vmatprep.subr.bf16.mxu0 0
    %7315 = vmatpush2.bf16.xpose.msra.mxu0 0
    %7316 = vmatprep.subr.bf16.mxu0 0
    %7317 = vmatpush2.bf16.xpose.msra.mxu0 0
    %7318 = vmatprep.mubr.bf16.mxu0 0
    %7319 = vmatmul.mubr.bf16.gmra.mxu0 %v7281
    %v7320 = vpop.f32.mrf.mxu0
    %v7321 = vadd.f32 0.0, %v7320
    %v7322 = vpop.f32.mrf.mxu0
    %v7323 = vpop.f32.mrf.mxu0
    %v7324 = vadd.f32 0.0, %v7323
    %v7325 = vpop.f32.mrf.mxu0
    %7326 = vdwg.mxu0
    %7327 = vrot.lane.b32.xlu0 %v1239, 32
    %v7328 = vpop.permute.xlu0 %7327
    %7329 = vrot.lane.b32.xlu0 %v1255, 32
    %v7330 = vpop.permute.xlu0 %7329
    %v7332 = vsel %vm1284, %v7328, 0
    %v7335 = vsel %vm1284, %v7330, 0
    %7337 = vmatprep.subr.bf16.mxu0 0
    %7338 = vmatpush1.bf16.xpose.msra.mxu0 0
    %7339 = vmatprep.subr.bf16.mxu0 0
    %7340 = vmatpush1.bf16.xpose.msra.mxu0 0
    %7341 = vmatprep.subr.bf16.mxu0 0
    %7342 = vmatpush1.bf16.xpose.msra.mxu0 0
    %7343 = vmatprep.subr.bf16.mxu0 0
    %7344 = vmatpush1.bf16.xpose.msra.mxu0 0
    %7345 = vmatprep.subr.bf16.mxu0 0
    %7346 = vmatpush1.bf16.xpose.msra.mxu0 0
    %7347 = vmatprep.subr.bf16.mxu0 0
    %7348 = vmatpush1.bf16.xpose.msra.mxu0 0
    %7349 = vmatprep.subr.bf16.mxu0 0
    %7350 = vmatpush1.bf16.xpose.msra.mxu0 0
    %7351 = vmatprep.subr.bf16.mxu0 0
    %7352 = vmatpush1.bf16.xpose.msra.mxu0 %v7335
    %7353 = vmatprep.subr.bf16.mxu0 0
    %7354 = vmatpush2.bf16.xpose.msra.mxu0 0
    %7355 = vmatprep.subr.bf16.mxu0 0
    %7356 = vmatpush2.bf16.xpose.msra.mxu0 0
    %7357 = vmatprep.subr.bf16.mxu0 0
    %7358 = vmatpush2.bf16.xpose.msra.mxu0 0
    %7359 = vmatprep.subr.bf16.mxu0 0
    %7360 = vmatpush2.bf16.xpose.msra.mxu0 0
    %7361 = vmatprep.subr.bf16.mxu0 0
    %7362 = vmatpush2.bf16.xpose.msra.mxu0 0
    %7363 = vmatprep.subr.bf16.mxu0 0
    %7364 = vmatpush2.bf16.xpose.msra.mxu0 0
    %7365 = vmatprep.subr.bf16.mxu0 0
    %7366 = vmatpush2.bf16.xpose.msra.mxu0 0
    %7367 = vmatprep.subr.bf16.mxu0 0
    %7368 = vmatpush2.bf16.xpose.msra.mxu0 0
    %7369 = vmatprep.mubr.bf16.mxu0 0
    %7370 = vmatmul.mubr.bf16.gmra.mxu0 %v7332
    %v7371 = vpop.f32.mrf.mxu0
    %v7372 = vadd.f32 0.0, %v7371
    %v7373 = vpop.f32.mrf.mxu0
    %v7374 = vpop.f32.mrf.mxu0
    %v7375 = vadd.f32 0.0, %v7374
    %v7376 = vpop.f32.mrf.mxu0
    %7377 = vdwg.mxu0
    %7378 = vrot.lane.b32.xlu0 %v1240, 32
    %v7379 = vpop.permute.xlu0 %7378
    %7380 = vrot.lane.b32.xlu0 %v1256, 32
    %v7381 = vpop.permute.xlu0 %7380
    %v7383 = vsel %vm1284, %v7379, 0
    %v7386 = vsel %vm1284, %v7381, 0
    %7388 = vmatprep.subr.bf16.mxu0 0
    %7389 = vmatpush1.bf16.xpose.msra.mxu0 0
    %7390 = vmatprep.subr.bf16.mxu0 0
    %7391 = vmatpush1.bf16.xpose.msra.mxu0 0
    %7392 = vmatprep.subr.bf16.mxu0 0
    %7393 = vmatpush1.bf16.xpose.msra.mxu0 0
    %7394 = vmatprep.subr.bf16.mxu0 0
    %7395 = vmatpush1.bf16.xpose.msra.mxu0 0
    %7396 = vmatprep.subr.bf16.mxu0 0
    %7397 = vmatpush1.bf16.xpose.msra.mxu0 0
    %7398 = vmatprep.subr.bf16.mxu0 0
    %7399 = vmatpush1.bf16.xpose.msra.mxu0 0
    %7400 = vmatprep.subr.bf16.mxu0 0
    %7401 = vmatpush1.bf16.xpose.msra.mxu0 0
    %7402 = vmatprep.subr.bf16.mxu0 0
    %7403 = vmatpush1.bf16.xpose.msra.mxu0 %v7386
    %7404 = vmatprep.subr.bf16.mxu0 0
    %7405 = vmatpush2.bf16.xpose.msra.mxu0 0
    %7406 = vmatprep.subr.bf16.mxu0 0
    %7407 = vmatpush2.bf16.xpose.msra.mxu0 0
    %7408 = vmatprep.subr.bf16.mxu0 0
    %7409 = vmatpush2.bf16.xpose.msra.mxu0 0
    %7410 = vmatprep.subr.bf16.mxu0 0
    %7411 = vmatpush2.bf16.xpose.msra.mxu0 0
    %7412 = vmatprep.subr.bf16.mxu0 0
    %7413 = vmatpush2.bf16.xpose.msra.mxu0 0
    %7414 = vmatprep.subr.bf16.mxu0 0
    %7415 = vmatpush2.bf16.xpose.msra.mxu0 0
    %7416 = vmatprep.subr.bf16.mxu0 0
    %7417 = vmatpush2.bf16.xpose.msra.mxu0 0
    %7418 = vmatprep.subr.bf16.mxu0 0
    %7419 = vmatpush2.bf16.xpose.msra.mxu0 0
    %7420 = vmatprep.mubr.bf16.mxu0 0
    %7421 = vmatmul.mubr.bf16.gmra.mxu0 %v7383
    %v7422 = vpop.f32.mrf.mxu0
    %v7423 = vadd.f32 0.0, %v7422
    %v7424 = vpop.f32.mrf.mxu0
    %v7425 = vpop.f32.mrf.mxu0
    %v7426 = vadd.f32 0.0, %v7425
    %v7427 = vpop.f32.mrf.mxu0
    %7428 = vdwg.mxu0
    %7429 = vrot.lane.b32.xlu0 %v1241, 32
    %v7430 = vpop.permute.xlu0 %7429
    %7431 = vrot.lane.b32.xlu0 %v1257, 32
    %v7432 = vpop.permute.xlu0 %7431
    %v7434 = vsel %vm1284, %v7430, 0
    %v7437 = vsel %vm1284, %v7432, 0
    %7439 = vmatprep.subr.bf16.mxu0 0
    %7440 = vmatpush1.bf16.xpose.msra.mxu0 0
    %7441 = vmatprep.subr.bf16.mxu0 0
    %7442 = vmatpush1.bf16.xpose.msra.mxu0 0
    %7443 = vmatprep.subr.bf16.mxu0 0
    %7444 = vmatpush1.bf16.xpose.msra.mxu0 0
    %7445 = vmatprep.subr.bf16.mxu0 0
    %7446 = vmatpush1.bf16.xpose.msra.mxu0 0
    %7447 = vmatprep.subr.bf16.mxu0 0
    %7448 = vmatpush1.bf16.xpose.msra.mxu0 0
    %7449 = vmatprep.subr.bf16.mxu0 0
    %7450 = vmatpush1.bf16.xpose.msra.mxu0 0
    %7451 = vmatprep.subr.bf16.mxu0 0
    %7452 = vmatpush1.bf16.xpose.msra.mxu0 0
    %7453 = vmatprep.subr.bf16.mxu0 0
    %7454 = vmatpush1.bf16.xpose.msra.mxu0 %v7437
    %7455 = vmatprep.subr.bf16.mxu0 0
    %7456 = vmatpush2.bf16.xpose.msra.mxu0 0
    %7457 = vmatprep.subr.bf16.mxu0 0
    %7458 = vmatpush2.bf16.xpose.msra.mxu0 0
    %7459 = vmatprep.subr.bf16.mxu0 0
    %7460 = vmatpush2.bf16.xpose.msra.mxu0 0
    %7461 = vmatprep.subr.bf16.mxu0 0
    %7462 = vmatpush2.bf16.xpose.msra.mxu0 0
    %7463 = vmatprep.subr.bf16.mxu0 0
    %7464 = vmatpush2.bf16.xpose.msra.mxu0 0
    %7465 = vmatprep.subr.bf16.mxu0 0
    %7466 = vmatpush2.bf16.xpose.msra.mxu0 0
    %7467 = vmatprep.subr.bf16.mxu0 0
    %7468 = vmatpush2.bf16.xpose.msra.mxu0 0
    %7469 = vmatprep.subr.bf16.mxu0 0
    %7470 = vmatpush2.bf16.xpose.msra.mxu0 0
    %7471 = vmatprep.mubr.bf16.mxu0 0
    %7472 = vmatmul.mubr.bf16.gmra.mxu0 %v7434
    %v7473 = vpop.f32.mrf.mxu0
    %v7474 = vadd.f32 0.0, %v7473
    %v7475 = vpop.f32.mrf.mxu0
    %v7476 = vpop.f32.mrf.mxu0
    %v7477 = vadd.f32 0.0, %v7476
    %v7478 = vpop.f32.mrf.mxu0
    %7479 = vdwg.mxu0
    %7480 = vrot.lane.b32.xlu0 %v1242, 32
    %v7481 = vpop.permute.xlu0 %7480
    %7482 = vrot.lane.b32.xlu0 %v1258, 32
    %v7483 = vpop.permute.xlu0 %7482
    %v7485 = vsel %vm1284, %v7481, 0
    %v7488 = vsel %vm1284, %v7483, 0
    %7490 = vmatprep.subr.bf16.mxu0 0
    %7491 = vmatpush1.bf16.xpose.msra.mxu0 0
    %7492 = vmatprep.subr.bf16.mxu0 0
    %7493 = vmatpush1.bf16.xpose.msra.mxu0 0
    %7494 = vmatprep.subr.bf16.mxu0 0
    %7495 = vmatpush1.bf16.xpose.msra.mxu0 0
    %7496 = vmatprep.subr.bf16.mxu0 0
    %7497 = vmatpush1.bf16.xpose.msra.mxu0 0
    %7498 = vmatprep.subr.bf16.mxu0 0
    %7499 = vmatpush1.bf16.xpose.msra.mxu0 0
    %7500 = vmatprep.subr.bf16.mxu0 0
    %7501 = vmatpush1.bf16.xpose.msra.mxu0 0
    %7502 = vmatprep.subr.bf16.mxu0 0
    %7503 = vmatpush1.bf16.xpose.msra.mxu0 0
    %7504 = vmatprep.subr.bf16.mxu0 0
    %7505 = vmatpush1.bf16.xpose.msra.mxu0 %v7488
    %7506 = vmatprep.subr.bf16.mxu0 0
    %7507 = vmatpush2.bf16.xpose.msra.mxu0 0
    %7508 = vmatprep.subr.bf16.mxu0 0
    %7509 = vmatpush2.bf16.xpose.msra.mxu0 0
    %7510 = vmatprep.subr.bf16.mxu0 0
    %7511 = vmatpush2.bf16.xpose.msra.mxu0 0
    %7512 = vmatprep.subr.bf16.mxu0 0
    %7513 = vmatpush2.bf16.xpose.msra.mxu0 0
    %7514 = vmatprep.subr.bf16.mxu0 0
    %7515 = vmatpush2.bf16.xpose.msra.mxu0 0
    %7516 = vmatprep.subr.bf16.mxu0 0
    %7517 = vmatpush2.bf16.xpose.msra.mxu0 0
    %7518 = vmatprep.subr.bf16.mxu0 0
    %7519 = vmatpush2.bf16.xpose.msra.mxu0 0
    %7520 = vmatprep.subr.bf16.mxu0 0
    %7521 = vmatpush2.bf16.xpose.msra.mxu0 0
    %7522 = vmatprep.mubr.bf16.mxu0 0
    %7523 = vmatmul.mubr.bf16.gmra.mxu0 %v7485
    %v7524 = vpop.f32.mrf.mxu0
    %v7525 = vadd.f32 0.0, %v7524
    %v7526 = vpop.f32.mrf.mxu0
    %v7527 = vpop.f32.mrf.mxu0
    %v7528 = vadd.f32 0.0, %v7527
    %v7529 = vpop.f32.mrf.mxu0
    %7530 = vdwg.mxu0
    %7531 = vrot.lane.b32.xlu0 %v1243, 32
    %v7532 = vpop.permute.xlu0 %7531
    %7533 = vrot.lane.b32.xlu0 %v1259, 32
    %v7534 = vpop.permute.xlu0 %7533
    %v7536 = vsel %vm1284, %v7532, 0
    %v7539 = vsel %vm1284, %v7534, 0
    %7541 = vmatprep.subr.bf16.mxu0 0
    %7542 = vmatpush1.bf16.xpose.msra.mxu0 0
    %7543 = vmatprep.subr.bf16.mxu0 0
    %7544 = vmatpush1.bf16.xpose.msra.mxu0 0
    %7545 = vmatprep.subr.bf16.mxu0 0
    %7546 = vmatpush1.bf16.xpose.msra.mxu0 0
    %7547 = vmatprep.subr.bf16.mxu0 0
    %7548 = vmatpush1.bf16.xpose.msra.mxu0 0
    %7549 = vmatprep.subr.bf16.mxu0 0
    %7550 = vmatpush1.bf16.xpose.msra.mxu0 0
    %7551 = vmatprep.subr.bf16.mxu0 0
    %7552 = vmatpush1.bf16.xpose.msra.mxu0 0
    %7553 = vmatprep.subr.bf16.mxu0 0
    %7554 = vmatpush1.bf16.xpose.msra.mxu0 0
    %7555 = vmatprep.subr.bf16.mxu0 0
    %7556 = vmatpush1.bf16.xpose.msra.mxu0 %v7539
    %7557 = vmatprep.subr.bf16.mxu0 0
    %7558 = vmatpush2.bf16.xpose.msra.mxu0 0
    %7559 = vmatprep.subr.bf16.mxu0 0
    %7560 = vmatpush2.bf16.xpose.msra.mxu0 0
    %7561 = vmatprep.subr.bf16.mxu0 0
    %7562 = vmatpush2.bf16.xpose.msra.mxu0 0
    %7563 = vmatprep.subr.bf16.mxu0 0
    %7564 = vmatpush2.bf16.xpose.msra.mxu0 0
    %7565 = vmatprep.subr.bf16.mxu0 0
    %7566 = vmatpush2.bf16.xpose.msra.mxu0 0
    %7567 = vmatprep.subr.bf16.mxu0 0
    %7568 = vmatpush2.bf16.xpose.msra.mxu0 0
    %7569 = vmatprep.subr.bf16.mxu0 0
    %7570 = vmatpush2.bf16.xpose.msra.mxu0 0
    %7571 = vmatprep.subr.bf16.mxu0 0
    %7572 = vmatpush2.bf16.xpose.msra.mxu0 0
    %7573 = vmatprep.mubr.bf16.mxu0 0
    %7574 = vmatmul.mubr.bf16.gmra.mxu0 %v7536
    %v7575 = vpop.f32.mrf.mxu0
    %v7576 = vadd.f32 0.0, %v7575
    %v7577 = vpop.f32.mrf.mxu0
    %v7578 = vpop.f32.mrf.mxu0
    %v7579 = vadd.f32 0.0, %v7578
    %v7580 = vpop.f32.mrf.mxu0
    %7581 = vdwg.mxu0
    %7582 = vrot.lane.b32.xlu0 %v1244, 32
    %v7583 = vpop.permute.xlu0 %7582
    %7584 = vrot.lane.b32.xlu0 %v1260, 32
    %v7585 = vpop.permute.xlu0 %7584
    %v7587 = vsel %vm1284, %v7583, 0
    %v7590 = vsel %vm1284, %v7585, 0
    %7592 = vmatprep.subr.bf16.mxu0 0
    %7593 = vmatpush1.bf16.xpose.msra.mxu0 0
    %7594 = vmatprep.subr.bf16.mxu0 0
    %7595 = vmatpush1.bf16.xpose.msra.mxu0 0
    %7596 = vmatprep.subr.bf16.mxu0 0
    %7597 = vmatpush1.bf16.xpose.msra.mxu0 0
    %7598 = vmatprep.subr.bf16.mxu0 0
    %7599 = vmatpush1.bf16.xpose.msra.mxu0 0
    %7600 = vmatprep.subr.bf16.mxu0 0
    %7601 = vmatpush1.bf16.xpose.msra.mxu0 0
    %7602 = vmatprep.subr.bf16.mxu0 0
    %7603 = vmatpush1.bf16.xpose.msra.mxu0 0
    %7604 = vmatprep.subr.bf16.mxu0 0
    %7605 = vmatpush1.bf16.xpose.msra.mxu0 0
    %7606 = vmatprep.subr.bf16.mxu0 0
    %7607 = vmatpush1.bf16.xpose.msra.mxu0 %v7590
    %7608 = vmatprep.subr.bf16.mxu0 0
    %7609 = vmatpush2.bf16.xpose.msra.mxu0 0
    %7610 = vmatprep.subr.bf16.mxu0 0
    %7611 = vmatpush2.bf16.xpose.msra.mxu0 0
    %7612 = vmatprep.subr.bf16.mxu0 0
    %7613 = vmatpush2.bf16.xpose.msra.mxu0 0
    %7614 = vmatprep.subr.bf16.mxu0 0
    %7615 = vmatpush2.bf16.xpose.msra.mxu0 0
    %7616 = vmatprep.subr.bf16.mxu0 0
    %7617 = vmatpush2.bf16.xpose.msra.mxu0 0
    %7618 = vmatprep.subr.bf16.mxu0 0
    %7619 = vmatpush2.bf16.xpose.msra.mxu0 0
    %7620 = vmatprep.subr.bf16.mxu0 0
    %7621 = vmatpush2.bf16.xpose.msra.mxu0 0
    %7622 = vmatprep.subr.bf16.mxu0 0
    %7623 = vmatpush2.bf16.xpose.msra.mxu0 0
    %7624 = vmatprep.mubr.bf16.mxu0 0
    %7625 = vmatmul.mubr.bf16.gmra.mxu0 %v7587
    %v7626 = vpop.f32.mrf.mxu0
    %v7627 = vadd.f32 0.0, %v7626
    %v7628 = vpop.f32.mrf.mxu0
    %v7629 = vpop.f32.mrf.mxu0
    %v7630 = vadd.f32 0.0, %v7629
    %v7631 = vpop.f32.mrf.mxu0
    %7632 = vdwg.mxu0
    %7633 = vrot.lane.b32.xlu0 %v1245, 32
    %v7634 = vpop.permute.xlu0 %7633
    %7635 = vrot.lane.b32.xlu0 %v1261, 32
    %v7636 = vpop.permute.xlu0 %7635
    %v7638 = vsel %vm1284, %v7634, 0
    %v7641 = vsel %vm1284, %v7636, 0
    %7643 = vmatprep.subr.bf16.mxu0 0
    %7644 = vmatpush1.bf16.xpose.msra.mxu0 0
    %7645 = vmatprep.subr.bf16.mxu0 0
    %7646 = vmatpush1.bf16.xpose.msra.mxu0 0
    %7647 = vmatprep.subr.bf16.mxu0 0
    %7648 = vmatpush1.bf16.xpose.msra.mxu0 0
    %7649 = vmatprep.subr.bf16.mxu0 0
    %7650 = vmatpush1.bf16.xpose.msra.mxu0 0
    %7651 = vmatprep.subr.bf16.mxu0 0
    %7652 = vmatpush1.bf16.xpose.msra.mxu0 0
    %7653 = vmatprep.subr.bf16.mxu0 0
    %7654 = vmatpush1.bf16.xpose.msra.mxu0 0
    %7655 = vmatprep.subr.bf16.mxu0 0
    %7656 = vmatpush1.bf16.xpose.msra.mxu0 0
    %7657 = vmatprep.subr.bf16.mxu0 0
    %7658 = vmatpush1.bf16.xpose.msra.mxu0 %v7641
    %7659 = vmatprep.subr.bf16.mxu0 0
    %7660 = vmatpush2.bf16.xpose.msra.mxu0 0
    %7661 = vmatprep.subr.bf16.mxu0 0
    %7662 = vmatpush2.bf16.xpose.msra.mxu0 0
    %7663 = vmatprep.subr.bf16.mxu0 0
    %7664 = vmatpush2.bf16.xpose.msra.mxu0 0
    %7665 = vmatprep.subr.bf16.mxu0 0
    %7666 = vmatpush2.bf16.xpose.msra.mxu0 0
    %7667 = vmatprep.subr.bf16.mxu0 0
    %7668 = vmatpush2.bf16.xpose.msra.mxu0 0
    %7669 = vmatprep.subr.bf16.mxu0 0
    %7670 = vmatpush2.bf16.xpose.msra.mxu0 0
    %7671 = vmatprep.subr.bf16.mxu0 0
    %7672 = vmatpush2.bf16.xpose.msra.mxu0 0
    %7673 = vmatprep.subr.bf16.mxu0 0
    %7674 = vmatpush2.bf16.xpose.msra.mxu0 0
    %7675 = vmatprep.mubr.bf16.mxu0 0
    %7676 = vmatmul.mubr.bf16.gmra.mxu0 %v7638
    %v7677 = vpop.f32.mrf.mxu0
    %v7678 = vadd.f32 0.0, %v7677
    %v7679 = vpop.f32.mrf.mxu0
    %v7680 = vpop.f32.mrf.mxu0
    %v7681 = vadd.f32 0.0, %v7680
    %v7682 = vpop.f32.mrf.mxu0
    %7683 = vdwg.mxu0
    %7684 = vrot.lane.b32.xlu0 %v1246, 32
    %v7685 = vpop.permute.xlu0 %7684
    %7686 = vrot.lane.b32.xlu0 %v1262, 32
    %v7687 = vpop.permute.xlu0 %7686
    %v7689 = vsel %vm1284, %v7685, 0
    %v7692 = vsel %vm1284, %v7687, 0
    %7694 = vmatprep.subr.bf16.mxu0 0
    %7695 = vmatpush1.bf16.xpose.msra.mxu0 0
    %7696 = vmatprep.subr.bf16.mxu0 0
    %7697 = vmatpush1.bf16.xpose.msra.mxu0 0
    %7698 = vmatprep.subr.bf16.mxu0 0
    %7699 = vmatpush1.bf16.xpose.msra.mxu0 0
    %7700 = vmatprep.subr.bf16.mxu0 0
    %7701 = vmatpush1.bf16.xpose.msra.mxu0 0
    %7702 = vmatprep.subr.bf16.mxu0 0
    %7703 = vmatpush1.bf16.xpose.msra.mxu0 0
    %7704 = vmatprep.subr.bf16.mxu0 0
    %7705 = vmatpush1.bf16.xpose.msra.mxu0 0
    %7706 = vmatprep.subr.bf16.mxu0 0
    %7707 = vmatpush1.bf16.xpose.msra.mxu0 0
    %7708 = vmatprep.subr.bf16.mxu0 0
    %7709 = vmatpush1.bf16.xpose.msra.mxu0 %v7692
    %7710 = vmatprep.subr.bf16.mxu0 0
    %7711 = vmatpush2.bf16.xpose.msra.mxu0 0
    %7712 = vmatprep.subr.bf16.mxu0 0
    %7713 = vmatpush2.bf16.xpose.msra.mxu0 0
    %7714 = vmatprep.subr.bf16.mxu0 0
    %7715 = vmatpush2.bf16.xpose.msra.mxu0 0
    %7716 = vmatprep.subr.bf16.mxu0 0
    %7717 = vmatpush2.bf16.xpose.msra.mxu0 0
    %7718 = vmatprep.subr.bf16.mxu0 0
    %7719 = vmatpush2.bf16.xpose.msra.mxu0 0
    %7720 = vmatprep.subr.bf16.mxu0 0
    %7721 = vmatpush2.bf16.xpose.msra.mxu0 0
    %7722 = vmatprep.subr.bf16.mxu0 0
    %7723 = vmatpush2.bf16.xpose.msra.mxu0 0
    %7724 = vmatprep.subr.bf16.mxu0 0
    %7725 = vmatpush2.bf16.xpose.msra.mxu0 0
    %7726 = vmatprep.mubr.bf16.mxu0 0
    %7727 = vmatmul.mubr.bf16.gmra.mxu0 %v7689
    %v7728 = vpop.f32.mrf.mxu0
    %v7729 = vadd.f32 0.0, %v7728
    %v7730 = vpop.f32.mrf.mxu0
    %v7731 = vpop.f32.mrf.mxu0
    %v7732 = vadd.f32 0.0, %v7731
    %v7733 = vpop.f32.mrf.mxu0
    %7734 = vdwg.mxu0
    %7735 = vrot.lane.b32.xlu0 %v1247, 32
    %v7736 = vpop.permute.xlu0 %7735
    %7737 = vrot.lane.b32.xlu0 %v1263, 32
    %v7738 = vpop.permute.xlu0 %7737
    %v7740 = vsel %vm1284, %v7736, 0
    %v7743 = vsel %vm1284, %v7738, 0
    %7745 = vmatprep.subr.bf16.mxu0 0
    %7746 = vmatpush1.bf16.xpose.msra.mxu0 0
    %7747 = vmatprep.subr.bf16.mxu0 0
    %7748 = vmatpush1.bf16.xpose.msra.mxu0 0
    %7749 = vmatprep.subr.bf16.mxu0 0
    %7750 = vmatpush1.bf16.xpose.msra.mxu0 0
    %7751 = vmatprep.subr.bf16.mxu0 0
    %7752 = vmatpush1.bf16.xpose.msra.mxu0 0
    %7753 = vmatprep.subr.bf16.mxu0 0
    %7754 = vmatpush1.bf16.xpose.msra.mxu0 0
    %7755 = vmatprep.subr.bf16.mxu0 0
    %7756 = vmatpush1.bf16.xpose.msra.mxu0 0
    %7757 = vmatprep.subr.bf16.mxu0 0
    %7758 = vmatpush1.bf16.xpose.msra.mxu0 0
    %7759 = vmatprep.subr.bf16.mxu0 0
    %7760 = vmatpush1.bf16.xpose.msra.mxu0 %v7743
    %7761 = vmatprep.subr.bf16.mxu0 0
    %7762 = vmatpush2.bf16.xpose.msra.mxu0 0
    %7763 = vmatprep.subr.bf16.mxu0 0
    %7764 = vmatpush2.bf16.xpose.msra.mxu0 0
    %7765 = vmatprep.subr.bf16.mxu0 0
    %7766 = vmatpush2.bf16.xpose.msra.mxu0 0
    %7767 = vmatprep.subr.bf16.mxu0 0
    %7768 = vmatpush2.bf16.xpose.msra.mxu0 0
    %7769 = vmatprep.subr.bf16.mxu0 0
    %7770 = vmatpush2.bf16.xpose.msra.mxu0 0
    %7771 = vmatprep.subr.bf16.mxu0 0
    %7772 = vmatpush2.bf16.xpose.msra.mxu0 0
    %7773 = vmatprep.subr.bf16.mxu0 0
    %7774 = vmatpush2.bf16.xpose.msra.mxu0 0
    %7775 = vmatprep.subr.bf16.mxu0 0
    %7776 = vmatpush2.bf16.xpose.msra.mxu0 0
    %7777 = vmatprep.mubr.bf16.mxu0 0
    %7778 = vmatmul.mubr.bf16.gmra.mxu0 %v7740
    %v7779 = vpop.f32.mrf.mxu0
    %v7780 = vadd.f32 0.0, %v7779
    %v7781 = vpop.f32.mrf.mxu0
    %v7782 = vpop.f32.mrf.mxu0
    %v7783 = vadd.f32 0.0, %v7782
    %v7784 = vpop.f32.mrf.mxu0
    %7785 = vdwg.mxu0
    %7786 = vrot.lane.b32.xlu0 %v1248, 32
    %v7787 = vpop.permute.xlu0 %7786
    %7788 = vrot.lane.b32.xlu0 %v1264, 32
    %v7789 = vpop.permute.xlu0 %7788
    %v7791 = vsel %vm1284, %v7787, 0
    %v7794 = vsel %vm1284, %v7789, 0
    %7796 = vmatprep.subr.bf16.mxu0 0
    %7797 = vmatpush1.bf16.xpose.msra.mxu0 0
    %7798 = vmatprep.subr.bf16.mxu0 0
    %7799 = vmatpush1.bf16.xpose.msra.mxu0 0
    %7800 = vmatprep.subr.bf16.mxu0 0
    %7801 = vmatpush1.bf16.xpose.msra.mxu0 0
    %7802 = vmatprep.subr.bf16.mxu0 0
    %7803 = vmatpush1.bf16.xpose.msra.mxu0 0
    %7804 = vmatprep.subr.bf16.mxu0 0
    %7805 = vmatpush1.bf16.xpose.msra.mxu0 0
    %7806 = vmatprep.subr.bf16.mxu0 0
    %7807 = vmatpush1.bf16.xpose.msra.mxu0 0
    %7808 = vmatprep.subr.bf16.mxu0 0
    %7809 = vmatpush1.bf16.xpose.msra.mxu0 0
    %7810 = vmatprep.subr.bf16.mxu0 0
    %7811 = vmatpush1.bf16.xpose.msra.mxu0 %v7794
    %7812 = vmatprep.subr.bf16.mxu0 0
    %7813 = vmatpush2.bf16.xpose.msra.mxu0 0
    %7814 = vmatprep.subr.bf16.mxu0 0
    %7815 = vmatpush2.bf16.xpose.msra.mxu0 0
    %7816 = vmatprep.subr.bf16.mxu0 0
    %7817 = vmatpush2.bf16.xpose.msra.mxu0 0
    %7818 = vmatprep.subr.bf16.mxu0 0
    %7819 = vmatpush2.bf16.xpose.msra.mxu0 0
    %7820 = vmatprep.subr.bf16.mxu0 0
    %7821 = vmatpush2.bf16.xpose.msra.mxu0 0
    %7822 = vmatprep.subr.bf16.mxu0 0
    %7823 = vmatpush2.bf16.xpose.msra.mxu0 0
    %7824 = vmatprep.subr.bf16.mxu0 0
    %7825 = vmatpush2.bf16.xpose.msra.mxu0 0
    %7826 = vmatprep.subr.bf16.mxu0 0
    %7827 = vmatpush2.bf16.xpose.msra.mxu0 0
    %7828 = vmatprep.mubr.bf16.mxu0 0
    %7829 = vmatmul.mubr.bf16.gmra.mxu0 %v7791
    %v7830 = vpop.f32.mrf.mxu0
    %v7831 = vadd.f32 0.0, %v7830
    %v7832 = vpop.f32.mrf.mxu0
    %v7833 = vpop.f32.mrf.mxu0
    %v7834 = vadd.f32 0.0, %v7833
    %v7835 = vpop.f32.mrf.mxu0
    %7836 = vdwg.mxu0
    %7837 = vrot.lane.b32.xlu0 %v1249, 32
    %v7838 = vpop.permute.xlu0 %7837
    %7839 = vrot.lane.b32.xlu0 %v1265, 32
    %v7840 = vpop.permute.xlu0 %7839
    %v7842 = vsel %vm1284, %v7838, 0
    %v7845 = vsel %vm1284, %v7840, 0
    %7847 = vmatprep.subr.bf16.mxu0 0
    %7848 = vmatpush1.bf16.xpose.msra.mxu0 0
    %7849 = vmatprep.subr.bf16.mxu0 0
    %7850 = vmatpush1.bf16.xpose.msra.mxu0 0
    %7851 = vmatprep.subr.bf16.mxu0 0
    %7852 = vmatpush1.bf16.xpose.msra.mxu0 0
    %7853 = vmatprep.subr.bf16.mxu0 0
    %7854 = vmatpush1.bf16.xpose.msra.mxu0 0
    %7855 = vmatprep.subr.bf16.mxu0 0
    %7856 = vmatpush1.bf16.xpose.msra.mxu0 0
    %7857 = vmatprep.subr.bf16.mxu0 0
    %7858 = vmatpush1.bf16.xpose.msra.mxu0 0
    %7859 = vmatprep.subr.bf16.mxu0 0
    %7860 = vmatpush1.bf16.xpose.msra.mxu0 0
    %7861 = vmatprep.subr.bf16.mxu0 0
    %7862 = vmatpush1.bf16.xpose.msra.mxu0 %v7845
    %7863 = vmatprep.subr.bf16.mxu0 0
    %7864 = vmatpush2.bf16.xpose.msra.mxu0 0
    %7865 = vmatprep.subr.bf16.mxu0 0
    %7866 = vmatpush2.bf16.xpose.msra.mxu0 0
    %7867 = vmatprep.subr.bf16.mxu0 0
    %7868 = vmatpush2.bf16.xpose.msra.mxu0 0
    %7869 = vmatprep.subr.bf16.mxu0 0
    %7870 = vmatpush2.bf16.xpose.msra.mxu0 0
    %7871 = vmatprep.subr.bf16.mxu0 0
    %7872 = vmatpush2.bf16.xpose.msra.mxu0 0
    %7873 = vmatprep.subr.bf16.mxu0 0
    %7874 = vmatpush2.bf16.xpose.msra.mxu0 0
    %7875 = vmatprep.subr.bf16.mxu0 0
    %7876 = vmatpush2.bf16.xpose.msra.mxu0 0
    %7877 = vmatprep.subr.bf16.mxu0 0
    %7878 = vmatpush2.bf16.xpose.msra.mxu0 0
    %7879 = vmatprep.mubr.bf16.mxu0 0
    %7880 = vmatmul.mubr.bf16.gmra.mxu0 %v7842
    %v7881 = vpop.f32.mrf.mxu0
    %v7882 = vadd.f32 0.0, %v7881
    %v7883 = vpop.f32.mrf.mxu0
    %v7884 = vpop.f32.mrf.mxu0
    %v7885 = vadd.f32 0.0, %v7884
    %v7886 = vpop.f32.mrf.mxu0
    %7887 = vdwg.mxu0
    %7888 = vrot.lane.b32.xlu0 %v1250, 32
    %v7889 = vpop.permute.xlu0 %7888
    %7890 = vrot.lane.b32.xlu0 %v1266, 32
    %v7891 = vpop.permute.xlu0 %7890
    %v7893 = vsel %vm1284, %v7889, 0
    %v7896 = vsel %vm1284, %v7891, 0
    %7898 = vmatprep.subr.bf16.mxu0 0
    %7899 = vmatpush1.bf16.xpose.msra.mxu0 0
    %7900 = vmatprep.subr.bf16.mxu0 0
    %7901 = vmatpush1.bf16.xpose.msra.mxu0 0
    %7902 = vmatprep.subr.bf16.mxu0 0
    %7903 = vmatpush1.bf16.xpose.msra.mxu0 0
    %7904 = vmatprep.subr.bf16.mxu0 0
    %7905 = vmatpush1.bf16.xpose.msra.mxu0 0
    %7906 = vmatprep.subr.bf16.mxu0 0
    %7907 = vmatpush1.bf16.xpose.msra.mxu0 0
    %7908 = vmatprep.subr.bf16.mxu0 0
    %7909 = vmatpush1.bf16.xpose.msra.mxu0 0
    %7910 = vmatprep.subr.bf16.mxu0 0
    %7911 = vmatpush1.bf16.xpose.msra.mxu0 0
    %7912 = vmatprep.subr.bf16.mxu0 0
    %7913 = vmatpush1.bf16.xpose.msra.mxu0 %v7896
    %7914 = vmatprep.subr.bf16.mxu0 0
    %7915 = vmatpush2.bf16.xpose.msra.mxu0 0
    %7916 = vmatprep.subr.bf16.mxu0 0
    %7917 = vmatpush2.bf16.xpose.msra.mxu0 0
    %7918 = vmatprep.subr.bf16.mxu0 0
    %7919 = vmatpush2.bf16.xpose.msra.mxu0 0
    %7920 = vmatprep.subr.bf16.mxu0 0
    %7921 = vmatpush2.bf16.xpose.msra.mxu0 0
    %7922 = vmatprep.subr.bf16.mxu0 0
    %7923 = vmatpush2.bf16.xpose.msra.mxu0 0
    %7924 = vmatprep.subr.bf16.mxu0 0
    %7925 = vmatpush2.bf16.xpose.msra.mxu0 0
    %7926 = vmatprep.subr.bf16.mxu0 0
    %7927 = vmatpush2.bf16.xpose.msra.mxu0 0
    %7928 = vmatprep.subr.bf16.mxu0 0
    %7929 = vmatpush2.bf16.xpose.msra.mxu0 0
    %7930 = vmatprep.mubr.bf16.mxu0 0
    %7931 = vmatmul.mubr.bf16.gmra.mxu0 %v7893
    %v7932 = vpop.f32.mrf.mxu0
    %v7933 = vadd.f32 0.0, %v7932
    %v7934 = vpop.f32.mrf.mxu0
    %v7935 = vpop.f32.mrf.mxu0
    %v7936 = vadd.f32 0.0, %v7935
    %v7937 = vpop.f32.mrf.mxu0
    %7938 = vdwg.mxu0
    %7939 = vrot.lane.b32.xlu0 %v1251, 32
    %v7940 = vpop.permute.xlu0 %7939
    %7941 = vrot.lane.b32.xlu0 %v1267, 32
    %v7942 = vpop.permute.xlu0 %7941
    %v7944 = vsel %vm1284, %v7940, 0
    %v7947 = vsel %vm1284, %v7942, 0
    %7949 = vmatprep.subr.bf16.mxu0 0
    %7950 = vmatpush1.bf16.xpose.msra.mxu0 0
    %7951 = vmatprep.subr.bf16.mxu0 0
    %7952 = vmatpush1.bf16.xpose.msra.mxu0 0
    %7953 = vmatprep.subr.bf16.mxu0 0
    %7954 = vmatpush1.bf16.xpose.msra.mxu0 0
    %7955 = vmatprep.subr.bf16.mxu0 0
    %7956 = vmatpush1.bf16.xpose.msra.mxu0 0
    %7957 = vmatprep.subr.bf16.mxu0 0
    %7958 = vmatpush1.bf16.xpose.msra.mxu0 0
    %7959 = vmatprep.subr.bf16.mxu0 0
    %7960 = vmatpush1.bf16.xpose.msra.mxu0 0
    %7961 = vmatprep.subr.bf16.mxu0 0
    %7962 = vmatpush1.bf16.xpose.msra.mxu0 0
    %7963 = vmatprep.subr.bf16.mxu0 0
    %7964 = vmatpush1.bf16.xpose.msra.mxu0 %v7947
    %7965 = vmatprep.subr.bf16.mxu0 0
    %7966 = vmatpush2.bf16.xpose.msra.mxu0 0
    %7967 = vmatprep.subr.bf16.mxu0 0
    %7968 = vmatpush2.bf16.xpose.msra.mxu0 0
    %7969 = vmatprep.subr.bf16.mxu0 0
    %7970 = vmatpush2.bf16.xpose.msra.mxu0 0
    %7971 = vmatprep.subr.bf16.mxu0 0
    %7972 = vmatpush2.bf16.xpose.msra.mxu0 0
    %7973 = vmatprep.subr.bf16.mxu0 0
    %7974 = vmatpush2.bf16.xpose.msra.mxu0 0
    %7975 = vmatprep.subr.bf16.mxu0 0
    %7976 = vmatpush2.bf16.xpose.msra.mxu0 0
    %7977 = vmatprep.subr.bf16.mxu0 0
    %7978 = vmatpush2.bf16.xpose.msra.mxu0 0
    %7979 = vmatprep.subr.bf16.mxu0 0
    %7980 = vmatpush2.bf16.xpose.msra.mxu0 0
    %7981 = vmatprep.mubr.bf16.mxu0 0
    %7982 = vmatmul.mubr.bf16.gmra.mxu0 %v7944
    %v7983 = vpop.f32.mrf.mxu0
    %v7984 = vadd.f32 0.0, %v7983
    %v7985 = vpop.f32.mrf.mxu0
    %v7986 = vpop.f32.mrf.mxu0
    %v7987 = vadd.f32 0.0, %v7986
    %v7988 = vpop.f32.mrf.mxu0
    %7989 = vdwg.mxu0
    %v7990 = vmul.f32 %v7219, 0.17677669
    %v7991 = vmul.f32 %v7222, 0.17677669
    %v7992 = vmul.f32 %v7270, 0.17677669
    %v7993 = vmul.f32 %v7273, 0.17677669
    %v7994 = vmul.f32 %v7321, 0.17677669
    %v7995 = vmul.f32 %v7324, 0.17677669
    %v7996 = vmul.f32 %v7372, 0.17677669
    %v7997 = vmul.f32 %v7375, 0.17677669
    %v7998 = vmul.f32 %v7423, 0.17677669
    %v7999 = vmul.f32 %v7426, 0.17677669
    %v8000 = vmul.f32 %v7474, 0.17677669
    %v8001 = vmul.f32 %v7477, 0.17677669
    %v8002 = vmul.f32 %v7525, 0.17677669
    %v8003 = vmul.f32 %v7528, 0.17677669
    %v8004 = vmul.f32 %v7576, 0.17677669
    %v8005 = vmul.f32 %v7579, 0.17677669
    %v8006 = vmul.f32 %v7627, 0.17677669
    %v8007 = vmul.f32 %v7630, 0.17677669
    %v8008 = vmul.f32 %v7678, 0.17677669
    %v8009 = vmul.f32 %v7681, 0.17677669
    %v8010 = vmul.f32 %v7729, 0.17677669
    %v8011 = vmul.f32 %v7732, 0.17677669
    %v8012 = vmul.f32 %v7780, 0.17677669
    %v8013 = vmul.f32 %v7783, 0.17677669
    %v8014 = vmul.f32 %v7831, 0.17677669
    %v8015 = vmul.f32 %v7834, 0.17677669
    %v8016 = vmul.f32 %v7882, 0.17677669
    %v8017 = vmul.f32 %v7885, 0.17677669
    %v8018 = vmul.f32 %v7933, 0.17677669
    %v8019 = vmul.f32 %v7936, 0.17677669
    %v8020 = vmul.f32 %v7984, 0.17677669
    %v8021 = vmul.f32 %v7987, 0.17677669
    %v8022 = vsel %vm2069, %v7990, -inf
    %8023 = vmax.xlane.f32.xlu0 %v8022
    %v8024 = vpop.xlane.xlu0 %8023
    %v8025 = vsel %vm2069, %v7991, -inf
    %8026 = vmax.xlane.f32.xlu0 %v8025
    %v8027 = vpop.xlane.xlu0 %8026
    %v8028 = vsel %vm2069, %v7992, -inf
    %8029 = vmax.xlane.f32.xlu0 %v8028
    %v8030 = vpop.xlane.xlu0 %8029
    %v8031 = vsel %vm2069, %v7993, -inf
    %8032 = vmax.xlane.f32.xlu0 %v8031
    %v8033 = vpop.xlane.xlu0 %8032
    %v8034 = vsel %vm2069, %v7994, -inf
    %8035 = vmax.xlane.f32.xlu0 %v8034
    %v8036 = vpop.xlane.xlu0 %8035
    %v8037 = vsel %vm2069, %v7995, -inf
    %8038 = vmax.xlane.f32.xlu0 %v8037
    %v8039 = vpop.xlane.xlu0 %8038
    %v8040 = vsel %vm2069, %v7996, -inf
    %8041 = vmax.xlane.f32.xlu0 %v8040
    %v8042 = vpop.xlane.xlu0 %8041
    %v8043 = vsel %vm2069, %v7997, -inf
    %8044 = vmax.xlane.f32.xlu0 %v8043
    %v8045 = vpop.xlane.xlu0 %8044
    %v8046 = vsel %vm2069, %v7998, -inf
    %8047 = vmax.xlane.f32.xlu0 %v8046
    %v8048 = vpop.xlane.xlu0 %8047
    %v8049 = vsel %vm2069, %v7999, -inf
    %8050 = vmax.xlane.f32.xlu0 %v8049
    %v8051 = vpop.xlane.xlu0 %8050
    %v8052 = vsel %vm2069, %v8000, -inf
    %8053 = vmax.xlane.f32.xlu0 %v8052
    %v8054 = vpop.xlane.xlu0 %8053
    %v8055 = vsel %vm2069, %v8001, -inf
    %8056 = vmax.xlane.f32.xlu0 %v8055
    %v8057 = vpop.xlane.xlu0 %8056
    %v8058 = vsel %vm2069, %v8002, -inf
    %8059 = vmax.xlane.f32.xlu0 %v8058
    %v8060 = vpop.xlane.xlu0 %8059
    %v8061 = vsel %vm2069, %v8003, -inf
    %8062 = vmax.xlane.f32.xlu0 %v8061
    %v8063 = vpop.xlane.xlu0 %8062
    %v8064 = vsel %vm2069, %v8004, -inf
    %8065 = vmax.xlane.f32.xlu0 %v8064
    %v8066 = vpop.xlane.xlu0 %8065
    %v8067 = vsel %vm2069, %v8005, -inf
    %8068 = vmax.xlane.f32.xlu0 %v8067
    %v8069 = vpop.xlane.xlu0 %8068
    %v8070 = vsel %vm2069, %v8006, -inf
    %8071 = vmax.xlane.f32.xlu0 %v8070
    %v8072 = vpop.xlane.xlu0 %8071
    %v8073 = vsel %vm2069, %v8007, -inf
    %8074 = vmax.xlane.f32.xlu0 %v8073
    %v8075 = vpop.xlane.xlu0 %8074
    %v8076 = vsel %vm2069, %v8008, -inf
    %8077 = vmax.xlane.f32.xlu0 %v8076
    %v8078 = vpop.xlane.xlu0 %8077
    %v8079 = vsel %vm2069, %v8009, -inf
    %8080 = vmax.xlane.f32.xlu0 %v8079
    %v8081 = vpop.xlane.xlu0 %8080
    %v8082 = vsel %vm2069, %v8010, -inf
    %8083 = vmax.xlane.f32.xlu0 %v8082
    %v8084 = vpop.xlane.xlu0 %8083
    %v8085 = vsel %vm2069, %v8011, -inf
    %8086 = vmax.xlane.f32.xlu0 %v8085
    %v8087 = vpop.xlane.xlu0 %8086
    %v8088 = vsel %vm2069, %v8012, -inf
    %8089 = vmax.xlane.f32.xlu0 %v8088
    %v8090 = vpop.xlane.xlu0 %8089
    %v8091 = vsel %vm2069, %v8013, -inf
    %8092 = vmax.xlane.f32.xlu0 %v8091
    %v8093 = vpop.xlane.xlu0 %8092
    %v8094 = vsel %vm2069, %v8014, -inf
    %8095 = vmax.xlane.f32.xlu0 %v8094
    %v8096 = vpop.xlane.xlu0 %8095
    %v8097 = vsel %vm2069, %v8015, -inf
    %8098 = vmax.xlane.f32.xlu0 %v8097
    %v8099 = vpop.xlane.xlu0 %8098
    %v8100 = vsel %vm2069, %v8016, -inf
    %8101 = vmax.xlane.f32.xlu0 %v8100
    %v8102 = vpop.xlane.xlu0 %8101
    %v8103 = vsel %vm2069, %v8017, -inf
    %8104 = vmax.xlane.f32.xlu0 %v8103
    %v8105 = vpop.xlane.xlu0 %8104
    %v8106 = vsel %vm2069, %v8018, -inf
    %8107 = vmax.xlane.f32.xlu0 %v8106
    %v8108 = vpop.xlane.xlu0 %8107
    %v8109 = vsel %vm2069, %v8019, -inf
    %8110 = vmax.xlane.f32.xlu0 %v8109
    %v8111 = vpop.xlane.xlu0 %8110
    %v8112 = vsel %vm2069, %v8020, -inf
    %8113 = vmax.xlane.f32.xlu0 %v8112
    %v8114 = vpop.xlane.xlu0 %8113
    %v8115 = vsel %vm2069, %v8021, -inf
    %8116 = vmax.xlane.f32.xlu0 %v8115
    %v8117 = vpop.xlane.xlu0 %8116
    %v8118 = vsub.f32 %v7990, %v8024
    %v8119 = vsub.f32 %v7991, %v8027
    %v8120 = vsub.f32 %v7992, %v8030
    %v8121 = vsub.f32 %v7993, %v8033
    %v8122 = vsub.f32 %v7994, %v8036
    %v8123 = vsub.f32 %v7995, %v8039
    %v8124 = vsub.f32 %v7996, %v8042
    %v8125 = vsub.f32 %v7997, %v8045
    %v8126 = vsub.f32 %v7998, %v8048
    %v8127 = vsub.f32 %v7999, %v8051
    %v8128 = vsub.f32 %v8000, %v8054
    %v8129 = vsub.f32 %v8001, %v8057
    %v8130 = vsub.f32 %v8002, %v8060
    %v8131 = vsub.f32 %v8003, %v8063
    %v8132 = vsub.f32 %v8004, %v8066
    %v8133 = vsub.f32 %v8005, %v8069
    %v8134 = vsub.f32 %v8006, %v8072
    %v8135 = vsub.f32 %v8007, %v8075
    %v8136 = vsub.f32 %v8008, %v8078
    %v8137 = vsub.f32 %v8009, %v8081
    %v8138 = vsub.f32 %v8010, %v8084
    %v8139 = vsub.f32 %v8011, %v8087
    %v8140 = vsub.f32 %v8012, %v8090
    %v8141 = vsub.f32 %v8013, %v8093
    %v8142 = vsub.f32 %v8014, %v8096
    %v8143 = vsub.f32 %v8015, %v8099
    %v8144 = vsub.f32 %v8016, %v8102
    %v8145 = vsub.f32 %v8017, %v8105
    %v8146 = vsub.f32 %v8018, %v8108
    %v8147 = vsub.f32 %v8019, %v8111
    %v8148 = vsub.f32 %v8020, %v8114
    %v8149 = vsub.f32 %v8021, %v8117
    %v8150 = vmul.f32 %v8118, 1.442695
    %v8151 = vpow.pop %v8150
    %v8152 = vmul.f32 %v8119, 1.442695
    %v8153 = vpow.pop %v8152
    %v8154 = vmul.f32 %v8120, 1.442695
    %v8155 = vpow.pop %v8154
    %v8156 = vmul.f32 %v8121, 1.442695
    %v8157 = vpow.pop %v8156
    %v8158 = vmul.f32 %v8122, 1.442695
    %v8159 = vpow.pop %v8158
    %v8160 = vmul.f32 %v8123, 1.442695
    %v8161 = vpow.pop %v8160
    %v8162 = vmul.f32 %v8124, 1.442695
    %v8163 = vpow.pop %v8162
    %v8164 = vmul.f32 %v8125, 1.442695
    %v8165 = vpow.pop %v8164
    %v8166 = vmul.f32 %v8126, 1.442695
    %v8167 = vpow.pop %v8166
    %v8168 = vmul.f32 %v8127, 1.442695
    %v8169 = vpow.pop %v8168
    %v8170 = vmul.f32 %v8128, 1.442695
    %v8171 = vpow.pop %v8170
    %v8172 = vmul.f32 %v8129, 1.442695
    %v8173 = vpow.pop %v8172
    %v8174 = vmul.f32 %v8130, 1.442695
    %v8175 = vpow.pop %v8174
    %v8176 = vmul.f32 %v8131, 1.442695
    %v8177 = vpow.pop %v8176
    %v8178 = vmul.f32 %v8132, 1.442695
    %v8179 = vpow.pop %v8178
    %v8180 = vmul.f32 %v8133, 1.442695
    %v8181 = vpow.pop %v8180
    %v8182 = vmul.f32 %v8134, 1.442695
    %v8183 = vpow.pop %v8182
    %v8184 = vmul.f32 %v8135, 1.442695
    %v8185 = vpow.pop %v8184
    %v8186 = vmul.f32 %v8136, 1.442695
    %v8187 = vpow.pop %v8186
    %v8188 = vmul.f32 %v8137, 1.442695
    %v8189 = vpow.pop %v8188
    %v8190 = vmul.f32 %v8138, 1.442695
    %v8191 = vpow.pop %v8190
    %v8192 = vmul.f32 %v8139, 1.442695
    %v8193 = vpow.pop %v8192
    %v8194 = vmul.f32 %v8140, 1.442695
    %v8195 = vpow.pop %v8194
    %v8196 = vmul.f32 %v8141, 1.442695
    %v8197 = vpow.pop %v8196
    %v8198 = vmul.f32 %v8142, 1.442695
    %v8199 = vpow.pop %v8198
    %v8200 = vmul.f32 %v8143, 1.442695
    %v8201 = vpow.pop %v8200
    %v8202 = vmul.f32 %v8144, 1.442695
    %v8203 = vpow.pop %v8202
    %v8204 = vmul.f32 %v8145, 1.442695
    %v8205 = vpow.pop %v8204
    %v8206 = vmul.f32 %v8146, 1.442695
    %v8207 = vpow.pop %v8206
    %v8208 = vmul.f32 %v8147, 1.442695
    %v8209 = vpow.pop %v8208
    %v8210 = vmul.f32 %v8148, 1.442695
    %v8211 = vpow.pop %v8210
    %v8212 = vmul.f32 %v8149, 1.442695
    %v8213 = vpow.pop %v8212
    %v8214 = vsel %vm2069, %v8151, 0.0
    %8215 = vadd.xlane.f32.xlu0 %v8214
    %v8216 = vpop.xlane.xlu0 %8215
    %v8217 = vsel %vm2069, %v8153, 0.0
    %8218 = vadd.xlane.f32.xlu0 %v8217
    %v8219 = vpop.xlane.xlu0 %8218
    %v8220 = vsel %vm2069, %v8155, 0.0
    %8221 = vadd.xlane.f32.xlu0 %v8220
    %v8222 = vpop.xlane.xlu0 %8221
    %v8223 = vsel %vm2069, %v8157, 0.0
    %8224 = vadd.xlane.f32.xlu0 %v8223
    %v8225 = vpop.xlane.xlu0 %8224
    %v8226 = vsel %vm2069, %v8159, 0.0
    %8227 = vadd.xlane.f32.xlu0 %v8226
    %v8228 = vpop.xlane.xlu0 %8227
    %v8229 = vsel %vm2069, %v8161, 0.0
    %8230 = vadd.xlane.f32.xlu0 %v8229
    %v8231 = vpop.xlane.xlu0 %8230
    %v8232 = vsel %vm2069, %v8163, 0.0
    %8233 = vadd.xlane.f32.xlu0 %v8232
    %v8234 = vpop.xlane.xlu0 %8233
    %v8235 = vsel %vm2069, %v8165, 0.0
    %8236 = vadd.xlane.f32.xlu0 %v8235
    %v8237 = vpop.xlane.xlu0 %8236
    %v8238 = vsel %vm2069, %v8167, 0.0
    %8239 = vadd.xlane.f32.xlu0 %v8238
    %v8240 = vpop.xlane.xlu0 %8239
    %v8241 = vsel %vm2069, %v8169, 0.0
    %8242 = vadd.xlane.f32.xlu0 %v8241
    %v8243 = vpop.xlane.xlu0 %8242
    %v8244 = vsel %vm2069, %v8171, 0.0
    %8245 = vadd.xlane.f32.xlu0 %v8244
    %v8246 = vpop.xlane.xlu0 %8245
    %v8247 = vsel %vm2069, %v8173, 0.0
    %8248 = vadd.xlane.f32.xlu0 %v8247
    %v8249 = vpop.xlane.xlu0 %8248
    %v8250 = vsel %vm2069, %v8175, 0.0
    %8251 = vadd.xlane.f32.xlu0 %v8250
    %v8252 = vpop.xlane.xlu0 %8251
    %v8253 = vsel %vm2069, %v8177, 0.0
    %8254 = vadd.xlane.f32.xlu0 %v8253
    %v8255 = vpop.xlane.xlu0 %8254
    %v8256 = vsel %vm2069, %v8179, 0.0
    %8257 = vadd.xlane.f32.xlu0 %v8256
    %v8258 = vpop.xlane.xlu0 %8257
    %v8259 = vsel %vm2069, %v8181, 0.0
    %8260 = vadd.xlane.f32.xlu0 %v8259
    %v8261 = vpop.xlane.xlu0 %8260
    %v8262 = vsel %vm2069, %v8183, 0.0
    %8263 = vadd.xlane.f32.xlu0 %v8262
    %v8264 = vpop.xlane.xlu0 %8263
    %v8265 = vsel %vm2069, %v8185, 0.0
    %8266 = vadd.xlane.f32.xlu0 %v8265
    %v8267 = vpop.xlane.xlu0 %8266
    %v8268 = vsel %vm2069, %v8187, 0.0
    %8269 = vadd.xlane.f32.xlu0 %v8268
    %v8270 = vpop.xlane.xlu0 %8269
    %v8271 = vsel %vm2069, %v8189, 0.0
    %8272 = vadd.xlane.f32.xlu0 %v8271
    %v8273 = vpop.xlane.xlu0 %8272
    %v8274 = vsel %vm2069, %v8191, 0.0
    %8275 = vadd.xlane.f32.xlu0 %v8274
    %v8276 = vpop.xlane.xlu0 %8275
    %v8277 = vsel %vm2069, %v8193, 0.0
    %8278 = vadd.xlane.f32.xlu0 %v8277
    %v8279 = vpop.xlane.xlu0 %8278
    %v8280 = vsel %vm2069, %v8195, 0.0
    %8281 = vadd.xlane.f32.xlu0 %v8280
    %v8282 = vpop.xlane.xlu0 %8281
    %v8283 = vsel %vm2069, %v8197, 0.0
    %8284 = vadd.xlane.f32.xlu0 %v8283
    %v8285 = vpop.xlane.xlu0 %8284
    %v8286 = vsel %vm2069, %v8199, 0.0
    %8287 = vadd.xlane.f32.xlu0 %v8286
    %v8288 = vpop.xlane.xlu0 %8287
    %v8289 = vsel %vm2069, %v8201, 0.0
    %8290 = vadd.xlane.f32.xlu0 %v8289
    %v8291 = vpop.xlane.xlu0 %8290
    %v8292 = vsel %vm2069, %v8203, 0.0
    %8293 = vadd.xlane.f32.xlu0 %v8292
    %v8294 = vpop.xlane.xlu0 %8293
    %v8295 = vsel %vm2069, %v8205, 0.0
    %8296 = vadd.xlane.f32.xlu0 %v8295
    %v8297 = vpop.xlane.xlu0 %8296
    %v8298 = vsel %vm2069, %v8207, 0.0
    %8299 = vadd.xlane.f32.xlu0 %v8298
    %v8300 = vpop.xlane.xlu0 %8299
    %v8301 = vsel %vm2069, %v8209, 0.0
    %8302 = vadd.xlane.f32.xlu0 %v8301
    %v8303 = vpop.xlane.xlu0 %8302
    %v8304 = vsel %vm2069, %v8211, 0.0
    %8305 = vadd.xlane.f32.xlu0 %v8304
    %v8306 = vpop.xlane.xlu0 %8305
    %v8307 = vsel %vm2069, %v8213, 0.0
    %8308 = vadd.xlane.f32.xlu0 %v8307
    %v8309 = vpop.xlane.xlu0 %8308
    %v8310 = vrcp.pop %v8216
    %v8311 = vmul.f32 %v8151, %v8310
    %v8312 = vrcp.pop %v8219
    %v8313 = vmul.f32 %v8153, %v8312
    %v8314 = vrcp.pop %v8222
    %v8315 = vmul.f32 %v8155, %v8314
    %v8316 = vrcp.pop %v8225
    %v8317 = vmul.f32 %v8157, %v8316
    %v8318 = vrcp.pop %v8228
    %v8319 = vmul.f32 %v8159, %v8318
    %v8320 = vrcp.pop %v8231
    %v8321 = vmul.f32 %v8161, %v8320
    %v8322 = vrcp.pop %v8234
    %v8323 = vmul.f32 %v8163, %v8322
    %v8324 = vrcp.pop %v8237
    %v8325 = vmul.f32 %v8165, %v8324
    %v8326 = vrcp.pop %v8240
    %v8327 = vmul.f32 %v8167, %v8326
    %v8328 = vrcp.pop %v8243
    %v8329 = vmul.f32 %v8169, %v8328
    %v8330 = vrcp.pop %v8246
    %v8331 = vmul.f32 %v8171, %v8330
    %v8332 = vrcp.pop %v8249
    %v8333 = vmul.f32 %v8173, %v8332
    %v8334 = vrcp.pop %v8252
    %v8335 = vmul.f32 %v8175, %v8334
    %v8336 = vrcp.pop %v8255
    %v8337 = vmul.f32 %v8177, %v8336
    %v8338 = vrcp.pop %v8258
    %v8339 = vmul.f32 %v8179, %v8338
    %v8340 = vrcp.pop %v8261
    %v8341 = vmul.f32 %v8181, %v8340
    %v8342 = vrcp.pop %v8264
    %v8343 = vmul.f32 %v8183, %v8342
    %v8344 = vrcp.pop %v8267
    %v8345 = vmul.f32 %v8185, %v8344
    %v8346 = vrcp.pop %v8270
    %v8347 = vmul.f32 %v8187, %v8346
    %v8348 = vrcp.pop %v8273
    %v8349 = vmul.f32 %v8189, %v8348
    %v8350 = vrcp.pop %v8276
    %v8351 = vmul.f32 %v8191, %v8350
    %v8352 = vrcp.pop %v8279
    %v8353 = vmul.f32 %v8193, %v8352
    %v8354 = vrcp.pop %v8282
    %v8355 = vmul.f32 %v8195, %v8354
    %v8356 = vrcp.pop %v8285
    %v8357 = vmul.f32 %v8197, %v8356
    %v8358 = vrcp.pop %v8288
    %v8359 = vmul.f32 %v8199, %v8358
    %v8360 = vrcp.pop %v8291
    %v8361 = vmul.f32 %v8201, %v8360
    %v8362 = vrcp.pop %v8294
    %v8363 = vmul.f32 %v8203, %v8362
    %v8364 = vrcp.pop %v8297
    %v8365 = vmul.f32 %v8205, %v8364
    %v8366 = vrcp.pop %v8300
    %v8367 = vmul.f32 %v8207, %v8366
    %v8368 = vrcp.pop %v8303
    %v8369 = vmul.f32 %v8209, %v8368
    %v8370 = vrcp.pop %v8306
    %v8371 = vmul.f32 %v8211, %v8370
    %v8372 = vrcp.pop %v8309
    %v8373 = vmul.f32 %v8213, %v8372
    %v8374 = vpack.c.bf16 %v8313, %v8311
    %v8375 = vpack.c.bf16 %v8317, %v8315
    %v8376 = vpack.c.bf16 %v8321, %v8319
    %v8377 = vpack.c.bf16 %v8325, %v8323
    %v8378 = vpack.c.bf16 %v8329, %v8327
    %v8379 = vpack.c.bf16 %v8333, %v8331
    %v8380 = vpack.c.bf16 %v8337, %v8335
    %v8381 = vpack.c.bf16 %v8341, %v8339
    %v8382 = vpack.c.bf16 %v8345, %v8343
    %v8383 = vpack.c.bf16 %v8349, %v8347
    %v8384 = vpack.c.bf16 %v8353, %v8351
    %v8385 = vpack.c.bf16 %v8357, %v8355
    %v8386 = vpack.c.bf16 %v8361, %v8359
    %v8387 = vpack.c.bf16 %v8365, %v8363
    %v8388 = vpack.c.bf16 %v8369, %v8367
    %v8389 = vpack.c.bf16 %v8373, %v8371
    %8390 = vrot.lane.b32.xlu0 %v1268, 32
    %v8391 = vpop.permute.xlu0 %8390
    %v8394 = vsel %vm2069, %v8374, 0
    %8396 = vmatprep.subr.bf16.mxu0 0
    %8397 = vmatpush1.bf16.msra.mxu0 0
    %8398 = vmatprep.subr.bf16.mxu0 0
    %8399 = vmatpush1.bf16.msra.mxu0 0
    %8400 = vmatprep.subr.bf16.mxu0 0
    %8401 = vmatpush1.bf16.msra.mxu0 0
    %8402 = vmatprep.subr.bf16.mxu0 0
    %8403 = vmatpush1.bf16.msra.mxu0 0
    %8404 = vmatprep.subr.bf16.mxu0 0
    %8405 = vmatpush1.bf16.msra.mxu0 0
    %8406 = vmatprep.subr.bf16.mxu0 0
    %8407 = vmatpush1.bf16.msra.mxu0 0
    %8408 = vmatprep.subr.bf16.mxu0 0
    %8409 = vmatpush1.bf16.msra.mxu0 0
    %8410 = vmatprep.subr.bf16.mxu0 0
    %8411 = vmatpush1.bf16.msra.mxu0 %v8391
    %8412 = vmatprep.subr.bf16.mxu0 0
    %8413 = vmatpush2.bf16.msra.mxu0 0
    %8414 = vmatprep.subr.bf16.mxu0 0
    %8415 = vmatpush2.bf16.msra.mxu0 0
    %8416 = vmatprep.subr.bf16.mxu0 0
    %8417 = vmatpush2.bf16.msra.mxu0 0
    %8418 = vmatprep.subr.bf16.mxu0 0
    %8419 = vmatpush2.bf16.msra.mxu0 0
    %8420 = vmatprep.subr.bf16.mxu0 0
    %8421 = vmatpush2.bf16.msra.mxu0 0
    %8422 = vmatprep.subr.bf16.mxu0 0
    %8423 = vmatpush2.bf16.msra.mxu0 0
    %8424 = vmatprep.subr.bf16.mxu0 0
    %8425 = vmatpush2.bf16.msra.mxu0 0
    %8426 = vmatprep.subr.bf16.mxu0 0
    %8427 = vmatpush2.bf16.msra.mxu0 0
    %8428 = vmatprep.mubr.bf16.mxu0 0
    %8429 = vmatmul.mubr.bf16.gmra.mxu0 %v8394
    %v8430 = vpop.f32.mrf.mxu0
    %v8431 = vadd.f32 0.0, %v8430
    %v8432 = vpop.f32.mrf.mxu0
    %v8433 = vpop.f32.mrf.mxu0
    %v8434 = vadd.f32 0.0, %v8433
    %v8435 = vpop.f32.mrf.mxu0
    %8436 = vdwg.mxu0
    %8437 = vrot.lane.b32.xlu0 %v1269, 32
    %v8438 = vpop.permute.xlu0 %8437
    %v8441 = vsel %vm2069, %v8375, 0
    %8443 = vmatprep.subr.bf16.mxu0 0
    %8444 = vmatpush1.bf16.msra.mxu0 0
    %8445 = vmatprep.subr.bf16.mxu0 0
    %8446 = vmatpush1.bf16.msra.mxu0 0
    %8447 = vmatprep.subr.bf16.mxu0 0
    %8448 = vmatpush1.bf16.msra.mxu0 0
    %8449 = vmatprep.subr.bf16.mxu0 0
    %8450 = vmatpush1.bf16.msra.mxu0 0
    %8451 = vmatprep.subr.bf16.mxu0 0
    %8452 = vmatpush1.bf16.msra.mxu0 0
    %8453 = vmatprep.subr.bf16.mxu0 0
    %8454 = vmatpush1.bf16.msra.mxu0 0
    %8455 = vmatprep.subr.bf16.mxu0 0
    %8456 = vmatpush1.bf16.msra.mxu0 0
    %8457 = vmatprep.subr.bf16.mxu0 0
    %8458 = vmatpush1.bf16.msra.mxu0 %v8438
    %8459 = vmatprep.subr.bf16.mxu0 0
    %8460 = vmatpush2.bf16.msra.mxu0 0
    %8461 = vmatprep.subr.bf16.mxu0 0
    %8462 = vmatpush2.bf16.msra.mxu0 0
    %8463 = vmatprep.subr.bf16.mxu0 0
    %8464 = vmatpush2.bf16.msra.mxu0 0
    %8465 = vmatprep.subr.bf16.mxu0 0
    %8466 = vmatpush2.bf16.msra.mxu0 0
    %8467 = vmatprep.subr.bf16.mxu0 0
    %8468 = vmatpush2.bf16.msra.mxu0 0
    %8469 = vmatprep.subr.bf16.mxu0 0
    %8470 = vmatpush2.bf16.msra.mxu0 0
    %8471 = vmatprep.subr.bf16.mxu0 0
    %8472 = vmatpush2.bf16.msra.mxu0 0
    %8473 = vmatprep.subr.bf16.mxu0 0
    %8474 = vmatpush2.bf16.msra.mxu0 0
    %8475 = vmatprep.mubr.bf16.mxu0 0
    %8476 = vmatmul.mubr.bf16.gmra.mxu0 %v8441
    %v8477 = vpop.f32.mrf.mxu0
    %v8478 = vadd.f32 0.0, %v8477
    %v8479 = vpop.f32.mrf.mxu0
    %v8480 = vpop.f32.mrf.mxu0
    %v8481 = vadd.f32 0.0, %v8480
    %v8482 = vpop.f32.mrf.mxu0
    %8483 = vdwg.mxu0
    %8484 = vrot.lane.b32.xlu0 %v1270, 32
    %v8485 = vpop.permute.xlu0 %8484
    %v8488 = vsel %vm2069, %v8376, 0
    %8490 = vmatprep.subr.bf16.mxu0 0
    %8491 = vmatpush1.bf16.msra.mxu0 0
    %8492 = vmatprep.subr.bf16.mxu0 0
    %8493 = vmatpush1.bf16.msra.mxu0 0
    %8494 = vmatprep.subr.bf16.mxu0 0
    %8495 = vmatpush1.bf16.msra.mxu0 0
    %8496 = vmatprep.subr.bf16.mxu0 0
    %8497 = vmatpush1.bf16.msra.mxu0 0
    %8498 = vmatprep.subr.bf16.mxu0 0
    %8499 = vmatpush1.bf16.msra.mxu0 0
    %8500 = vmatprep.subr.bf16.mxu0 0
    %8501 = vmatpush1.bf16.msra.mxu0 0
    %8502 = vmatprep.subr.bf16.mxu0 0
    %8503 = vmatpush1.bf16.msra.mxu0 0
    %8504 = vmatprep.subr.bf16.mxu0 0
    %8505 = vmatpush1.bf16.msra.mxu0 %v8485
    %8506 = vmatprep.subr.bf16.mxu0 0
    %8507 = vmatpush2.bf16.msra.mxu0 0
    %8508 = vmatprep.subr.bf16.mxu0 0
    %8509 = vmatpush2.bf16.msra.mxu0 0
    %8510 = vmatprep.subr.bf16.mxu0 0
    %8511 = vmatpush2.bf16.msra.mxu0 0
    %8512 = vmatprep.subr.bf16.mxu0 0
    %8513 = vmatpush2.bf16.msra.mxu0 0
    %8514 = vmatprep.subr.bf16.mxu0 0
    %8515 = vmatpush2.bf16.msra.mxu0 0
    %8516 = vmatprep.subr.bf16.mxu0 0
    %8517 = vmatpush2.bf16.msra.mxu0 0
    %8518 = vmatprep.subr.bf16.mxu0 0
    %8519 = vmatpush2.bf16.msra.mxu0 0
    %8520 = vmatprep.subr.bf16.mxu0 0
    %8521 = vmatpush2.bf16.msra.mxu0 0
    %8522 = vmatprep.mubr.bf16.mxu0 0
    %8523 = vmatmul.mubr.bf16.gmra.mxu0 %v8488
    %v8524 = vpop.f32.mrf.mxu0
    %v8525 = vadd.f32 0.0, %v8524
    %v8526 = vpop.f32.mrf.mxu0
    %v8527 = vpop.f32.mrf.mxu0
    %v8528 = vadd.f32 0.0, %v8527
    %v8529 = vpop.f32.mrf.mxu0
    %8530 = vdwg.mxu0
    %8531 = vrot.lane.b32.xlu0 %v1271, 32
    %v8532 = vpop.permute.xlu0 %8531
    %v8535 = vsel %vm2069, %v8377, 0
    %8537 = vmatprep.subr.bf16.mxu0 0
    %8538 = vmatpush1.bf16.msra.mxu0 0
    %8539 = vmatprep.subr.bf16.mxu0 0
    %8540 = vmatpush1.bf16.msra.mxu0 0
    %8541 = vmatprep.subr.bf16.mxu0 0
    %8542 = vmatpush1.bf16.msra.mxu0 0
    %8543 = vmatprep.subr.bf16.mxu0 0
    %8544 = vmatpush1.bf16.msra.mxu0 0
    %8545 = vmatprep.subr.bf16.mxu0 0
    %8546 = vmatpush1.bf16.msra.mxu0 0
    %8547 = vmatprep.subr.bf16.mxu0 0
    %8548 = vmatpush1.bf16.msra.mxu0 0
    %8549 = vmatprep.subr.bf16.mxu0 0
    %8550 = vmatpush1.bf16.msra.mxu0 0
    %8551 = vmatprep.subr.bf16.mxu0 0
    %8552 = vmatpush1.bf16.msra.mxu0 %v8532
    %8553 = vmatprep.subr.bf16.mxu0 0
    %8554 = vmatpush2.bf16.msra.mxu0 0
    %8555 = vmatprep.subr.bf16.mxu0 0
    %8556 = vmatpush2.bf16.msra.mxu0 0
    %8557 = vmatprep.subr.bf16.mxu0 0
    %8558 = vmatpush2.bf16.msra.mxu0 0
    %8559 = vmatprep.subr.bf16.mxu0 0
    %8560 = vmatpush2.bf16.msra.mxu0 0
    %8561 = vmatprep.subr.bf16.mxu0 0
    %8562 = vmatpush2.bf16.msra.mxu0 0
    %8563 = vmatprep.subr.bf16.mxu0 0
    %8564 = vmatpush2.bf16.msra.mxu0 0
    %8565 = vmatprep.subr.bf16.mxu0 0
    %8566 = vmatpush2.bf16.msra.mxu0 0
    %8567 = vmatprep.subr.bf16.mxu0 0
    %8568 = vmatpush2.bf16.msra.mxu0 0
    %8569 = vmatprep.mubr.bf16.mxu0 0
    %8570 = vmatmul.mubr.bf16.gmra.mxu0 %v8535
    %v8571 = vpop.f32.mrf.mxu0
    %v8572 = vadd.f32 0.0, %v8571
    %v8573 = vpop.f32.mrf.mxu0
    %v8574 = vpop.f32.mrf.mxu0
    %v8575 = vadd.f32 0.0, %v8574
    %v8576 = vpop.f32.mrf.mxu0
    %8577 = vdwg.mxu0
    %8578 = vrot.lane.b32.xlu0 %v1272, 32
    %v8579 = vpop.permute.xlu0 %8578
    %v8582 = vsel %vm2069, %v8378, 0
    %8584 = vmatprep.subr.bf16.mxu0 0
    %8585 = vmatpush1.bf16.msra.mxu0 0
    %8586 = vmatprep.subr.bf16.mxu0 0
    %8587 = vmatpush1.bf16.msra.mxu0 0
    %8588 = vmatprep.subr.bf16.mxu0 0
    %8589 = vmatpush1.bf16.msra.mxu0 0
    %8590 = vmatprep.subr.bf16.mxu0 0
    %8591 = vmatpush1.bf16.msra.mxu0 0
    %8592 = vmatprep.subr.bf16.mxu0 0
    %8593 = vmatpush1.bf16.msra.mxu0 0
    %8594 = vmatprep.subr.bf16.mxu0 0
    %8595 = vmatpush1.bf16.msra.mxu0 0
    %8596 = vmatprep.subr.bf16.mxu0 0
    %8597 = vmatpush1.bf16.msra.mxu0 0
    %8598 = vmatprep.subr.bf16.mxu0 0
    %8599 = vmatpush1.bf16.msra.mxu0 %v8579
    %8600 = vmatprep.subr.bf16.mxu0 0
    %8601 = vmatpush2.bf16.msra.mxu0 0
    %8602 = vmatprep.subr.bf16.mxu0 0
    %8603 = vmatpush2.bf16.msra.mxu0 0
    %8604 = vmatprep.subr.bf16.mxu0 0
    %8605 = vmatpush2.bf16.msra.mxu0 0
    %8606 = vmatprep.subr.bf16.mxu0 0
    %8607 = vmatpush2.bf16.msra.mxu0 0
    %8608 = vmatprep.subr.bf16.mxu0 0
    %8609 = vmatpush2.bf16.msra.mxu0 0
    %8610 = vmatprep.subr.bf16.mxu0 0
    %8611 = vmatpush2.bf16.msra.mxu0 0
    %8612 = vmatprep.subr.bf16.mxu0 0
    %8613 = vmatpush2.bf16.msra.mxu0 0
    %8614 = vmatprep.subr.bf16.mxu0 0
    %8615 = vmatpush2.bf16.msra.mxu0 0
    %8616 = vmatprep.mubr.bf16.mxu0 0
    %8617 = vmatmul.mubr.bf16.gmra.mxu0 %v8582
    %v8618 = vpop.f32.mrf.mxu0
    %v8619 = vadd.f32 0.0, %v8618
    %v8620 = vpop.f32.mrf.mxu0
    %v8621 = vpop.f32.mrf.mxu0
    %v8622 = vadd.f32 0.0, %v8621
    %v8623 = vpop.f32.mrf.mxu0
    %8624 = vdwg.mxu0
    %8625 = vrot.lane.b32.xlu0 %v1273, 32
    %v8626 = vpop.permute.xlu0 %8625
    %v8629 = vsel %vm2069, %v8379, 0
    %8631 = vmatprep.subr.bf16.mxu0 0
    %8632 = vmatpush1.bf16.msra.mxu0 0
    %8633 = vmatprep.subr.bf16.mxu0 0
    %8634 = vmatpush1.bf16.msra.mxu0 0
    %8635 = vmatprep.subr.bf16.mxu0 0
    %8636 = vmatpush1.bf16.msra.mxu0 0
    %8637 = vmatprep.subr.bf16.mxu0 0
    %8638 = vmatpush1.bf16.msra.mxu0 0
    %8639 = vmatprep.subr.bf16.mxu0 0
    %8640 = vmatpush1.bf16.msra.mxu0 0
    %8641 = vmatprep.subr.bf16.mxu0 0
    %8642 = vmatpush1.bf16.msra.mxu0 0
    %8643 = vmatprep.subr.bf16.mxu0 0
    %8644 = vmatpush1.bf16.msra.mxu0 0
    %8645 = vmatprep.subr.bf16.mxu0 0
    %8646 = vmatpush1.bf16.msra.mxu0 %v8626
    %8647 = vmatprep.subr.bf16.mxu0 0
    %8648 = vmatpush2.bf16.msra.mxu0 0
    %8649 = vmatprep.subr.bf16.mxu0 0
    %8650 = vmatpush2.bf16.msra.mxu0 0
    %8651 = vmatprep.subr.bf16.mxu0 0
    %8652 = vmatpush2.bf16.msra.mxu0 0
    %8653 = vmatprep.subr.bf16.mxu0 0
    %8654 = vmatpush2.bf16.msra.mxu0 0
    %8655 = vmatprep.subr.bf16.mxu0 0
    %8656 = vmatpush2.bf16.msra.mxu0 0
    %8657 = vmatprep.subr.bf16.mxu0 0
    %8658 = vmatpush2.bf16.msra.mxu0 0
    %8659 = vmatprep.subr.bf16.mxu0 0
    %8660 = vmatpush2.bf16.msra.mxu0 0
    %8661 = vmatprep.subr.bf16.mxu0 0
    %8662 = vmatpush2.bf16.msra.mxu0 0
    %8663 = vmatprep.mubr.bf16.mxu0 0
    %8664 = vmatmul.mubr.bf16.gmra.mxu0 %v8629
    %v8665 = vpop.f32.mrf.mxu0
    %v8666 = vadd.f32 0.0, %v8665
    %v8667 = vpop.f32.mrf.mxu0
    %v8668 = vpop.f32.mrf.mxu0
    %v8669 = vadd.f32 0.0, %v8668
    %v8670 = vpop.f32.mrf.mxu0
    %8671 = vdwg.mxu0
    %8672 = vrot.lane.b32.xlu0 %v1274, 32
    %v8673 = vpop.permute.xlu0 %8672
    %v8676 = vsel %vm2069, %v8380, 0
    %8678 = vmatprep.subr.bf16.mxu0 0
    %8679 = vmatpush1.bf16.msra.mxu0 0
    %8680 = vmatprep.subr.bf16.mxu0 0
    %8681 = vmatpush1.bf16.msra.mxu0 0
    %8682 = vmatprep.subr.bf16.mxu0 0
    %8683 = vmatpush1.bf16.msra.mxu0 0
    %8684 = vmatprep.subr.bf16.mxu0 0
    %8685 = vmatpush1.bf16.msra.mxu0 0
    %8686 = vmatprep.subr.bf16.mxu0 0
    %8687 = vmatpush1.bf16.msra.mxu0 0
    %8688 = vmatprep.subr.bf16.mxu0 0
    %8689 = vmatpush1.bf16.msra.mxu0 0
    %8690 = vmatprep.subr.bf16.mxu0 0
    %8691 = vmatpush1.bf16.msra.mxu0 0
    %8692 = vmatprep.subr.bf16.mxu0 0
    %8693 = vmatpush1.bf16.msra.mxu0 %v8673
    %8694 = vmatprep.subr.bf16.mxu0 0
    %8695 = vmatpush2.bf16.msra.mxu0 0
    %8696 = vmatprep.subr.bf16.mxu0 0
    %8697 = vmatpush2.bf16.msra.mxu0 0
    %8698 = vmatprep.subr.bf16.mxu0 0
    %8699 = vmatpush2.bf16.msra.mxu0 0
    %8700 = vmatprep.subr.bf16.mxu0 0
    %8701 = vmatpush2.bf16.msra.mxu0 0
    %8702 = vmatprep.subr.bf16.mxu0 0
    %8703 = vmatpush2.bf16.msra.mxu0 0
    %8704 = vmatprep.subr.bf16.mxu0 0
    %8705 = vmatpush2.bf16.msra.mxu0 0
    %8706 = vmatprep.subr.bf16.mxu0 0
    %8707 = vmatpush2.bf16.msra.mxu0 0
    %8708 = vmatprep.subr.bf16.mxu0 0
    %8709 = vmatpush2.bf16.msra.mxu0 0
    %8710 = vmatprep.mubr.bf16.mxu0 0
    %8711 = vmatmul.mubr.bf16.gmra.mxu0 %v8676
    %v8712 = vpop.f32.mrf.mxu0
    %v8713 = vadd.f32 0.0, %v8712
    %v8714 = vpop.f32.mrf.mxu0
    %v8715 = vpop.f32.mrf.mxu0
    %v8716 = vadd.f32 0.0, %v8715
    %v8717 = vpop.f32.mrf.mxu0
    %8718 = vdwg.mxu0
    %8719 = vrot.lane.b32.xlu0 %v1275, 32
    %v8720 = vpop.permute.xlu0 %8719
    %v8723 = vsel %vm2069, %v8381, 0
    %8725 = vmatprep.subr.bf16.mxu0 0
    %8726 = vmatpush1.bf16.msra.mxu0 0
    %8727 = vmatprep.subr.bf16.mxu0 0
    %8728 = vmatpush1.bf16.msra.mxu0 0
    %8729 = vmatprep.subr.bf16.mxu0 0
    %8730 = vmatpush1.bf16.msra.mxu0 0
    %8731 = vmatprep.subr.bf16.mxu0 0
    %8732 = vmatpush1.bf16.msra.mxu0 0
    %8733 = vmatprep.subr.bf16.mxu0 0
    %8734 = vmatpush1.bf16.msra.mxu0 0
    %8735 = vmatprep.subr.bf16.mxu0 0
    %8736 = vmatpush1.bf16.msra.mxu0 0
    %8737 = vmatprep.subr.bf16.mxu0 0
    %8738 = vmatpush1.bf16.msra.mxu0 0
    %8739 = vmatprep.subr.bf16.mxu0 0
    %8740 = vmatpush1.bf16.msra.mxu0 %v8720
    %8741 = vmatprep.subr.bf16.mxu0 0
    %8742 = vmatpush2.bf16.msra.mxu0 0
    %8743 = vmatprep.subr.bf16.mxu0 0
    %8744 = vmatpush2.bf16.msra.mxu0 0
    %8745 = vmatprep.subr.bf16.mxu0 0
    %8746 = vmatpush2.bf16.msra.mxu0 0
    %8747 = vmatprep.subr.bf16.mxu0 0
    %8748 = vmatpush2.bf16.msra.mxu0 0
    %8749 = vmatprep.subr.bf16.mxu0 0
    %8750 = vmatpush2.bf16.msra.mxu0 0
    %8751 = vmatprep.subr.bf16.mxu0 0
    %8752 = vmatpush2.bf16.msra.mxu0 0
    %8753 = vmatprep.subr.bf16.mxu0 0
    %8754 = vmatpush2.bf16.msra.mxu0 0
    %8755 = vmatprep.subr.bf16.mxu0 0
    %8756 = vmatpush2.bf16.msra.mxu0 0
    %8757 = vmatprep.mubr.bf16.mxu0 0
    %8758 = vmatmul.mubr.bf16.gmra.mxu0 %v8723
    %v8759 = vpop.f32.mrf.mxu0
    %v8760 = vadd.f32 0.0, %v8759
    %v8761 = vpop.f32.mrf.mxu0
    %v8762 = vpop.f32.mrf.mxu0
    %v8763 = vadd.f32 0.0, %v8762
    %v8764 = vpop.f32.mrf.mxu0
    %8765 = vdwg.mxu0
    %8766 = vrot.lane.b32.xlu0 %v1276, 32
    %v8767 = vpop.permute.xlu0 %8766
    %v8770 = vsel %vm2069, %v8382, 0
    %8772 = vmatprep.subr.bf16.mxu0 0
    %8773 = vmatpush1.bf16.msra.mxu0 0
    %8774 = vmatprep.subr.bf16.mxu0 0
    %8775 = vmatpush1.bf16.msra.mxu0 0
    %8776 = vmatprep.subr.bf16.mxu0 0
    %8777 = vmatpush1.bf16.msra.mxu0 0
    %8778 = vmatprep.subr.bf16.mxu0 0
    %8779 = vmatpush1.bf16.msra.mxu0 0
    %8780 = vmatprep.subr.bf16.mxu0 0
    %8781 = vmatpush1.bf16.msra.mxu0 0
    %8782 = vmatprep.subr.bf16.mxu0 0
    %8783 = vmatpush1.bf16.msra.mxu0 0
    %8784 = vmatprep.subr.bf16.mxu0 0
    %8785 = vmatpush1.bf16.msra.mxu0 0
    %8786 = vmatprep.subr.bf16.mxu0 0
    %8787 = vmatpush1.bf16.msra.mxu0 %v8767
    %8788 = vmatprep.subr.bf16.mxu0 0
    %8789 = vmatpush2.bf16.msra.mxu0 0
    %8790 = vmatprep.subr.bf16.mxu0 0
    %8791 = vmatpush2.bf16.msra.mxu0 0
    %8792 = vmatprep.subr.bf16.mxu0 0
    %8793 = vmatpush2.bf16.msra.mxu0 0
    %8794 = vmatprep.subr.bf16.mxu0 0
    %8795 = vmatpush2.bf16.msra.mxu0 0
    %8796 = vmatprep.subr.bf16.mxu0 0
    %8797 = vmatpush2.bf16.msra.mxu0 0
    %8798 = vmatprep.subr.bf16.mxu0 0
    %8799 = vmatpush2.bf16.msra.mxu0 0
    %8800 = vmatprep.subr.bf16.mxu0 0
    %8801 = vmatpush2.bf16.msra.mxu0 0
    %8802 = vmatprep.subr.bf16.mxu0 0
    %8803 = vmatpush2.bf16.msra.mxu0 0
    %8804 = vmatprep.mubr.bf16.mxu0 0
    %8805 = vmatmul.mubr.bf16.gmra.mxu0 %v8770
    %v8806 = vpop.f32.mrf.mxu0
    %v8807 = vadd.f32 0.0, %v8806
    %v8808 = vpop.f32.mrf.mxu0
    %v8809 = vpop.f32.mrf.mxu0
    %v8810 = vadd.f32 0.0, %v8809
    %v8811 = vpop.f32.mrf.mxu0
    %8812 = vdwg.mxu0
    %8813 = vrot.lane.b32.xlu0 %v1277, 32
    %v8814 = vpop.permute.xlu0 %8813
    %v8817 = vsel %vm2069, %v8383, 0
    %8819 = vmatprep.subr.bf16.mxu0 0
    %8820 = vmatpush1.bf16.msra.mxu0 0
    %8821 = vmatprep.subr.bf16.mxu0 0
    %8822 = vmatpush1.bf16.msra.mxu0 0
    %8823 = vmatprep.subr.bf16.mxu0 0
    %8824 = vmatpush1.bf16.msra.mxu0 0
    %8825 = vmatprep.subr.bf16.mxu0 0
    %8826 = vmatpush1.bf16.msra.mxu0 0
    %8827 = vmatprep.subr.bf16.mxu0 0
    %8828 = vmatpush1.bf16.msra.mxu0 0
    %8829 = vmatprep.subr.bf16.mxu0 0
    %8830 = vmatpush1.bf16.msra.mxu0 0
    %8831 = vmatprep.subr.bf16.mxu0 0
    %8832 = vmatpush1.bf16.msra.mxu0 0
    %8833 = vmatprep.subr.bf16.mxu0 0
    %8834 = vmatpush1.bf16.msra.mxu0 %v8814
    %8835 = vmatprep.subr.bf16.mxu0 0
    %8836 = vmatpush2.bf16.msra.mxu0 0
    %8837 = vmatprep.subr.bf16.mxu0 0
    %8838 = vmatpush2.bf16.msra.mxu0 0
    %8839 = vmatprep.subr.bf16.mxu0 0
    %8840 = vmatpush2.bf16.msra.mxu0 0
    %8841 = vmatprep.subr.bf16.mxu0 0
    %8842 = vmatpush2.bf16.msra.mxu0 0
    %8843 = vmatprep.subr.bf16.mxu0 0
    %8844 = vmatpush2.bf16.msra.mxu0 0
    %8845 = vmatprep.subr.bf16.mxu0 0
    %8846 = vmatpush2.bf16.msra.mxu0 0
    %8847 = vmatprep.subr.bf16.mxu0 0
    %8848 = vmatpush2.bf16.msra.mxu0 0
    %8849 = vmatprep.subr.bf16.mxu0 0
    %8850 = vmatpush2.bf16.msra.mxu0 0
    %8851 = vmatprep.mubr.bf16.mxu0 0
    %8852 = vmatmul.mubr.bf16.gmra.mxu0 %v8817
    %v8853 = vpop.f32.mrf.mxu0
    %v8854 = vadd.f32 0.0, %v8853
    %v8855 = vpop.f32.mrf.mxu0
    %v8856 = vpop.f32.mrf.mxu0
    %v8857 = vadd.f32 0.0, %v8856
    %v8858 = vpop.f32.mrf.mxu0
    %8859 = vdwg.mxu0
    %8860 = vrot.lane.b32.xlu0 %v1278, 32
    %v8861 = vpop.permute.xlu0 %8860
    %v8864 = vsel %vm2069, %v8384, 0
    %8866 = vmatprep.subr.bf16.mxu0 0
    %8867 = vmatpush1.bf16.msra.mxu0 0
    %8868 = vmatprep.subr.bf16.mxu0 0
    %8869 = vmatpush1.bf16.msra.mxu0 0
    %8870 = vmatprep.subr.bf16.mxu0 0
    %8871 = vmatpush1.bf16.msra.mxu0 0
    %8872 = vmatprep.subr.bf16.mxu0 0
    %8873 = vmatpush1.bf16.msra.mxu0 0
    %8874 = vmatprep.subr.bf16.mxu0 0
    %8875 = vmatpush1.bf16.msra.mxu0 0
    %8876 = vmatprep.subr.bf16.mxu0 0
    %8877 = vmatpush1.bf16.msra.mxu0 0
    %8878 = vmatprep.subr.bf16.mxu0 0
    %8879 = vmatpush1.bf16.msra.mxu0 0
    %8880 = vmatprep.subr.bf16.mxu0 0
    %8881 = vmatpush1.bf16.msra.mxu0 %v8861
    %8882 = vmatprep.subr.bf16.mxu0 0
    %8883 = vmatpush2.bf16.msra.mxu0 0
    %8884 = vmatprep.subr.bf16.mxu0 0
    %8885 = vmatpush2.bf16.msra.mxu0 0
    %8886 = vmatprep.subr.bf16.mxu0 0
    %8887 = vmatpush2.bf16.msra.mxu0 0
    %8888 = vmatprep.subr.bf16.mxu0 0
    %8889 = vmatpush2.bf16.msra.mxu0 0
    %8890 = vmatprep.subr.bf16.mxu0 0
    %8891 = vmatpush2.bf16.msra.mxu0 0
    %8892 = vmatprep.subr.bf16.mxu0 0
    %8893 = vmatpush2.bf16.msra.mxu0 0
    %8894 = vmatprep.subr.bf16.mxu0 0
    %8895 = vmatpush2.bf16.msra.mxu0 0
    %8896 = vmatprep.subr.bf16.mxu0 0
    %8897 = vmatpush2.bf16.msra.mxu0 0
    %8898 = vmatprep.mubr.bf16.mxu0 0
    %8899 = vmatmul.mubr.bf16.gmra.mxu0 %v8864
    %v8900 = vpop.f32.mrf.mxu0
    %v8901 = vadd.f32 0.0, %v8900
    %v8902 = vpop.f32.mrf.mxu0
    %v8903 = vpop.f32.mrf.mxu0
    %v8904 = vadd.f32 0.0, %v8903
    %v8905 = vpop.f32.mrf.mxu0
    %8906 = vdwg.mxu0
    %8907 = vrot.lane.b32.xlu0 %v1279, 32
    %v8908 = vpop.permute.xlu0 %8907
    %v8911 = vsel %vm2069, %v8385, 0
    %8913 = vmatprep.subr.bf16.mxu0 0
    %8914 = vmatpush1.bf16.msra.mxu0 0
    %8915 = vmatprep.subr.bf16.mxu0 0
    %8916 = vmatpush1.bf16.msra.mxu0 0
    %8917 = vmatprep.subr.bf16.mxu0 0
    %8918 = vmatpush1.bf16.msra.mxu0 0
    %8919 = vmatprep.subr.bf16.mxu0 0
    %8920 = vmatpush1.bf16.msra.mxu0 0
    %8921 = vmatprep.subr.bf16.mxu0 0
    %8922 = vmatpush1.bf16.msra.mxu0 0
    %8923 = vmatprep.subr.bf16.mxu0 0
    %8924 = vmatpush1.bf16.msra.mxu0 0
    %8925 = vmatprep.subr.bf16.mxu0 0
    %8926 = vmatpush1.bf16.msra.mxu0 0
    %8927 = vmatprep.subr.bf16.mxu0 0
    %8928 = vmatpush1.bf16.msra.mxu0 %v8908
    %8929 = vmatprep.subr.bf16.mxu0 0
    %8930 = vmatpush2.bf16.msra.mxu0 0
    %8931 = vmatprep.subr.bf16.mxu0 0
    %8932 = vmatpush2.bf16.msra.mxu0 0
    %8933 = vmatprep.subr.bf16.mxu0 0
    %8934 = vmatpush2.bf16.msra.mxu0 0
    %8935 = vmatprep.subr.bf16.mxu0 0
    %8936 = vmatpush2.bf16.msra.mxu0 0
    %8937 = vmatprep.subr.bf16.mxu0 0
    %8938 = vmatpush2.bf16.msra.mxu0 0
    %8939 = vmatprep.subr.bf16.mxu0 0
    %8940 = vmatpush2.bf16.msra.mxu0 0
    %8941 = vmatprep.subr.bf16.mxu0 0
    %8942 = vmatpush2.bf16.msra.mxu0 0
    %8943 = vmatprep.subr.bf16.mxu0 0
    %8944 = vmatpush2.bf16.msra.mxu0 0
    %8945 = vmatprep.mubr.bf16.mxu0 0
    %8946 = vmatmul.mubr.bf16.gmra.mxu0 %v8911
    %v8947 = vpop.f32.mrf.mxu0
    %v8948 = vadd.f32 0.0, %v8947
    %v8949 = vpop.f32.mrf.mxu0
    %v8950 = vpop.f32.mrf.mxu0
    %v8951 = vadd.f32 0.0, %v8950
    %v8952 = vpop.f32.mrf.mxu0
    %8953 = vdwg.mxu0
    %8954 = vrot.lane.b32.xlu0 %v1280, 32
    %v8955 = vpop.permute.xlu0 %8954
    %v8958 = vsel %vm2069, %v8386, 0
    %8960 = vmatprep.subr.bf16.mxu0 0
    %8961 = vmatpush1.bf16.msra.mxu0 0
    %8962 = vmatprep.subr.bf16.mxu0 0
    %8963 = vmatpush1.bf16.msra.mxu0 0
    %8964 = vmatprep.subr.bf16.mxu0 0
    %8965 = vmatpush1.bf16.msra.mxu0 0
    %8966 = vmatprep.subr.bf16.mxu0 0
    %8967 = vmatpush1.bf16.msra.mxu0 0
    %8968 = vmatprep.subr.bf16.mxu0 0
    %8969 = vmatpush1.bf16.msra.mxu0 0
    %8970 = vmatprep.subr.bf16.mxu0 0
    %8971 = vmatpush1.bf16.msra.mxu0 0
    %8972 = vmatprep.subr.bf16.mxu0 0
    %8973 = vmatpush1.bf16.msra.mxu0 0
    %8974 = vmatprep.subr.bf16.mxu0 0
    %8975 = vmatpush1.bf16.msra.mxu0 %v8955
    %8976 = vmatprep.subr.bf16.mxu0 0
    %8977 = vmatpush2.bf16.msra.mxu0 0
    %8978 = vmatprep.subr.bf16.mxu0 0
    %8979 = vmatpush2.bf16.msra.mxu0 0
    %8980 = vmatprep.subr.bf16.mxu0 0
    %8981 = vmatpush2.bf16.msra.mxu0 0
    %8982 = vmatprep.subr.bf16.mxu0 0
    %8983 = vmatpush2.bf16.msra.mxu0 0
    %8984 = vmatprep.subr.bf16.mxu0 0
    %8985 = vmatpush2.bf16.msra.mxu0 0
    %8986 = vmatprep.subr.bf16.mxu0 0
    %8987 = vmatpush2.bf16.msra.mxu0 0
    %8988 = vmatprep.subr.bf16.mxu0 0
    %8989 = vmatpush2.bf16.msra.mxu0 0
    %8990 = vmatprep.subr.bf16.mxu0 0
    %8991 = vmatpush2.bf16.msra.mxu0 0
    %8992 = vmatprep.mubr.bf16.mxu0 0
    %8993 = vmatmul.mubr.bf16.gmra.mxu0 %v8958
    %v8994 = vpop.f32.mrf.mxu0
    %v8995 = vadd.f32 0.0, %v8994
    %v8996 = vpop.f32.mrf.mxu0
    %v8997 = vpop.f32.mrf.mxu0
    %v8998 = vadd.f32 0.0, %v8997
    %v8999 = vpop.f32.mrf.mxu0
    %9000 = vdwg.mxu0
    %9001 = vrot.lane.b32.xlu0 %v1281, 32
    %v9002 = vpop.permute.xlu0 %9001
    %v9005 = vsel %vm2069, %v8387, 0
    %9007 = vmatprep.subr.bf16.mxu0 0
    %9008 = vmatpush1.bf16.msra.mxu0 0
    %9009 = vmatprep.subr.bf16.mxu0 0
    %9010 = vmatpush1.bf16.msra.mxu0 0
    %9011 = vmatprep.subr.bf16.mxu0 0
    %9012 = vmatpush1.bf16.msra.mxu0 0
    %9013 = vmatprep.subr.bf16.mxu0 0
    %9014 = vmatpush1.bf16.msra.mxu0 0
    %9015 = vmatprep.subr.bf16.mxu0 0
    %9016 = vmatpush1.bf16.msra.mxu0 0
    %9017 = vmatprep.subr.bf16.mxu0 0
    %9018 = vmatpush1.bf16.msra.mxu0 0
    %9019 = vmatprep.subr.bf16.mxu0 0
    %9020 = vmatpush1.bf16.msra.mxu0 0
    %9021 = vmatprep.subr.bf16.mxu0 0
    %9022 = vmatpush1.bf16.msra.mxu0 %v9002
    %9023 = vmatprep.subr.bf16.mxu0 0
    %9024 = vmatpush2.bf16.msra.mxu0 0
    %9025 = vmatprep.subr.bf16.mxu0 0
    %9026 = vmatpush2.bf16.msra.mxu0 0
    %9027 = vmatprep.subr.bf16.mxu0 0
    %9028 = vmatpush2.bf16.msra.mxu0 0
    %9029 = vmatprep.subr.bf16.mxu0 0
    %9030 = vmatpush2.bf16.msra.mxu0 0
    %9031 = vmatprep.subr.bf16.mxu0 0
    %9032 = vmatpush2.bf16.msra.mxu0 0
    %9033 = vmatprep.subr.bf16.mxu0 0
    %9034 = vmatpush2.bf16.msra.mxu0 0
    %9035 = vmatprep.subr.bf16.mxu0 0
    %9036 = vmatpush2.bf16.msra.mxu0 0
    %9037 = vmatprep.subr.bf16.mxu0 0
    %9038 = vmatpush2.bf16.msra.mxu0 0
    %9039 = vmatprep.mubr.bf16.mxu0 0
    %9040 = vmatmul.mubr.bf16.gmra.mxu0 %v9005
    %v9041 = vpop.f32.mrf.mxu0
    %v9042 = vadd.f32 0.0, %v9041
    %v9043 = vpop.f32.mrf.mxu0
    %v9044 = vpop.f32.mrf.mxu0
    %v9045 = vadd.f32 0.0, %v9044
    %v9046 = vpop.f32.mrf.mxu0
    %9047 = vdwg.mxu0
    %9048 = vrot.lane.b32.xlu0 %v1282, 32
    %v9049 = vpop.permute.xlu0 %9048
    %v9052 = vsel %vm2069, %v8388, 0
    %9054 = vmatprep.subr.bf16.mxu0 0
    %9055 = vmatpush1.bf16.msra.mxu0 0
    %9056 = vmatprep.subr.bf16.mxu0 0
    %9057 = vmatpush1.bf16.msra.mxu0 0
    %9058 = vmatprep.subr.bf16.mxu0 0
    %9059 = vmatpush1.bf16.msra.mxu0 0
    %9060 = vmatprep.subr.bf16.mxu0 0
    %9061 = vmatpush1.bf16.msra.mxu0 0
    %9062 = vmatprep.subr.bf16.mxu0 0
    %9063 = vmatpush1.bf16.msra.mxu0 0
    %9064 = vmatprep.subr.bf16.mxu0 0
    %9065 = vmatpush1.bf16.msra.mxu0 0
    %9066 = vmatprep.subr.bf16.mxu0 0
    %9067 = vmatpush1.bf16.msra.mxu0 0
    %9068 = vmatprep.subr.bf16.mxu0 0
    %9069 = vmatpush1.bf16.msra.mxu0 %v9049
    %9070 = vmatprep.subr.bf16.mxu0 0
    %9071 = vmatpush2.bf16.msra.mxu0 0
    %9072 = vmatprep.subr.bf16.mxu0 0
    %9073 = vmatpush2.bf16.msra.mxu0 0
    %9074 = vmatprep.subr.bf16.mxu0 0
    %9075 = vmatpush2.bf16.msra.mxu0 0
    %9076 = vmatprep.subr.bf16.mxu0 0
    %9077 = vmatpush2.bf16.msra.mxu0 0
    %9078 = vmatprep.subr.bf16.mxu0 0
    %9079 = vmatpush2.bf16.msra.mxu0 0
    %9080 = vmatprep.subr.bf16.mxu0 0
    %9081 = vmatpush2.bf16.msra.mxu0 0
    %9082 = vmatprep.subr.bf16.mxu0 0
    %9083 = vmatpush2.bf16.msra.mxu0 0
    %9084 = vmatprep.subr.bf16.mxu0 0
    %9085 = vmatpush2.bf16.msra.mxu0 0
    %9086 = vmatprep.mubr.bf16.mxu0 0
    %9087 = vmatmul.mubr.bf16.gmra.mxu0 %v9052
    %v9088 = vpop.f32.mrf.mxu0
    %v9089 = vadd.f32 0.0, %v9088
    %v9090 = vpop.f32.mrf.mxu0
    %v9091 = vpop.f32.mrf.mxu0
    %v9092 = vadd.f32 0.0, %v9091
    %v9093 = vpop.f32.mrf.mxu0
    %9094 = vdwg.mxu0
    %9095 = vrot.lane.b32.xlu0 %v1283, 32
    %v9096 = vpop.permute.xlu0 %9095
    %v9099 = vsel %vm2069, %v8389, 0
    %9101 = vmatprep.subr.bf16.mxu0 0
    %9102 = vmatpush1.bf16.msra.mxu0 0
    %9103 = vmatprep.subr.bf16.mxu0 0
    %9104 = vmatpush1.bf16.msra.mxu0 0
    %9105 = vmatprep.subr.bf16.mxu0 0
    %9106 = vmatpush1.bf16.msra.mxu0 0
    %9107 = vmatprep.subr.bf16.mxu0 0
    %9108 = vmatpush1.bf16.msra.mxu0 0
    %9109 = vmatprep.subr.bf16.mxu0 0
    %9110 = vmatpush1.bf16.msra.mxu0 0
    %9111 = vmatprep.subr.bf16.mxu0 0
    %9112 = vmatpush1.bf16.msra.mxu0 0
    %9113 = vmatprep.subr.bf16.mxu0 0
    %9114 = vmatpush1.bf16.msra.mxu0 0
    %9115 = vmatprep.subr.bf16.mxu0 0
    %9116 = vmatpush1.bf16.msra.mxu0 %v9096
    %9117 = vmatprep.subr.bf16.mxu0 0
    %9118 = vmatpush2.bf16.msra.mxu0 0
    %9119 = vmatprep.subr.bf16.mxu0 0
    %9120 = vmatpush2.bf16.msra.mxu0 0
    %9121 = vmatprep.subr.bf16.mxu0 0
    %9122 = vmatpush2.bf16.msra.mxu0 0
    %9123 = vmatprep.subr.bf16.mxu0 0
    %9124 = vmatpush2.bf16.msra.mxu0 0
    %9125 = vmatprep.subr.bf16.mxu0 0
    %9126 = vmatpush2.bf16.msra.mxu0 0
    %9127 = vmatprep.subr.bf16.mxu0 0
    %9128 = vmatpush2.bf16.msra.mxu0 0
    %9129 = vmatprep.subr.bf16.mxu0 0
    %9130 = vmatpush2.bf16.msra.mxu0 0
    %9131 = vmatprep.subr.bf16.mxu0 0
    %9132 = vmatpush2.bf16.msra.mxu0 0
    %9133 = vmatprep.mubr.bf16.mxu0 0
    %9134 = vmatmul.mubr.bf16.gmra.mxu0 %v9099
    %v9135 = vpop.f32.mrf.mxu0
    %v9136 = vadd.f32 0.0, %v9135
    %v9137 = vpop.f32.mrf.mxu0
    %v9138 = vpop.f32.mrf.mxu0
    %v9139 = vadd.f32 0.0, %v9138
    %v9140 = vpop.f32.mrf.mxu0
    %9141 = vdwg.mxu0
    %v9142 = vpack.c.bf16 %v8434, %v8431
    %v9143 = vpack.c.bf16 %v8481, %v8478
    %v9144 = vpack.c.bf16 %v8528, %v8525
    %v9145 = vpack.c.bf16 %v8575, %v8572
    %v9146 = vpack.c.bf16 %v8622, %v8619
    %v9147 = vpack.c.bf16 %v8669, %v8666
    %v9148 = vpack.c.bf16 %v8716, %v8713
    %v9149 = vpack.c.bf16 %v8763, %v8760
    %v9150 = vpack.c.bf16 %v8810, %v8807
    %v9151 = vpack.c.bf16 %v8857, %v8854
    %v9152 = vpack.c.bf16 %v8904, %v8901
    %v9153 = vpack.c.bf16 %v8951, %v8948
    %v9154 = vpack.c.bf16 %v8998, %v8995
    %v9155 = vpack.c.bf16 %v9045, %v9042
    %v9156 = vpack.c.bf16 %v9092, %v9089
    %v9157 = vpack.c.bf16 %v9139, %v9136
    %9174 = vrot.lane.b32.xlu0 %v5174, 32
    %v9175 = vpop.permute.xlu0 %9174
    %9176 = vrot.lane.b32.xlu0 %v5175, 32
    %v9177 = vpop.permute.xlu0 %9176
    %9178 = vrot.lane.b32.xlu0 %v5176, 32
    %v9179 = vpop.permute.xlu0 %9178
    %9180 = vrot.lane.b32.xlu0 %v5177, 32
    %v9181 = vpop.permute.xlu0 %9180
    %9182 = vrot.lane.b32.xlu0 %v5178, 32
    %v9183 = vpop.permute.xlu0 %9182
    %9184 = vrot.lane.b32.xlu0 %v5179, 32
    %v9185 = vpop.permute.xlu0 %9184
    %9186 = vrot.lane.b32.xlu0 %v5180, 32
    %v9187 = vpop.permute.xlu0 %9186
    %9188 = vrot.lane.b32.xlu0 %v5181, 32
    %v9189 = vpop.permute.xlu0 %9188
    %9190 = vrot.lane.b32.xlu0 %v5182, 32
    %v9191 = vpop.permute.xlu0 %9190
    %9192 = vrot.lane.b32.xlu0 %v5183, 32
    %v9193 = vpop.permute.xlu0 %9192
    %9194 = vrot.lane.b32.xlu0 %v5184, 32
    %v9195 = vpop.permute.xlu0 %9194
    %9196 = vrot.lane.b32.xlu0 %v5185, 32
    %v9197 = vpop.permute.xlu0 %9196
    %9198 = vrot.lane.b32.xlu0 %v5186, 32
    %v9199 = vpop.permute.xlu0 %9198
    %9200 = vrot.lane.b32.xlu0 %v5187, 32
    %v9201 = vpop.permute.xlu0 %9200
    %9202 = vrot.lane.b32.xlu0 %v5188, 32
    %v9203 = vpop.permute.xlu0 %9202
    %9204 = vrot.lane.b32.xlu0 %v5189, 32
    %v9205 = vpop.permute.xlu0 %9204
    %9222 = vrot.lane.b32.xlu0 %v7158, 64
    %v9223 = vpop.permute.xlu0 %9222
    %9224 = vrot.lane.b32.xlu0 %v7159, 64
    %v9225 = vpop.permute.xlu0 %9224
    %9226 = vrot.lane.b32.xlu0 %v7160, 64
    %v9227 = vpop.permute.xlu0 %9226
    %9228 = vrot.lane.b32.xlu0 %v7161, 64
    %v9229 = vpop.permute.xlu0 %9228
    %9230 = vrot.lane.b32.xlu0 %v7162, 64
    %v9231 = vpop.permute.xlu0 %9230
    %9232 = vrot.lane.b32.xlu0 %v7163, 64
    %v9233 = vpop.permute.xlu0 %9232
    %9234 = vrot.lane.b32.xlu0 %v7164, 64
    %v9235 = vpop.permute.xlu0 %9234
    %9236 = vrot.lane.b32.xlu0 %v7165, 64
    %v9237 = vpop.permute.xlu0 %9236
    %9238 = vrot.lane.b32.xlu0 %v7166, 64
    %v9239 = vpop.permute.xlu0 %9238
    %9240 = vrot.lane.b32.xlu0 %v7167, 64
    %v9241 = vpop.permute.xlu0 %9240
    %9242 = vrot.lane.b32.xlu0 %v7168, 64
    %v9243 = vpop.permute.xlu0 %9242
    %9244 = vrot.lane.b32.xlu0 %v7169, 64
    %v9245 = vpop.permute.xlu0 %9244
    %9246 = vrot.lane.b32.xlu0 %v7170, 64
    %v9247 = vpop.permute.xlu0 %9246
    %9248 = vrot.lane.b32.xlu0 %v7171, 64
    %v9249 = vpop.permute.xlu0 %9248
    %9250 = vrot.lane.b32.xlu0 %v7172, 64
    %v9251 = vpop.permute.xlu0 %9250
    %9252 = vrot.lane.b32.xlu0 %v7173, 64
    %v9253 = vpop.permute.xlu0 %9252
    %9270 = vrot.lane.b32.xlu0 %v9142, 96
    %v9271 = vpop.permute.xlu0 %9270
    %9272 = vrot.lane.b32.xlu0 %v9143, 96
    %v9273 = vpop.permute.xlu0 %9272
    %9274 = vrot.lane.b32.xlu0 %v9144, 96
    %v9275 = vpop.permute.xlu0 %9274
    %9276 = vrot.lane.b32.xlu0 %v9145, 96
    %v9277 = vpop.permute.xlu0 %9276
    %9278 = vrot.lane.b32.xlu0 %v9146, 96
    %v9279 = vpop.permute.xlu0 %9278
    %9280 = vrot.lane.b32.xlu0 %v9147, 96
    %v9281 = vpop.permute.xlu0 %9280
    %9282 = vrot.lane.b32.xlu0 %v9148, 96
    %v9283 = vpop.permute.xlu0 %9282
    %9284 = vrot.lane.b32.xlu0 %v9149, 96
    %v9285 = vpop.permute.xlu0 %9284
    %9286 = vrot.lane.b32.xlu0 %v9150, 96
    %v9287 = vpop.permute.xlu0 %9286
    %9288 = vrot.lane.b32.xlu0 %v9151, 96
    %v9289 = vpop.permute.xlu0 %9288
    %9290 = vrot.lane.b32.xlu0 %v9152, 96
    %v9291 = vpop.permute.xlu0 %9290
    %9292 = vrot.lane.b32.xlu0 %v9153, 96
    %v9293 = vpop.permute.xlu0 %9292
    %9294 = vrot.lane.b32.xlu0 %v9154, 96
    %v9295 = vpop.permute.xlu0 %9294
    %9296 = vrot.lane.b32.xlu0 %v9155, 96
    %v9297 = vpop.permute.xlu0 %9296
    %9298 = vrot.lane.b32.xlu0 %v9156, 96
    %v9299 = vpop.permute.xlu0 %9298
    %9300 = vrot.lane.b32.xlu0 %v9157, 96
    %v9301 = vpop.permute.xlu0 %9300
    %v9304 = vsel %vm1284, %v3142, %v9175
    %v9307 = vsel %vm1284, %v3143, %v9177
    %v9310 = vsel %vm1284, %v3144, %v9179
    %v9313 = vsel %vm1284, %v3145, %v9181
    %v9316 = vsel %vm1284, %v3146, %v9183
    %v9319 = vsel %vm1284, %v3147, %v9185
    %v9322 = vsel %vm1284, %v3148, %v9187
    %v9325 = vsel %vm1284, %v3149, %v9189
    %v9328 = vsel %vm1284, %v3150, %v9191
    %v9331 = vsel %vm1284, %v3151, %v9193
    %v9334 = vsel %vm1284, %v3152, %v9195
    %v9337 = vsel %vm1284, %v3153, %v9197
    %v9340 = vsel %vm1284, %v3154, %v9199
    %v9343 = vsel %vm1284, %v3155, %v9201
    %v9346 = vsel %vm1284, %v3156, %v9203
    %v9349 = vsel %vm1284, %v3157, %v9205
    %v9351 = vsel %vm271, %v9304, %v9223
    %v9353 = vsel %vm271, %v9307, %v9225
    %v9355 = vsel %vm271, %v9310, %v9227
    %v9357 = vsel %vm271, %v9313, %v9229
    %v9359 = vsel %vm271, %v9316, %v9231
    %v9361 = vsel %vm271, %v9319, %v9233
    %v9363 = vsel %vm271, %v9322, %v9235
    %v9365 = vsel %vm271, %v9325, %v9237
    %v9367 = vsel %vm271, %v9328, %v9239
    %v9369 = vsel %vm271, %v9331, %v9241
    %v9371 = vsel %vm271, %v9334, %v9243
    %v9373 = vsel %vm271, %v9337, %v9245
    %v9375 = vsel %vm271, %v9340, %v9247
    %v9377 = vsel %vm271, %v9343, %v9249
    %v9379 = vsel %vm271, %v9346, %v9251
    %v9381 = vsel %vm271, %v9349, %v9253
    %vm9382 = vcmask 785408
    %v9384 = vsel %vm9382, %v9351, %v9271
    %v9387 = vsel %vm9382, %v9353, %v9273
    %v9390 = vsel %vm9382, %v9355, %v9275
    %v9393 = vsel %vm9382, %v9357, %v9277
    %v9396 = vsel %vm9382, %v9359, %v9279
    %v9399 = vsel %vm9382, %v9361, %v9281
    %v9402 = vsel %vm9382, %v9363, %v9283
    %v9405 = vsel %vm9382, %v9365, %v9285
    %v9408 = vsel %vm9382, %v9367, %v9287
    %v9411 = vsel %vm9382, %v9369, %v9289
    %v9414 = vsel %vm9382, %v9371, %v9291
    %v9417 = vsel %vm9382, %v9373, %v9293
    %v9420 = vsel %vm9382, %v9375, %v9295
    %v9423 = vsel %vm9382, %v9377, %v9297
    %v9426 = vsel %vm9382, %v9379, %v9299
    %v9429 = vsel %vm9382, %v9381, %v9301
    %v9431 = vld [vmem:[%s5] sm:$0xf]
    %v9432 = vld [vmem:[%s5 + $0x4] sm:$0xf]
    %v9433 = vld [vmem:[%s5 + $0x8] sm:$0xf]
    %v9434 = vld [vmem:[%s5 + $0xc] sm:$0xf]
    %v9435 = vld [vmem:[%s5 + $0x10] sm:$0xf]
    %v9436 = vld [vmem:[%s5 + $0x14] sm:$0xf]
    %v9437 = vld [vmem:[%s5 + $0x18] sm:$0xf]
    %v9438 = vld [vmem:[%s5 + $0x1c] sm:$0xf]
    %v9439 = vld [vmem:[%s5 + $0x20] sm:$0xf]
    %v9440 = vld [vmem:[%s5 + $0x24] sm:$0xf]
    %v9441 = vld [vmem:[%s5 + $0x28] sm:$0xf]
    %v9442 = vld [vmem:[%s5 + $0x2c] sm:$0xf]
    %v9443 = vld [vmem:[%s5 + $0x30] sm:$0xf]
    %v9444 = vld [vmem:[%s5 + $0x34] sm:$0xf]
    %v9445 = vld [vmem:[%s5 + $0x38] sm:$0xf]
    %v9446 = vld [vmem:[%s5 + $0x3c] sm:$0xf]
    %v9447 = vld [vmem:[%s6] sm:$0x1]
    %v9449 = vlaneseq
    %v9450 = vshrl.u32 %v9449, 7
    %v9451 = vsub.s32 0, %v9450
    %v9452 = vrot.slane %v9447, %v9451
    %v9470 = vunpack.c.l.b16 %v9431
    %v9471 = vunpack.c.l.b16 %v9432
    %v9472 = vunpack.c.l.b16 %v9433
    %v9473 = vunpack.c.l.b16 %v9434
    %v9474 = vunpack.c.l.b16 %v9435
    %v9475 = vunpack.c.l.b16 %v9436
    %v9476 = vunpack.c.l.b16 %v9437
    %v9477 = vunpack.c.l.b16 %v9438
    %v9478 = vunpack.c.l.b16 %v9439
    %v9479 = vunpack.c.l.b16 %v9440
    %v9480 = vunpack.c.l.b16 %v9441
    %v9481 = vunpack.c.l.b16 %v9442
    %v9482 = vunpack.c.l.b16 %v9443
    %v9483 = vunpack.c.l.b16 %v9444
    %v9484 = vunpack.c.l.b16 %v9445
    %v9485 = vunpack.c.l.b16 %v9446
    %v9486 = vpack.c.b16 %v9471, %v9470
    %v9487 = vpack.c.b16 %v9473, %v9472
    %v9488 = vpack.c.b16 %v9475, %v9474
    %v9489 = vpack.c.b16 %v9477, %v9476
    %v9490 = vpack.c.b16 %v9479, %v9478
    %v9491 = vpack.c.b16 %v9481, %v9480
    %v9492 = vpack.c.b16 %v9483, %v9482
    %v9493 = vpack.c.b16 %v9485, %v9484
    %9502 = vmatprep.subr.bf16.mxu0 0
    %9503 = vmatpush1.bf16.msra.mxu0 %v9493
    %9504 = vmatprep.subr.bf16.mxu0 0
    %9505 = vmatpush1.bf16.msra.mxu0 %v9492
    %9506 = vmatprep.subr.bf16.mxu0 0
    %9507 = vmatpush1.bf16.msra.mxu0 %v9491
    %9508 = vmatprep.subr.bf16.mxu0 0
    %9509 = vmatpush1.bf16.msra.mxu0 %v9490
    %9510 = vmatprep.subr.bf16.mxu0 0
    %9511 = vmatpush1.bf16.msra.mxu0 %v9489
    %9512 = vmatprep.subr.bf16.mxu0 0
    %9513 = vmatpush1.bf16.msra.mxu0 %v9488
    %9514 = vmatprep.subr.bf16.mxu0 0
    %9515 = vmatpush1.bf16.msra.mxu0 %v9487
    %9516 = vmatprep.subr.bf16.mxu0 0
    %9517 = vmatpush1.bf16.msra.mxu0 %v9486
    %9518 = vmatprep.subr.bf16.mxu0 0
    %9519 = vmatpush2.bf16.msra.mxu0 0
    %9520 = vmatprep.subr.bf16.mxu0 0
    %9521 = vmatpush2.bf16.msra.mxu0 0
    %9522 = vmatprep.subr.bf16.mxu0 0
    %9523 = vmatpush2.bf16.msra.mxu0 0
    %9524 = vmatprep.subr.bf16.mxu0 0
    %9525 = vmatpush2.bf16.msra.mxu0 0
    %9526 = vmatprep.subr.bf16.mxu0 0
    %9527 = vmatpush2.bf16.msra.mxu0 0
    %9528 = vmatprep.subr.bf16.mxu0 0
    %9529 = vmatpush2.bf16.msra.mxu0 0
    %9530 = vmatprep.subr.bf16.mxu0 0
    %9531 = vmatpush2.bf16.msra.mxu0 0
    %9532 = vmatprep.subr.bf16.mxu0 0
    %9533 = vmatpush2.bf16.msra.mxu0 0
    %9534 = vmatprep.mubr.bf16.mxu0 0
    %9535 = vmatmul.mubr.bf16.gmra.mxu0 %v9384
    %v9536 = vpop.f32.mrf.mxu0
    %v9537 = vadd.f32 %v9452, %v9536
    %v9538 = vpop.f32.mrf.mxu0
    %v9539 = vpop.f32.mrf.mxu0
    %v9540 = vadd.f32 %v9452, %v9539
    %v9541 = vpop.f32.mrf.mxu0
    %9542 = vmatprep.mubr.bf16.mxu0 0
    %9543 = vmatmul.mubr.bf16.gmra.mxu0 %v9387
    %v9544 = vpop.f32.mrf.mxu0
    %v9545 = vadd.f32 %v9452, %v9544
    %v9546 = vpop.f32.mrf.mxu0
    %v9547 = vpop.f32.mrf.mxu0
    %v9548 = vadd.f32 %v9452, %v9547
    %v9549 = vpop.f32.mrf.mxu0
    %9550 = vmatprep.mubr.bf16.mxu0 0
    %9551 = vmatmul.mubr.bf16.gmra.mxu0 %v9390
    %v9552 = vpop.f32.mrf.mxu0
    %v9553 = vadd.f32 %v9452, %v9552
    %v9554 = vpop.f32.mrf.mxu0
    %v9555 = vpop.f32.mrf.mxu0
    %v9556 = vadd.f32 %v9452, %v9555
    %v9557 = vpop.f32.mrf.mxu0
    %9558 = vmatprep.mubr.bf16.mxu0 0
    %9559 = vmatmul.mubr.bf16.gmra.mxu0 %v9393
    %v9560 = vpop.f32.mrf.mxu0
    %v9561 = vadd.f32 %v9452, %v9560
    %v9562 = vpop.f32.mrf.mxu0
    %v9563 = vpop.f32.mrf.mxu0
    %v9564 = vadd.f32 %v9452, %v9563
    %v9565 = vpop.f32.mrf.mxu0
    %9566 = vmatprep.mubr.bf16.mxu0 0
    %9567 = vmatmul.mubr.bf16.gmra.mxu0 %v9396
    %v9568 = vpop.f32.mrf.mxu0
    %v9569 = vadd.f32 %v9452, %v9568
    %v9570 = vpop.f32.mrf.mxu0
    %v9571 = vpop.f32.mrf.mxu0
    %v9572 = vadd.f32 %v9452, %v9571
    %v9573 = vpop.f32.mrf.mxu0
    %9574 = vmatprep.mubr.bf16.mxu0 0
    %9575 = vmatmul.mubr.bf16.gmra.mxu0 %v9399
    %v9576 = vpop.f32.mrf.mxu0
    %v9577 = vadd.f32 %v9452, %v9576
    %v9578 = vpop.f32.mrf.mxu0
    %v9579 = vpop.f32.mrf.mxu0
    %v9580 = vadd.f32 %v9452, %v9579
    %v9581 = vpop.f32.mrf.mxu0
    %9582 = vmatprep.mubr.bf16.mxu0 0
    %9583 = vmatmul.mubr.bf16.gmra.mxu0 %v9402
    %v9584 = vpop.f32.mrf.mxu0
    %v9585 = vadd.f32 %v9452, %v9584
    %v9586 = vpop.f32.mrf.mxu0
    %v9587 = vpop.f32.mrf.mxu0
    %v9588 = vadd.f32 %v9452, %v9587
    %v9589 = vpop.f32.mrf.mxu0
    %9590 = vmatprep.mubr.bf16.mxu0 0
    %9591 = vmatmul.mubr.bf16.gmra.mxu0 %v9405
    %v9592 = vpop.f32.mrf.mxu0
    %v9593 = vadd.f32 %v9452, %v9592
    %v9594 = vpop.f32.mrf.mxu0
    %v9595 = vpop.f32.mrf.mxu0
    %v9596 = vadd.f32 %v9452, %v9595
    %v9597 = vpop.f32.mrf.mxu0
    %9598 = vmatprep.mubr.bf16.mxu0 0
    %9599 = vmatmul.mubr.bf16.gmra.mxu0 %v9408
    %v9600 = vpop.f32.mrf.mxu0
    %v9601 = vadd.f32 %v9452, %v9600
    %v9602 = vpop.f32.mrf.mxu0
    %v9603 = vpop.f32.mrf.mxu0
    %v9604 = vadd.f32 %v9452, %v9603
    %v9605 = vpop.f32.mrf.mxu0
    %9606 = vmatprep.mubr.bf16.mxu0 0
    %9607 = vmatmul.mubr.bf16.gmra.mxu0 %v9411
    %v9608 = vpop.f32.mrf.mxu0
    %v9609 = vadd.f32 %v9452, %v9608
    %v9610 = vpop.f32.mrf.mxu0
    %v9611 = vpop.f32.mrf.mxu0
    %v9612 = vadd.f32 %v9452, %v9611
    %v9613 = vpop.f32.mrf.mxu0
    %9614 = vmatprep.mubr.bf16.mxu0 0
    %9615 = vmatmul.mubr.bf16.gmra.mxu0 %v9414
    %v9616 = vpop.f32.mrf.mxu0
    %v9617 = vadd.f32 %v9452, %v9616
    %v9618 = vpop.f32.mrf.mxu0
    %v9619 = vpop.f32.mrf.mxu0
    %v9620 = vadd.f32 %v9452, %v9619
    %v9621 = vpop.f32.mrf.mxu0
    %9622 = vmatprep.mubr.bf16.mxu0 0
    %9623 = vmatmul.mubr.bf16.gmra.mxu0 %v9417
    %v9624 = vpop.f32.mrf.mxu0
    %v9625 = vadd.f32 %v9452, %v9624
    %v9626 = vpop.f32.mrf.mxu0
    %v9627 = vpop.f32.mrf.mxu0
    %v9628 = vadd.f32 %v9452, %v9627
    %v9629 = vpop.f32.mrf.mxu0
    %9630 = vmatprep.mubr.bf16.mxu0 0
    %9631 = vmatmul.mubr.bf16.gmra.mxu0 %v9420
    %v9632 = vpop.f32.mrf.mxu0
    %v9633 = vadd.f32 %v9452, %v9632
    %v9634 = vpop.f32.mrf.mxu0
    %v9635 = vpop.f32.mrf.mxu0
    %v9636 = vadd.f32 %v9452, %v9635
    %v9637 = vpop.f32.mrf.mxu0
    %9638 = vmatprep.mubr.bf16.mxu0 0
    %9639 = vmatmul.mubr.bf16.gmra.mxu0 %v9423
    %v9640 = vpop.f32.mrf.mxu0
    %v9641 = vadd.f32 %v9452, %v9640
    %v9642 = vpop.f32.mrf.mxu0
    %v9643 = vpop.f32.mrf.mxu0
    %v9644 = vadd.f32 %v9452, %v9643
    %v9645 = vpop.f32.mrf.mxu0
    %9646 = vmatprep.mubr.bf16.mxu0 0
    %9647 = vmatmul.mubr.bf16.gmra.mxu0 %v9426
    %v9648 = vpop.f32.mrf.mxu0
    %v9649 = vadd.f32 %v9452, %v9648
    %v9650 = vpop.f32.mrf.mxu0
    %v9651 = vpop.f32.mrf.mxu0
    %v9652 = vadd.f32 %v9452, %v9651
    %v9653 = vpop.f32.mrf.mxu0
    %9654 = vmatprep.mubr.bf16.mxu0 0
    %9655 = vmatmul.mubr.bf16.gmra.mxu0 %v9429
    %v9656 = vpop.f32.mrf.mxu0
    %v9657 = vadd.f32 %v9452, %v9656
    %v9658 = vpop.f32.mrf.mxu0
    %v9659 = vpop.f32.mrf.mxu0
    %v9660 = vadd.f32 %v9452, %v9659
    %v9661 = vpop.f32.mrf.mxu0
    %9662 = vdwg.mxu0
    %v9663 = vpack.c.bf16 %v9540, %v9537
    %v9664 = vpack.c.bf16 %v9548, %v9545
    %v9665 = vpack.c.bf16 %v9556, %v9553
    %v9666 = vpack.c.bf16 %v9564, %v9561
    %v9667 = vpack.c.bf16 %v9572, %v9569
    %v9668 = vpack.c.bf16 %v9580, %v9577
    %v9669 = vpack.c.bf16 %v9588, %v9585
    %v9670 = vpack.c.bf16 %v9596, %v9593
    %v9671 = vpack.c.bf16 %v9604, %v9601
    %v9672 = vpack.c.bf16 %v9612, %v9609
    %v9673 = vpack.c.bf16 %v9620, %v9617
    %v9674 = vpack.c.bf16 %v9628, %v9625
    %v9675 = vpack.c.bf16 %v9636, %v9633
    %v9676 = vpack.c.bf16 %v9644, %v9641
    %v9677 = vpack.c.bf16 %v9652, %v9649
    %v9678 = vpack.c.bf16 %v9660, %v9657
    %v9679 = vld [vmem:[%s7] sm:$0xf]
    %v9680 = vld [vmem:[%s7 + $0x4] sm:$0xf]
    %v9681 = vld [vmem:[%s7 + $0x8] sm:$0xf]
    %v9682 = vld [vmem:[%s7 + $0xc] sm:$0xf]
    %v9683 = vld [vmem:[%s7 + $0x10] sm:$0xf]
    %v9684 = vld [vmem:[%s7 + $0x14] sm:$0xf]
    %v9685 = vld [vmem:[%s7 + $0x18] sm:$0xf]
    %v9686 = vld [vmem:[%s7 + $0x1c] sm:$0xf]
    %v9687 = vld [vmem:[%s7 + $0x20] sm:$0xf]
    %v9688 = vld [vmem:[%s7 + $0x24] sm:$0xf]
    %v9689 = vld [vmem:[%s7 + $0x28] sm:$0xf]
    %v9690 = vld [vmem:[%s7 + $0x2c] sm:$0xf]
    %v9691 = vld [vmem:[%s7 + $0x30] sm:$0xf]
    %v9692 = vld [vmem:[%s7 + $0x34] sm:$0xf]
    %v9693 = vld [vmem:[%s7 + $0x38] sm:$0xf]
    %v9694 = vld [vmem:[%s7 + $0x3c] sm:$0xf]
    %v9695 = vld [vmem:[%s8] sm:$0x1]
    %v9697 = vlaneseq
    %v9698 = vshrl.u32 %v9697, 7
    %v9699 = vsub.s32 0, %v9698
    %v9700 = vrot.slane %v9695, %v9699
    %v9718 = vunpack.c.l.b16 %v9679
    %v9719 = vunpack.c.l.b16 %v9680
    %v9720 = vunpack.c.l.b16 %v9681
    %v9721 = vunpack.c.l.b16 %v9682
    %v9722 = vunpack.c.l.b16 %v9683
    %v9723 = vunpack.c.l.b16 %v9684
    %v9724 = vunpack.c.l.b16 %v9685
    %v9725 = vunpack.c.l.b16 %v9686
    %v9726 = vunpack.c.l.b16 %v9687
    %v9727 = vunpack.c.l.b16 %v9688
    %v9728 = vunpack.c.l.b16 %v9689
    %v9729 = vunpack.c.l.b16 %v9690
    %v9730 = vunpack.c.l.b16 %v9691
    %v9731 = vunpack.c.l.b16 %v9692
    %v9732 = vunpack.c.l.b16 %v9693
    %v9733 = vunpack.c.l.b16 %v9694
    %v9734 = vpack.c.b16 %v9719, %v9718
    %v9735 = vpack.c.b16 %v9721, %v9720
    %v9736 = vpack.c.b16 %v9723, %v9722
    %v9737 = vpack.c.b16 %v9725, %v9724
    %v9738 = vpack.c.b16 %v9727, %v9726
    %v9739 = vpack.c.b16 %v9729, %v9728
    %v9740 = vpack.c.b16 %v9731, %v9730
    %v9741 = vpack.c.b16 %v9733, %v9732
    %9750 = vmatprep.subr.bf16.mxu0 0
    %9751 = vmatpush1.bf16.msra.mxu0 %v9741
    %9752 = vmatprep.subr.bf16.mxu0 0
    %9753 = vmatpush1.bf16.msra.mxu0 %v9740
    %9754 = vmatprep.subr.bf16.mxu0 0
    %9755 = vmatpush1.bf16.msra.mxu0 %v9739
    %9756 = vmatprep.subr.bf16.mxu0 0
    %9757 = vmatpush1.bf16.msra.mxu0 %v9738
    %9758 = vmatprep.subr.bf16.mxu0 0
    %9759 = vmatpush1.bf16.msra.mxu0 %v9737
    %9760 = vmatprep.subr.bf16.mxu0 0
    %9761 = vmatpush1.bf16.msra.mxu0 %v9736
    %9762 = vmatprep.subr.bf16.mxu0 0
    %9763 = vmatpush1.bf16.msra.mxu0 %v9735
    %9764 = vmatprep.subr.bf16.mxu0 0
    %9765 = vmatpush1.bf16.msra.mxu0 %v9734
    %9766 = vmatprep.subr.bf16.mxu0 0
    %9767 = vmatpush2.bf16.msra.mxu0 0
    %9768 = vmatprep.subr.bf16.mxu0 0
    %9769 = vmatpush2.bf16.msra.mxu0 0
    %9770 = vmatprep.subr.bf16.mxu0 0
    %9771 = vmatpush2.bf16.msra.mxu0 0
    %9772 = vmatprep.subr.bf16.mxu0 0
    %9773 = vmatpush2.bf16.msra.mxu0 0
    %9774 = vmatprep.subr.bf16.mxu0 0
    %9775 = vmatpush2.bf16.msra.mxu0 0
    %9776 = vmatprep.subr.bf16.mxu0 0
    %9777 = vmatpush2.bf16.msra.mxu0 0
    %9778 = vmatprep.subr.bf16.mxu0 0
    %9779 = vmatpush2.bf16.msra.mxu0 0
    %9780 = vmatprep.subr.bf16.mxu0 0
    %9781 = vmatpush2.bf16.msra.mxu0 0
    %9782 = vmatprep.mubr.bf16.mxu0 0
    %9783 = vmatmul.mubr.bf16.gmra.mxu0 %v9663
    %v9784 = vpop.f32.mrf.mxu0
    %v9785 = vadd.f32 %v9700, %v9784
    %v9786 = vpop.f32.mrf.mxu0
    %v9787 = vpop.f32.mrf.mxu0
    %v9788 = vadd.f32 %v9700, %v9787
    %v9789 = vpop.f32.mrf.mxu0
    %9790 = vmatprep.mubr.bf16.mxu0 0
    %9791 = vmatmul.mubr.bf16.gmra.mxu0 %v9664
    %v9792 = vpop.f32.mrf.mxu0
    %v9793 = vadd.f32 %v9700, %v9792
    %v9794 = vpop.f32.mrf.mxu0
    %v9795 = vpop.f32.mrf.mxu0
    %v9796 = vadd.f32 %v9700, %v9795
    %v9797 = vpop.f32.mrf.mxu0
    %9798 = vmatprep.mubr.bf16.mxu0 0
    %9799 = vmatmul.mubr.bf16.gmra.mxu0 %v9665
    %v9800 = vpop.f32.mrf.mxu0
    %v9801 = vadd.f32 %v9700, %v9800
    %v9802 = vpop.f32.mrf.mxu0
    %v9803 = vpop.f32.mrf.mxu0
    %v9804 = vadd.f32 %v9700, %v9803
    %v9805 = vpop.f32.mrf.mxu0
    %9806 = vmatprep.mubr.bf16.mxu0 0
    %9807 = vmatmul.mubr.bf16.gmra.mxu0 %v9666
    %v9808 = vpop.f32.mrf.mxu0
    %v9809 = vadd.f32 %v9700, %v9808
    %v9810 = vpop.f32.mrf.mxu0
    %v9811 = vpop.f32.mrf.mxu0
    %v9812 = vadd.f32 %v9700, %v9811
    %v9813 = vpop.f32.mrf.mxu0
    %9814 = vmatprep.mubr.bf16.mxu0 0
    %9815 = vmatmul.mubr.bf16.gmra.mxu0 %v9667
    %v9816 = vpop.f32.mrf.mxu0
    %v9817 = vadd.f32 %v9700, %v9816
    %v9818 = vpop.f32.mrf.mxu0
    %v9819 = vpop.f32.mrf.mxu0
    %v9820 = vadd.f32 %v9700, %v9819
    %v9821 = vpop.f32.mrf.mxu0
    %9822 = vmatprep.mubr.bf16.mxu0 0
    %9823 = vmatmul.mubr.bf16.gmra.mxu0 %v9668
    %v9824 = vpop.f32.mrf.mxu0
    %v9825 = vadd.f32 %v9700, %v9824
    %v9826 = vpop.f32.mrf.mxu0
    %v9827 = vpop.f32.mrf.mxu0
    %v9828 = vadd.f32 %v9700, %v9827
    %v9829 = vpop.f32.mrf.mxu0
    %9830 = vmatprep.mubr.bf16.mxu0 0
    %9831 = vmatmul.mubr.bf16.gmra.mxu0 %v9669
    %v9832 = vpop.f32.mrf.mxu0
    %v9833 = vadd.f32 %v9700, %v9832
    %v9834 = vpop.f32.mrf.mxu0
    %v9835 = vpop.f32.mrf.mxu0
    %v9836 = vadd.f32 %v9700, %v9835
    %v9837 = vpop.f32.mrf.mxu0
    %9838 = vmatprep.mubr.bf16.mxu0 0
    %9839 = vmatmul.mubr.bf16.gmra.mxu0 %v9670
    %v9840 = vpop.f32.mrf.mxu0
    %v9841 = vadd.f32 %v9700, %v9840
    %v9842 = vpop.f32.mrf.mxu0
    %v9843 = vpop.f32.mrf.mxu0
    %v9844 = vadd.f32 %v9700, %v9843
    %v9845 = vpop.f32.mrf.mxu0
    %9846 = vmatprep.mubr.bf16.mxu0 0
    %9847 = vmatmul.mubr.bf16.gmra.mxu0 %v9671
    %v9848 = vpop.f32.mrf.mxu0
    %v9849 = vadd.f32 %v9700, %v9848
    %v9850 = vpop.f32.mrf.mxu0
    %v9851 = vpop.f32.mrf.mxu0
    %v9852 = vadd.f32 %v9700, %v9851
    %v9853 = vpop.f32.mrf.mxu0
    %9854 = vmatprep.mubr.bf16.mxu0 0
    %9855 = vmatmul.mubr.bf16.gmra.mxu0 %v9672
    %v9856 = vpop.f32.mrf.mxu0
    %v9857 = vadd.f32 %v9700, %v9856
    %v9858 = vpop.f32.mrf.mxu0
    %v9859 = vpop.f32.mrf.mxu0
    %v9860 = vadd.f32 %v9700, %v9859
    %v9861 = vpop.f32.mrf.mxu0
    %9862 = vmatprep.mubr.bf16.mxu0 0
    %9863 = vmatmul.mubr.bf16.gmra.mxu0 %v9673
    %v9864 = vpop.f32.mrf.mxu0
    %v9865 = vadd.f32 %v9700, %v9864
    %v9866 = vpop.f32.mrf.mxu0
    %v9867 = vpop.f32.mrf.mxu0
    %v9868 = vadd.f32 %v9700, %v9867
    %v9869 = vpop.f32.mrf.mxu0
    %9870 = vmatprep.mubr.bf16.mxu0 0
    %9871 = vmatmul.mubr.bf16.gmra.mxu0 %v9674
    %v9872 = vpop.f32.mrf.mxu0
    %v9873 = vadd.f32 %v9700, %v9872
    %v9874 = vpop.f32.mrf.mxu0
    %v9875 = vpop.f32.mrf.mxu0
    %v9876 = vadd.f32 %v9700, %v9875
    %v9877 = vpop.f32.mrf.mxu0
    %9878 = vmatprep.mubr.bf16.mxu0 0
    %9879 = vmatmul.mubr.bf16.gmra.mxu0 %v9675
    %v9880 = vpop.f32.mrf.mxu0
    %v9881 = vadd.f32 %v9700, %v9880
    %v9882 = vpop.f32.mrf.mxu0
    %v9883 = vpop.f32.mrf.mxu0
    %v9884 = vadd.f32 %v9700, %v9883
    %v9885 = vpop.f32.mrf.mxu0
    %9886 = vmatprep.mubr.bf16.mxu0 0
    %9887 = vmatmul.mubr.bf16.gmra.mxu0 %v9676
    %v9888 = vpop.f32.mrf.mxu0
    %v9889 = vadd.f32 %v9700, %v9888
    %v9890 = vpop.f32.mrf.mxu0
    %v9891 = vpop.f32.mrf.mxu0
    %v9892 = vadd.f32 %v9700, %v9891
    %v9893 = vpop.f32.mrf.mxu0
    %9894 = vmatprep.mubr.bf16.mxu0 0
    %9895 = vmatmul.mubr.bf16.gmra.mxu0 %v9677
    %v9896 = vpop.f32.mrf.mxu0
    %v9897 = vadd.f32 %v9700, %v9896
    %v9898 = vpop.f32.mrf.mxu0
    %v9899 = vpop.f32.mrf.mxu0
    %v9900 = vadd.f32 %v9700, %v9899
    %v9901 = vpop.f32.mrf.mxu0
    %9902 = vmatprep.mubr.bf16.mxu0 0
    %9903 = vmatmul.mubr.bf16.gmra.mxu0 %v9678
    %v9904 = vpop.f32.mrf.mxu0
    %v9905 = vadd.f32 %v9700, %v9904
    %v9906 = vpop.f32.mrf.mxu0
    %v9907 = vpop.f32.mrf.mxu0
    %v9908 = vadd.f32 %v9700, %v9907
    %v9909 = vpop.f32.mrf.mxu0
    %9910 = vdwg.mxu0
    %v9911 = vtanh.pop %v9785
    %v9912 = vtanh.pop %v9788
    %v9913 = vtanh.pop %v9793
    %v9914 = vtanh.pop %v9796
    %v9915 = vtanh.pop %v9801
    %v9916 = vtanh.pop %v9804
    %v9917 = vtanh.pop %v9809
    %v9918 = vtanh.pop %v9812
    %v9919 = vtanh.pop %v9817
    %v9920 = vtanh.pop %v9820
    %v9921 = vtanh.pop %v9825
    %v9922 = vtanh.pop %v9828
    %v9923 = vtanh.pop %v9833
    %v9924 = vtanh.pop %v9836
    %v9925 = vtanh.pop %v9841
    %v9926 = vtanh.pop %v9844
    %v9927 = vtanh.pop %v9849
    %v9928 = vtanh.pop %v9852
    %v9929 = vtanh.pop %v9857
    %v9930 = vtanh.pop %v9860
    %v9931 = vtanh.pop %v9865
    %v9932 = vtanh.pop %v9868
    %v9933 = vtanh.pop %v9873
    %v9934 = vtanh.pop %v9876
    %v9935 = vtanh.pop %v9881
    %v9936 = vtanh.pop %v9884
    %v9937 = vtanh.pop %v9889
    %v9938 = vtanh.pop %v9892
    %v9939 = vtanh.pop %v9897
    %v9940 = vtanh.pop %v9900
    %v9941 = vtanh.pop %v9905
    %v9942 = vtanh.pop %v9908
    %v9943 = vld [vmem:[%s9] sm:$0x1]
    %v9945 = vlaneseq
    %v9946 = vshrl.u32 %v9945, 7
    %v9947 = vsub.s32 0, %v9946
    %v9948 = vrot.slane %v9943, %v9947
    %v9950 = vmul.f32 %v9911, %v9948
    %v9951 = vmul.f32 %v9912, %v9948
    %v9952 = vmul.f32 %v9913, %v9948
    %v9953 = vmul.f32 %v9914, %v9948
    %v9954 = vmul.f32 %v9915, %v9948
    %v9955 = vmul.f32 %v9916, %v9948
    %v9956 = vmul.f32 %v9917, %v9948
    %v9957 = vmul.f32 %v9918, %v9948
    %v9958 = vmul.f32 %v9919, %v9948
    %v9959 = vmul.f32 %v9920, %v9948
    %v9960 = vmul.f32 %v9921, %v9948
    %v9961 = vmul.f32 %v9922, %v9948
    %v9962 = vmul.f32 %v9923, %v9948
    %v9963 = vmul.f32 %v9924, %v9948
    %v9964 = vmul.f32 %v9925, %v9948
    %v9965 = vmul.f32 %v9926, %v9948
    %v9966 = vmul.f32 %v9927, %v9948
    %v9967 = vmul.f32 %v9928, %v9948
    %v9968 = vmul.f32 %v9929, %v9948
    %v9969 = vmul.f32 %v9930, %v9948
    %v9970 = vmul.f32 %v9931, %v9948
    %v9971 = vmul.f32 %v9932, %v9948
    %v9972 = vmul.f32 %v9933, %v9948
    %v9973 = vmul.f32 %v9934, %v9948
    %v9974 = vmul.f32 %v9935, %v9948
    %v9975 = vmul.f32 %v9936, %v9948
    %v9976 = vmul.f32 %v9937, %v9948
    %v9977 = vmul.f32 %v9938, %v9948
    %v9978 = vmul.f32 %v9939, %v9948
    %v9979 = vmul.f32 %v9940, %v9948
    %v9980 = vmul.f32 %v9941, %v9948
    %v9981 = vmul.f32 %v9942, %v9948
    %v9982 = vsel %vm1284, %v9950, 0.0
    %9983 = vadd.xlane.f32.xlu0 %v9982
    %v9984 = vpop.xlane.xlu0 %9983
    %v9985 = vsel %vm1284, %v9951, 0.0
    %9986 = vadd.xlane.f32.xlu0 %v9985
    %v9987 = vpop.xlane.xlu0 %9986
    %v9988 = vsel %vm1284, %v9952, 0.0
    %9989 = vadd.xlane.f32.xlu0 %v9988
    %v9990 = vpop.xlane.xlu0 %9989
    %v9991 = vsel %vm1284, %v9953, 0.0
    %9992 = vadd.xlane.f32.xlu0 %v9991
    %v9993 = vpop.xlane.xlu0 %9992
    %v9994 = vsel %vm1284, %v9954, 0.0
    %9995 = vadd.xlane.f32.xlu0 %v9994
    %v9996 = vpop.xlane.xlu0 %9995
    %v9997 = vsel %vm1284, %v9955, 0.0
    %9998 = vadd.xlane.f32.xlu0 %v9997
    %v9999 = vpop.xlane.xlu0 %9998
    %v10000 = vsel %vm1284, %v9956, 0.0
    %10001 = vadd.xlane.f32.xlu0 %v10000
    %v10002 = vpop.xlane.xlu0 %10001
    %v10003 = vsel %vm1284, %v9957, 0.0
    %10004 = vadd.xlane.f32.xlu0 %v10003
    %v10005 = vpop.xlane.xlu0 %10004
    %v10006 = vsel %vm1284, %v9958, 0.0
    %10007 = vadd.xlane.f32.xlu0 %v10006
    %v10008 = vpop.xlane.xlu0 %10007
    %v10009 = vsel %vm1284, %v9959, 0.0
    %10010 = vadd.xlane.f32.xlu0 %v10009
    %v10011 = vpop.xlane.xlu0 %10010
    %v10012 = vsel %vm1284, %v9960, 0.0
    %10013 = vadd.xlane.f32.xlu0 %v10012
    %v10014 = vpop.xlane.xlu0 %10013
    %v10015 = vsel %vm1284, %v9961, 0.0
    %10016 = vadd.xlane.f32.xlu0 %v10015
    %v10017 = vpop.xlane.xlu0 %10016
    %v10018 = vsel %vm1284, %v9962, 0.0
    %10019 = vadd.xlane.f32.xlu0 %v10018
    %v10020 = vpop.xlane.xlu0 %10019
    %v10021 = vsel %vm1284, %v9963, 0.0
    %10022 = vadd.xlane.f32.xlu0 %v10021
    %v10023 = vpop.xlane.xlu0 %10022
    %v10024 = vsel %vm1284, %v9964, 0.0
    %10025 = vadd.xlane.f32.xlu0 %v10024
    %v10026 = vpop.xlane.xlu0 %10025
    %v10027 = vsel %vm1284, %v9965, 0.0
    %10028 = vadd.xlane.f32.xlu0 %v10027
    %v10029 = vpop.xlane.xlu0 %10028
    %v10030 = vsel %vm1284, %v9966, 0.0
    %10031 = vadd.xlane.f32.xlu0 %v10030
    %v10032 = vpop.xlane.xlu0 %10031
    %v10033 = vsel %vm1284, %v9967, 0.0
    %10034 = vadd.xlane.f32.xlu0 %v10033
    %v10035 = vpop.xlane.xlu0 %10034
    %v10036 = vsel %vm1284, %v9968, 0.0
    %10037 = vadd.xlane.f32.xlu0 %v10036
    %v10038 = vpop.xlane.xlu0 %10037
    %v10039 = vsel %vm1284, %v9969, 0.0
    %10040 = vadd.xlane.f32.xlu0 %v10039
    %v10041 = vpop.xlane.xlu0 %10040
    %v10042 = vsel %vm1284, %v9970, 0.0
    %10043 = vadd.xlane.f32.xlu0 %v10042
    %v10044 = vpop.xlane.xlu0 %10043
    %v10045 = vsel %vm1284, %v9971, 0.0
    %10046 = vadd.xlane.f32.xlu0 %v10045
    %v10047 = vpop.xlane.xlu0 %10046
    %v10048 = vsel %vm1284, %v9972, 0.0
    %10049 = vadd.xlane.f32.xlu0 %v10048
    %v10050 = vpop.xlane.xlu0 %10049
    %v10051 = vsel %vm1284, %v9973, 0.0
    %10052 = vadd.xlane.f32.xlu0 %v10051
    %v10053 = vpop.xlane.xlu0 %10052
    %v10054 = vsel %vm1284, %v9974, 0.0
    %10055 = vadd.xlane.f32.xlu0 %v10054
    %v10056 = vpop.xlane.xlu0 %10055
    %v10057 = vsel %vm1284, %v9975, 0.0
    %10058 = vadd.xlane.f32.xlu0 %v10057
    %v10059 = vpop.xlane.xlu0 %10058
    %v10060 = vsel %vm1284, %v9976, 0.0
    %10061 = vadd.xlane.f32.xlu0 %v10060
    %v10062 = vpop.xlane.xlu0 %10061
    %v10063 = vsel %vm1284, %v9977, 0.0
    %10064 = vadd.xlane.f32.xlu0 %v10063
    %v10065 = vpop.xlane.xlu0 %10064
    %v10066 = vsel %vm1284, %v9978, 0.0
    %10067 = vadd.xlane.f32.xlu0 %v10066
    %v10068 = vpop.xlane.xlu0 %10067
    %v10069 = vsel %vm1284, %v9979, 0.0
    %10070 = vadd.xlane.f32.xlu0 %v10069
    %v10071 = vpop.xlane.xlu0 %10070
    %v10072 = vsel %vm1284, %v9980, 0.0
    %10073 = vadd.xlane.f32.xlu0 %v10072
    %v10074 = vpop.xlane.xlu0 %10073
    %v10075 = vsel %vm1284, %v9981, 0.0
    %10076 = vadd.xlane.f32.xlu0 %v10075
    %v10077 = vpop.xlane.xlu0 %10076
    %v10078 = vmax.f32 %v9984, %v9987
    %v10079 = vrot.slane %v10078, 4
    %v10080 = vmax.f32 %v10078, %v10079
    %v10081 = vrot.slane %v10080, 2
    %v10082 = vmax.f32 %v10080, %v10081
    %v10083 = vrot.slane %v10082, 1
    %v10084 = vmax.f32 %v10082, %v10083
    %v10085 = vmax.f32 %v9990, %v9993
    %v10086 = vrot.slane %v10085, 4
    %v10087 = vmax.f32 %v10085, %v10086
    %v10088 = vrot.slane %v10087, 2
    %v10089 = vmax.f32 %v10087, %v10088
    %v10090 = vrot.slane %v10089, 1
    %v10091 = vmax.f32 %v10089, %v10090
    %v10092 = vmax.f32 %v9996, %v9999
    %v10093 = vrot.slane %v10092, 4
    %v10094 = vmax.f32 %v10092, %v10093
    %v10095 = vrot.slane %v10094, 2
    %v10096 = vmax.f32 %v10094, %v10095
    %v10097 = vrot.slane %v10096, 1
    %v10098 = vmax.f32 %v10096, %v10097
    %v10099 = vmax.f32 %v10002, %v10005
    %v10100 = vrot.slane %v10099, 4
    %v10101 = vmax.f32 %v10099, %v10100
    %v10102 = vrot.slane %v10101, 2
    %v10103 = vmax.f32 %v10101, %v10102
    %v10104 = vrot.slane %v10103, 1
    %v10105 = vmax.f32 %v10103, %v10104
    %v10106 = vmax.f32 %v10008, %v10011
    %v10107 = vrot.slane %v10106, 4
    %v10108 = vmax.f32 %v10106, %v10107
    %v10109 = vrot.slane %v10108, 2
    %v10110 = vmax.f32 %v10108, %v10109
    %v10111 = vrot.slane %v10110, 1
    %v10112 = vmax.f32 %v10110, %v10111
    %v10113 = vmax.f32 %v10014, %v10017
    %v10114 = vrot.slane %v10113, 4
    %v10115 = vmax.f32 %v10113, %v10114
    %v10116 = vrot.slane %v10115, 2
    %v10117 = vmax.f32 %v10115, %v10116
    %v10118 = vrot.slane %v10117, 1
    %v10119 = vmax.f32 %v10117, %v10118
    %v10120 = vmax.f32 %v10020, %v10023
    %v10121 = vrot.slane %v10120, 4
    %v10122 = vmax.f32 %v10120, %v10121
    %v10123 = vrot.slane %v10122, 2
    %v10124 = vmax.f32 %v10122, %v10123
    %v10125 = vrot.slane %v10124, 1
    %v10126 = vmax.f32 %v10124, %v10125
    %v10127 = vmax.f32 %v10026, %v10029
    %v10128 = vrot.slane %v10127, 4
    %v10129 = vmax.f32 %v10127, %v10128
    %v10130 = vrot.slane %v10129, 2
    %v10131 = vmax.f32 %v10129, %v10130
    %v10132 = vrot.slane %v10131, 1
    %v10133 = vmax.f32 %v10131, %v10132
    %v10134 = vmax.f32 %v10032, %v10035
    %v10135 = vrot.slane %v10134, 4
    %v10136 = vmax.f32 %v10134, %v10135
    %v10137 = vrot.slane %v10136, 2
    %v10138 = vmax.f32 %v10136, %v10137
    %v10139 = vrot.slane %v10138, 1
    %v10140 = vmax.f32 %v10138, %v10139
    %v10141 = vmax.f32 %v10038, %v10041
    %v10142 = vrot.slane %v10141, 4
    %v10143 = vmax.f32 %v10141, %v10142
    %v10144 = vrot.slane %v10143, 2
    %v10145 = vmax.f32 %v10143, %v10144
    %v10146 = vrot.slane %v10145, 1
    %v10147 = vmax.f32 %v10145, %v10146
    %v10148 = vmax.f32 %v10044, %v10047
    %v10149 = vrot.slane %v10148, 4
    %v10150 = vmax.f32 %v10148, %v10149
    %v10151 = vrot.slane %v10150, 2
    %v10152 = vmax.f32 %v10150, %v10151
    %v10153 = vrot.slane %v10152, 1
    %v10154 = vmax.f32 %v10152, %v10153
    %v10155 = vmax.f32 %v10050, %v10053
    %v10156 = vrot.slane %v10155, 4
    %v10157 = vmax.f32 %v10155, %v10156
    %v10158 = vrot.slane %v10157, 2
    %v10159 = vmax.f32 %v10157, %v10158
    %v10160 = vrot.slane %v10159, 1
    %v10161 = vmax.f32 %v10159, %v10160
    %v10162 = vmax.f32 %v10056, %v10059
    %v10163 = vrot.slane %v10162, 4
    %v10164 = vmax.f32 %v10162, %v10163
    %v10165 = vrot.slane %v10164, 2
    %v10166 = vmax.f32 %v10164, %v10165
    %v10167 = vrot.slane %v10166, 1
    %v10168 = vmax.f32 %v10166, %v10167
    %v10169 = vmax.f32 %v10062, %v10065
    %v10170 = vrot.slane %v10169, 4
    %v10171 = vmax.f32 %v10169, %v10170
    %v10172 = vrot.slane %v10171, 2
    %v10173 = vmax.f32 %v10171, %v10172
    %v10174 = vrot.slane %v10173, 1
    %v10175 = vmax.f32 %v10173, %v10174
    %v10176 = vmax.f32 %v10068, %v10071
    %v10177 = vrot.slane %v10176, 4
    %v10178 = vmax.f32 %v10176, %v10177
    %v10179 = vrot.slane %v10178, 2
    %v10180 = vmax.f32 %v10178, %v10179
    %v10181 = vrot.slane %v10180, 1
    %v10182 = vmax.f32 %v10180, %v10181
    %v10183 = vmax.f32 %v10074, %v10077
    %v10184 = vrot.slane %v10183, 4
    %v10185 = vmax.f32 %v10183, %v10184
    %v10186 = vrot.slane %v10185, 2
    %v10187 = vmax.f32 %v10185, %v10186
    %v10188 = vrot.slane %v10187, 1
    %v10189 = vmax.f32 %v10187, %v10188
    %v10190 = vsub.f32 %v9984, %v10084
    %v10191 = vsub.f32 %v9987, %v10084
    %v10192 = vsub.f32 %v9990, %v10091
    %v10193 = vsub.f32 %v9993, %v10091
    %v10194 = vsub.f32 %v9996, %v10098
    %v10195 = vsub.f32 %v9999, %v10098
    %v10196 = vsub.f32 %v10002, %v10105
    %v10197 = vsub.f32 %v10005, %v10105
    %v10198 = vsub.f32 %v10008, %v10112
    %v10199 = vsub.f32 %v10011, %v10112
    %v10200 = vsub.f32 %v10014, %v10119
    %v10201 = vsub.f32 %v10017, %v10119
    %v10202 = vsub.f32 %v10020, %v10126
    %v10203 = vsub.f32 %v10023, %v10126
    %v10204 = vsub.f32 %v10026, %v10133
    %v10205 = vsub.f32 %v10029, %v10133
    %v10206 = vsub.f32 %v10032, %v10140
    %v10207 = vsub.f32 %v10035, %v10140
    %v10208 = vsub.f32 %v10038, %v10147
    %v10209 = vsub.f32 %v10041, %v10147
    %v10210 = vsub.f32 %v10044, %v10154
    %v10211 = vsub.f32 %v10047, %v10154
    %v10212 = vsub.f32 %v10050, %v10161
    %v10213 = vsub.f32 %v10053, %v10161
    %v10214 = vsub.f32 %v10056, %v10168
    %v10215 = vsub.f32 %v10059, %v10168
    %v10216 = vsub.f32 %v10062, %v10175
    %v10217 = vsub.f32 %v10065, %v10175
    %v10218 = vsub.f32 %v10068, %v10182
    %v10219 = vsub.f32 %v10071, %v10182
    %v10220 = vsub.f32 %v10074, %v10189
    %v10221 = vsub.f32 %v10077, %v10189
    %v10222 = vmul.f32 %v10190, 1.442695
    %v10223 = vpow.pop %v10222
    %v10224 = vmul.f32 %v10191, 1.442695
    %v10225 = vpow.pop %v10224
    %v10226 = vmul.f32 %v10192, 1.442695
    %v10227 = vpow.pop %v10226
    %v10228 = vmul.f32 %v10193, 1.442695
    %v10229 = vpow.pop %v10228
    %v10230 = vmul.f32 %v10194, 1.442695
    %v10231 = vpow.pop %v10230
    %v10232 = vmul.f32 %v10195, 1.442695
    %v10233 = vpow.pop %v10232
    %v10234 = vmul.f32 %v10196, 1.442695
    %v10235 = vpow.pop %v10234
    %v10236 = vmul.f32 %v10197, 1.442695
    %v10237 = vpow.pop %v10236
    %v10238 = vmul.f32 %v10198, 1.442695
    %v10239 = vpow.pop %v10238
    %v10240 = vmul.f32 %v10199, 1.442695
    %v10241 = vpow.pop %v10240
    %v10242 = vmul.f32 %v10200, 1.442695
    %v10243 = vpow.pop %v10242
    %v10244 = vmul.f32 %v10201, 1.442695
    %v10245 = vpow.pop %v10244
    %v10246 = vmul.f32 %v10202, 1.442695
    %v10247 = vpow.pop %v10246
    %v10248 = vmul.f32 %v10203, 1.442695
    %v10249 = vpow.pop %v10248
    %v10250 = vmul.f32 %v10204, 1.442695
    %v10251 = vpow.pop %v10250
    %v10252 = vmul.f32 %v10205, 1.442695
    %v10253 = vpow.pop %v10252
    %v10254 = vmul.f32 %v10206, 1.442695
    %v10255 = vpow.pop %v10254
    %v10256 = vmul.f32 %v10207, 1.442695
    %v10257 = vpow.pop %v10256
    %v10258 = vmul.f32 %v10208, 1.442695
    %v10259 = vpow.pop %v10258
    %v10260 = vmul.f32 %v10209, 1.442695
    %v10261 = vpow.pop %v10260
    %v10262 = vmul.f32 %v10210, 1.442695
    %v10263 = vpow.pop %v10262
    %v10264 = vmul.f32 %v10211, 1.442695
    %v10265 = vpow.pop %v10264
    %v10266 = vmul.f32 %v10212, 1.442695
    %v10267 = vpow.pop %v10266
    %v10268 = vmul.f32 %v10213, 1.442695
    %v10269 = vpow.pop %v10268
    %v10270 = vmul.f32 %v10214, 1.442695
    %v10271 = vpow.pop %v10270
    %v10272 = vmul.f32 %v10215, 1.442695
    %v10273 = vpow.pop %v10272
    %v10274 = vmul.f32 %v10216, 1.442695
    %v10275 = vpow.pop %v10274
    %v10276 = vmul.f32 %v10217, 1.442695
    %v10277 = vpow.pop %v10276
    %v10278 = vmul.f32 %v10218, 1.442695
    %v10279 = vpow.pop %v10278
    %v10280 = vmul.f32 %v10219, 1.442695
    %v10281 = vpow.pop %v10280
    %v10282 = vmul.f32 %v10220, 1.442695
    %v10283 = vpow.pop %v10282
    %v10284 = vmul.f32 %v10221, 1.442695
    %v10285 = vpow.pop %v10284
    %v10286 = vadd.f32 %v10223, %v10225
    %v10287 = vrot.slane %v10286, 4
    %v10288 = vadd.f32 %v10286, %v10287
    %v10289 = vrot.slane %v10288, 2
    %v10290 = vadd.f32 %v10288, %v10289
    %v10291 = vrot.slane %v10290, 1
    %v10292 = vadd.f32 %v10290, %v10291
    %v10293 = vadd.f32 %v10227, %v10229
    %v10294 = vrot.slane %v10293, 4
    %v10295 = vadd.f32 %v10293, %v10294
    %v10296 = vrot.slane %v10295, 2
    %v10297 = vadd.f32 %v10295, %v10296
    %v10298 = vrot.slane %v10297, 1
    %v10299 = vadd.f32 %v10297, %v10298
    %v10300 = vadd.f32 %v10231, %v10233
    %v10301 = vrot.slane %v10300, 4
    %v10302 = vadd.f32 %v10300, %v10301
    %v10303 = vrot.slane %v10302, 2
    %v10304 = vadd.f32 %v10302, %v10303
    %v10305 = vrot.slane %v10304, 1
    %v10306 = vadd.f32 %v10304, %v10305
    %v10307 = vadd.f32 %v10235, %v10237
    %v10308 = vrot.slane %v10307, 4
    %v10309 = vadd.f32 %v10307, %v10308
    %v10310 = vrot.slane %v10309, 2
    %v10311 = vadd.f32 %v10309, %v10310
    %v10312 = vrot.slane %v10311, 1
    %v10313 = vadd.f32 %v10311, %v10312
    %v10314 = vadd.f32 %v10239, %v10241
    %v10315 = vrot.slane %v10314, 4
    %v10316 = vadd.f32 %v10314, %v10315
    %v10317 = vrot.slane %v10316, 2
    %v10318 = vadd.f32 %v10316, %v10317
    %v10319 = vrot.slane %v10318, 1
    %v10320 = vadd.f32 %v10318, %v10319
    %v10321 = vadd.f32 %v10243, %v10245
    %v10322 = vrot.slane %v10321, 4
    %v10323 = vadd.f32 %v10321, %v10322
    %v10324 = vrot.slane %v10323, 2
    %v10325 = vadd.f32 %v10323, %v10324
    %v10326 = vrot.slane %v10325, 1
    %v10327 = vadd.f32 %v10325, %v10326
    %v10328 = vadd.f32 %v10247, %v10249
    %v10329 = vrot.slane %v10328, 4
    %v10330 = vadd.f32 %v10328, %v10329
    %v10331 = vrot.slane %v10330, 2
    %v10332 = vadd.f32 %v10330, %v10331
    %v10333 = vrot.slane %v10332, 1
    %v10334 = vadd.f32 %v10332, %v10333
    %v10335 = vadd.f32 %v10251, %v10253
    %v10336 = vrot.slane %v10335, 4
    %v10337 = vadd.f32 %v10335, %v10336
    %v10338 = vrot.slane %v10337, 2
    %v10339 = vadd.f32 %v10337, %v10338
    %v10340 = vrot.slane %v10339, 1
    %v10341 = vadd.f32 %v10339, %v10340
    %v10342 = vadd.f32 %v10255, %v10257
    %v10343 = vrot.slane %v10342, 4
    %v10344 = vadd.f32 %v10342, %v10343
    %v10345 = vrot.slane %v10344, 2
    %v10346 = vadd.f32 %v10344, %v10345
    %v10347 = vrot.slane %v10346, 1
    %v10348 = vadd.f32 %v10346, %v10347
    %v10349 = vadd.f32 %v10259, %v10261
    %v10350 = vrot.slane %v10349, 4
    %v10351 = vadd.f32 %v10349, %v10350
    %v10352 = vrot.slane %v10351, 2
    %v10353 = vadd.f32 %v10351, %v10352
    %v10354 = vrot.slane %v10353, 1
    %v10355 = vadd.f32 %v10353, %v10354
    %v10356 = vadd.f32 %v10263, %v10265
    %v10357 = vrot.slane %v10356, 4
    %v10358 = vadd.f32 %v10356, %v10357
    %v10359 = vrot.slane %v10358, 2
    %v10360 = vadd.f32 %v10358, %v10359
    %v10361 = vrot.slane %v10360, 1
    %v10362 = vadd.f32 %v10360, %v10361
    %v10363 = vadd.f32 %v10267, %v10269
    %v10364 = vrot.slane %v10363, 4
    %v10365 = vadd.f32 %v10363, %v10364
    %v10366 = vrot.slane %v10365, 2
    %v10367 = vadd.f32 %v10365, %v10366
    %v10368 = vrot.slane %v10367, 1
    %v10369 = vadd.f32 %v10367, %v10368
    %v10370 = vadd.f32 %v10271, %v10273
    %v10371 = vrot.slane %v10370, 4
    %v10372 = vadd.f32 %v10370, %v10371
    %v10373 = vrot.slane %v10372, 2
    %v10374 = vadd.f32 %v10372, %v10373
    %v10375 = vrot.slane %v10374, 1
    %v10376 = vadd.f32 %v10374, %v10375
    %v10377 = vadd.f32 %v10275, %v10277
    %v10378 = vrot.slane %v10377, 4
    %v10379 = vadd.f32 %v10377, %v10378
    %v10380 = vrot.slane %v10379, 2
    %v10381 = vadd.f32 %v10379, %v10380
    %v10382 = vrot.slane %v10381, 1
    %v10383 = vadd.f32 %v10381, %v10382
    %v10384 = vadd.f32 %v10279, %v10281
    %v10385 = vrot.slane %v10384, 4
    %v10386 = vadd.f32 %v10384, %v10385
    %v10387 = vrot.slane %v10386, 2
    %v10388 = vadd.f32 %v10386, %v10387
    %v10389 = vrot.slane %v10388, 1
    %v10390 = vadd.f32 %v10388, %v10389
    %v10391 = vadd.f32 %v10283, %v10285
    %v10392 = vrot.slane %v10391, 4
    %v10393 = vadd.f32 %v10391, %v10392
    %v10394 = vrot.slane %v10393, 2
    %v10395 = vadd.f32 %v10393, %v10394
    %v10396 = vrot.slane %v10395, 1
    %v10397 = vadd.f32 %v10395, %v10396
    %v10398 = vrcp.pop %v10292
    %v10399 = vmul.f32 %v10223, %v10398
    %v10400 = vmul.f32 %v10225, %v10398
    %v10401 = vrcp.pop %v10299
    %v10402 = vmul.f32 %v10227, %v10401
    %v10403 = vmul.f32 %v10229, %v10401
    %v10404 = vrcp.pop %v10306
    %v10405 = vmul.f32 %v10231, %v10404
    %v10406 = vmul.f32 %v10233, %v10404
    %v10407 = vrcp.pop %v10313
    %v10408 = vmul.f32 %v10235, %v10407
    %v10409 = vmul.f32 %v10237, %v10407
    %v10410 = vrcp.pop %v10320
    %v10411 = vmul.f32 %v10239, %v10410
    %v10412 = vmul.f32 %v10241, %v10410
    %v10413 = vrcp.pop %v10327
    %v10414 = vmul.f32 %v10243, %v10413
    %v10415 = vmul.f32 %v10245, %v10413
    %v10416 = vrcp.pop %v10334
    %v10417 = vmul.f32 %v10247, %v10416
    %v10418 = vmul.f32 %v10249, %v10416
    %v10419 = vrcp.pop %v10341
    %v10420 = vmul.f32 %v10251, %v10419
    %v10421 = vmul.f32 %v10253, %v10419
    %v10422 = vrcp.pop %v10348
    %v10423 = vmul.f32 %v10255, %v10422
    %v10424 = vmul.f32 %v10257, %v10422
    %v10425 = vrcp.pop %v10355
    %v10426 = vmul.f32 %v10259, %v10425
    %v10427 = vmul.f32 %v10261, %v10425
    %v10428 = vrcp.pop %v10362
    %v10429 = vmul.f32 %v10263, %v10428
    %v10430 = vmul.f32 %v10265, %v10428
    %v10431 = vrcp.pop %v10369
    %v10432 = vmul.f32 %v10267, %v10431
    %v10433 = vmul.f32 %v10269, %v10431
    %v10434 = vrcp.pop %v10376
    %v10435 = vmul.f32 %v10271, %v10434
    %v10436 = vmul.f32 %v10273, %v10434
    %v10437 = vrcp.pop %v10383
    %v10438 = vmul.f32 %v10275, %v10437
    %v10439 = vmul.f32 %v10277, %v10437
    %v10440 = vrcp.pop %v10390
    %v10441 = vmul.f32 %v10279, %v10440
    %v10442 = vmul.f32 %v10281, %v10440
    %v10443 = vrcp.pop %v10397
    %v10444 = vmul.f32 %v10283, %v10443
    %v10445 = vmul.f32 %v10285, %v10443
    %v10446 = vmul.f32 %v10399, %v9537
    %v10447 = vmul.f32 %v10400, %v9540
    %v10448 = vmul.f32 %v10402, %v9545
    %v10449 = vmul.f32 %v10403, %v9548
    %v10450 = vmul.f32 %v10405, %v9553
    %v10451 = vmul.f32 %v10406, %v9556
    %v10452 = vmul.f32 %v10408, %v9561
    %v10453 = vmul.f32 %v10409, %v9564
    %v10454 = vmul.f32 %v10411, %v9569
    %v10455 = vmul.f32 %v10412, %v9572
    %v10456 = vmul.f32 %v10414, %v9577
    %v10457 = vmul.f32 %v10415, %v9580
    %v10458 = vmul.f32 %v10417, %v9585
    %v10459 = vmul.f32 %v10418, %v9588
    %v10460 = vmul.f32 %v10420, %v9593
    %v10461 = vmul.f32 %v10421, %v9596
    %v10462 = vmul.f32 %v10423, %v9601
    %v10463 = vmul.f32 %v10424, %v9604
    %v10464 = vmul.f32 %v10426, %v9609
    %v10465 = vmul.f32 %v10427, %v9612
    %v10466 = vmul.f32 %v10429, %v9617
    %v10467 = vmul.f32 %v10430, %v9620
    %v10468 = vmul.f32 %v10432, %v9625
    %v10469 = vmul.f32 %v10433, %v9628
    %v10470 = vmul.f32 %v10435, %v9633
    %v10471 = vmul.f32 %v10436, %v9636
    %v10472 = vmul.f32 %v10438, %v9641
    %v10473 = vmul.f32 %v10439, %v9644
    %v10474 = vmul.f32 %v10441, %v9649
    %v10475 = vmul.f32 %v10442, %v9652
    %v10476 = vmul.f32 %v10444, %v9657
    %v10477 = vmul.f32 %v10445, %v9660
    %v10478 = vadd.f32 %v10446, %v10447
    %v10479 = vrot.slane %v10478, 4
    %v10480 = vadd.f32 %v10478, %v10479
    %v10481 = vrot.slane %v10480, 2
    %v10482 = vadd.f32 %v10480, %v10481
    %v10483 = vrot.slane %v10482, 1
    %v10484 = vadd.f32 %v10482, %v10483
    %v10485 = vadd.f32 %v10448, %v10449
    %v10486 = vrot.slane %v10485, 4
    %v10487 = vadd.f32 %v10485, %v10486
    %v10488 = vrot.slane %v10487, 2
    %v10489 = vadd.f32 %v10487, %v10488
    %v10490 = vrot.slane %v10489, 1
    %v10491 = vadd.f32 %v10489, %v10490
    %v10492 = vadd.f32 %v10450, %v10451
    %v10493 = vrot.slane %v10492, 4
    %v10494 = vadd.f32 %v10492, %v10493
    %v10495 = vrot.slane %v10494, 2
    %v10496 = vadd.f32 %v10494, %v10495
    %v10497 = vrot.slane %v10496, 1
    %v10498 = vadd.f32 %v10496, %v10497
    %v10499 = vadd.f32 %v10452, %v10453
    %v10500 = vrot.slane %v10499, 4
    %v10501 = vadd.f32 %v10499, %v10500
    %v10502 = vrot.slane %v10501, 2
    %v10503 = vadd.f32 %v10501, %v10502
    %v10504 = vrot.slane %v10503, 1
    %v10505 = vadd.f32 %v10503, %v10504
    %v10506 = vadd.f32 %v10454, %v10455
    %v10507 = vrot.slane %v10506, 4
    %v10508 = vadd.f32 %v10506, %v10507
    %v10509 = vrot.slane %v10508, 2
    %v10510 = vadd.f32 %v10508, %v10509
    %v10511 = vrot.slane %v10510, 1
    %v10512 = vadd.f32 %v10510, %v10511
    %v10513 = vadd.f32 %v10456, %v10457
    %v10514 = vrot.slane %v10513, 4
    %v10515 = vadd.f32 %v10513, %v10514
    %v10516 = vrot.slane %v10515, 2
    %v10517 = vadd.f32 %v10515, %v10516
    %v10518 = vrot.slane %v10517, 1
    %v10519 = vadd.f32 %v10517, %v10518
    %v10520 = vadd.f32 %v10458, %v10459
    %v10521 = vrot.slane %v10520, 4
    %v10522 = vadd.f32 %v10520, %v10521
    %v10523 = vrot.slane %v10522, 2
    %v10524 = vadd.f32 %v10522, %v10523
    %v10525 = vrot.slane %v10524, 1
    %v10526 = vadd.f32 %v10524, %v10525
    %v10527 = vadd.f32 %v10460, %v10461
    %v10528 = vrot.slane %v10527, 4
    %v10529 = vadd.f32 %v10527, %v10528
    %v10530 = vrot.slane %v10529, 2
    %v10531 = vadd.f32 %v10529, %v10530
    %v10532 = vrot.slane %v10531, 1
    %v10533 = vadd.f32 %v10531, %v10532
    %v10534 = vadd.f32 %v10462, %v10463
    %v10535 = vrot.slane %v10534, 4
    %v10536 = vadd.f32 %v10534, %v10535
    %v10537 = vrot.slane %v10536, 2
    %v10538 = vadd.f32 %v10536, %v10537
    %v10539 = vrot.slane %v10538, 1
    %v10540 = vadd.f32 %v10538, %v10539
    %v10541 = vadd.f32 %v10464, %v10465
    %v10542 = vrot.slane %v10541, 4
    %v10543 = vadd.f32 %v10541, %v10542
    %v10544 = vrot.slane %v10543, 2
    %v10545 = vadd.f32 %v10543, %v10544
    %v10546 = vrot.slane %v10545, 1
    %v10547 = vadd.f32 %v10545, %v10546
    %v10548 = vadd.f32 %v10466, %v10467
    %v10549 = vrot.slane %v10548, 4
    %v10550 = vadd.f32 %v10548, %v10549
    %v10551 = vrot.slane %v10550, 2
    %v10552 = vadd.f32 %v10550, %v10551
    %v10553 = vrot.slane %v10552, 1
    %v10554 = vadd.f32 %v10552, %v10553
    %v10555 = vadd.f32 %v10468, %v10469
    %v10556 = vrot.slane %v10555, 4
    %v10557 = vadd.f32 %v10555, %v10556
    %v10558 = vrot.slane %v10557, 2
    %v10559 = vadd.f32 %v10557, %v10558
    %v10560 = vrot.slane %v10559, 1
    %v10561 = vadd.f32 %v10559, %v10560
    %v10562 = vadd.f32 %v10470, %v10471
    %v10563 = vrot.slane %v10562, 4
    %v10564 = vadd.f32 %v10562, %v10563
    %v10565 = vrot.slane %v10564, 2
    %v10566 = vadd.f32 %v10564, %v10565
    %v10567 = vrot.slane %v10566, 1
    %v10568 = vadd.f32 %v10566, %v10567
    %v10569 = vadd.f32 %v10472, %v10473
    %v10570 = vrot.slane %v10569, 4
    %v10571 = vadd.f32 %v10569, %v10570
    %v10572 = vrot.slane %v10571, 2
    %v10573 = vadd.f32 %v10571, %v10572
    %v10574 = vrot.slane %v10573, 1
    %v10575 = vadd.f32 %v10573, %v10574
    %v10576 = vadd.f32 %v10474, %v10475
    %v10577 = vrot.slane %v10576, 4
    %v10578 = vadd.f32 %v10576, %v10577
    %v10579 = vrot.slane %v10578, 2
    %v10580 = vadd.f32 %v10578, %v10579
    %v10581 = vrot.slane %v10580, 1
    %v10582 = vadd.f32 %v10580, %v10581
    %v10583 = vadd.f32 %v10476, %v10477
    %v10584 = vrot.slane %v10583, 4
    %v10585 = vadd.f32 %v10583, %v10584
    %v10586 = vrot.slane %v10585, 2
    %v10587 = vadd.f32 %v10585, %v10586
    %v10588 = vrot.slane %v10587, 1
    %v10589 = vadd.f32 %v10587, %v10588
    %vm10606 = vcmask 1041409
    %v10607 = vsel %vm10606, %v10491, %v10484
    %vm10608 = vcmask 1042434
    %v10609 = vsel %vm10608, %v10498, %v10607
    %vm10610 = vcmask 1043459
    %v10611 = vsel %vm10610, %v10505, %v10609
    %vm10612 = vcmask 1044484
    %v10613 = vsel %vm10612, %v10512, %v10611
    %vm10614 = vcmask 1045509
    %v10615 = vsel %vm10614, %v10519, %v10613
    %vm10616 = vcmask 1046534
    %v10617 = vsel %vm10616, %v10526, %v10615
    %vm10618 = vcmask 1047559
    %v10619 = vsel %vm10618, %v10533, %v10617
    %v10620 = vsel %vm10606, %v10547, %v10540
    %v10621 = vsel %vm10608, %v10554, %v10620
    %v10622 = vsel %vm10610, %v10561, %v10621
    %v10623 = vsel %vm10612, %v10568, %v10622
    %v10624 = vsel %vm10614, %v10575, %v10623
    %v10625 = vsel %vm10616, %v10582, %v10624
    %v10626 = vsel %vm10618, %v10589, %v10625
    %10629 = vst [vmem:[#allocation2] sm:$0xff] %v10619
    %10630 = vst [vmem:[#allocation2 + $0x8] sm:$0xff] %v10626
    // Predicated region
    $region42: #{_news_encoder_jit.1} parent=1 // pred_check
      _
    $region43: #{_news_encoder_jit.1} parent=1 // pred_check_branch
      %10632 = sbr.rel (0) target = $region45
    $region44: #{_news_encoder_jit.1} parent=1 // pred_region
      %s10634 = ssub.s32 256, 256
      %10635 = vsyncadd [#allocation3], %s10634
      %s10636 = sshll.u32 [#allocation2], 4
      %s10637 = int_to_ptr.vmem [resolvable:$true] %s10636
      %10642 = dma.vmem_to_hbm [thread:$0]  %s10637, 256, %s10, [#allocation3], 128, 128, 8
    $region45: #{_news_encoder_jit.1} parent=1 // pred_fallthru
      _
    // Predicated region
    $region46: #{_news_encoder_jit.1} parent=1 // pred_check
      _
    $region47: #{_news_encoder_jit.1} parent=1 // pred_check_branch
      %10644 = sbr.rel (0) target = $region49
    $region48: #{_news_encoder_jit.1} parent=1 // pred_region
      %10645 = dma.done [#allocation3], 256
    $region49: #{_news_encoder_jit.1} parent=1 // pred_fallthru
      _
    %10646 = vsyncpa [#allocation3], 1

</llo_original>
